<compile_context>
chip_gen: v5e
topology: v5e:2x2
jax: 0.10.0
libtpu: 0.0.40
codegen_flags: <defaults>
</compile_context>

<pallas_src>
import functools

import numpy as np
import jax
import jax.numpy as jnp
from jax.experimental import pallas as pl
from jax.experimental.pallas import tpu as pltpu


def _round_up(x, m):
    return ((x + m - 1) // m) * m


def _cdiv(a, b):
    return (a + b - 1) // b


# ----------------------------- Pallas kernels ------------------------------

def _mm_bias_act_kernel(a_ref, w_ref, b_ref, o_ref, *, act):
    """One M-tile of act(A @ W + b); bf16 inputs, f32 accumulate/epilogue."""
    acc = jnp.dot(a_ref[...], w_ref[...], preferred_element_type=jnp.float32)
    acc = acc + b_ref[...]
    if act == "relu":
        acc = jnp.maximum(acc, 0.0)
    o_ref[...] = acc.astype(o_ref.dtype)


def matmul_bias_act(a, w, b, act="none", max_tm=512):
    """a: (M, K) bf16, w: (K, N) bf16, b: (N,) f32 -> (M, N) bf16."""
    M, K = a.shape
    N = w.shape[1]
    nsteps = max(1, _cdiv(M, max_tm))
    if nsteps == 1 and M >= 256:
        nsteps = 2                        # keep both v7x TensorCores busy
    tm = _round_up(_cdiv(M, nsteps), 16)  # adaptive tile, bf16-sublane aligned
    Mp = tm * nsteps
    if Mp != M:
        a = jnp.pad(a, ((0, Mp - M), (0, 0)))
    b2 = b.reshape(1, N).astype(jnp.float32)

    out = pl.pallas_call(
        functools.partial(_mm_bias_act_kernel, act=act),
        out_shape=jax.ShapeDtypeStruct((Mp, N), jnp.bfloat16),
        grid=(nsteps,),
        in_specs=[pl.BlockSpec((tm, K), lambda i: (i, 0)),
                  pl.BlockSpec((K, N), lambda i: (0, 0)),
                  pl.BlockSpec((1, N), lambda i: (0, 0))],
        out_specs=pl.BlockSpec((tm, N), lambda i: (i, 0)),
        compiler_params=pltpu.CompilerParams(dimension_semantics=("parallel",)),
    )(a, w, b2)
    return out[:M] if Mp != M else out


def _block_kernel(x_ref, mask_ref, w_pre_ref, b_pre_ref, w33_ref, b33_ref,
                  w_post_ref, b_post_ref, o_ref, y_scr,
                  *, Wp, m_out, act3, has_post, masked):
    """Fused residual block for one image.

        y = relu(x @ w_pre + b_pre)                       (1x1 conv; padding ring
                                                           re-zeroed via mask)
        z = act3(sum_t y[s_t : s_t+m_out] @ w33[t] + b33) (3x3 conv, shift trick)
        o = z @ w_post + b_post + x[centre-tap slice]     (1x1 conv + residual,
                                                           only if has_post)

    x is the flattened (Hp*Wp, C) zero-padded NHWC image; output rows live in the
    same flat coordinate system (Wp-Wo garbage columns stripped by the caller).
    """
    C = w_pre_ref.shape[0]
    x = x_ref[0]                                           # (L, C) bf16

    # pre 1x1 conv + relu
    y = jnp.dot(x, w_pre_ref[...], preferred_element_type=jnp.float32)
    y = jnp.maximum(y + b_pre_ref[...], 0.0)
    if masked:
        y = y * mask_ref[...]                              # zero the padding ring
    y_scr[...] = y.astype(y_scr.dtype)                     # bf16 staging in VMEM

    # 3x3 conv: 9 shifted contiguous-row matmuls, f32 accumulation
    acc = jnp.zeros((m_out, C), jnp.float32) + b33_ref[...]
    for t in range(9):
        di, dj = t // 3, t % 3
        s = di * Wp + dj
        acc = acc + jnp.dot(y_scr[s:s + m_out, :], w33_ref[t],
                            preferred_element_type=jnp.float32)
    if act3 == "relu":
        acc = jnp.maximum(acc, 0.0)

    if has_post:
        # post 1x1 conv + residual (residual == input at the centre tap)
        z = jnp.dot(acc.astype(y_scr.dtype), w_post_ref[...],
                    preferred_element_type=jnp.float32)
        res = x_ref[0, Wp + 1:Wp + 1 + m_out, :].astype(jnp.float32)
        acc = z + b_post_ref[...] + res

    o_ref[0] = acc.astype(o_ref.dtype)


def fused_block(x, w_pre, b_pre, w33, b33, w_post=None, b_post=None,
                *, pad, act3):
    """x: (N, H, W, C) bf16 -> (N, Ho, Wo, C) bf16 (see _block_kernel)."""
    N, H, W, C = x.shape
    Hp, Wp = H + 2 * pad, W + 2 * pad
    Ho, Wo = Hp - 2, Wp - 2
    L = Hp * Wp
    m_out = (Ho - 1) * Wp + Wo
    has_post = w_post is not None
    masked = pad > 0

    xp = jnp.pad(x, ((0, 0), (pad, pad), (pad, pad), (0, 0))) if pad else x
    x_flat = xp.reshape(N, L, C)

    # static 0/1 interior mask in the flat (padded) row space
    r = np.arange(L)
    interior = ((r // Wp >= pad) & (r // Wp < Hp - pad) &
                (r % Wp >= pad) & (r % Wp < Wp - pad))
    mask = jnp.asarray(interior.astype(np.float32).reshape(L, 1))

    if not has_post:
        w_post = jnp.zeros((C, C), jnp.bfloat16)
        b_post = jnp.zeros((C,), jnp.float32)

    out = pl.pallas_call(
        functools.partial(_block_kernel, Wp=Wp, m_out=m_out, act3=act3,
                          has_post=has_post, masked=masked),
        out_shape=jax.ShapeDtypeStruct((N, m_out, C), jnp.bfloat16),
        grid=(N,),
        in_specs=[
            pl.BlockSpec((1, L, C), lambda n: (n, 0, 0)),
            pl.BlockSpec((L, 1), lambda n: (0, 0)),
            pl.BlockSpec((C, C), lambda n: (0, 0)),
            pl.BlockSpec((1, C), lambda n: (0, 0)),
            pl.BlockSpec((9, C, C), lambda n: (0, 0, 0)),
            pl.BlockSpec((1, C), lambda n: (0, 0)),
            pl.BlockSpec((C, C), lambda n: (0, 0)),
            pl.BlockSpec((1, C), lambda n: (0, 0)),
        ],
        out_specs=pl.BlockSpec((1, m_out, C), lambda n: (n, 0, 0)),
        scratch_shapes=[pltpu.VMEM((L, C), jnp.bfloat16)],
        compiler_params=pltpu.CompilerParams(dimension_semantics=("parallel",)),
    )(x_flat, mask,
      w_pre, b_pre.reshape(1, C).astype(jnp.float32),
      w33, b33.reshape(1, C).astype(jnp.float32),
      w_post, b_post.reshape(1, C).astype(jnp.float32))

    # strip the Wp-Wo garbage columns of the flat row layout
    out = jnp.pad(out, ((0, 0), (0, Ho * Wp - m_out), (0, 0)))
    return out.reshape(N, Ho, Wp, C)[:, :, :Wo, :]


# ------------------------------- JAX glue ------------------------------------

def conv1_im2col(x, w, b, *, stride=3):
    """7x7/s3 conv: im2col (XLA, bf16) + fused Pallas matmul+bias+relu."""
    Cout, Cin, kh, kw = w.shape
    N, H, W, _ = x.shape
    Ho = (H - kh) // stride + 1
    Wo = (W - kw) // stride + 1
    slabs = []
    for di in range(kh):
        for dj in range(kw):
            slabs.append(x[:, di:di + stride * (Ho - 1) + 1:stride,
                           dj:dj + stride * (Wo - 1) + 1:stride, :])
    patches = jnp.stack(slabs, axis=3)                    # (N, Ho, Wo, kh*kw, Cin)
    K = kh * kw * Cin
    Kp = _round_up(K, 128)                                # lane-align contraction
    a = patches.reshape(N * Ho * Wo, K)
    a = jnp.pad(a, ((0, 0), (0, Kp - K)))
    wm = jnp.transpose(w, (2, 3, 1, 0)).reshape(K, Cout).astype(jnp.bfloat16)
    wm = jnp.pad(wm, ((0, Kp - K), (0, 0)))
    y = matmul_bias_act(a, wm, b, act="relu")
    return y.reshape(N, Ho, Wo, Cout)


def maxpool2d(x, k, stride):
    N, H, W, C = x.shape
    Ho = (H - k) // stride + 1
    Wo = (W - k) // stride + 1
    out = None
    for di in range(k):
        for dj in range(k):
            s = x[:, di:di + stride * (Ho - 1) + 1:stride,
                  dj:dj + stride * (Wo - 1) + 1:stride, :]
            out = s if out is None else jnp.maximum(out, s)
    return out


def avgpool2x2(x):
    N, H, W, C = x.shape
    Ho, Wo = H // 2, W // 2
    x = x[:, :2 * Ho, :2 * Wo, :].astype(jnp.float32)
    x = x.reshape(N, Ho, 2, Wo, 2, C).mean(axis=(2, 4))
    return x.astype(jnp.bfloat16)


def _elu(x):
    # clamp inside the expm1 branch so a future backward pass stays NaN-free
    return jnp.where(x > 0, x, jnp.expm1(jnp.minimum(x, 0.0)))


def _softplus(x):
    return jnp.logaddexp(x, 0.0)


# ------------------------------ Model forward --------------------------------

def cnn_forward(x_nhwc, p):
    xb = x_nhwc.astype(jnp.bfloat16)
    cn = p["conv1_w"].shape[0]

    y = conv1_im2col(xb, p["conv1_w"], p["conv1_b"])        # (N, 25, 25, 64)
    bo = maxpool2d(y, 3, 2)                                 # (N, 12, 12, 64)

    w2 = p["conv2_w"][:, :, 0, 0].T.astype(jnp.bfloat16)    # (Cin, Cout)
    b2 = p["conv2_b"]
    w3 = jnp.transpose(p["conv3_w"], (2, 3, 1, 0)).reshape(9, cn, cn).astype(jnp.bfloat16)
    b3 = p["conv3_b"]
    w4 = jnp.transpose(p["conv4_w"], (2, 3, 1, 0)).reshape(9, cn, cn).astype(jnp.bfloat16)
    b4 = p["conv4_b"]

    # block 1: relu(conv2) -> relu(conv3, pad 1) -> conv2 + residual  (one kernel)
    x = fused_block(bo, w2, b2, w3, b3, w2, b2, pad=1, act3="relu")
    bo = avgpool2x2(x)                                      # (N, 6, 6, 64)
    # block 2
    x = fused_block(bo, w2, b2, w3, b3, w2, b2, pad=1, act3="relu")
    bo = avgpool2x2(x)                                      # (N, 3, 3, 64)
    # block 3: relu(conv2) -> conv4 (3x3, no pad, no act)             (one kernel)
    x = fused_block(bo, w2, b2, w4, b4, pad=0, act3="none") # (N, 1, 1, 64)

    # global average pool + tiny FC tail in plain XLA (per the perf review:
    # padding 2-4 rows to a 128-row pallas_call costs more than the FLOPs)
    feat = jnp.mean(x.astype(jnp.float32), axis=(1, 2))     # (N, 64)
    h = _elu(feat @ p["cnn_fc1_w"].T + p["cnn_fc1_b"])      # (N, 32)
    return h @ p["cnn_fcout_w"].T + p["cnn_fcout_b"]        # (N, 6)


def combine_forward(x, p):
    # x: (B, T, C, H, W) -- PyTorch NCHW frames
    B, T, C, H, W = x.shape
    c_in = jnp.transpose(x.reshape(B * T, C, H, W), (0, 2, 3, 1))    # -> NHWC
    c_out = cnn_forward(c_in, p)                                     # (B*T, 6)
    h = _elu(c_out.reshape(B, -1) @ p["fc1_w"].T + p["fc1_b"])       # (B, 10)
    return _softplus(h @ p["fc2_w"].T + p["fc2_b"])                  # (B, 1)


# ------------------------------ Params (synthetic) ----------------------------

def init_params(key, channel_num=64, cnn_feat_out=6, frames=2):
    ks = jax.random.split(key, 16)

    def w(k, shape, scale=0.05):
        return (scale * jax.random.normal(k, shape)).astype(jnp.float32)

    return {
        "conv1_w": w(ks[0], (channel_num, 3, 7, 7)),
        "conv1_b": w(ks[1], (channel_num,)),
        "conv2_w": w(ks[2], (channel_num, channel_num, 1, 1)),
        "conv2_b": w(ks[3], (channel_num,)),
        "conv3_w": w(ks[4], (channel_num, channel_num, 3, 3)),
        "conv3_b": w(ks[5], (channel_num,)),
        "conv4_w": w(ks[6], (channel_num, channel_num, 3, 3)),
        "conv4_b": w(ks[7], (channel_num,)),
        "cnn_fc1_w": w(ks[8], (channel_num // 2, channel_num)),
        "cnn_fc1_b": w(ks[9], (channel_num // 2,)),
        "cnn_fcout_w": w(ks[10], (cnn_feat_out, channel_num // 2)),
        "cnn_fcout_b": w(ks[11], (cnn_feat_out,)),
        "fc1_w": w(ks[12], (10, cnn_feat_out * frames)),
        "fc1_b": w(ks[13], (10,)),
        "fc2_w": w(ks[14], (1, 10)),
        "fc2_b": w(ks[15], (1,)),
    }
    # NOTE: conv_out / maxpool2 / avgpool1 exist in the PyTorch module but are
    # unused in its forward(), so they have no parameters here.


if __name__ == "__main__":
    frames = 2
    key = jax.random.PRNGKey(0)
    kx, kp = jax.random.split(key)
    # H = W = 79 is the smallest square spatial size that survives the
    # conv1(s=3,k=7) -> maxpool(3,2) -> 2x avgpool(2,2) -> conv4(k=3) chain.
    x = jax.random.normal(kx, (2, frames, 3, 79, 79), dtype=jnp.float32)
    params = init_params(kp, frames=frames)
    out = jax.block_until_ready(jax.jit(combine_forward)(x, params))
    assert out.shape == (2, 1)
    assert bool(jnp.all(jnp.isfinite(out)))
    print("KERNEL_OK")
</pallas_src>

<mosaic_0001>
module attributes {stable_mosaic.version = 11 : i64} {
  func.func @_mm_bias_act_kernel(%arg0: i32, %arg1: memref<512x256xbf16, #tpu.memory_space<vmem>>, %arg2: memref<256x64xbf16, #tpu.memory_space<vmem>>, %arg3: memref<1x64xf32, #tpu.memory_space<vmem>>, %arg4: memref<512x64xbf16, #tpu.memory_space<vmem>>) attributes {dimension_semantics = [#tpu.dimension_semantics<parallel>], iteration_bounds = array<i64: 5>, scalar_prefetch = 0 : i64, scratch_operands = 0 : i64, tpu.core_type = #tpu.core_type<tc>, window_params = [{transform_indices = @transform_0, window_bounds = array<i64: 512, 256>}, {pipeline_mode = #tpu.pipeline_mode<synchronous>, transform_indices = @transform_1, window_bounds = array<i64: 256, 64>}, {pipeline_mode = #tpu.pipeline_mode<synchronous>, transform_indices = @transform_2, window_bounds = array<i64: 1, 64>}, {transform_indices = @transform_3, window_bounds = array<i64: 512, 64>}]} {
    %c0 = arith.constant 0 : index
    %c0_0 = arith.constant 0 : index
    %0 = vector.load %arg1[%c0, %c0_0] : memref<512x256xbf16, #tpu.memory_space<vmem>>, vector<512x256xbf16>
    %c0_1 = arith.constant 0 : index
    %c0_2 = arith.constant 0 : index
    %1 = vector.load %arg2[%c0_1, %c0_2] : memref<256x64xbf16, #tpu.memory_space<vmem>>, vector<256x64xbf16>
    %cst = arith.constant dense<0.000000e+00> : vector<512x64xf32>
    %2 = tpu.matmul %0, %1, %cst {dimension_numbers = #tpu.dot_dimension_numbers<[1], [0], [0], [1], [0, 0, 1, 1], [], []>} : vector<512x256xbf16>, vector<256x64xbf16>, vector<512x64xf32> -> vector<512x64xf32>
    %c0_3 = arith.constant 0 : index
    %c0_4 = arith.constant 0 : index
    %3 = vector.load %arg3[%c0_3, %c0_4] : memref<1x64xf32, #tpu.memory_space<vmem>>, vector<1x64xf32>
    %4 = vector.broadcast %3 : vector<1x64xf32> to vector<512x64xf32>
    %5 = arith.addf %2, %4 : vector<512x64xf32>
    %cst_5 = arith.constant 0.000000e+00 : f32
    %6 = vector.broadcast %cst_5 : f32 to vector<512x64xf32>
    %7 = arith.maximumf %5, %6 : vector<512x64xf32>
    %8 = arith.truncf %7 : vector<512x64xf32> to vector<512x64xbf16>
    %c0_6 = arith.constant 0 : index
    %c0_7 = arith.constant 0 : index
    %9 = vector.load %arg4[%c0_6, %c0_7] : memref<512x64xbf16, #tpu.memory_space<vmem>>, vector<512x64xbf16>
    tpu.vector_store %arg4[%c0_6, %c0_7], %8 {strides = array<i32>} : memref<512x64xbf16, #tpu.memory_space<vmem>>, vector<512x64xbf16>,
    return
  }
  func.func @transform_0(%arg0: i32) -> (i32, i32) {
    %c0_i32 = arith.constant 0 : i32
    %c0_i32_0 = arith.constant 0 : i32
    return %arg0, %c0_i32 : i32, i32
  }
  func.func @transform_1(%arg0: i32) -> (i32, i32) {
    %c0_i32 = arith.constant 0 : i32
    %c0_i32_0 = arith.constant 0 : i32
    %c0_i32_1 = arith.constant 0 : i32
    return %c0_i32, %c0_i32_0 : i32, i32
  }
  func.func @transform_2(%arg0: i32) -> (i32, i32) {
    %c0_i32 = arith.constant 0 : i32
    %c0_i32_0 = arith.constant 0 : i32
    %c0_i32_1 = arith.constant 0 : i32
    return %c0_i32, %c0_i32_0 : i32, i32
  }
  func.func @transform_3(%arg0: i32) -> (i32, i32) {
    %c0_i32 = arith.constant 0 : i32
    %c0_i32_0 = arith.constant 0 : i32
    return %arg0, %c0_i32 : i32, i32
  }
}

module attributes {stable_mosaic.version = 11 : i64} {
  func.func @_block_kernel(%arg0: i32, %arg1: memref<1x196x64xbf16, #tpu.memory_space<vmem>>, %arg2: memref<196x1xf32, #tpu.memory_space<vmem>>, %arg3: memref<64x64xbf16, #tpu.memory_space<vmem>>, %arg4: memref<1x64xf32, #tpu.memory_space<vmem>>, %arg5: memref<9x64x64xbf16, #tpu.memory_space<vmem>>, %arg6: memref<1x64xf32, #tpu.memory_space<vmem>>, %arg7: memref<64x64xbf16, #tpu.memory_space<vmem>>, %arg8: memref<1x64xf32, #tpu.memory_space<vmem>>, %arg9: memref<1x166x64xbf16, #tpu.memory_space<vmem>>, %arg10: memref<196x64xbf16, #tpu.memory_space<vmem>>) attributes {dimension_semantics = [#tpu.dimension_semantics<parallel>], iteration_bounds = array<i64: 4>, scalar_prefetch = 0 : i64, scratch_operands = 1 : i64, tpu.core_type = #tpu.core_type<tc>, window_params = [{transform_indices = @transform_0, window_bounds = array<i64: 1, 196, 64>}, {pipeline_mode = #tpu.pipeline_mode<synchronous>, transform_indices = @transform_1, window_bounds = array<i64: 196, 1>}, {pipeline_mode = #tpu.pipeline_mode<synchronous>, transform_indices = @transform_2, window_bounds = array<i64: 64, 64>}, {pipeline_mode = #tpu.pipeline_mode<synchronous>, transform_indices = @transform_3, window_bounds = array<i64: 1, 64>}, {pipeline_mode = #tpu.pipeline_mode<synchronous>, transform_indices = @transform_4, window_bounds = array<i64: 9, 64, 64>}, {pipeline_mode = #tpu.pipeline_mode<synchronous>, transform_indices = @transform_5, window_bounds = array<i64: 1, 64>}, {pipeline_mode = #tpu.pipeline_mode<synchronous>, transform_indices = @transform_6, window_bounds = array<i64: 64, 64>}, {pipeline_mode = #tpu.pipeline_mode<synchronous>, transform_indices = @transform_7, window_bounds = array<i64: 1, 64>}, {transform_indices = @transform_8, window_bounds = array<i64: 1, 166, 64>}]} {
    %c0 = arith.constant 0 : index
    %c0_0 = arith.constant 0 : index
    %c0_1 = arith.constant 0 : index
    %0 = vector.load %arg1[%c0, %c0_0, %c0_1] : memref<1x196x64xbf16, #tpu.memory_space<vmem>>, vector<1x196x64xbf16>
    %1 = vector.shape_cast %0 : vector<1x196x64xbf16> to vector<196x64xbf16>
    %c0_2 = arith.constant 0 : index
    %c0_3 = arith.constant 0 : index
    %2 = vector.load %arg3[%c0_2, %c0_3] : memref<64x64xbf16, #tpu.memory_space<vmem>>, vector<64x64xbf16>
    %cst = arith.constant dense<0.000000e+00> : vector<196x64xf32>
    %3 = tpu.matmul %1, %2, %cst {dimension_numbers = #tpu.dot_dimension_numbers<[1], [0], [0], [1], [0, 0, 1, 1], [], []>} : vector<196x64xbf16>, vector<64x64xbf16>, vector<196x64xf32> -> vector<196x64xf32>
    %c0_4 = arith.constant 0 : index
    %c0_5 = arith.constant 0 : index
    %4 = vector.load %arg4[%c0_4, %c0_5] : memref<1x64xf32, #tpu.memory_space<vmem>>, vector<1x64xf32>
    %5 = vector.broadcast %4 : vector<1x64xf32> to vector<196x64xf32>
    %6 = arith.addf %3, %5 : vector<196x64xf32>
    %cst_6 = arith.constant 0.000000e+00 : f32
    %7 = vector.broadcast %cst_6 : f32 to vector<196x64xf32>
    %8 = arith.maximumf %6, %7 : vector<196x64xf32>
    %c0_7 = arith.constant 0 : index
    %c0_8 = arith.constant 0 : index
    %9 = vector.load %arg2[%c0_7, %c0_8] : memref<196x1xf32, #tpu.memory_space<vmem>>, vector<196x1xf32>
    %10 = vector.broadcast %9 : vector<196x1xf32> to vector<196x64xf32>
    %11 = arith.mulf %8, %10 : vector<196x64xf32>
    %12 = arith.truncf %11 : vector<196x64xf32> to vector<196x64xbf16>
    %c0_9 = arith.constant 0 : index
    %c0_10 = arith.constant 0 : index
    %13 = vector.load %arg10[%c0_9, %c0_10] : memref<196x64xbf16, #tpu.memory_space<vmem>>, vector<196x64xbf16>
    tpu.vector_store %arg10[%c0_9, %c0_10], %12 {strides = array<i32>} : memref<196x64xbf16, #tpu.memory_space<vmem>>, vector<196x64xbf16>,
    %cst_11 = arith.constant 0.000000e+00 : f32
    %14 = vector.broadcast %cst_11 : f32 to vector<166x64xf32>
    %c0_12 = arith.constant 0 : index
    %c0_13 = arith.constant 0 : index
    %15 = vector.load %arg6[%c0_12, %c0_13] : memref<1x64xf32, #tpu.memory_space<vmem>>, vector<1x64xf32>
    %16 = vector.broadcast %15 : vector<1x64xf32> to vector<166x64xf32>
    %17 = arith.addf %14, %16 : vector<166x64xf32>
    %c0_14 = arith.constant 0 : index
    %c0_15 = arith.constant 0 : index
    %18 = vector.load %arg10[%c0_14, %c0_15] : memref<196x64xbf16, #tpu.memory_space<vmem>>, vector<166x64xbf16>
    %c0_16 = arith.constant 0 : index
    %c0_17 = arith.constant 0 : index
    %c0_18 = arith.constant 0 : index
    %19 = vector.load %arg5[%c0_16, %c0_17, %c0_18] : memref<9x64x64xbf16, #tpu.memory_space<vmem>>, vector<1x64x64xbf16>
    %20 = vector.shape_cast %19 : vector<1x64x64xbf16> to vector<64x64xbf16>
    %cst_19 = arith.constant dense<0.000000e+00> : vector<166x64xf32>
    %21 = tpu.matmul %18, %20, %cst_19 {dimension_numbers = #tpu.dot_dimension_numbers<[1], [0], [0], [1], [0, 0, 1, 1], [], []>} : vector<166x64xbf16>, vector<64x64xbf16>, vector<166x64xf32> -> vector<166x64xf32>
    %22 = arith.addf %17, %21 : vector<166x64xf32>
    %c1 = arith.constant 1 : index
    %c0_20 = arith.constant 0 : index
    %23 = vector.load %arg10[%c1, %c0_20] : memref<196x64xbf16, #tpu.memory_space<vmem>>, vector<166x64xbf16>
    %c1_21 = arith.constant 1 : index
    %c0_22 = arith.constant 0 : index
    %c0_23 = arith.constant 0 : index
    %24 = vector.load %arg5[%c1_21, %c0_22, %c0_23] : memref<9x64x64xbf16, #tpu.memory_space<vmem>>, vector<1x64x64xbf16>
    %25 = vector.shape_cast %24 : vector<1x64x64xbf16> to vector<64x64xbf16>
    %cst_24 = arith.constant dense<0.000000e+00> : vector<166x64xf32>
    %26 = tpu.matmul %23, %25, %cst_24 {dimension_numbers = #tpu.dot_dimension_numbers<[1], [0], [0], [1], [0, 0, 1, 1], [], []>} : vector<166x64xbf16>, vector<64x64xbf16>, vector<166x64xf32> -> vector<166x64xf32>
    %27 = arith.addf %22, %26 : vector<166x64xf32>
    %c2 = arith.constant 2 : index
    %c0_25 = arith.constant 0 : index
    %28 = vector.load %arg10[%c2, %c0_25] : memref<196x64xbf16, #tpu.memory_space<vmem>>, vector<166x64xbf16>
    %c2_26 = arith.constant 2 : index
    %c0_27 = arith.constant 0 : index
    %c0_28 = arith.constant 0 : index
    %29 = vector.load %arg5[%c2_26, %c0_27, %c0_28] : memref<9x64x64xbf16, #tpu.memory_space<vmem>>, vector<1x64x64xbf16>
    %30 = vector.shape_cast %29 : vector<1x64x64xbf16> to vector<64x64xbf16>
    %cst_29 = arith.constant dense<0.000000e+00> : vector<166x64xf32>
    %31 = tpu.matmul %28, %30, %cst_29 {dimension_numbers = #tpu.dot_dimension_numbers<[1], [0], [0], [1], [0, 0, 1, 1], [], []>} : vector<166x64xbf16>, vector<64x64xbf16>, vector<166x64xf32> -> vector<166x64xf32>
    %32 = arith.addf %27, %31 : vector<166x64xf32>
    %c14 = arith.constant 14 : index
    %c0_30 = arith.constant 0 : index
    %33 = vector.load %arg10[%c14, %c0_30] : memref<196x64xbf16, #tpu.memory_space<vmem>>, vector<166x64xbf16>
    %c3 = arith.constant 3 : index
    %c0_31 = arith.constant 0 : index
    %c0_32 = arith.constant 0 : index
    %34 = vector.load %arg5[%c3, %c0_31, %c0_32] : memref<9x64x64xbf16, #tpu.memory_space<vmem>>, vector<1x64x64xbf16>
    %35 = vector.shape_cast %34 : vector<1x64x64xbf16> to vector<64x64xbf16>
    %cst_33 = arith.constant dense<0.000000e+00> : vector<166x64xf32>
    %36 = tpu.matmul %33, %35, %cst_33 {dimension_numbers = #tpu.dot_dimension_numbers<[1], [0], [0], [1], [0, 0, 1, 1], [], []>} : vector<166x64xbf16>, vector<64x64xbf16>, vector<166x64xf32> -> vector<166x64xf32>
    %37 = arith.addf %32, %36 : vector<166x64xf32>
    %c15 = arith.constant 15 : index
    %c0_34 = arith.constant 0 : index
    %38 = vector.load %arg10[%c15, %c0_34] : memref<196x64xbf16, #tpu.memory_space<vmem>>, vector<166x64xbf16>
    %c4 = arith.constant 4 : index
    %c0_35 = arith.constant 0 : index
    %c0_36 = arith.constant 0 : index
    %39 = vector.load %arg5[%c4, %c0_35, %c0_36] : memref<9x64x64xbf16, #tpu.memory_space<vmem>>, vector<1x64x64xbf16>
    %40 = vector.shape_cast %39 : vector<1x64x64xbf16> to vector<64x64xbf16>
    %cst_37 = arith.constant dense<0.000000e+00> : vector<166x64xf32>
    %41 = tpu.matmul %38, %40, %cst_37 {dimension_numbers = #tpu.dot_dimension_numbers<[1], [0], [0], [1], [0, 0, 1, 1], [], []>} : vector<166x64xbf16>, vector<64x64xbf16>, vector<166x64xf32> -> vector<166x64xf32>
    %42 = arith.addf %37, %41 : vector<166x64xf32>
    %c16 = arith.constant 16 : index
    %c0_38 = arith.constant 0 : index
    %43 = vector.load %arg10[%c16, %c0_38] : memref<196x64xbf16, #tpu.memory_space<vmem>>, vector<166x64xbf16>
    %c5 = arith.constant 5 : index
    %c0_39 = arith.constant 0 : index
    %c0_40 = arith.constant 0 : index
    %44 = vector.load %arg5[%c5, %c0_39, %c0_40] : memref<9x64x64xbf16, #tpu.memory_space<vmem>>, vector<1x64x64xbf16>
    %45 = vector.shape_cast %44 : vector<1x64x64xbf16> to vector<64x64xbf16>
    %cst_41 = arith.constant dense<0.000000e+00> : vector<166x64xf32>
    %46 = tpu.matmul %43, %45, %cst_41 {dimension_numbers = #tpu.dot_dimension_numbers<[1], [0], [0], [1], [0, 0, 1, 1], [], []>} : vector<166x64xbf16>, vector<64x64xbf16>, vector<166x64xf32> -> vector<166x64xf32>
    %47 = arith.addf %42, %46 : vector<166x64xf32>
    %c28 = arith.constant 28 : index
    %c0_42 = arith.constant 0 : index
    %48 = vector.load %arg10[%c28, %c0_42] : memref<196x64xbf16, #tpu.memory_space<vmem>>, vector<166x64xbf16>
    %c6 = arith.constant 6 : index
    %c0_43 = arith.constant 0 : index
    %c0_44 = arith.constant 0 : index
    %49 = vector.load %arg5[%c6, %c0_43, %c0_44] : memref<9x64x64xbf16, #tpu.memory_space<vmem>>, vector<1x64x64xbf16>
    %50 = vector.shape_cast %49 : vector<1x64x64xbf16> to vector<64x64xbf16>
    %cst_45 = arith.constant dense<0.000000e+00> : vector<166x64xf32>
    %51 = tpu.matmul %48, %50, %cst_45 {dimension_numbers = #tpu.dot_dimension_numbers<[1], [0], [0], [1], [0, 0, 1, 1], [], []>} : vector<166x64xbf16>, vector<64x64xbf16>, vector<166x64xf32> -> vector<166x64xf32>
    %52 = arith.addf %47, %51 : vector<166x64xf32>
    %c29 = arith.constant 29 : index
    %c0_46 = arith.constant 0 : index
    %53 = vector.load %arg10[%c29, %c0_46] : memref<196x64xbf16, #tpu.memory_space<vmem>>, vector<166x64xbf16>
    %c7 = arith.constant 7 : index
    %c0_47 = arith.constant 0 : index
    %c0_48 = arith.constant 0 : index
    %54 = vector.load %arg5[%c7, %c0_47, %c0_48] : memref<9x64x64xbf16, #tpu.memory_space<vmem>>, vector<1x64x64xbf16>
    %55 = vector.shape_cast %54 : vector<1x64x64xbf16> to vector<64x64xbf16>
    %cst_49 = arith.constant dense<0.000000e+00> : vector<166x64xf32>
    %56 = tpu.matmul %53, %55, %cst_49 {dimension_numbers = #tpu.dot_dimension_numbers<[1], [0], [0], [1], [0, 0, 1, 1], [], []>} : vector<166x64xbf16>, vector<64x64xbf16>, vector<166x64xf32> -> vector<166x64xf32>
    %57 = arith.addf %52, %56 : vector<166x64xf32>
    %c30 = arith.constant 30 : index
    %c0_50 = arith.constant 0 : index
    %58 = vector.load %arg10[%c30, %c0_50] : memref<196x64xbf16, #tpu.memory_space<vmem>>, vector<166x64xbf16>
    %c8 = arith.constant 8 : index
    %c0_51 = arith.constant 0 : index
    %c0_52 = arith.constant 0 : index
    %59 = vector.load %arg5[%c8, %c0_51, %c0_52] : memref<9x64x64xbf16, #tpu.memory_space<vmem>>, vector<1x64x64xbf16>
    %60 = vector.shape_cast %59 : vector<1x64x64xbf16> to vector<64x64xbf16>
    %cst_53 = arith.constant dense<0.000000e+00> : vector<166x64xf32>
    %61 = tpu.matmul %58, %60, %cst_53 {dimension_numbers = #tpu.dot_dimension_numbers<[1], [0], [0], [1], [0, 0, 1, 1], [], []>} : vector<166x64xbf16>, vector<64x64xbf16>, vector<166x64xf32> -> vector<166x64xf32>
    %62 = arith.addf %57, %61 : vector<166x64xf32>
    %cst_54 = arith.constant 0.000000e+00 : f32
    %63 = vector.broadcast %cst_54 : f32 to vector<166x64xf32>
    %64 = arith.maximumf %62, %63 : vector<166x64xf32>
    %65 = arith.truncf %64 : vector<166x64xf32> to vector<166x64xbf16>
    %c0_55 = arith.constant 0 : index
    %c0_56 = arith.constant 0 : index
    %66 = vector.load %arg7[%c0_55, %c0_56] : memref<64x64xbf16, #tpu.memory_space<vmem>>, vector<64x64xbf16>
    %cst_57 = arith.constant dense<0.000000e+00> : vector<166x64xf32>
    %67 = tpu.matmul %65, %66, %cst_57 {dimension_numbers = #tpu.dot_dimension_numbers<[1], [0], [0], [1], [0, 0, 1, 1], [], []>} : vector<166x64xbf16>, vector<64x64xbf16>, vector<166x64xf32> -> vector<166x64xf32>
    %c0_58 = arith.constant 0 : index
    %c15_59 = arith.constant 15 : index
    %c0_60 = arith.constant 0 : index
    %68 = vector.load %arg1[%c0_58, %c15_59, %c0_60] : memref<1x196x64xbf16, #tpu.memory_space<vmem>>, vector<1x166x64xbf16>
    %69 = vector.shape_cast %68 : vector<1x166x64xbf16> to vector<166x64xbf16>
    %70 = arith.extf %69 : vector<166x64xbf16> to vector<166x64xf32>
    %c0_61 = arith.constant 0 : index
    %c0_62 = arith.constant 0 : index
    %71 = vector.load %arg8[%c0_61, %c0_62] : memref<1x64xf32, #tpu.memory_space<vmem>>, vector<1x64xf32>
    %72 = vector.broadcast %71 : vector<1x64xf32> to vector<166x64xf32>
    %73 = arith.addf %67, %72 : vector<166x64xf32>
    %74 = arith.addf %73, %70 : vector<166x64xf32>
    %75 = arith.truncf %74 : vector<166x64xf32> to vector<166x64xbf16>
    %c0_63 = arith.constant 0 : index
    %c0_64 = arith.constant 0 : index
    %c0_65 = arith.constant 0 : index
    %76 = vector.load %arg9[%c0_63, %c0_64, %c0_65] : memref<1x166x64xbf16, #tpu.memory_space<vmem>>, vector<1x166x64xbf16>
    %77 = vector.shape_cast %76 : vector<1x166x64xbf16> to vector<166x64xbf16>
    %78 = vector.shape_cast %75 : vector<166x64xbf16> to vector<1x166x64xbf16>
    tpu.vector_store %arg9[%c0_63, %c0_64, %c0_65], %78 {strides = array<i32>} : memref<1x166x64xbf16, #tpu.memory_space<vmem>>, vector<1x166x64xbf16>,
    return
  }
  func.func @transform_0(%arg0: i32) -> (i32, i32, i32) {
    %c0_i32 = arith.constant 0 : i32
    %c0_i32_0 = arith.constant 0 : i32
    %c0_i32_1 = arith.constant 0 : i32
    return %arg0, %c0_i32, %c0_i32_0 : i32, i32, i32
  }
  func.func @transform_1(%arg0: i32) -> (i32, i32) {
    %c0_i32 = arith.constant 0 : i32
    %c0_i32_0 = arith.constant 0 : i32
    %c0_i32_1 = arith.constant 0 : i32
    return %c0_i32, %c0_i32_0 : i32, i32
  }
  func.func @transform_2(%arg0: i32) -> (i32, i32) {
    %c0_i32 = arith.constant 0 : i32
    %c0_i32_0 = arith.constant 0 : i32
    %c0_i32_1 = arith.constant 0 : i32
    return %c0_i32, %c0_i32_0 : i32, i32
  }
  func.func @transform_3(%arg0: i32) -> (i32, i32) {
    %c0_i32 = arith.constant 0 : i32
    %c0_i32_0 = arith.constant 0 : i32
    %c0_i32_1 = arith.constant 0 : i32
    return %c0_i32, %c0_i32_0 : i32, i32
  }
  func.func @transform_4(%arg0: i32) -> (i32, i32, i32) {
    %c0_i32 = arith.constant 0 : i32
    %c0_i32_0 = arith.constant 0 : i32
    %c0_i32_1 = arith.constant 0 : i32
    %c0_i32_2 = arith.constant 0 : i32
    return %c0_i32, %c0_i32_0, %c0_i32_1 : i32, i32, i32
  }
  func.func @transform_5(%arg0: i32) -> (i32, i32) {
    %c0_i32 = arith.constant 0 : i32
    %c0_i32_0 = arith.constant 0 : i32
    %c0_i32_1 = arith.constant 0 : i32
    return %c0_i32, %c0_i32_0 : i32, i32
  }
  func.func @transform_6(%arg0: i32) -> (i32, i32) {
    %c0_i32 = arith.constant 0 : i32
    %c0_i32_0 = arith.constant 0 : i32
    %c0_i32_1 = arith.constant 0 : i32
    return %c0_i32, %c0_i32_0 : i32, i32
  }
  func.func @transform_7(%arg0: i32) -> (i32, i32) {
    %c0_i32 = arith.constant 0 : i32
    %c0_i32_0 = arith.constant 0 : i32
    %c0_i32_1 = arith.constant 0 : i32
    return %c0_i32, %c0_i32_0 : i32, i32
  }
  func.func @transform_8(%arg0: i32) -> (i32, i32, i32) {
    %c0_i32 = arith.constant 0 : i32
    %c0_i32_0 = arith.constant 0 : i32
    %c0_i32_1 = arith.constant 0 : i32
    return %arg0, %c0_i32, %c0_i32_0 : i32, i32, i32
  }
}

module attributes {stable_mosaic.version = 11 : i64} {
  func.func @_block_kernel(%arg0: i32, %arg1: memref<1x64x64xbf16, #tpu.memory_space<vmem>>, %arg2: memref<64x1xf32, #tpu.memory_space<vmem>>, %arg3: memref<64x64xbf16, #tpu.memory_space<vmem>>, %arg4: memref<1x64xf32, #tpu.memory_space<vmem>>, %arg5: memref<9x64x64xbf16, #tpu.memory_space<vmem>>, %arg6: memref<1x64xf32, #tpu.memory_space<vmem>>, %arg7: memref<64x64xbf16, #tpu.memory_space<vmem>>, %arg8: memref<1x64xf32, #tpu.memory_space<vmem>>, %arg9: memref<1x46x64xbf16, #tpu.memory_space<vmem>>, %arg10: memref<64x64xbf16, #tpu.memory_space<vmem>>) attributes {dimension_semantics = [#tpu.dimension_semantics<parallel>], iteration_bounds = array<i64: 4>, scalar_prefetch = 0 : i64, scratch_operands = 1 : i64, tpu.core_type = #tpu.core_type<tc>, window_params = [{transform_indices = @transform_0, window_bounds = array<i64: 1, 64, 64>}, {pipeline_mode = #tpu.pipeline_mode<synchronous>, transform_indices = @transform_1, window_bounds = array<i64: 64, 1>}, {pipeline_mode = #tpu.pipeline_mode<synchronous>, transform_indices = @transform_2, window_bounds = array<i64: 64, 64>}, {pipeline_mode = #tpu.pipeline_mode<synchronous>, transform_indices = @transform_3, window_bounds = array<i64: 1, 64>}, {pipeline_mode = #tpu.pipeline_mode<synchronous>, transform_indices = @transform_4, window_bounds = array<i64: 9, 64, 64>}, {pipeline_mode = #tpu.pipeline_mode<synchronous>, transform_indices = @transform_5, window_bounds = array<i64: 1, 64>}, {pipeline_mode = #tpu.pipeline_mode<synchronous>, transform_indices = @transform_6, window_bounds = array<i64: 64, 64>}, {pipeline_mode = #tpu.pipeline_mode<synchronous>, transform_indices = @transform_7, window_bounds = array<i64: 1, 64>}, {transform_indices = @transform_8, window_bounds = array<i64: 1, 46, 64>}]} {
    %c0 = arith.constant 0 : index
    %c0_0 = arith.constant 0 : index
    %c0_1 = arith.constant 0 : index
    %0 = vector.load %arg1[%c0, %c0_0, %c0_1] : memref<1x64x64xbf16, #tpu.memory_space<vmem>>, vector<1x64x64xbf16>
    %1 = vector.shape_cast %0 : vector<1x64x64xbf16> to vector<64x64xbf16>
    %c0_2 = arith.constant 0 : index
    %c0_3 = arith.constant 0 : index
    %2 = vector.load %arg3[%c0_2, %c0_3] : memref<64x64xbf16, #tpu.memory_space<vmem>>, vector<64x64xbf16>
    %cst = arith.constant dense<0.000000e+00> : vector<64x64xf32>
    %3 = tpu.matmul %1, %2, %cst {dimension_numbers = #tpu.dot_dimension_numbers<[1], [0], [0], [1], [0, 0, 1, 1], [], []>} : vector<64x64xbf16>, vector<64x64xbf16>, vector<64x64xf32> -> vector<64x64xf32>
    %c0_4 = arith.constant 0 : index
    %c0_5 = arith.constant 0 : index
    %4 = vector.load %arg4[%c0_4, %c0_5] : memref<1x64xf32, #tpu.memory_space<vmem>>, vector<1x64xf32>
    %5 = vector.broadcast %4 : vector<1x64xf32> to vector<64x64xf32>
    %6 = arith.addf %3, %5 : vector<64x64xf32>
    %cst_6 = arith.constant 0.000000e+00 : f32
    %7 = vector.broadcast %cst_6 : f32 to vector<64x64xf32>
    %8 = arith.maximumf %6, %7 : vector<64x64xf32>
    %c0_7 = arith.constant 0 : index
    %c0_8 = arith.constant 0 : index
    %9 = vector.load %arg2[%c0_7, %c0_8] : memref<64x1xf32, #tpu.memory_space<vmem>>, vector<64x1xf32>
    %10 = vector.broadcast %9 : vector<64x1xf32> to vector<64x64xf32>
    %11 = arith.mulf %8, %10 : vector<64x64xf32>
    %12 = arith.truncf %11 : vector<64x64xf32> to vector<64x64xbf16>
    %c0_9 = arith.constant 0 : index
    %c0_10 = arith.constant 0 : index
    %13 = vector.load %arg10[%c0_9, %c0_10] : memref<64x64xbf16, #tpu.memory_space<vmem>>, vector<64x64xbf16>
    tpu.vector_store %arg10[%c0_9, %c0_10], %12 {strides = array<i32>} : memref<64x64xbf16, #tpu.memory_space<vmem>>, vector<64x64xbf16>,
    %cst_11 = arith.constant 0.000000e+00 : f32
    %14 = vector.broadcast %cst_11 : f32 to vector<46x64xf32>
    %c0_12 = arith.constant 0 : index
    %c0_13 = arith.constant 0 : index
    %15 = vector.load %arg6[%c0_12, %c0_13] : memref<1x64xf32, #tpu.memory_space<vmem>>, vector<1x64xf32>
    %16 = vector.broadcast %15 : vector<1x64xf32> to vector<46x64xf32>
    %17 = arith.addf %14, %16 : vector<46x64xf32>
    %c0_14 = arith.constant 0 : index
    %c0_15 = arith.constant 0 : index
    %18 = vector.load %arg10[%c0_14, %c0_15] : memref<64x64xbf16, #tpu.memory_space<vmem>>, vector<46x64xbf16>
    %c0_16 = arith.constant 0 : index
    %c0_17 = arith.constant 0 : index
    %c0_18 = arith.constant 0 : index
    %19 = vector.load %arg5[%c0_16, %c0_17, %c0_18] : memref<9x64x64xbf16, #tpu.memory_space<vmem>>, vector<1x64x64xbf16>
    %20 = vector.shape_cast %19 : vector<1x64x64xbf16> to vector<64x64xbf16>
    %cst_19 = arith.constant dense<0.000000e+00> : vector<46x64xf32>
    %21 = tpu.matmul %18, %20, %cst_19 {dimension_numbers = #tpu.dot_dimension_numbers<[1], [0], [0], [1], [0, 0, 1, 1], [], []>} : vector<46x64xbf16>, vector<64x64xbf16>, vector<46x64xf32> -> vector<46x64xf32>
    %22 = arith.addf %17, %21 : vector<46x64xf32>
    %c1 = arith.constant 1 : index
    %c0_20 = arith.constant 0 : index
    %23 = vector.load %arg10[%c1, %c0_20] : memref<64x64xbf16, #tpu.memory_space<vmem>>, vector<46x64xbf16>
    %c1_21 = arith.constant 1 : index
    %c0_22 = arith.constant 0 : index
    %c0_23 = arith.constant 0 : index
    %24 = vector.load %arg5[%c1_21, %c0_22, %c0_23] : memref<9x64x64xbf16, #tpu.memory_space<vmem>>, vector<1x64x64xbf16>
    %25 = vector.shape_cast %24 : vector<1x64x64xbf16> to vector<64x64xbf16>
    %cst_24 = arith.constant dense<0.000000e+00> : vector<46x64xf32>
    %26 = tpu.matmul %23, %25, %cst_24 {dimension_numbers = #tpu.dot_dimension_numbers<[1], [0], [0], [1], [0, 0, 1, 1], [], []>} : vector<46x64xbf16>, vector<64x64xbf16>, vector<46x64xf32> -> vector<46x64xf32>
    %27 = arith.addf %22, %26 : vector<46x64xf32>
    %c2 = arith.constant 2 : index
    %c0_25 = arith.constant 0 : index
    %28 = vector.load %arg10[%c2, %c0_25] : memref<64x64xbf16, #tpu.memory_space<vmem>>, vector<46x64xbf16>
    %c2_26 = arith.constant 2 : index
    %c0_27 = arith.constant 0 : index
    %c0_28 = arith.constant 0 : index
    %29 = vector.load %arg5[%c2_26, %c0_27, %c0_28] : memref<9x64x64xbf16, #tpu.memory_space<vmem>>, vector<1x64x64xbf16>
    %30 = vector.shape_cast %29 : vector<1x64x64xbf16> to vector<64x64xbf16>
    %cst_29 = arith.constant dense<0.000000e+00> : vector<46x64xf32>
    %31 = tpu.matmul %28, %30, %cst_29 {dimension_numbers = #tpu.dot_dimension_numbers<[1], [0], [0], [1], [0, 0, 1, 1], [], []>} : vector<46x64xbf16>, vector<64x64xbf16>, vector<46x64xf32> -> vector<46x64xf32>
    %32 = arith.addf %27, %31 : vector<46x64xf32>
    %c8 = arith.constant 8 : index
    %c0_30 = arith.constant 0 : index
    %33 = vector.load %arg10[%c8, %c0_30] : memref<64x64xbf16, #tpu.memory_space<vmem>>, vector<46x64xbf16>
    %c3 = arith.constant 3 : index
    %c0_31 = arith.constant 0 : index
    %c0_32 = arith.constant 0 : index
    %34 = vector.load %arg5[%c3, %c0_31, %c0_32] : memref<9x64x64xbf16, #tpu.memory_space<vmem>>, vector<1x64x64xbf16>
    %35 = vector.shape_cast %34 : vector<1x64x64xbf16> to vector<64x64xbf16>
    %cst_33 = arith.constant dense<0.000000e+00> : vector<46x64xf32>
    %36 = tpu.matmul %33, %35, %cst_33 {dimension_numbers = #tpu.dot_dimension_numbers<[1], [0], [0], [1], [0, 0, 1, 1], [], []>} : vector<46x64xbf16>, vector<64x64xbf16>, vector<46x64xf32> -> vector<46x64xf32>
    %37 = arith.addf %32, %36 : vector<46x64xf32>
    %c9 = arith.constant 9 : index
    %c0_34 = arith.constant 0 : index
    %38 = vector.load %arg10[%c9, %c0_34] : memref<64x64xbf16, #tpu.memory_space<vmem>>, vector<46x64xbf16>
    %c4 = arith.constant 4 : index
    %c0_35 = arith.constant 0 : index
    %c0_36 = arith.constant 0 : index
    %39 = vector.load %arg5[%c4, %c0_35, %c0_36] : memref<9x64x64xbf16, #tpu.memory_space<vmem>>, vector<1x64x64xbf16>
    %40 = vector.shape_cast %39 : vector<1x64x64xbf16> to vector<64x64xbf16>
    %cst_37 = arith.constant dense<0.000000e+00> : vector<46x64xf32>
    %41 = tpu.matmul %38, %40, %cst_37 {dimension_numbers = #tpu.dot_dimension_numbers<[1], [0], [0], [1], [0, 0, 1, 1], [], []>} : vector<46x64xbf16>, vector<64x64xbf16>, vector<46x64xf32> -> vector<46x64xf32>
    %42 = arith.addf %37, %41 : vector<46x64xf32>
    %c10 = arith.constant 10 : index
    %c0_38 = arith.constant 0 : index
    %43 = vector.load %arg10[%c10, %c0_38] : memref<64x64xbf16, #tpu.memory_space<vmem>>, vector<46x64xbf16>
    %c5 = arith.constant 5 : index
    %c0_39 = arith.constant 0 : index
    %c0_40 = arith.constant 0 : index
    %44 = vector.load %arg5[%c5, %c0_39, %c0_40] : memref<9x64x64xbf16, #tpu.memory_space<vmem>>, vector<1x64x64xbf16>
    %45 = vector.shape_cast %44 : vector<1x64x64xbf16> to vector<64x64xbf16>
    %cst_41 = arith.constant dense<0.000000e+00> : vector<46x64xf32>
    %46 = tpu.matmul %43, %45, %cst_41 {dimension_numbers = #tpu.dot_dimension_numbers<[1], [0], [0], [1], [0, 0, 1, 1], [], []>} : vector<46x64xbf16>, vector<64x64xbf16>, vector<46x64xf32> -> vector<46x64xf32>
    %47 = arith.addf %42, %46 : vector<46x64xf32>
    %c16 = arith.constant 16 : index
    %c0_42 = arith.constant 0 : index
    %48 = vector.load %arg10[%c16, %c0_42] : memref<64x64xbf16, #tpu.memory_space<vmem>>, vector<46x64xbf16>
    %c6 = arith.constant 6 : index
    %c0_43 = arith.constant 0 : index
    %c0_44 = arith.constant 0 : index
    %49 = vector.load %arg5[%c6, %c0_43, %c0_44] : memref<9x64x64xbf16, #tpu.memory_space<vmem>>, vector<1x64x64xbf16>
    %50 = vector.shape_cast %49 : vector<1x64x64xbf16> to vector<64x64xbf16>
    %cst_45 = arith.constant dense<0.000000e+00> : vector<46x64xf32>
    %51 = tpu.matmul %48, %50, %cst_45 {dimension_numbers = #tpu.dot_dimension_numbers<[1], [0], [0], [1], [0, 0, 1, 1], [], []>} : vector<46x64xbf16>, vector<64x64xbf16>, vector<46x64xf32> -> vector<46x64xf32>
    %52 = arith.addf %47, %51 : vector<46x64xf32>
    %c17 = arith.constant 17 : index
    %c0_46 = arith.constant 0 : index
    %53 = vector.load %arg10[%c17, %c0_46] : memref<64x64xbf16, #tpu.memory_space<vmem>>, vector<46x64xbf16>
    %c7 = arith.constant 7 : index
    %c0_47 = arith.constant 0 : index
    %c0_48 = arith.constant 0 : index
    %54 = vector.load %arg5[%c7, %c0_47, %c0_48] : memref<9x64x64xbf16, #tpu.memory_space<vmem>>, vector<1x64x64xbf16>
    %55 = vector.shape_cast %54 : vector<1x64x64xbf16> to vector<64x64xbf16>
    %cst_49 = arith.constant dense<0.000000e+00> : vector<46x64xf32>
    %56 = tpu.matmul %53, %55, %cst_49 {dimension_numbers = #tpu.dot_dimension_numbers<[1], [0], [0], [1], [0, 0, 1, 1], [], []>} : vector<46x64xbf16>, vector<64x64xbf16>, vector<46x64xf32> -> vector<46x64xf32>
    %57 = arith.addf %52, %56 : vector<46x64xf32>
    %c18 = arith.constant 18 : index
    %c0_50 = arith.constant 0 : index
    %58 = vector.load %arg10[%c18, %c0_50] : memref<64x64xbf16, #tpu.memory_space<vmem>>, vector<46x64xbf16>
    %c8_51 = arith.constant 8 : index
    %c0_52 = arith.constant 0 : index
    %c0_53 = arith.constant 0 : index
    %59 = vector.load %arg5[%c8_51, %c0_52, %c0_53] : memref<9x64x64xbf16, #tpu.memory_space<vmem>>, vector<1x64x64xbf16>
    %60 = vector.shape_cast %59 : vector<1x64x64xbf16> to vector<64x64xbf16>
    %cst_54 = arith.constant dense<0.000000e+00> : vector<46x64xf32>
    %61 = tpu.matmul %58, %60, %cst_54 {dimension_numbers = #tpu.dot_dimension_numbers<[1], [0], [0], [1], [0, 0, 1, 1], [], []>} : vector<46x64xbf16>, vector<64x64xbf16>, vector<46x64xf32> -> vector<46x64xf32>
    %62 = arith.addf %57, %61 : vector<46x64xf32>
    %cst_55 = arith.constant 0.000000e+00 : f32
    %63 = vector.broadcast %cst_55 : f32 to vector<46x64xf32>
    %64 = arith.maximumf %62, %63 : vector<46x64xf32>
    %65 = arith.truncf %64 : vector<46x64xf32> to vector<46x64xbf16>
    %c0_56 = arith.constant 0 : index
    %c0_57 = arith.constant 0 : index
    %66 = vector.load %arg7[%c0_56, %c0_57] : memref<64x64xbf16, #tpu.memory_space<vmem>>, vector<64x64xbf16>
    %cst_58 = arith.constant dense<0.000000e+00> : vector<46x64xf32>
    %67 = tpu.matmul %65, %66, %cst_58 {dimension_numbers = #tpu.dot_dimension_numbers<[1], [0], [0], [1], [0, 0, 1, 1], [], []>} : vector<46x64xbf16>, vector<64x64xbf16>, vector<46x64xf32> -> vector<46x64xf32>
    %c0_59 = arith.constant 0 : index
    %c9_60 = arith.constant 9 : index
    %c0_61 = arith.constant 0 : index
    %68 = vector.load %arg1[%c0_59, %c9_60, %c0_61] : memref<1x64x64xbf16, #tpu.memory_space<vmem>>, vector<1x46x64xbf16>
    %69 = vector.shape_cast %68 : vector<1x46x64xbf16> to vector<46x64xbf16>
    %70 = arith.extf %69 : vector<46x64xbf16> to vector<46x64xf32>
    %c0_62 = arith.constant 0 : index
    %c0_63 = arith.constant 0 : index
    %71 = vector.load %arg8[%c0_62, %c0_63] : memref<1x64xf32, #tpu.memory_space<vmem>>, vector<1x64xf32>
    %72 = vector.broadcast %71 : vector<1x64xf32> to vector<46x64xf32>
    %73 = arith.addf %67, %72 : vector<46x64xf32>
    %74 = arith.addf %73, %70 : vector<46x64xf32>
    %75 = arith.truncf %74 : vector<46x64xf32> to vector<46x64xbf16>
    %c0_64 = arith.constant 0 : index
    %c0_65 = arith.constant 0 : index
    %c0_66 = arith.constant 0 : index
    %76 = vector.load %arg9[%c0_64, %c0_65, %c0_66] : memref<1x46x64xbf16, #tpu.memory_space<vmem>>, vector<1x46x64xbf16>
    %77 = vector.shape_cast %76 : vector<1x46x64xbf16> to vector<46x64xbf16>
    %78 = vector.shape_cast %75 : vector<46x64xbf16> to vector<1x46x64xbf16>
    tpu.vector_store %arg9[%c0_64, %c0_65, %c0_66], %78 {strides = array<i32>} : memref<1x46x64xbf16, #tpu.memory_space<vmem>>, vector<1x46x64xbf16>,
    return
  }
  func.func @transform_0(%arg0: i32) -> (i32, i32, i32) {
    %c0_i32 = arith.constant 0 : i32
    %c0_i32_0 = arith.constant 0 : i32
    %c0_i32_1 = arith.constant 0 : i32
    return %arg0, %c0_i32, %c0_i32_0 : i32, i32, i32
  }
  func.func @transform_1(%arg0: i32) -> (i32, i32) {
    %c0_i32 = arith.constant 0 : i32
    %c0_i32_0 = arith.constant 0 : i32
    %c0_i32_1 = arith.constant 0 : i32
    return %c0_i32, %c0_i32_0 : i32, i32
  }
  func.func @transform_2(%arg0: i32) -> (i32, i32) {
    %c0_i32 = arith.constant 0 : i32
    %c0_i32_0 = arith.constant 0 : i32
    %c0_i32_1 = arith.constant 0 : i32
    return %c0_i32, %c0_i32_0 : i32, i32
  }
  func.func @transform_3(%arg0: i32) -> (i32, i32) {
    %c0_i32 = arith.constant 0 : i32
    %c0_i32_0 = arith.constant 0 : i32
    %c0_i32_1 = arith.constant 0 : i32
    return %c0_i32, %c0_i32_0 : i32, i32
  }
  func.func @transform_4(%arg0: i32) -> (i32, i32, i32) {
    %c0_i32 = arith.constant 0 : i32
    %c0_i32_0 = arith.constant 0 : i32
    %c0_i32_1 = arith.constant 0 : i32
    %c0_i32_2 = arith.constant 0 : i32
    return %c0_i32, %c0_i32_0, %c0_i32_1 : i32, i32, i32
  }
  func.func @transform_5(%arg0: i32) -> (i32, i32) {
    %c0_i32 = arith.constant 0 : i32
    %c0_i32_0 = arith.constant 0 : i32
    %c0_i32_1 = arith.constant 0 : i32
    return %c0_i32, %c0_i32_0 : i32, i32
  }
  func.func @transform_6(%arg0: i32) -> (i32, i32) {
    %c0_i32 = arith.constant 0 : i32
    %c0_i32_0 = arith.constant 0 : i32
    %c0_i32_1 = arith.constant 0 : i32
    return %c0_i32, %c0_i32_0 : i32, i32
  }
  func.func @transform_7(%arg0: i32) -> (i32, i32) {
    %c0_i32 = arith.constant 0 : i32
    %c0_i32_0 = arith.constant 0 : i32
    %c0_i32_1 = arith.constant 0 : i32
    return %c0_i32, %c0_i32_0 : i32, i32
  }
  func.func @transform_8(%arg0: i32) -> (i32, i32, i32) {
    %c0_i32 = arith.constant 0 : i32
    %c0_i32_0 = arith.constant 0 : i32
    %c0_i32_1 = arith.constant 0 : i32
    return %arg0, %c0_i32, %c0_i32_0 : i32, i32, i32
  }
}

module attributes {stable_mosaic.version = 11 : i64} {
  func.func @_block_kernel(%arg0: i32, %arg1: memref<1x9x64xbf16, #tpu.memory_space<vmem>>, %arg2: memref<9x1xf32, #tpu.memory_space<vmem>>, %arg3: memref<64x64xbf16, #tpu.memory_space<vmem>>, %arg4: memref<1x64xf32, #tpu.memory_space<vmem>>, %arg5: memref<9x64x64xbf16, #tpu.memory_space<vmem>>, %arg6: memref<1x64xf32, #tpu.memory_space<vmem>>, %arg7: memref<64x64xbf16, #tpu.memory_space<vmem>>, %arg8: memref<1x64xf32, #tpu.memory_space<vmem>>, %arg9: memref<1x1x64xbf16, #tpu.memory_space<vmem>>, %arg10: memref<9x64xbf16, #tpu.memory_space<vmem>>) attributes {dimension_semantics = [#tpu.dimension_semantics<parallel>], iteration_bounds = array<i64: 4>, scalar_prefetch = 0 : i64, scratch_operands = 1 : i64, tpu.core_type = #tpu.core_type<tc>, window_params = [{transform_indices = @transform_0, window_bounds = array<i64: 1, 9, 64>}, {pipeline_mode = #tpu.pipeline_mode<synchronous>, transform_indices = @transform_1, window_bounds = array<i64: 9, 1>}, {pipeline_mode = #tpu.pipeline_mode<synchronous>, transform_indices = @transform_2, window_bounds = array<i64: 64, 64>}, {pipeline_mode = #tpu.pipeline_mode<synchronous>, transform_indices = @transform_3, window_bounds = array<i64: 1, 64>}, {pipeline_mode = #tpu.pipeline_mode<synchronous>, transform_indices = @transform_4, window_bounds = array<i64: 9, 64, 64>}, {pipeline_mode = #tpu.pipeline_mode<synchronous>, transform_indices = @transform_5, window_bounds = array<i64: 1, 64>}, {pipeline_mode = #tpu.pipeline_mode<synchronous>, transform_indices = @transform_6, window_bounds = array<i64: 64, 64>}, {pipeline_mode = #tpu.pipeline_mode<synchronous>, transform_indices = @transform_7, window_bounds = array<i64: 1, 64>}, {transform_indices = @transform_8, window_bounds = array<i64: 1, 1, 64>}]} {
    %c0 = arith.constant 0 : index
    %c0_0 = arith.constant 0 : index
    %c0_1 = arith.constant 0 : index
    %0 = vector.load %arg1[%c0, %c0_0, %c0_1] : memref<1x9x64xbf16, #tpu.memory_space<vmem>>, vector<1x9x64xbf16>
    %1 = vector.shape_cast %0 : vector<1x9x64xbf16> to vector<9x64xbf16>
    %c0_2 = arith.constant 0 : index
    %c0_3 = arith.constant 0 : index
    %2 = vector.load %arg3[%c0_2, %c0_3] : memref<64x64xbf16, #tpu.memory_space<vmem>>, vector<64x64xbf16>
    %cst = arith.constant dense<0.000000e+00> : vector<9x64xf32>
    %3 = tpu.matmul %1, %2, %cst {dimension_numbers = #tpu.dot_dimension_numbers<[1], [0], [0], [1], [0, 0, 1, 1], [], []>} : vector<9x64xbf16>, vector<64x64xbf16>, vector<9x64xf32> -> vector<9x64xf32>
    %c0_4 = arith.constant 0 : index
    %c0_5 = arith.constant 0 : index
    %4 = vector.load %arg4[%c0_4, %c0_5] : memref<1x64xf32, #tpu.memory_space<vmem>>, vector<1x64xf32>
    %5 = vector.broadcast %4 : vector<1x64xf32> to vector<9x64xf32>
    %6 = arith.addf %3, %5 : vector<9x64xf32>
    %cst_6 = arith.constant 0.000000e+00 : f32
    %7 = vector.broadcast %cst_6 : f32 to vector<9x64xf32>
    %8 = arith.maximumf %6, %7 : vector<9x64xf32>
    %9 = arith.truncf %8 : vector<9x64xf32> to vector<9x64xbf16>
    %c0_7 = arith.constant 0 : index
    %c0_8 = arith.constant 0 : index
    %10 = vector.load %arg10[%c0_7, %c0_8] : memref<9x64xbf16, #tpu.memory_space<vmem>>, vector<9x64xbf16>
    tpu.vector_store %arg10[%c0_7, %c0_8], %9 {strides = array<i32>} : memref<9x64xbf16, #tpu.memory_space<vmem>>, vector<9x64xbf16>,
    %cst_9 = arith.constant 0.000000e+00 : f32
    %11 = vector.broadcast %cst_9 : f32 to vector<1x64xf32>
    %c0_10 = arith.constant 0 : index
    %c0_11 = arith.constant 0 : index
    %12 = vector.load %arg6[%c0_10, %c0_11] : memref<1x64xf32, #tpu.memory_space<vmem>>, vector<1x64xf32>
    %13 = arith.addf %11, %12 : vector<1x64xf32>
    %c0_12 = arith.constant 0 : index
    %c0_13 = arith.constant 0 : index
    %14 = vector.load %arg10[%c0_12, %c0_13] : memref<9x64xbf16, #tpu.memory_space<vmem>>, vector<1x64xbf16>
    %c0_14 = arith.constant 0 : index
    %c0_15 = arith.constant 0 : index
    %c0_16 = arith.constant 0 : index
    %15 = vector.load %arg5[%c0_14, %c0_15, %c0_16] : memref<9x64x64xbf16, #tpu.memory_space<vmem>>, vector<1x64x64xbf16>
    %16 = vector.shape_cast %15 : vector<1x64x64xbf16> to vector<64x64xbf16>
    %cst_17 = arith.constant dense<0.000000e+00> : vector<1x64xf32>
    %17 = tpu.matmul %14, %16, %cst_17 {dimension_numbers = #tpu.dot_dimension_numbers<[1], [0], [0], [1], [0, 0, 1, 1], [], []>} : vector<1x64xbf16>, vector<64x64xbf16>, vector<1x64xf32> -> vector<1x64xf32>
    %18 = arith.addf %13, %17 : vector<1x64xf32>
    %c1 = arith.constant 1 : index
    %c0_18 = arith.constant 0 : index
    %19 = vector.load %arg10[%c1, %c0_18] : memref<9x64xbf16, #tpu.memory_space<vmem>>, vector<1x64xbf16>
    %c1_19 = arith.constant 1 : index
    %c0_20 = arith.constant 0 : index
    %c0_21 = arith.constant 0 : index
    %20 = vector.load %arg5[%c1_19, %c0_20, %c0_21] : memref<9x64x64xbf16, #tpu.memory_space<vmem>>, vector<1x64x64xbf16>
    %21 = vector.shape_cast %20 : vector<1x64x64xbf16> to vector<64x64xbf16>
    %cst_22 = arith.constant dense<0.000000e+00> : vector<1x64xf32>
    %22 = tpu.matmul %19, %21, %cst_22 {dimension_numbers = #tpu.dot_dimension_numbers<[1], [0], [0], [1], [0, 0, 1, 1], [], []>} : vector<1x64xbf16>, vector<64x64xbf16>, vector<1x64xf32> -> vector<1x64xf32>
    %23 = arith.addf %18, %22 : vector<1x64xf32>
    %c2 = arith.constant 2 : index
    %c0_23 = arith.constant 0 : index
    %24 = vector.load %arg10[%c2, %c0_23] : memref<9x64xbf16, #tpu.memory_space<vmem>>, vector<1x64xbf16>
    %c2_24 = arith.constant 2 : index
    %c0_25 = arith.constant 0 : index
    %c0_26 = arith.constant 0 : index
    %25 = vector.load %arg5[%c2_24, %c0_25, %c0_26] : memref<9x64x64xbf16, #tpu.memory_space<vmem>>, vector<1x64x64xbf16>
    %26 = vector.shape_cast %25 : vector<1x64x64xbf16> to vector<64x64xbf16>
    %cst_27 = arith.constant dense<0.000000e+00> : vector<1x64xf32>
    %27 = tpu.matmul %24, %26, %cst_27 {dimension_numbers = #tpu.dot_dimension_numbers<[1], [0], [0], [1], [0, 0, 1, 1], [], []>} : vector<1x64xbf16>, vector<64x64xbf16>, vector<1x64xf32> -> vector<1x64xf32>
    %28 = arith.addf %23, %27 : vector<1x64xf32>
    %c3 = arith.constant 3 : index
    %c0_28 = arith.constant 0 : index
    %29 = vector.load %arg10[%c3, %c0_28] : memref<9x64xbf16, #tpu.memory_space<vmem>>, vector<1x64xbf16>
    %c3_29 = arith.constant 3 : index
    %c0_30 = arith.constant 0 : index
    %c0_31 = arith.constant 0 : index
    %30 = vector.load %arg5[%c3_29, %c0_30, %c0_31] : memref<9x64x64xbf16, #tpu.memory_space<vmem>>, vector<1x64x64xbf16>
    %31 = vector.shape_cast %30 : vector<1x64x64xbf16> to vector<64x64xbf16>
    %cst_32 = arith.constant dense<0.000000e+00> : vector<1x64xf32>
    %32 = tpu.matmul %29, %31, %cst_32 {dimension_numbers = #tpu.dot_dimension_numbers<[1], [0], [0], [1], [0, 0, 1, 1], [], []>} : vector<1x64xbf16>, vector<64x64xbf16>, vector<1x64xf32> -> vector<1x64xf32>
    %33 = arith.addf %28, %32 : vector<1x64xf32>
    %c4 = arith.constant 4 : index
    %c0_33 = arith.constant 0 : index
    %34 = vector.load %arg10[%c4, %c0_33] : memref<9x64xbf16, #tpu.memory_space<vmem>>, vector<1x64xbf16>
    %c4_34 = arith.constant 4 : index
    %c0_35 = arith.constant 0 : index
    %c0_36 = arith.constant 0 : index
    %35 = vector.load %arg5[%c4_34, %c0_35, %c0_36] : memref<9x64x64xbf16, #tpu.memory_space<vmem>>, vector<1x64x64xbf16>
    %36 = vector.shape_cast %35 : vector<1x64x64xbf16> to vector<64x64xbf16>
    %cst_37 = arith.constant dense<0.000000e+00> : vector<1x64xf32>
    %37 = tpu.matmul %34, %36, %cst_37 {dimension_numbers = #tpu.dot_dimension_numbers<[1], [0], [0], [1], [0, 0, 1, 1], [], []>} : vector<1x64xbf16>, vector<64x64xbf16>, vector<1x64xf32> -> vector<1x64xf32>
    %38 = arith.addf %33, %37 : vector<1x64xf32>
    %c5 = arith.constant 5 : index
    %c0_38 = arith.constant 0 : index
    %39 = vector.load %arg10[%c5, %c0_38] : memref<9x64xbf16, #tpu.memory_space<vmem>>, vector<1x64xbf16>
    %c5_39 = arith.constant 5 : index
    %c0_40 = arith.constant 0 : index
    %c0_41 = arith.constant 0 : index
    %40 = vector.load %arg5[%c5_39, %c0_40, %c0_41] : memref<9x64x64xbf16, #tpu.memory_space<vmem>>, vector<1x64x64xbf16>
    %41 = vector.shape_cast %40 : vector<1x64x64xbf16> to vector<64x64xbf16>
    %cst_42 = arith.constant dense<0.000000e+00> : vector<1x64xf32>
    %42 = tpu.matmul %39, %41, %cst_42 {dimension_numbers = #tpu.dot_dimension_numbers<[1], [0], [0], [1], [0, 0, 1, 1], [], []>} : vector<1x64xbf16>, vector<64x64xbf16>, vector<1x64xf32> -> vector<1x64xf32>
    %43 = arith.addf %38, %42 : vector<1x64xf32>
    %c6 = arith.constant 6 : index
    %c0_43 = arith.constant 0 : index
    %44 = vector.load %arg10[%c6, %c0_43] : memref<9x64xbf16, #tpu.memory_space<vmem>>, vector<1x64xbf16>
    %c6_44 = arith.constant 6 : index
    %c0_45 = arith.constant 0 : index
    %c0_46 = arith.constant 0 : index
    %45 = vector.load %arg5[%c6_44, %c0_45, %c0_46] : memref<9x64x64xbf16, #tpu.memory_space<vmem>>, vector<1x64x64xbf16>
    %46 = vector.shape_cast %45 : vector<1x64x64xbf16> to vector<64x64xbf16>
    %cst_47 = arith.constant dense<0.000000e+00> : vector<1x64xf32>
    %47 = tpu.matmul %44, %46, %cst_47 {dimension_numbers = #tpu.dot_dimension_numbers<[1], [0], [0], [1], [0, 0, 1, 1], [], []>} : vector<1x64xbf16>, vector<64x64xbf16>, vector<1x64xf32> -> vector<1x64xf32>
    %48 = arith.addf %43, %47 : vector<1x64xf32>
    %c7 = arith.constant 7 : index
    %c0_48 = arith.constant 0 : index
    %49 = vector.load %arg10[%c7, %c0_48] : memref<9x64xbf16, #tpu.memory_space<vmem>>, vector<1x64xbf16>
    %c7_49 = arith.constant 7 : index
    %c0_50 = arith.constant 0 : index
    %c0_51 = arith.constant 0 : index
    %50 = vector.load %arg5[%c7_49, %c0_50, %c0_51] : memref<9x64x64xbf16, #tpu.memory_space<vmem>>, vector<1x64x64xbf16>
    %51 = vector.shape_cast %50 : vector<1x64x64xbf16> to vector<64x64xbf16>
    %cst_52 = arith.constant dense<0.000000e+00> : vector<1x64xf32>
    %52 = tpu.matmul %49, %51, %cst_52 {dimension_numbers = #tpu.dot_dimension_numbers<[1], [0], [0], [1], [0, 0, 1, 1], [], []>} : vector<1x64xbf16>, vector<64x64xbf16>, vector<1x64xf32> -> vector<1x64xf32>
    %53 = arith.addf %48, %52 : vector<1x64xf32>
    %c8 = arith.constant 8 : index
    %c0_53 = arith.constant 0 : index
    %54 = vector.load %arg10[%c8, %c0_53] : memref<9x64xbf16, #tpu.memory_space<vmem>>, vector<1x64xbf16>
    %c8_54 = arith.constant 8 : index
    %c0_55 = arith.constant 0 : index
    %c0_56 = arith.constant 0 : index
    %55 = vector.load %arg5[%c8_54, %c0_55, %c0_56] : memref<9x64x64xbf16, #tpu.memory_space<vmem>>, vector<1x64x64xbf16>
    %56 = vector.shape_cast %55 : vector<1x64x64xbf16> to vector<64x64xbf16>
    %cst_57 = arith.constant dense<0.000000e+00> : vector<1x64xf32>
    %57 = tpu.matmul %54, %56, %cst_57 {dimension_numbers = #tpu.dot_dimension_numbers<[1], [0], [0], [1], [0, 0, 1, 1], [], []>} : vector<1x64xbf16>, vector<64x64xbf16>, vector<1x64xf32> -> vector<1x64xf32>
    %58 = arith.addf %53, %57 : vector<1x64xf32>
    %59 = arith.truncf %58 : vector<1x64xf32> to vector<1x64xbf16>
    %c0_58 = arith.constant 0 : index
    %c0_59 = arith.constant 0 : index
    %c0_60 = arith.constant 0 : index
    %60 = vector.load %arg9[%c0_58, %c0_59, %c0_60] : memref<1x1x64xbf16, #tpu.memory_space<vmem>>, vector<1x1x64xbf16>
    %61 = vector.shape_cast %60 : vector<1x1x64xbf16> to vector<1x64xbf16>
    %62 = vector.shape_cast %59 : vector<1x64xbf16> to vector<1x1x64xbf16>
    tpu.vector_store %arg9[%c0_58, %c0_59, %c0_60], %62 {strides = array<i32>} : memref<1x1x64xbf16, #tpu.memory_space<vmem>>, vector<1x1x64xbf16>,
    return
  }
  func.func @transform_0(%arg0: i32) -> (i32, i32, i32) {
    %c0_i32 = arith.constant 0 : i32
    %c0_i32_0 = arith.constant 0 : i32
    %c0_i32_1 = arith.constant 0 : i32
    return %arg0, %c0_i32, %c0_i32_0 : i32, i32, i32
  }
  func.func @transform_1(%arg0: i32) -> (i32, i32) {
    %c0_i32 = arith.constant 0 : i32
    %c0_i32_0 = arith.constant 0 : i32
    %c0_i32_1 = arith.constant 0 : i32
    return %c0_i32, %c0_i32_0 : i32, i32
  }
  func.func @transform_2(%arg0: i32) -> (i32, i32) {
    %c0_i32 = arith.constant 0 : i32
    %c0_i32_0 = arith.constant 0 : i32
    %c0_i32_1 = arith.constant 0 : i32
    return %c0_i32, %c0_i32_0 : i32, i32
  }
  func.func @transform_3(%arg0: i32) -> (i32, i32) {
    %c0_i32 = arith.constant 0 : i32
    %c0_i32_0 = arith.constant 0 : i32
    %c0_i32_1 = arith.constant 0 : i32
    return %c0_i32, %c0_i32_0 : i32, i32
  }
  func.func @transform_4(%arg0: i32) -> (i32, i32, i32) {
    %c0_i32 = arith.constant 0 : i32
    %c0_i32_0 = arith.constant 0 : i32
    %c0_i32_1 = arith.constant 0 : i32
    %c0_i32_2 = arith.constant 0 : i32
    return %c0_i32, %c0_i32_0, %c0_i32_1 : i32, i32, i32
  }
  func.func @transform_5(%arg0: i32) -> (i32, i32) {
    %c0_i32 = arith.constant 0 : i32
    %c0_i32_0 = arith.constant 0 : i32
    %c0_i32_1 = arith.constant 0 : i32
    return %c0_i32, %c0_i32_0 : i32, i32
  }
  func.func @transform_6(%arg0: i32) -> (i32, i32) {
    %c0_i32 = arith.constant 0 : i32
    %c0_i32_0 = arith.constant 0 : i32
    %c0_i32_1 = arith.constant 0 : i32
    return %c0_i32, %c0_i32_0 : i32, i32
  }
  func.func @transform_7(%arg0: i32) -> (i32, i32) {
    %c0_i32 = arith.constant 0 : i32
    %c0_i32_0 = arith.constant 0 : i32
    %c0_i32_1 = arith.constant 0 : i32
    return %c0_i32, %c0_i32_0 : i32, i32
  }
  func.func @transform_8(%arg0: i32) -> (i32, i32, i32) {
    %c0_i32 = arith.constant 0 : i32
    %c0_i32_0 = arith.constant 0 : i32
    %c0_i32_1 = arith.constant 0 : i32
    return %arg0, %c0_i32, %c0_i32_0 : i32, i32, i32
  }
}

</mosaic_0001>

<llo_original>
// kernel: combine_forward.4
$region0: #{combine_forward.4}
  #allocation0 [shape = 'u32[]', space=smem, size = 0x4, offset = 0x4, fixed_abs, tag = 'smem constant byte address 0x4 - core index']
  #allocation1 [shape = 'u32[72,128]{1,0:T(1,128)}', space=vmem, size = 0x9000, scoped, tag = 'internal scratch']
  %s0 = inlined_call_operand.vmem [shape: bf16[2560,256], index: 0, kind: input, shape index: {}]
  %s1 = inlined_call_operand.vmem [shape: bf16[256,64], index: 1, kind: input, shape index: {}]
  %s2 = inlined_call_operand.vmem [shape: f32[1,64], index: 2, kind: input, shape index: {}]
  %s3 = inlined_call_operand.vmem [shape: bf16[2560,64], index: 3, kind: output, shape index: {}]
  %s4 = sld [smem:[#allocation0]]
  $region45: #{combine_forward.4} parent=0
    _
  %s6 = ssub.s32 1, %s4
  %s7 = scalar_select 0, %s6, %s4
  loop: start=0, step=1, limit=7
  $region2: #{combine_forward.4} parent=0 // loop_pre_header
    _
  $region3: #{combine_forward.4} parent=0 // loop_header
    %s9 = sphi 0, %s13
    %p10 = scmp.ge.s32.totalorder %s9, 7
    %s19 = sphi 0, %s21
    %s22 = sphi 0, %s19
    %s23 = sphi 0, %s22
    %s39 = sphi 0, %s23
    %s43 = sphi 0, %s43
    %s45 = sphi 0, %s43
    %s46 = sphi 0, %s45
    %s60 = sphi 0, %s46
    %s64 = sphi 0, %s64
    %s66 = sphi 0, %s64
    %s67 = sphi 0, %s66
    %s81 = sphi 0, %s67
    %s87 = sphi 0, %s89
    %s90 = sphi 0, %s87
    %s91 = sphi 0, %s90
    %s107 = sphi 0, %s91
  $region4: #{combine_forward.4} parent=0 // loop_header_branch
    %12 = sbr.rel (%p10) target = $region8
  $region5: #{combine_forward.4} parent=0 // loop_body
    %s14 = ssub.s32 %s9, 1
    %s15 = ssub.s32 %s9, 2
    %s16 = sadd.s32 %s9, 1
    %s17 = ssub.s32 %s9, %s16
    %p18 = scmp.eq.s32.totalorder %s17, 0
    %s20 = sadd.s32 %s19, 1
    %s21 = scalar_select %p18, %s19, %s20
    %p24 = pneg %p18
    %p25 = scmp.eq.s32.totalorder %s9, 4
    %p26 = por %p24, %p25
    %p27 = scmp.ne.s32.totalorder %s19, %s22
    %p28 = scmp.eq.s32.totalorder %s9, 0
    %p29 = por %p27, %p28
    %p30 = scmp.ne.s32.totalorder %s19, %s22
    %p31 = scmp.eq.s32.totalorder %s14, 4
    %p32 = por %p30, %p31
    %p33 = scmp.ne.s32.totalorder %s22, %s23
    %p34 = scmp.eq.s32.totalorder %s14, 0
    %p35 = por %p33, %p34
    %p36 = scmp.ne.s32.totalorder %s22, %s23
    %p37 = scmp.eq.s32.totalorder %s15, 4
    %p38 = por %p36, %p37
    %p40 = scmp.ne.s32.totalorder %s23, %s39
    %p41 = scmp.eq.s32.totalorder %s15, 0
    %p42 = por %p40, %p41
    %s44 = sadd.s32 %s43, 1
    %p47 = scmp.eq.s32.totalorder %s9, 4
    %p48 = scmp.ne.s32.totalorder %s43, %s45
    %p49 = scmp.eq.s32.totalorder %s9, 0
    %p50 = por %p48, %p49
    %p51 = scmp.ne.s32.totalorder %s43, %s45
    %p52 = scmp.eq.s32.totalorder %s14, 4
    %p53 = por %p51, %p52
    %p54 = scmp.ne.s32.totalorder %s45, %s46
    %p55 = scmp.eq.s32.totalorder %s14, 0
    %p56 = por %p54, %p55
    %p57 = scmp.ne.s32.totalorder %s45, %s46
    %p58 = scmp.eq.s32.totalorder %s15, 4
    %p59 = por %p57, %p58
    %p61 = scmp.ne.s32.totalorder %s46, %s60
    %p62 = scmp.eq.s32.totalorder %s15, 0
    %p63 = por %p61, %p62
    %s65 = sadd.s32 %s64, 1
    %p68 = scmp.eq.s32.totalorder %s9, 4
    %p69 = scmp.ne.s32.totalorder %s64, %s66
    %p70 = scmp.eq.s32.totalorder %s9, 0
    %p71 = por %p69, %p70
    %p72 = scmp.ne.s32.totalorder %s64, %s66
    %p73 = scmp.eq.s32.totalorder %s14, 4
    %p74 = por %p72, %p73
    %p75 = scmp.ne.s32.totalorder %s66, %s67
    %p76 = scmp.eq.s32.totalorder %s14, 0
    %p77 = por %p75, %p76
    %p78 = scmp.ne.s32.totalorder %s66, %s67
    %p79 = scmp.eq.s32.totalorder %s15, 4
    %p80 = por %p78, %p79
    %p82 = scmp.ne.s32.totalorder %s67, %s81
    %p83 = scmp.eq.s32.totalorder %s15, 0
    %p84 = por %p82, %p83
    %s85 = ssub.s32 %s9, %s16
    %p86 = scmp.eq.s32.totalorder %s85, 0
    %s88 = sadd.s32 %s87, 1
    %s89 = scalar_select %p86, %s87, %s88
    %p92 = pneg %p86
    %p93 = scmp.eq.s32.totalorder %s9, 4
    %p94 = por %p92, %p93
    %p95 = scmp.ne.s32.totalorder %s87, %s90
    %p96 = scmp.eq.s32.totalorder %s9, 0
    %p97 = por %p95, %p96
    %p98 = scmp.ne.s32.totalorder %s87, %s90
    %p99 = scmp.eq.s32.totalorder %s14, 4
    %p100 = por %p98, %p99
    %p101 = scmp.ne.s32.totalorder %s90, %s91
    %p102 = scmp.eq.s32.totalorder %s14, 0
    %p103 = por %p101, %p102
    %p104 = scmp.ne.s32.totalorder %s90, %s91
    %p105 = scmp.eq.s32.totalorder %s15, 4
    %p106 = por %p104, %p105
    %p108 = scmp.ne.s32.totalorder %s91, %s107
    %p109 = scmp.eq.s32.totalorder %s15, 0
    %p110 = por %p108, %p109
    %p111 = scmp.le.s32.totalorder 1, %s9
    %p112 = scmp.lt.s32.totalorder %s9, 6
    %p113 = pnand %p111, %p112
    %p114 = pneg %p113
    // Predicated region
    $region9: #{combine_forward.4} parent=5 // pred_check
      _
    $region10: #{combine_forward.4} parent=5 // pred_check_branch
      %116 = sbr.rel (%p113) target = $region12
    $region11: #{combine_forward.4} parent=5 // pred_region
      %s117 = ssub.s32 %s9, 1
      // Predicated region
      $region13: #{combine_forward.4} parent=11 // pred_check
        %p118 = pneg %p56
      $region14: #{combine_forward.4} parent=11 // pred_check_branch
        %120 = sbr.rel (%p118) target = $region16
      $region15: #{combine_forward.4} parent=11 // pred_region
        _
      $region16: #{combine_forward.4} parent=11 // pred_fallthru
        _
      // Predicated region
      $region17: #{combine_forward.4} parent=11 // pred_check
        %p121 = pneg %p77
      $region18: #{combine_forward.4} parent=11 // pred_check_branch
        %123 = sbr.rel (%p121) target = $region20
      $region19: #{combine_forward.4} parent=11 // pred_region
        _
      $region20: #{combine_forward.4} parent=11 // pred_fallthru
        _
    $region12: #{combine_forward.4} parent=5 // pred_fallthru
      _
    %p124 = scmp.lt.s32.totalorder %s9, 5
    // Predicated region
    $region21: #{combine_forward.4} parent=5 // pred_check
      %p125 = pneg %p124
    $region22: #{combine_forward.4} parent=5 // pred_check_branch
      %127 = sbr.rel (%p125) target = $region24
    $region23: #{combine_forward.4} parent=5 // pred_region
      // Predicated region
      $region25: #{combine_forward.4} parent=23 // pred_check
        %p128 = pneg %p29
      $region26: #{combine_forward.4} parent=23 // pred_check_branch
        %130 = sbr.rel (%p128) target = $region28
      $region27: #{combine_forward.4} parent=23 // pred_region
        %s131 = smul.u32 64, %s9
        %p132 = scmp.lt.s32.totalorder %s131, 319
        %s133 = scalar_select %p132, %s131, 319
        %s134 = smul.addr %s133, 2
        %s135 = smul.addr %s134, 4
        %s136 = scalar_lea.vmem %s0, %s135
        %s137 = smul.u32 64, %s9
      $region28: #{combine_forward.4} parent=23 // pred_fallthru
        _
    $region24: #{combine_forward.4} parent=5 // pred_fallthru
      _
    %p138 = scmp.le.s32.totalorder 1, %s9
    %p139 = scmp.lt.s32.totalorder %s9, 6
    %p140 = pnand %p138, %p139
    %p141 = pneg %p140
    // Predicated region
    $region29: #{combine_forward.4} parent=5 // pred_check
      _
    $region30: #{combine_forward.4} parent=5 // pred_check_branch
      %143 = sbr.rel (%p140) target = $region32
    $region31: #{combine_forward.4} parent=5 // pred_region
      %s144 = ssub.s32 %s9, 1
      %s145 = smul.u32 64, %s14
      %p146 = scmp.lt.s32.totalorder %s145, 319
      %s147 = scalar_select %p146, %s145, 319
      %s148 = smul.addr %s147, 2
      %s149 = smul.addr %s148, 4
      %s150 = scalar_lea.vmem %s0, %s149
      %p151 = pneg %p35
      %p152 = pneg %p32
      %p153 = pneg %p56
      %p154 = pneg %p53
      %p155 = pneg %p77
      %p156 = pneg %p74
      %p157 = pneg %p103
      %p158 = pneg %p100
      %s159 = smul.u32 64, %s14
      %p160 = scmp.lt.s32.totalorder %s159, 319
      %s161 = scalar_select %p160, %s159, 319
      %s162 = smul.addr %s161, 4
      %s163 = scalar_lea.vmem %s3, %s162
      %s164 = smul.u32 64, %s14
      %p165 = scmp.lt.s32.totalorder %s164, 319
      %s166 = scalar_select %p165, %s164, 319
      %s167 = smul.addr %s166, 2
      %s168 = smul.addr %s167, 4
      %s169 = scalar_lea.vmem %s0, %s168
      %s170 = smul.u32 64, %s14
      %s171 = smul.u32 64, %s14
      %p172 = scmp.lt.s32.totalorder %s171, 319
      %s173 = scalar_select %p172, %s171, 319
      %s174 = smul.addr %s173, 4
      %s175 = scalar_lea.vmem %s3, %s174
      %s176 = smul.u32 64, %s14
      %v177 = vld [vmem:[%s169] sm:$0xff]
      %v178 = vld [vmem:[%s169 + $0x8] sm:$0xff]
      %v179 = vld [vmem:[%s169 + $0x10] sm:$0xff]
      %v180 = vld [vmem:[%s169 + $0x18] sm:$0xff]
      %v181 = vld [vmem:[%s169 + $0x20] sm:$0xff]
      %v182 = vld [vmem:[%s169 + $0x28] sm:$0xff]
      %v183 = vld [vmem:[%s169 + $0x30] sm:$0xff]
      %v184 = vld [vmem:[%s169 + $0x38] sm:$0xff]
      %v185 = vld [vmem:[%s169 + $0x40] sm:$0xff]
      %v186 = vld [vmem:[%s169 + $0x48] sm:$0xff]
      %v187 = vld [vmem:[%s169 + $0x50] sm:$0xff]
      %v188 = vld [vmem:[%s169 + $0x58] sm:$0xff]
      %v189 = vld [vmem:[%s169 + $0x60] sm:$0xff]
      %v190 = vld [vmem:[%s169 + $0x68] sm:$0xff]
      %v191 = vld [vmem:[%s169 + $0x70] sm:$0xff]
      %v192 = vld [vmem:[%s169 + $0x78] sm:$0xff]
      %v193 = vld [vmem:[%s169 + $0x80] sm:$0xff]
      %v194 = vld [vmem:[%s169 + $0x88] sm:$0xff]
      %v195 = vld [vmem:[%s169 + $0x90] sm:$0xff]
      %v196 = vld [vmem:[%s169 + $0x98] sm:$0xff]
      %v197 = vld [vmem:[%s169 + $0xa0] sm:$0xff]
      %v198 = vld [vmem:[%s169 + $0xa8] sm:$0xff]
      %v199 = vld [vmem:[%s169 + $0xb0] sm:$0xff]
      %v200 = vld [vmem:[%s169 + $0xb8] sm:$0xff]
      %v201 = vld [vmem:[%s169 + $0xc0] sm:$0xff]
      %v202 = vld [vmem:[%s169 + $0xc8] sm:$0xff]
      %v203 = vld [vmem:[%s169 + $0xd0] sm:$0xff]
      %v204 = vld [vmem:[%s169 + $0xd8] sm:$0xff]
      %v205 = vld [vmem:[%s169 + $0xe0] sm:$0xff]
      %v206 = vld [vmem:[%s169 + $0xe8] sm:$0xff]
      %v207 = vld [vmem:[%s169 + $0xf0] sm:$0xff]
      %v208 = vld [vmem:[%s169 + $0xf8] sm:$0xff]
      %v209 = vld [vmem:[%s169 + $0x100] sm:$0xff]
      %v210 = vld [vmem:[%s169 + $0x108] sm:$0xff]
      %v211 = vld [vmem:[%s169 + $0x110] sm:$0xff]
      %v212 = vld [vmem:[%s169 + $0x118] sm:$0xff]
      %v213 = vld [vmem:[%s169 + $0x120] sm:$0xff]
      %v214 = vld [vmem:[%s169 + $0x128] sm:$0xff]
      %v215 = vld [vmem:[%s169 + $0x130] sm:$0xff]
      %v216 = vld [vmem:[%s169 + $0x138] sm:$0xff]
      %v217 = vld [vmem:[%s169 + $0x140] sm:$0xff]
      %v218 = vld [vmem:[%s169 + $0x148] sm:$0xff]
      %v219 = vld [vmem:[%s169 + $0x150] sm:$0xff]
      %v220 = vld [vmem:[%s169 + $0x158] sm:$0xff]
      %v221 = vld [vmem:[%s169 + $0x160] sm:$0xff]
      %v222 = vld [vmem:[%s169 + $0x168] sm:$0xff]
      %v223 = vld [vmem:[%s169 + $0x170] sm:$0xff]
      %v224 = vld [vmem:[%s169 + $0x178] sm:$0xff]
      %v225 = vld [vmem:[%s169 + $0x180] sm:$0xff]
      %v226 = vld [vmem:[%s169 + $0x188] sm:$0xff]
      %v227 = vld [vmem:[%s169 + $0x190] sm:$0xff]
      %v228 = vld [vmem:[%s169 + $0x198] sm:$0xff]
      %v229 = vld [vmem:[%s169 + $0x1a0] sm:$0xff]
      %v230 = vld [vmem:[%s169 + $0x1a8] sm:$0xff]
      %v231 = vld [vmem:[%s169 + $0x1b0] sm:$0xff]
      %v232 = vld [vmem:[%s169 + $0x1b8] sm:$0xff]
      %v233 = vld [vmem:[%s169 + $0x1c0] sm:$0xff]
      %v234 = vld [vmem:[%s169 + $0x1c8] sm:$0xff]
      %v235 = vld [vmem:[%s169 + $0x1d0] sm:$0xff]
      %v236 = vld [vmem:[%s169 + $0x1d8] sm:$0xff]
      %v237 = vld [vmem:[%s169 + $0x1e0] sm:$0xff]
      %v238 = vld [vmem:[%s169 + $0x1e8] sm:$0xff]
      %v239 = vld [vmem:[%s169 + $0x1f0] sm:$0xff]
      %v240 = vld [vmem:[%s169 + $0x1f8] sm:$0xff]
      %v241 = vld [vmem:[%s1] sm:$0xf]
      %v242 = vld [vmem:[%s1 + $0x4] sm:$0xf]
      %v243 = vld [vmem:[%s1 + $0x8] sm:$0xf]
      %v244 = vld [vmem:[%s1 + $0xc] sm:$0xf]
      %v245 = vld [vmem:[%s1 + $0x10] sm:$0xf]
      %v246 = vld [vmem:[%s1 + $0x14] sm:$0xf]
      %v247 = vld [vmem:[%s1 + $0x18] sm:$0xf]
      %v248 = vld [vmem:[%s1 + $0x1c] sm:$0xf]
      %v249 = vld [vmem:[%s1 + $0x20] sm:$0xf]
      %v250 = vld [vmem:[%s1 + $0x24] sm:$0xf]
      %v251 = vld [vmem:[%s1 + $0x28] sm:$0xf]
      %v252 = vld [vmem:[%s1 + $0x2c] sm:$0xf]
      %v253 = vld [vmem:[%s1 + $0x30] sm:$0xf]
      %v254 = vld [vmem:[%s1 + $0x34] sm:$0xf]
      %v255 = vld [vmem:[%s1 + $0x38] sm:$0xf]
      %v256 = vld [vmem:[%s1 + $0x3c] sm:$0xf]
      %v257 = vld [vmem:[%s1 + $0x40] sm:$0xf]
      %v258 = vld [vmem:[%s1 + $0x44] sm:$0xf]
      %v259 = vld [vmem:[%s1 + $0x48] sm:$0xf]
      %v260 = vld [vmem:[%s1 + $0x4c] sm:$0xf]
      %v261 = vld [vmem:[%s1 + $0x50] sm:$0xf]
      %v262 = vld [vmem:[%s1 + $0x54] sm:$0xf]
      %v263 = vld [vmem:[%s1 + $0x58] sm:$0xf]
      %v264 = vld [vmem:[%s1 + $0x5c] sm:$0xf]
      %v265 = vld [vmem:[%s1 + $0x60] sm:$0xf]
      %v266 = vld [vmem:[%s1 + $0x64] sm:$0xf]
      %v267 = vld [vmem:[%s1 + $0x68] sm:$0xf]
      %v268 = vld [vmem:[%s1 + $0x6c] sm:$0xf]
      %v269 = vld [vmem:[%s1 + $0x70] sm:$0xf]
      %v270 = vld [vmem:[%s1 + $0x74] sm:$0xf]
      %v271 = vld [vmem:[%s1 + $0x78] sm:$0xf]
      %v272 = vld [vmem:[%s1 + $0x7c] sm:$0xf]
      %v273 = vld [vmem:[%s2] sm:$0x1]
      %v275 = vperm.slane %v273, 0
      %v341 = vunpack.c.l.b16 %v177
      %v342 = vunpack.c.h.b16 %v177
      %v343 = vunpack.c.l.b16 %v178
      %v344 = vunpack.c.h.b16 %v178
      %v345 = vunpack.c.l.b16 %v179
      %v346 = vunpack.c.h.b16 %v179
      %v347 = vunpack.c.l.b16 %v180
      %v348 = vunpack.c.h.b16 %v180
      %v349 = vunpack.c.l.b16 %v181
      %v350 = vunpack.c.h.b16 %v181
      %v351 = vunpack.c.l.b16 %v182
      %v352 = vunpack.c.h.b16 %v182
      %v353 = vunpack.c.l.b16 %v183
      %v354 = vunpack.c.h.b16 %v183
      %v355 = vunpack.c.l.b16 %v184
      %v356 = vunpack.c.h.b16 %v184
      %v357 = vunpack.c.l.b16 %v185
      %v358 = vunpack.c.h.b16 %v185
      %v359 = vunpack.c.l.b16 %v186
      %v360 = vunpack.c.h.b16 %v186
      %v361 = vunpack.c.l.b16 %v187
      %v362 = vunpack.c.h.b16 %v187
      %v363 = vunpack.c.l.b16 %v188
      %v364 = vunpack.c.h.b16 %v188
      %v365 = vunpack.c.l.b16 %v189
      %v366 = vunpack.c.h.b16 %v189
      %v367 = vunpack.c.l.b16 %v190
      %v368 = vunpack.c.h.b16 %v190
      %v369 = vunpack.c.l.b16 %v191
      %v370 = vunpack.c.h.b16 %v191
      %v371 = vunpack.c.l.b16 %v192
      %v372 = vunpack.c.h.b16 %v192
      %v373 = vunpack.c.l.b16 %v193
      %v374 = vunpack.c.h.b16 %v193
      %v375 = vunpack.c.l.b16 %v194
      %v376 = vunpack.c.h.b16 %v194
      %v377 = vunpack.c.l.b16 %v195
      %v378 = vunpack.c.h.b16 %v195
      %v379 = vunpack.c.l.b16 %v196
      %v380 = vunpack.c.h.b16 %v196
      %v381 = vunpack.c.l.b16 %v197
      %v382 = vunpack.c.h.b16 %v197
      %v383 = vunpack.c.l.b16 %v198
      %v384 = vunpack.c.h.b16 %v198
      %v385 = vunpack.c.l.b16 %v199
      %v386 = vunpack.c.h.b16 %v199
      %v387 = vunpack.c.l.b16 %v200
      %v388 = vunpack.c.h.b16 %v200
      %v389 = vunpack.c.l.b16 %v201
      %v390 = vunpack.c.h.b16 %v201
      %v391 = vunpack.c.l.b16 %v202
      %v392 = vunpack.c.h.b16 %v202
      %v393 = vunpack.c.l.b16 %v203
      %v394 = vunpack.c.h.b16 %v203
      %v395 = vunpack.c.l.b16 %v204
      %v396 = vunpack.c.h.b16 %v204
      %v397 = vunpack.c.l.b16 %v205
      %v398 = vunpack.c.h.b16 %v205
      %v399 = vunpack.c.l.b16 %v206
      %v400 = vunpack.c.h.b16 %v206
      %v401 = vunpack.c.l.b16 %v207
      %v402 = vunpack.c.h.b16 %v207
      %v403 = vunpack.c.l.b16 %v208
      %v404 = vunpack.c.h.b16 %v208
      %v405 = vunpack.c.l.b16 %v209
      %v406 = vunpack.c.h.b16 %v209
      %v407 = vunpack.c.l.b16 %v210
      %v408 = vunpack.c.h.b16 %v210
      %v409 = vunpack.c.l.b16 %v211
      %v410 = vunpack.c.h.b16 %v211
      %v411 = vunpack.c.l.b16 %v212
      %v412 = vunpack.c.h.b16 %v212
      %v413 = vunpack.c.l.b16 %v213
      %v414 = vunpack.c.h.b16 %v213
      %v415 = vunpack.c.l.b16 %v214
      %v416 = vunpack.c.h.b16 %v214
      %v417 = vunpack.c.l.b16 %v215
      %v418 = vunpack.c.h.b16 %v215
      %v419 = vunpack.c.l.b16 %v216
      %v420 = vunpack.c.h.b16 %v216
      %v421 = vunpack.c.l.b16 %v217
      %v422 = vunpack.c.h.b16 %v217
      %v423 = vunpack.c.l.b16 %v218
      %v424 = vunpack.c.h.b16 %v218
      %v425 = vunpack.c.l.b16 %v219
      %v426 = vunpack.c.h.b16 %v219
      %v427 = vunpack.c.l.b16 %v220
      %v428 = vunpack.c.h.b16 %v220
      %v429 = vunpack.c.l.b16 %v221
      %v430 = vunpack.c.h.b16 %v221
      %v431 = vunpack.c.l.b16 %v222
      %v432 = vunpack.c.h.b16 %v222
      %v433 = vunpack.c.l.b16 %v223
      %v434 = vunpack.c.h.b16 %v223
      %v435 = vunpack.c.l.b16 %v224
      %v436 = vunpack.c.h.b16 %v224
      %v437 = vunpack.c.l.b16 %v225
      %v438 = vunpack.c.h.b16 %v225
      %v439 = vunpack.c.l.b16 %v226
      %v440 = vunpack.c.h.b16 %v226
      %v441 = vunpack.c.l.b16 %v227
      %v442 = vunpack.c.h.b16 %v227
      %v443 = vunpack.c.l.b16 %v228
      %v444 = vunpack.c.h.b16 %v228
      %v445 = vunpack.c.l.b16 %v229
      %v446 = vunpack.c.h.b16 %v229
      %v447 = vunpack.c.l.b16 %v230
      %v448 = vunpack.c.h.b16 %v230
      %v449 = vunpack.c.l.b16 %v231
      %v450 = vunpack.c.h.b16 %v231
      %v451 = vunpack.c.l.b16 %v232
      %v452 = vunpack.c.h.b16 %v232
      %v453 = vunpack.c.l.b16 %v233
      %v454 = vunpack.c.h.b16 %v233
      %v455 = vunpack.c.l.b16 %v234
      %v456 = vunpack.c.h.b16 %v234
      %v457 = vunpack.c.l.b16 %v235
      %v458 = vunpack.c.h.b16 %v235
      %v459 = vunpack.c.l.b16 %v236
      %v460 = vunpack.c.h.b16 %v236
      %v461 = vunpack.c.l.b16 %v237
      %v462 = vunpack.c.h.b16 %v237
      %v463 = vunpack.c.l.b16 %v238
      %v464 = vunpack.c.h.b16 %v238
      %v465 = vunpack.c.l.b16 %v239
      %v466 = vunpack.c.h.b16 %v239
      %v467 = vunpack.c.l.b16 %v240
      %v468 = vunpack.c.h.b16 %v240
      %v469 = vpack.c.b16 %v343, %v341
      %v470 = vpack.c.b16 %v344, %v342
      %v471 = vpack.c.b16 %v347, %v345
      %v472 = vpack.c.b16 %v348, %v346
      %v473 = vpack.c.b16 %v351, %v349
      %v474 = vpack.c.b16 %v352, %v350
      %v475 = vpack.c.b16 %v355, %v353
      %v476 = vpack.c.b16 %v356, %v354
      %v477 = vpack.c.b16 %v359, %v357
      %v478 = vpack.c.b16 %v360, %v358
      %v479 = vpack.c.b16 %v363, %v361
      %v480 = vpack.c.b16 %v364, %v362
      %v481 = vpack.c.b16 %v367, %v365
      %v482 = vpack.c.b16 %v368, %v366
      %v483 = vpack.c.b16 %v371, %v369
      %v484 = vpack.c.b16 %v372, %v370
      %v485 = vpack.c.b16 %v375, %v373
      %v486 = vpack.c.b16 %v376, %v374
      %v487 = vpack.c.b16 %v379, %v377
      %v488 = vpack.c.b16 %v380, %v378
      %v489 = vpack.c.b16 %v383, %v381
      %v490 = vpack.c.b16 %v384, %v382
      %v491 = vpack.c.b16 %v387, %v385
      %v492 = vpack.c.b16 %v388, %v386
      %v493 = vpack.c.b16 %v391, %v389
      %v494 = vpack.c.b16 %v392, %v390
      %v495 = vpack.c.b16 %v395, %v393
      %v496 = vpack.c.b16 %v396, %v394
      %v497 = vpack.c.b16 %v399, %v397
      %v498 = vpack.c.b16 %v400, %v398
      %v499 = vpack.c.b16 %v403, %v401
      %v500 = vpack.c.b16 %v404, %v402
      %v501 = vpack.c.b16 %v407, %v405
      %v502 = vpack.c.b16 %v408, %v406
      %v503 = vpack.c.b16 %v411, %v409
      %v504 = vpack.c.b16 %v412, %v410
      %v505 = vpack.c.b16 %v415, %v413
      %v506 = vpack.c.b16 %v416, %v414
      %v507 = vpack.c.b16 %v419, %v417
      %v508 = vpack.c.b16 %v420, %v418
      %v509 = vpack.c.b16 %v423, %v421
      %v510 = vpack.c.b16 %v424, %v422
      %v511 = vpack.c.b16 %v427, %v425
      %v512 = vpack.c.b16 %v428, %v426
      %v513 = vpack.c.b16 %v431, %v429
      %v514 = vpack.c.b16 %v432, %v430
      %v515 = vpack.c.b16 %v435, %v433
      %v516 = vpack.c.b16 %v436, %v434
      %v517 = vpack.c.b16 %v439, %v437
      %v518 = vpack.c.b16 %v440, %v438
      %v519 = vpack.c.b16 %v443, %v441
      %v520 = vpack.c.b16 %v444, %v442
      %v521 = vpack.c.b16 %v447, %v445
      %v522 = vpack.c.b16 %v448, %v446
      %v523 = vpack.c.b16 %v451, %v449
      %v524 = vpack.c.b16 %v452, %v450
      %v525 = vpack.c.b16 %v455, %v453
      %v526 = vpack.c.b16 %v456, %v454
      %v527 = vpack.c.b16 %v459, %v457
      %v528 = vpack.c.b16 %v460, %v458
      %v529 = vpack.c.b16 %v463, %v461
      %v530 = vpack.c.b16 %v464, %v462
      %v531 = vpack.c.b16 %v467, %v465
      %v532 = vpack.c.b16 %v468, %v466
      %v629 = vunpack.c.l.b16 %v241
      %v630 = vunpack.c.l.b16 %v242
      %v631 = vunpack.c.l.b16 %v243
      %v632 = vunpack.c.l.b16 %v244
      %v633 = vunpack.c.l.b16 %v245
      %v634 = vunpack.c.l.b16 %v246
      %v635 = vunpack.c.l.b16 %v247
      %v636 = vunpack.c.l.b16 %v248
      %v637 = vunpack.c.l.b16 %v249
      %v638 = vunpack.c.l.b16 %v250
      %v639 = vunpack.c.l.b16 %v251
      %v640 = vunpack.c.l.b16 %v252
      %v641 = vunpack.c.l.b16 %v253
      %v642 = vunpack.c.l.b16 %v254
      %v643 = vunpack.c.l.b16 %v255
      %v644 = vunpack.c.l.b16 %v256
      %v645 = vunpack.c.l.b16 %v257
      %v646 = vunpack.c.l.b16 %v258
      %v647 = vunpack.c.l.b16 %v259
      %v648 = vunpack.c.l.b16 %v260
      %v649 = vunpack.c.l.b16 %v261
      %v650 = vunpack.c.l.b16 %v262
      %v651 = vunpack.c.l.b16 %v263
      %v652 = vunpack.c.l.b16 %v264
      %v653 = vunpack.c.l.b16 %v265
      %v654 = vunpack.c.l.b16 %v266
      %v655 = vunpack.c.l.b16 %v267
      %v656 = vunpack.c.l.b16 %v268
      %v657 = vunpack.c.l.b16 %v269
      %v658 = vunpack.c.l.b16 %v270
      %v659 = vunpack.c.l.b16 %v271
      %v660 = vunpack.c.l.b16 %v272
      %v661 = vpack.c.b16 %v630, %v629
      %v662 = vpack.c.b16 %v632, %v631
      %v663 = vpack.c.b16 %v634, %v633
      %v664 = vpack.c.b16 %v636, %v635
      %v665 = vpack.c.b16 %v638, %v637
      %v666 = vpack.c.b16 %v640, %v639
      %v667 = vpack.c.b16 %v642, %v641
      %v668 = vpack.c.b16 %v644, %v643
      %v669 = vpack.c.b16 %v646, %v645
      %v670 = vpack.c.b16 %v648, %v647
      %v671 = vpack.c.b16 %v650, %v649
      %v672 = vpack.c.b16 %v652, %v651
      %v673 = vpack.c.b16 %v654, %v653
      %v674 = vpack.c.b16 %v656, %v655
      %v675 = vpack.c.b16 %v658, %v657
      %v676 = vpack.c.b16 %v660, %v659
      %693 = vmatpush.bf16.msra.mxu0 %v668
      %694 = vmatpush.bf16.msra.mxu0 %v667
      %695 = vmatpush.bf16.msra.mxu0 %v666
      %696 = vmatpush.bf16.msra.mxu0 %v665
      %697 = vmatpush.bf16.msra.mxu0 %v664
      %698 = vmatpush.bf16.msra.mxu0 %v663
      %699 = vmatpush.bf16.msra.mxu0 %v662
      %700 = vmatpush.bf16.msra.mxu0 %v661
      %701 = vmatmul.bf16.gmra.mxu0 %v469
      %v702 = vpop.f32.mrf.mxu0
      %v703 = vadd.f32 %v275, %v702
      %v704 = vpop.f32.mrf.mxu0
      %v705 = vadd.f32 %v275, %v704
      %706 = vmatmul.bf16.gmra.mxu0 %v471
      %v707 = vpop.f32.mrf.mxu0
      %v708 = vadd.f32 %v275, %v707
      %v709 = vpop.f32.mrf.mxu0
      %v710 = vadd.f32 %v275, %v709
      %711 = vmatmul.bf16.gmra.mxu0 %v473
      %v712 = vpop.f32.mrf.mxu0
      %v713 = vadd.f32 %v275, %v712
      %v714 = vpop.f32.mrf.mxu0
      %v715 = vadd.f32 %v275, %v714
      %716 = vmatmul.bf16.gmra.mxu0 %v475
      %v717 = vpop.f32.mrf.mxu0
      %v718 = vadd.f32 %v275, %v717
      %v719 = vpop.f32.mrf.mxu0
      %v720 = vadd.f32 %v275, %v719
      %721 = vmatmul.bf16.gmra.mxu0 %v477
      %v722 = vpop.f32.mrf.mxu0
      %v723 = vadd.f32 %v275, %v722
      %v724 = vpop.f32.mrf.mxu0
      %v725 = vadd.f32 %v275, %v724
      %726 = vmatmul.bf16.gmra.mxu0 %v479
      %v727 = vpop.f32.mrf.mxu0
      %v728 = vadd.f32 %v275, %v727
      %v729 = vpop.f32.mrf.mxu0
      %v730 = vadd.f32 %v275, %v729
      %731 = vmatmul.bf16.gmra.mxu0 %v481
      %v732 = vpop.f32.mrf.mxu0
      %v733 = vadd.f32 %v275, %v732
      %v734 = vpop.f32.mrf.mxu0
      %v735 = vadd.f32 %v275, %v734
      %736 = vmatmul.bf16.gmra.mxu0 %v483
      %v737 = vpop.f32.mrf.mxu0
      %v738 = vadd.f32 %v275, %v737
      %v739 = vpop.f32.mrf.mxu0
      %v740 = vadd.f32 %v275, %v739
      %741 = vmatmul.bf16.gmra.mxu0 %v485
      %v742 = vpop.f32.mrf.mxu0
      %v743 = vadd.f32 %v275, %v742
      %v744 = vpop.f32.mrf.mxu0
      %v745 = vadd.f32 %v275, %v744
      %746 = vmatmul.bf16.gmra.mxu0 %v487
      %v747 = vpop.f32.mrf.mxu0
      %v748 = vadd.f32 %v275, %v747
      %v749 = vpop.f32.mrf.mxu0
      %v750 = vadd.f32 %v275, %v749
      %751 = vmatmul.bf16.gmra.mxu0 %v489
      %v752 = vpop.f32.mrf.mxu0
      %v753 = vadd.f32 %v275, %v752
      %v754 = vpop.f32.mrf.mxu0
      %v755 = vadd.f32 %v275, %v754
      %756 = vmatmul.bf16.gmra.mxu0 %v491
      %v757 = vpop.f32.mrf.mxu0
      %v758 = vadd.f32 %v275, %v757
      %v759 = vpop.f32.mrf.mxu0
      %v760 = vadd.f32 %v275, %v759
      %761 = vmatmul.bf16.gmra.mxu0 %v493
      %v762 = vpop.f32.mrf.mxu0
      %v763 = vadd.f32 %v275, %v762
      %v764 = vpop.f32.mrf.mxu0
      %v765 = vadd.f32 %v275, %v764
      %766 = vmatmul.bf16.gmra.mxu0 %v495
      %v767 = vpop.f32.mrf.mxu0
      %v768 = vadd.f32 %v275, %v767
      %v769 = vpop.f32.mrf.mxu0
      %v770 = vadd.f32 %v275, %v769
      %771 = vmatmul.bf16.gmra.mxu0 %v497
      %v772 = vpop.f32.mrf.mxu0
      %v773 = vadd.f32 %v275, %v772
      %v774 = vpop.f32.mrf.mxu0
      %v775 = vadd.f32 %v275, %v774
      %776 = vmatmul.bf16.gmra.mxu0 %v499
      %v777 = vpop.f32.mrf.mxu0
      %v778 = vadd.f32 %v275, %v777
      %v779 = vpop.f32.mrf.mxu0
      %v780 = vadd.f32 %v275, %v779
      %781 = vmatmul.bf16.gmra.mxu0 %v501
      %v782 = vpop.f32.mrf.mxu0
      %v783 = vadd.f32 %v275, %v782
      %v784 = vpop.f32.mrf.mxu0
      %v785 = vadd.f32 %v275, %v784
      %786 = vmatmul.bf16.gmra.mxu0 %v503
      %v787 = vpop.f32.mrf.mxu0
      %v788 = vadd.f32 %v275, %v787
      %v789 = vpop.f32.mrf.mxu0
      %v790 = vadd.f32 %v275, %v789
      %791 = vmatmul.bf16.gmra.mxu0 %v505
      %v792 = vpop.f32.mrf.mxu0
      %v793 = vadd.f32 %v275, %v792
      %v794 = vpop.f32.mrf.mxu0
      %v795 = vadd.f32 %v275, %v794
      %796 = vmatmul.bf16.gmra.mxu0 %v507
      %v797 = vpop.f32.mrf.mxu0
      %v798 = vadd.f32 %v275, %v797
      %v799 = vpop.f32.mrf.mxu0
      %v800 = vadd.f32 %v275, %v799
      %801 = vmatmul.bf16.gmra.mxu0 %v509
      %v802 = vpop.f32.mrf.mxu0
      %v803 = vadd.f32 %v275, %v802
      %v804 = vpop.f32.mrf.mxu0
      %v805 = vadd.f32 %v275, %v804
      %806 = vmatmul.bf16.gmra.mxu0 %v511
      %v807 = vpop.f32.mrf.mxu0
      %v808 = vadd.f32 %v275, %v807
      %v809 = vpop.f32.mrf.mxu0
      %v810 = vadd.f32 %v275, %v809
      %811 = vmatmul.bf16.gmra.mxu0 %v513
      %v812 = vpop.f32.mrf.mxu0
      %v813 = vadd.f32 %v275, %v812
      %v814 = vpop.f32.mrf.mxu0
      %v815 = vadd.f32 %v275, %v814
      %816 = vmatmul.bf16.gmra.mxu0 %v515
      %v817 = vpop.f32.mrf.mxu0
      %v818 = vadd.f32 %v275, %v817
      %v819 = vpop.f32.mrf.mxu0
      %v820 = vadd.f32 %v275, %v819
      %821 = vmatmul.bf16.gmra.mxu0 %v517
      %v822 = vpop.f32.mrf.mxu0
      %v823 = vadd.f32 %v275, %v822
      %v824 = vpop.f32.mrf.mxu0
      %v825 = vadd.f32 %v275, %v824
      %826 = vmatmul.bf16.gmra.mxu0 %v519
      %v827 = vpop.f32.mrf.mxu0
      %v828 = vadd.f32 %v275, %v827
      %v829 = vpop.f32.mrf.mxu0
      %v830 = vadd.f32 %v275, %v829
      %831 = vmatmul.bf16.gmra.mxu0 %v521
      %v832 = vpop.f32.mrf.mxu0
      %v833 = vadd.f32 %v275, %v832
      %v834 = vpop.f32.mrf.mxu0
      %v835 = vadd.f32 %v275, %v834
      %836 = vmatmul.bf16.gmra.mxu0 %v523
      %v837 = vpop.f32.mrf.mxu0
      %v838 = vadd.f32 %v275, %v837
      %v839 = vpop.f32.mrf.mxu0
      %v840 = vadd.f32 %v275, %v839
      %841 = vmatmul.bf16.gmra.mxu0 %v525
      %v842 = vpop.f32.mrf.mxu0
      %v843 = vadd.f32 %v275, %v842
      %v844 = vpop.f32.mrf.mxu0
      %v845 = vadd.f32 %v275, %v844
      %846 = vmatmul.bf16.gmra.mxu0 %v527
      %v847 = vpop.f32.mrf.mxu0
      %v848 = vadd.f32 %v275, %v847
      %v849 = vpop.f32.mrf.mxu0
      %v850 = vadd.f32 %v275, %v849
      %851 = vmatmul.bf16.gmra.mxu0 %v529
      %v852 = vpop.f32.mrf.mxu0
      %v853 = vadd.f32 %v275, %v852
      %v854 = vpop.f32.mrf.mxu0
      %v855 = vadd.f32 %v275, %v854
      %856 = vmatmul.bf16.gmra.mxu0 %v531
      %v857 = vpop.f32.mrf.mxu0
      %v858 = vadd.f32 %v275, %v857
      %v859 = vpop.f32.mrf.mxu0
      %v860 = vadd.f32 %v275, %v859
      %861 = vdwg.mxu0
      %862 = vmatpush.bf16.msra.mxu0 %v676
      %863 = vmatpush.bf16.msra.mxu0 %v675
      %864 = vmatpush.bf16.msra.mxu0 %v674
      %865 = vmatpush.bf16.msra.mxu0 %v673
      %866 = vmatpush.bf16.msra.mxu0 %v672
      %867 = vmatpush.bf16.msra.mxu0 %v671
      %868 = vmatpush.bf16.msra.mxu0 %v670
      %869 = vmatpush.bf16.msra.mxu0 %v669
      %870 = vmatmul.bf16.gmra.mxu0 %v470
      %v871 = vpop.f32.mrf.mxu0
      %v872 = vadd.f32 %v703, %v871
      %v873 = vpop.f32.mrf.mxu0
      %v874 = vadd.f32 %v705, %v873
      %875 = vmatmul.bf16.gmra.mxu0 %v472
      %v876 = vpop.f32.mrf.mxu0
      %v877 = vadd.f32 %v708, %v876
      %v878 = vpop.f32.mrf.mxu0
      %v879 = vadd.f32 %v710, %v878
      %880 = vmatmul.bf16.gmra.mxu0 %v474
      %v881 = vpop.f32.mrf.mxu0
      %v882 = vadd.f32 %v713, %v881
      %v883 = vpop.f32.mrf.mxu0
      %v884 = vadd.f32 %v715, %v883
      %885 = vmatmul.bf16.gmra.mxu0 %v476
      %v886 = vpop.f32.mrf.mxu0
      %v887 = vadd.f32 %v718, %v886
      %v888 = vpop.f32.mrf.mxu0
      %v889 = vadd.f32 %v720, %v888
      %890 = vmatmul.bf16.gmra.mxu0 %v478
      %v891 = vpop.f32.mrf.mxu0
      %v892 = vadd.f32 %v723, %v891
      %v893 = vpop.f32.mrf.mxu0
      %v894 = vadd.f32 %v725, %v893
      %895 = vmatmul.bf16.gmra.mxu0 %v480
      %v896 = vpop.f32.mrf.mxu0
      %v897 = vadd.f32 %v728, %v896
      %v898 = vpop.f32.mrf.mxu0
      %v899 = vadd.f32 %v730, %v898
      %900 = vmatmul.bf16.gmra.mxu0 %v482
      %v901 = vpop.f32.mrf.mxu0
      %v902 = vadd.f32 %v733, %v901
      %v903 = vpop.f32.mrf.mxu0
      %v904 = vadd.f32 %v735, %v903
      %905 = vmatmul.bf16.gmra.mxu0 %v484
      %v906 = vpop.f32.mrf.mxu0
      %v907 = vadd.f32 %v738, %v906
      %v908 = vpop.f32.mrf.mxu0
      %v909 = vadd.f32 %v740, %v908
      %910 = vmatmul.bf16.gmra.mxu0 %v486
      %v911 = vpop.f32.mrf.mxu0
      %v912 = vadd.f32 %v743, %v911
      %v913 = vpop.f32.mrf.mxu0
      %v914 = vadd.f32 %v745, %v913
      %915 = vmatmul.bf16.gmra.mxu0 %v488
      %v916 = vpop.f32.mrf.mxu0
      %v917 = vadd.f32 %v748, %v916
      %v918 = vpop.f32.mrf.mxu0
      %v919 = vadd.f32 %v750, %v918
      %920 = vmatmul.bf16.gmra.mxu0 %v490
      %v921 = vpop.f32.mrf.mxu0
      %v922 = vadd.f32 %v753, %v921
      %v923 = vpop.f32.mrf.mxu0
      %v924 = vadd.f32 %v755, %v923
      %925 = vmatmul.bf16.gmra.mxu0 %v492
      %v926 = vpop.f32.mrf.mxu0
      %v927 = vadd.f32 %v758, %v926
      %v928 = vpop.f32.mrf.mxu0
      %v929 = vadd.f32 %v760, %v928
      %930 = vmatmul.bf16.gmra.mxu0 %v494
      %v931 = vpop.f32.mrf.mxu0
      %v932 = vadd.f32 %v763, %v931
      %v933 = vpop.f32.mrf.mxu0
      %v934 = vadd.f32 %v765, %v933
      %935 = vmatmul.bf16.gmra.mxu0 %v496
      %v936 = vpop.f32.mrf.mxu0
      %v937 = vadd.f32 %v768, %v936
      %v938 = vpop.f32.mrf.mxu0
      %v939 = vadd.f32 %v770, %v938
      %940 = vmatmul.bf16.gmra.mxu0 %v498
      %v941 = vpop.f32.mrf.mxu0
      %v942 = vadd.f32 %v773, %v941
      %v943 = vpop.f32.mrf.mxu0
      %v944 = vadd.f32 %v775, %v943
      %945 = vmatmul.bf16.gmra.mxu0 %v500
      %v946 = vpop.f32.mrf.mxu0
      %v947 = vadd.f32 %v778, %v946
      %v948 = vpop.f32.mrf.mxu0
      %v949 = vadd.f32 %v780, %v948
      %950 = vmatmul.bf16.gmra.mxu0 %v502
      %v951 = vpop.f32.mrf.mxu0
      %v952 = vadd.f32 %v783, %v951
      %v953 = vpop.f32.mrf.mxu0
      %v954 = vadd.f32 %v785, %v953
      %955 = vmatmul.bf16.gmra.mxu0 %v504
      %v956 = vpop.f32.mrf.mxu0
      %v957 = vadd.f32 %v788, %v956
      %v958 = vpop.f32.mrf.mxu0
      %v959 = vadd.f32 %v790, %v958
      %960 = vmatmul.bf16.gmra.mxu0 %v506
      %v961 = vpop.f32.mrf.mxu0
      %v962 = vadd.f32 %v793, %v961
      %v963 = vpop.f32.mrf.mxu0
      %v964 = vadd.f32 %v795, %v963
      %965 = vmatmul.bf16.gmra.mxu0 %v508
      %v966 = vpop.f32.mrf.mxu0
      %v967 = vadd.f32 %v798, %v966
      %v968 = vpop.f32.mrf.mxu0
      %v969 = vadd.f32 %v800, %v968
      %970 = vmatmul.bf16.gmra.mxu0 %v510
      %v971 = vpop.f32.mrf.mxu0
      %v972 = vadd.f32 %v803, %v971
      %v973 = vpop.f32.mrf.mxu0
      %v974 = vadd.f32 %v805, %v973
      %975 = vmatmul.bf16.gmra.mxu0 %v512
      %v976 = vpop.f32.mrf.mxu0
      %v977 = vadd.f32 %v808, %v976
      %v978 = vpop.f32.mrf.mxu0
      %v979 = vadd.f32 %v810, %v978
      %980 = vmatmul.bf16.gmra.mxu0 %v514
      %v981 = vpop.f32.mrf.mxu0
      %v982 = vadd.f32 %v813, %v981
      %v983 = vpop.f32.mrf.mxu0
      %v984 = vadd.f32 %v815, %v983
      %985 = vmatmul.bf16.gmra.mxu0 %v516
      %v986 = vpop.f32.mrf.mxu0
      %v987 = vadd.f32 %v818, %v986
      %v988 = vpop.f32.mrf.mxu0
      %v989 = vadd.f32 %v820, %v988
      %990 = vmatmul.bf16.gmra.mxu0 %v518
      %v991 = vpop.f32.mrf.mxu0
      %v992 = vadd.f32 %v823, %v991
      %v993 = vpop.f32.mrf.mxu0
      %v994 = vadd.f32 %v825, %v993
      %995 = vmatmul.bf16.gmra.mxu0 %v520
      %v996 = vpop.f32.mrf.mxu0
      %v997 = vadd.f32 %v828, %v996
      %v998 = vpop.f32.mrf.mxu0
      %v999 = vadd.f32 %v830, %v998
      %1000 = vmatmul.bf16.gmra.mxu0 %v522
      %v1001 = vpop.f32.mrf.mxu0
      %v1002 = vadd.f32 %v833, %v1001
      %v1003 = vpop.f32.mrf.mxu0
      %v1004 = vadd.f32 %v835, %v1003
      %1005 = vmatmul.bf16.gmra.mxu0 %v524
      %v1006 = vpop.f32.mrf.mxu0
      %v1007 = vadd.f32 %v838, %v1006
      %v1008 = vpop.f32.mrf.mxu0
      %v1009 = vadd.f32 %v840, %v1008
      %1010 = vmatmul.bf16.gmra.mxu0 %v526
      %v1011 = vpop.f32.mrf.mxu0
      %v1012 = vadd.f32 %v843, %v1011
      %v1013 = vpop.f32.mrf.mxu0
      %v1014 = vadd.f32 %v845, %v1013
      %1015 = vmatmul.bf16.gmra.mxu0 %v528
      %v1016 = vpop.f32.mrf.mxu0
      %v1017 = vadd.f32 %v848, %v1016
      %v1018 = vpop.f32.mrf.mxu0
      %v1019 = vadd.f32 %v850, %v1018
      %1020 = vmatmul.bf16.gmra.mxu0 %v530
      %v1021 = vpop.f32.mrf.mxu0
      %v1022 = vadd.f32 %v853, %v1021
      %v1023 = vpop.f32.mrf.mxu0
      %v1024 = vadd.f32 %v855, %v1023
      %1025 = vmatmul.bf16.gmra.mxu0 %v532
      %v1026 = vpop.f32.mrf.mxu0
      %v1027 = vadd.f32 %v858, %v1026
      %v1028 = vpop.f32.mrf.mxu0
      %v1029 = vadd.f32 %v860, %v1028
      %1030 = vdwg.mxu0
      %v1031 = vmax.f32 %v872, 0.0
      %v1032 = vmax.f32 %v874, 0.0
      %v1033 = vmax.f32 %v877, 0.0
      %v1034 = vmax.f32 %v879, 0.0
      %v1035 = vmax.f32 %v882, 0.0
      %v1036 = vmax.f32 %v884, 0.0
      %v1037 = vmax.f32 %v887, 0.0
      %v1038 = vmax.f32 %v889, 0.0
      %v1039 = vmax.f32 %v892, 0.0
      %v1040 = vmax.f32 %v894, 0.0
      %v1041 = vmax.f32 %v897, 0.0
      %v1042 = vmax.f32 %v899, 0.0
      %v1043 = vmax.f32 %v902, 0.0
      %v1044 = vmax.f32 %v904, 0.0
      %v1045 = vmax.f32 %v907, 0.0
      %v1046 = vmax.f32 %v909, 0.0
      %v1047 = vmax.f32 %v912, 0.0
      %v1048 = vmax.f32 %v914, 0.0
      %v1049 = vmax.f32 %v917, 0.0
      %v1050 = vmax.f32 %v919, 0.0
      %v1051 = vmax.f32 %v922, 0.0
      %v1052 = vmax.f32 %v924, 0.0
      %v1053 = vmax.f32 %v927, 0.0
      %v1054 = vmax.f32 %v929, 0.0
      %v1055 = vmax.f32 %v932, 0.0
      %v1056 = vmax.f32 %v934, 0.0
      %v1057 = vmax.f32 %v937, 0.0
      %v1058 = vmax.f32 %v939, 0.0
      %v1059 = vmax.f32 %v942, 0.0
      %v1060 = vmax.f32 %v944, 0.0
      %v1061 = vmax.f32 %v947, 0.0
      %v1062 = vmax.f32 %v949, 0.0
      %v1063 = vmax.f32 %v952, 0.0
      %v1064 = vmax.f32 %v954, 0.0
      %v1065 = vmax.f32 %v957, 0.0
      %v1066 = vmax.f32 %v959, 0.0
      %v1067 = vmax.f32 %v962, 0.0
      %v1068 = vmax.f32 %v964, 0.0
      %v1069 = vmax.f32 %v967, 0.0
      %v1070 = vmax.f32 %v969, 0.0
      %v1071 = vmax.f32 %v972, 0.0
      %v1072 = vmax.f32 %v974, 0.0
      %v1073 = vmax.f32 %v977, 0.0
      %v1074 = vmax.f32 %v979, 0.0
      %v1075 = vmax.f32 %v982, 0.0
      %v1076 = vmax.f32 %v984, 0.0
      %v1077 = vmax.f32 %v987, 0.0
      %v1078 = vmax.f32 %v989, 0.0
      %v1079 = vmax.f32 %v992, 0.0
      %v1080 = vmax.f32 %v994, 0.0
      %v1081 = vmax.f32 %v997, 0.0
      %v1082 = vmax.f32 %v999, 0.0
      %v1083 = vmax.f32 %v1002, 0.0
      %v1084 = vmax.f32 %v1004, 0.0
      %v1085 = vmax.f32 %v1007, 0.0
      %v1086 = vmax.f32 %v1009, 0.0
      %v1087 = vmax.f32 %v1012, 0.0
      %v1088 = vmax.f32 %v1014, 0.0
      %v1089 = vmax.f32 %v1017, 0.0
      %v1090 = vmax.f32 %v1019, 0.0
      %v1091 = vmax.f32 %v1022, 0.0
      %v1092 = vmax.f32 %v1024, 0.0
      %v1093 = vmax.f32 %v1027, 0.0
      %v1094 = vmax.f32 %v1029, 0.0
      %v1095 = vpack.c.bf16 %v1031, %v1031
      %v1096 = vpack.c.bf16 %v1032, %v1032
      %v1097 = vpack.c.bf16 %v1033, %v1033
      %v1098 = vpack.c.bf16 %v1034, %v1034
      %v1099 = vpack.c.bf16 %v1035, %v1035
      %v1100 = vpack.c.bf16 %v1036, %v1036
      %v1101 = vpack.c.bf16 %v1037, %v1037
      %v1102 = vpack.c.bf16 %v1038, %v1038
      %v1103 = vpack.c.bf16 %v1039, %v1039
      %v1104 = vpack.c.bf16 %v1040, %v1040
      %v1105 = vpack.c.bf16 %v1041, %v1041
      %v1106 = vpack.c.bf16 %v1042, %v1042
      %v1107 = vpack.c.bf16 %v1043, %v1043
      %v1108 = vpack.c.bf16 %v1044, %v1044
      %v1109 = vpack.c.bf16 %v1045, %v1045
      %v1110 = vpack.c.bf16 %v1046, %v1046
      %v1111 = vpack.c.bf16 %v1047, %v1047
      %v1112 = vpack.c.bf16 %v1048, %v1048
      %v1113 = vpack.c.bf16 %v1049, %v1049
      %v1114 = vpack.c.bf16 %v1050, %v1050
      %v1115 = vpack.c.bf16 %v1051, %v1051
      %v1116 = vpack.c.bf16 %v1052, %v1052
      %v1117 = vpack.c.bf16 %v1053, %v1053
      %v1118 = vpack.c.bf16 %v1054, %v1054
      %v1119 = vpack.c.bf16 %v1055, %v1055
      %v1120 = vpack.c.bf16 %v1056, %v1056
      %v1121 = vpack.c.bf16 %v1057, %v1057
      %v1122 = vpack.c.bf16 %v1058, %v1058
      %v1123 = vpack.c.bf16 %v1059, %v1059
      %v1124 = vpack.c.bf16 %v1060, %v1060
      %v1125 = vpack.c.bf16 %v1061, %v1061
      %v1126 = vpack.c.bf16 %v1062, %v1062
      %v1127 = vpack.c.bf16 %v1063, %v1063
      %v1128 = vpack.c.bf16 %v1064, %v1064
      %v1129 = vpack.c.bf16 %v1065, %v1065
      %v1130 = vpack.c.bf16 %v1066, %v1066
      %v1131 = vpack.c.bf16 %v1067, %v1067
      %v1132 = vpack.c.bf16 %v1068, %v1068
      %v1133 = vpack.c.bf16 %v1069, %v1069
      %v1134 = vpack.c.bf16 %v1070, %v1070
      %v1135 = vpack.c.bf16 %v1071, %v1071
      %v1136 = vpack.c.bf16 %v1072, %v1072
      %v1137 = vpack.c.bf16 %v1073, %v1073
      %v1138 = vpack.c.bf16 %v1074, %v1074
      %v1139 = vpack.c.bf16 %v1075, %v1075
      %v1140 = vpack.c.bf16 %v1076, %v1076
      %v1141 = vpack.c.bf16 %v1077, %v1077
      %v1142 = vpack.c.bf16 %v1078, %v1078
      %v1143 = vpack.c.bf16 %v1079, %v1079
      %v1144 = vpack.c.bf16 %v1080, %v1080
      %v1145 = vpack.c.bf16 %v1081, %v1081
      %v1146 = vpack.c.bf16 %v1082, %v1082
      %v1147 = vpack.c.bf16 %v1083, %v1083
      %v1148 = vpack.c.bf16 %v1084, %v1084
      %v1149 = vpack.c.bf16 %v1085, %v1085
      %v1150 = vpack.c.bf16 %v1086, %v1086
      %v1151 = vpack.c.bf16 %v1087, %v1087
      %v1152 = vpack.c.bf16 %v1088, %v1088
      %v1153 = vpack.c.bf16 %v1089, %v1089
      %v1154 = vpack.c.bf16 %v1090, %v1090
      %v1155 = vpack.c.bf16 %v1091, %v1091
      %v1156 = vpack.c.bf16 %v1092, %v1092
      %v1157 = vpack.c.bf16 %v1093, %v1093
      %v1158 = vpack.c.bf16 %v1094, %v1094
      %vm1159 = vcmask 519168
      %1160 = vst.msk [vmem:[%s175] sm:$0xf] %vm1159, %v1095
      %1161 = vst.msk [vmem:[%s175 + $0x4] sm:$0xf] %vm1159, %v1096
      %1162 = vst.msk [vmem:[%s175 + $0x8] sm:$0xf] %vm1159, %v1097
      %1163 = vst.msk [vmem:[%s175 + $0xc] sm:$0xf] %vm1159, %v1098
      %1164 = vst.msk [vmem:[%s175 + $0x10] sm:$0xf] %vm1159, %v1099
      %1165 = vst.msk [vmem:[%s175 + $0x14] sm:$0xf] %vm1159, %v1100
      %1166 = vst.msk [vmem:[%s175 + $0x18] sm:$0xf] %vm1159, %v1101
      %1167 = vst.msk [vmem:[%s175 + $0x1c] sm:$0xf] %vm1159, %v1102
      %1168 = vst.msk [vmem:[%s175 + $0x20] sm:$0xf] %vm1159, %v1103
      %1169 = vst.msk [vmem:[%s175 + $0x24] sm:$0xf] %vm1159, %v1104
      %1170 = vst.msk [vmem:[%s175 + $0x28] sm:$0xf] %vm1159, %v1105
      %1171 = vst.msk [vmem:[%s175 + $0x2c] sm:$0xf] %vm1159, %v1106
      %1172 = vst.msk [vmem:[%s175 + $0x30] sm:$0xf] %vm1159, %v1107
      %1173 = vst.msk [vmem:[%s175 + $0x34] sm:$0xf] %vm1159, %v1108
      %1174 = vst.msk [vmem:[%s175 + $0x38] sm:$0xf] %vm1159, %v1109
      %1175 = vst.msk [vmem:[%s175 + $0x3c] sm:$0xf] %vm1159, %v1110
      %1176 = vst.msk [vmem:[%s175 + $0x40] sm:$0xf] %vm1159, %v1111
      %1177 = vst.msk [vmem:[%s175 + $0x44] sm:$0xf] %vm1159, %v1112
      %1178 = vst.msk [vmem:[%s175 + $0x48] sm:$0xf] %vm1159, %v1113
      %1179 = vst.msk [vmem:[%s175 + $0x4c] sm:$0xf] %vm1159, %v1114
      %1180 = vst.msk [vmem:[%s175 + $0x50] sm:$0xf] %vm1159, %v1115
      %1181 = vst.msk [vmem:[%s175 + $0x54] sm:$0xf] %vm1159, %v1116
      %1182 = vst.msk [vmem:[%s175 + $0x58] sm:$0xf] %vm1159, %v1117
      %1183 = vst.msk [vmem:[%s175 + $0x5c] sm:$0xf] %vm1159, %v1118
      %1184 = vst.msk [vmem:[%s175 + $0x60] sm:$0xf] %vm1159, %v1119
      %1185 = vst.msk [vmem:[%s175 + $0x64] sm:$0xf] %vm1159, %v1120
      %1186 = vst.msk [vmem:[%s175 + $0x68] sm:$0xf] %vm1159, %v1121
      %1187 = vst.msk [vmem:[%s175 + $0x6c] sm:$0xf] %vm1159, %v1122
      %1188 = vst.msk [vmem:[%s175 + $0x70] sm:$0xf] %vm1159, %v1123
      %1189 = vst.msk [vmem:[%s175 + $0x74] sm:$0xf] %vm1159, %v1124
      %1190 = vst.msk [vmem:[%s175 + $0x78] sm:$0xf] %vm1159, %v1125
      %1191 = vst.msk [vmem:[%s175 + $0x7c] sm:$0xf] %vm1159, %v1126
      %1192 = vst.msk [vmem:[%s175 + $0x80] sm:$0xf] %vm1159, %v1127
      %1193 = vst.msk [vmem:[%s175 + $0x84] sm:$0xf] %vm1159, %v1128
      %1194 = vst.msk [vmem:[%s175 + $0x88] sm:$0xf] %vm1159, %v1129
      %1195 = vst.msk [vmem:[%s175 + $0x8c] sm:$0xf] %vm1159, %v1130
      %1196 = vst.msk [vmem:[%s175 + $0x90] sm:$0xf] %vm1159, %v1131
      %1197 = vst.msk [vmem:[%s175 + $0x94] sm:$0xf] %vm1159, %v1132
      %1198 = vst.msk [vmem:[%s175 + $0x98] sm:$0xf] %vm1159, %v1133
      %1199 = vst.msk [vmem:[%s175 + $0x9c] sm:$0xf] %vm1159, %v1134
      %1200 = vst.msk [vmem:[%s175 + $0xa0] sm:$0xf] %vm1159, %v1135
      %1201 = vst.msk [vmem:[%s175 + $0xa4] sm:$0xf] %vm1159, %v1136
      %1202 = vst.msk [vmem:[%s175 + $0xa8] sm:$0xf] %vm1159, %v1137
      %1203 = vst.msk [vmem:[%s175 + $0xac] sm:$0xf] %vm1159, %v1138
      %1204 = vst.msk [vmem:[%s175 + $0xb0] sm:$0xf] %vm1159, %v1139
      %1205 = vst.msk [vmem:[%s175 + $0xb4] sm:$0xf] %vm1159, %v1140
      %1206 = vst.msk [vmem:[%s175 + $0xb8] sm:$0xf] %vm1159, %v1141
      %1207 = vst.msk [vmem:[%s175 + $0xbc] sm:$0xf] %vm1159, %v1142
      %1208 = vst.msk [vmem:[%s175 + $0xc0] sm:$0xf] %vm1159, %v1143
      %1209 = vst.msk [vmem:[%s175 + $0xc4] sm:$0xf] %vm1159, %v1144
      %1210 = vst.msk [vmem:[%s175 + $0xc8] sm:$0xf] %vm1159, %v1145
      %1211 = vst.msk [vmem:[%s175 + $0xcc] sm:$0xf] %vm1159, %v1146
      %1212 = vst.msk [vmem:[%s175 + $0xd0] sm:$0xf] %vm1159, %v1147
      %1213 = vst.msk [vmem:[%s175 + $0xd4] sm:$0xf] %vm1159, %v1148
      %1214 = vst.msk [vmem:[%s175 + $0xd8] sm:$0xf] %vm1159, %v1149
      %1215 = vst.msk [vmem:[%s175 + $0xdc] sm:$0xf] %vm1159, %v1150
      %1216 = vst.msk [vmem:[%s175 + $0xe0] sm:$0xf] %vm1159, %v1151
      %1217 = vst.msk [vmem:[%s175 + $0xe4] sm:$0xf] %vm1159, %v1152
      %1218 = vst.msk [vmem:[%s175 + $0xe8] sm:$0xf] %vm1159, %v1153
      %1219 = vst.msk [vmem:[%s175 + $0xec] sm:$0xf] %vm1159, %v1154
      %1220 = vst.msk [vmem:[%s175 + $0xf0] sm:$0xf] %vm1159, %v1155
      %1221 = vst.msk [vmem:[%s175 + $0xf4] sm:$0xf] %vm1159, %v1156
      %1222 = vst.msk [vmem:[%s175 + $0xf8] sm:$0xf] %vm1159, %v1157
      %1223 = vst.msk [vmem:[%s175 + $0xfc] sm:$0xf] %vm1159, %v1158
      %s1224 = smul.u32 64, %s14
      %p1225 = scmp.lt.s32.totalorder %s1224, 319
      %s1226 = scalar_select %p1225, %s1224, 319
      %s1227 = smul.addr %s1226, 4
      %s1228 = scalar_lea.vmem %s3, %s1227
      // Predicated region
      $region33: #{combine_forward.4} parent=31 // pred_check
        %p1229 = pneg %p100
      $region34: #{combine_forward.4} parent=31 // pred_check_branch
        %1231 = sbr.rel (%p1229) target = $region36
      $region35: #{combine_forward.4} parent=31 // pred_region
        %s1232 = smul.u32 64, %s14
      $region36: #{combine_forward.4} parent=31 // pred_fallthru
        _
    $region32: #{combine_forward.4} parent=5 // pred_fallthru
      _
    %p1233 = scmp.le.s32.totalorder 2, %s9
    // Predicated region
    $region37: #{combine_forward.4} parent=5 // pred_check
      %p1234 = pneg %p1233
    $region38: #{combine_forward.4} parent=5 // pred_check_branch
      %1236 = sbr.rel (%p1234) target = $region40
    $region39: #{combine_forward.4} parent=5 // pred_region
      %s1237 = ssub.s32 %s9, 2
      // Predicated region
      $region41: #{combine_forward.4} parent=39 // pred_check
        %p1238 = pneg %p106
      $region42: #{combine_forward.4} parent=39 // pred_check_branch
        %1240 = sbr.rel (%p1238) target = $region44
      $region43: #{combine_forward.4} parent=39 // pred_region
        %s1241 = smul.u32 64, %s15
        %p1242 = scmp.lt.s32.totalorder %s1241, 319
        %s1243 = scalar_select %p1242, %s1241, 319
        %s1244 = smul.addr %s1243, 4
        %s1245 = scalar_lea.vmem %s3, %s1244
      $region44: #{combine_forward.4} parent=39 // pred_fallthru
        _
    $region40: #{combine_forward.4} parent=5 // pred_fallthru
      _
  $region6: #{combine_forward.4} parent=0 // loop_footer
    %s13 = sadd.s32 1, %s9
  $region7: #{combine_forward.4} parent=0 // loop_footer_branch
    %8 = sbr.rel target = $region3
  $region8: #{combine_forward.4} parent=0 // loop_exit
    _

// kernel: combine_forward.5
$region0: #{combine_forward.5}
  #allocation0 [shape = 'u32[]', space=smem, size = 0x4, offset = 0x4, fixed_abs, tag = 'smem constant byte address 0x4 - core index']
  #allocation1 [shape = 'u32[72,128]{1,0:T(1,128)}', space=vmem, size = 0x9000, scoped, tag = 'internal scratch']
  #allocation2 [shape = 'bf16[196,64]{1,0:T(8,128)(2,1)}', space=vmem, size = 0xc800, scoped, tag = 'scratch operand']
  %s0 = inlined_call_operand.vmem [shape: bf16[4,196,64], index: 0, kind: input, shape index: {}]
  %s1 = inlined_call_operand.vmem [shape: f32[196,1], index: 1, kind: input, shape index: {}]
  %s2 = inlined_call_operand.vmem [shape: bf16[64,64], index: 2, kind: input, shape index: {}, may-alias: {2,6}]
  %s3 = inlined_call_operand.vmem [shape: f32[1,64], index: 3, kind: input, shape index: {}, may-alias: {3,7}]
  %s4 = inlined_call_operand.vmem [shape: bf16[9,64,64], index: 4, kind: input, shape index: {}]
  %s5 = inlined_call_operand.vmem [shape: f32[1,64], index: 5, kind: input, shape index: {}]
  %s6 = inlined_call_operand.vmem [shape: bf16[64,64], index: 6, kind: input, shape index: {}, may-alias: {2,6}]
  %s7 = inlined_call_operand.vmem [shape: f32[1,64], index: 7, kind: input, shape index: {}, may-alias: {3,7}]
  %s8 = inlined_call_operand.vmem [shape: bf16[4,166,64], index: 8, kind: output, shape index: {}]
  %s9 = sld [smem:[#allocation0]]
  $region65: #{combine_forward.5} parent=0
    _
  %s11 = ssub.s32 1, %s9
  %s12 = scalar_select 0, %s11, %s9
  loop: start=0, step=1, limit=6
  $region2: #{combine_forward.5} parent=0 // loop_pre_header
    _
  $region3: #{combine_forward.5} parent=0 // loop_header
    %s14 = sphi 0, %s18
    %p15 = scmp.ge.s32.totalorder %s14, 6
    %s24 = sphi 0, %s26
    %s27 = sphi 0, %s24
    %s28 = sphi 0, %s27
    %s44 = sphi 0, %s28
    %s48 = sphi 0, %s48
    %s50 = sphi 0, %s48
    %s51 = sphi 0, %s50
    %s65 = sphi 0, %s51
    %s69 = sphi 0, %s69
    %s71 = sphi 0, %s69
    %s72 = sphi 0, %s71
    %s86 = sphi 0, %s72
    %s90 = sphi 0, %s90
    %s92 = sphi 0, %s90
    %s93 = sphi 0, %s92
    %s107 = sphi 0, %s93
    %s111 = sphi 0, %s111
    %s113 = sphi 0, %s111
    %s114 = sphi 0, %s113
    %s128 = sphi 0, %s114
    %s132 = sphi 0, %s132
    %s134 = sphi 0, %s132
    %s135 = sphi 0, %s134
    %s149 = sphi 0, %s135
    %s153 = sphi 0, %s153
    %s155 = sphi 0, %s153
    %s156 = sphi 0, %s155
    %s170 = sphi 0, %s156
    %s174 = sphi 0, %s174
    %s176 = sphi 0, %s174
    %s177 = sphi 0, %s176
    %s191 = sphi 0, %s177
    %s197 = sphi 0, %s199
    %s200 = sphi 0, %s197
    %s201 = sphi 0, %s200
    %s217 = sphi 0, %s201
  $region4: #{combine_forward.5} parent=0 // loop_header_branch
    %17 = sbr.rel (%p15) target = $region8
  $region5: #{combine_forward.5} parent=0 // loop_body
    %s19 = ssub.s32 %s14, 1
    %s20 = ssub.s32 %s14, 2
    %s21 = sadd.s32 %s14, 1
    %s22 = ssub.s32 %s14, %s21
    %p23 = scmp.eq.s32.totalorder %s22, 0
    %s25 = sadd.s32 %s24, 1
    %s26 = scalar_select %p23, %s24, %s25
    %p29 = pneg %p23
    %p30 = scmp.eq.s32.totalorder %s14, 3
    %p31 = por %p29, %p30
    %p32 = scmp.ne.s32.totalorder %s24, %s27
    %p33 = scmp.eq.s32.totalorder %s14, 0
    %p34 = por %p32, %p33
    %p35 = scmp.ne.s32.totalorder %s24, %s27
    %p36 = scmp.eq.s32.totalorder %s19, 3
    %p37 = por %p35, %p36
    %p38 = scmp.ne.s32.totalorder %s27, %s28
    %p39 = scmp.eq.s32.totalorder %s19, 0
    %p40 = por %p38, %p39
    %p41 = scmp.ne.s32.totalorder %s27, %s28
    %p42 = scmp.eq.s32.totalorder %s20, 3
    %p43 = por %p41, %p42
    %p45 = scmp.ne.s32.totalorder %s28, %s44
    %p46 = scmp.eq.s32.totalorder %s20, 0
    %p47 = por %p45, %p46
    %s49 = sadd.s32 %s48, 1
    %p52 = scmp.eq.s32.totalorder %s14, 3
    %p53 = scmp.ne.s32.totalorder %s48, %s50
    %p54 = scmp.eq.s32.totalorder %s14, 0
    %p55 = por %p53, %p54
    %p56 = scmp.ne.s32.totalorder %s48, %s50
    %p57 = scmp.eq.s32.totalorder %s19, 3
    %p58 = por %p56, %p57
    %p59 = scmp.ne.s32.totalorder %s50, %s51
    %p60 = scmp.eq.s32.totalorder %s19, 0
    %p61 = por %p59, %p60
    %p62 = scmp.ne.s32.totalorder %s50, %s51
    %p63 = scmp.eq.s32.totalorder %s20, 3
    %p64 = por %p62, %p63
    %p66 = scmp.ne.s32.totalorder %s51, %s65
    %p67 = scmp.eq.s32.totalorder %s20, 0
    %p68 = por %p66, %p67
    %s70 = sadd.s32 %s69, 1
    %p73 = scmp.eq.s32.totalorder %s14, 3
    %p74 = scmp.ne.s32.totalorder %s69, %s71
    %p75 = scmp.eq.s32.totalorder %s14, 0
    %p76 = por %p74, %p75
    %p77 = scmp.ne.s32.totalorder %s69, %s71
    %p78 = scmp.eq.s32.totalorder %s19, 3
    %p79 = por %p77, %p78
    %p80 = scmp.ne.s32.totalorder %s71, %s72
    %p81 = scmp.eq.s32.totalorder %s19, 0
    %p82 = por %p80, %p81
    %p83 = scmp.ne.s32.totalorder %s71, %s72
    %p84 = scmp.eq.s32.totalorder %s20, 3
    %p85 = por %p83, %p84
    %p87 = scmp.ne.s32.totalorder %s72, %s86
    %p88 = scmp.eq.s32.totalorder %s20, 0
    %p89 = por %p87, %p88
    %s91 = sadd.s32 %s90, 1
    %p94 = scmp.eq.s32.totalorder %s14, 3
    %p95 = scmp.ne.s32.totalorder %s90, %s92
    %p96 = scmp.eq.s32.totalorder %s14, 0
    %p97 = por %p95, %p96
    %p98 = scmp.ne.s32.totalorder %s90, %s92
    %p99 = scmp.eq.s32.totalorder %s19, 3
    %p100 = por %p98, %p99
    %p101 = scmp.ne.s32.totalorder %s92, %s93
    %p102 = scmp.eq.s32.totalorder %s19, 0
    %p103 = por %p101, %p102
    %p104 = scmp.ne.s32.totalorder %s92, %s93
    %p105 = scmp.eq.s32.totalorder %s20, 3
    %p106 = por %p104, %p105
    %p108 = scmp.ne.s32.totalorder %s93, %s107
    %p109 = scmp.eq.s32.totalorder %s20, 0
    %p110 = por %p108, %p109
    %s112 = sadd.s32 %s111, 1
    %p115 = scmp.eq.s32.totalorder %s14, 3
    %p116 = scmp.ne.s32.totalorder %s111, %s113
    %p117 = scmp.eq.s32.totalorder %s14, 0
    %p118 = por %p116, %p117
    %p119 = scmp.ne.s32.totalorder %s111, %s113
    %p120 = scmp.eq.s32.totalorder %s19, 3
    %p121 = por %p119, %p120
    %p122 = scmp.ne.s32.totalorder %s113, %s114
    %p123 = scmp.eq.s32.totalorder %s19, 0
    %p124 = por %p122, %p123
    %p125 = scmp.ne.s32.totalorder %s113, %s114
    %p126 = scmp.eq.s32.totalorder %s20, 3
    %p127 = por %p125, %p126
    %p129 = scmp.ne.s32.totalorder %s114, %s128
    %p130 = scmp.eq.s32.totalorder %s20, 0
    %p131 = por %p129, %p130
    %s133 = sadd.s32 %s132, 1
    %p136 = scmp.eq.s32.totalorder %s14, 3
    %p137 = scmp.ne.s32.totalorder %s132, %s134
    %p138 = scmp.eq.s32.totalorder %s14, 0
    %p139 = por %p137, %p138
    %p140 = scmp.ne.s32.totalorder %s132, %s134
    %p141 = scmp.eq.s32.totalorder %s19, 3
    %p142 = por %p140, %p141
    %p143 = scmp.ne.s32.totalorder %s134, %s135
    %p144 = scmp.eq.s32.totalorder %s19, 0
    %p145 = por %p143, %p144
    %p146 = scmp.ne.s32.totalorder %s134, %s135
    %p147 = scmp.eq.s32.totalorder %s20, 3
    %p148 = por %p146, %p147
    %p150 = scmp.ne.s32.totalorder %s135, %s149
    %p151 = scmp.eq.s32.totalorder %s20, 0
    %p152 = por %p150, %p151
    %s154 = sadd.s32 %s153, 1
    %p157 = scmp.eq.s32.totalorder %s14, 3
    %p158 = scmp.ne.s32.totalorder %s153, %s155
    %p159 = scmp.eq.s32.totalorder %s14, 0
    %p160 = por %p158, %p159
    %p161 = scmp.ne.s32.totalorder %s153, %s155
    %p162 = scmp.eq.s32.totalorder %s19, 3
    %p163 = por %p161, %p162
    %p164 = scmp.ne.s32.totalorder %s155, %s156
    %p165 = scmp.eq.s32.totalorder %s19, 0
    %p166 = por %p164, %p165
    %p167 = scmp.ne.s32.totalorder %s155, %s156
    %p168 = scmp.eq.s32.totalorder %s20, 3
    %p169 = por %p167, %p168
    %p171 = scmp.ne.s32.totalorder %s156, %s170
    %p172 = scmp.eq.s32.totalorder %s20, 0
    %p173 = por %p171, %p172
    %s175 = sadd.s32 %s174, 1
    %p178 = scmp.eq.s32.totalorder %s14, 3
    %p179 = scmp.ne.s32.totalorder %s174, %s176
    %p180 = scmp.eq.s32.totalorder %s14, 0
    %p181 = por %p179, %p180
    %p182 = scmp.ne.s32.totalorder %s174, %s176
    %p183 = scmp.eq.s32.totalorder %s19, 3
    %p184 = por %p182, %p183
    %p185 = scmp.ne.s32.totalorder %s176, %s177
    %p186 = scmp.eq.s32.totalorder %s19, 0
    %p187 = por %p185, %p186
    %p188 = scmp.ne.s32.totalorder %s176, %s177
    %p189 = scmp.eq.s32.totalorder %s20, 3
    %p190 = por %p188, %p189
    %p192 = scmp.ne.s32.totalorder %s177, %s191
    %p193 = scmp.eq.s32.totalorder %s20, 0
    %p194 = por %p192, %p193
    %s195 = ssub.s32 %s14, %s21
    %p196 = scmp.eq.s32.totalorder %s195, 0
    %s198 = sadd.s32 %s197, 1
    %s199 = scalar_select %p196, %s197, %s198
    %p202 = pneg %p196
    %p203 = scmp.eq.s32.totalorder %s14, 3
    %p204 = por %p202, %p203
    %p205 = scmp.ne.s32.totalorder %s197, %s200
    %p206 = scmp.eq.s32.totalorder %s14, 0
    %p207 = por %p205, %p206
    %p208 = scmp.ne.s32.totalorder %s197, %s200
    %p209 = scmp.eq.s32.totalorder %s19, 3
    %p210 = por %p208, %p209
    %p211 = scmp.ne.s32.totalorder %s200, %s201
    %p212 = scmp.eq.s32.totalorder %s19, 0
    %p213 = por %p211, %p212
    %p214 = scmp.ne.s32.totalorder %s200, %s201
    %p215 = scmp.eq.s32.totalorder %s20, 3
    %p216 = por %p214, %p215
    %p218 = scmp.ne.s32.totalorder %s201, %s217
    %p219 = scmp.eq.s32.totalorder %s20, 0
    %p220 = por %p218, %p219
    %p221 = scmp.le.s32.totalorder 1, %s14
    %p222 = scmp.lt.s32.totalorder %s14, 5
    %p223 = pnand %p221, %p222
    %p224 = pneg %p223
    // Predicated region
    $region9: #{combine_forward.5} parent=5 // pred_check
      _
    $region10: #{combine_forward.5} parent=5 // pred_check_branch
      %226 = sbr.rel (%p223) target = $region12
    $region11: #{combine_forward.5} parent=5 // pred_region
      %s227 = ssub.s32 %s14, 1
      // Predicated region
      $region13: #{combine_forward.5} parent=11 // pred_check
        %p228 = pneg %p61
      $region14: #{combine_forward.5} parent=11 // pred_check_branch
        %230 = sbr.rel (%p228) target = $region16
      $region15: #{combine_forward.5} parent=11 // pred_region
        _
      $region16: #{combine_forward.5} parent=11 // pred_fallthru
        _
      // Predicated region
      $region17: #{combine_forward.5} parent=11 // pred_check
        %p231 = pneg %p82
      $region18: #{combine_forward.5} parent=11 // pred_check_branch
        %233 = sbr.rel (%p231) target = $region20
      $region19: #{combine_forward.5} parent=11 // pred_region
        _
      $region20: #{combine_forward.5} parent=11 // pred_fallthru
        _
      // Predicated region
      $region21: #{combine_forward.5} parent=11 // pred_check
        %p234 = pneg %p103
      $region22: #{combine_forward.5} parent=11 // pred_check_branch
        %236 = sbr.rel (%p234) target = $region24
      $region23: #{combine_forward.5} parent=11 // pred_region
        _
      $region24: #{combine_forward.5} parent=11 // pred_fallthru
        _
      // Predicated region
      $region25: #{combine_forward.5} parent=11 // pred_check
        %p237 = pneg %p124
      $region26: #{combine_forward.5} parent=11 // pred_check_branch
        %239 = sbr.rel (%p237) target = $region28
      $region27: #{combine_forward.5} parent=11 // pred_region
        _
      $region28: #{combine_forward.5} parent=11 // pred_fallthru
        _
      // Predicated region
      $region29: #{combine_forward.5} parent=11 // pred_check
        %p240 = pneg %p145
      $region30: #{combine_forward.5} parent=11 // pred_check_branch
        %242 = sbr.rel (%p240) target = $region32
      $region31: #{combine_forward.5} parent=11 // pred_region
        _
      $region32: #{combine_forward.5} parent=11 // pred_fallthru
        _
      // Predicated region
      $region33: #{combine_forward.5} parent=11 // pred_check
        %p243 = pneg %p166
      $region34: #{combine_forward.5} parent=11 // pred_check_branch
        %245 = sbr.rel (%p243) target = $region36
      $region35: #{combine_forward.5} parent=11 // pred_region
        _
      $region36: #{combine_forward.5} parent=11 // pred_fallthru
        _
      // Predicated region
      $region37: #{combine_forward.5} parent=11 // pred_check
        %p246 = pneg %p187
      $region38: #{combine_forward.5} parent=11 // pred_check_branch
        %248 = sbr.rel (%p246) target = $region40
      $region39: #{combine_forward.5} parent=11 // pred_region
        _
      $region40: #{combine_forward.5} parent=11 // pred_fallthru
        _
    $region12: #{combine_forward.5} parent=5 // pred_fallthru
      _
    %p249 = scmp.lt.s32.totalorder %s14, 4
    // Predicated region
    $region41: #{combine_forward.5} parent=5 // pred_check
      %p250 = pneg %p249
    $region42: #{combine_forward.5} parent=5 // pred_check_branch
      %252 = sbr.rel (%p250) target = $region44
    $region43: #{combine_forward.5} parent=5 // pred_region
      // Predicated region
      $region45: #{combine_forward.5} parent=43 // pred_check
        %p253 = pneg %p34
      $region46: #{combine_forward.5} parent=43 // pred_check_branch
        %255 = sbr.rel (%p253) target = $region48
      $region47: #{combine_forward.5} parent=43 // pred_region
        %p256 = scmp.lt.s32.totalorder %s14, 3
        %s257 = scalar_select %p256, %s14, 3
        %s258 = smul.addr %s257, 25
        %s259 = smul.addr %s258, 4
        %s260 = scalar_lea.vmem %s0, %s259
      $region48: #{combine_forward.5} parent=43 // pred_fallthru
        _
    $region44: #{combine_forward.5} parent=5 // pred_fallthru
      _
    %p261 = scmp.le.s32.totalorder 1, %s14
    %p262 = scmp.lt.s32.totalorder %s14, 5
    %p263 = pnand %p261, %p262
    %p264 = pneg %p263
    // Predicated region
    $region49: #{combine_forward.5} parent=5 // pred_check
      _
    $region50: #{combine_forward.5} parent=5 // pred_check_branch
      %266 = sbr.rel (%p263) target = $region52
    $region51: #{combine_forward.5} parent=5 // pred_region
      %s267 = ssub.s32 %s14, 1
      %p268 = scmp.lt.s32.totalorder %s19, 3
      %s269 = scalar_select %p268, %s19, 3
      %s270 = smul.addr %s269, 25
      %s271 = smul.addr %s270, 4
      %s272 = scalar_lea.vmem %s0, %s271
      %p273 = pneg %p40
      %p274 = pneg %p37
      %p275 = pneg %p61
      %p276 = pneg %p58
      %p277 = pneg %p82
      %p278 = pneg %p79
      %p279 = pneg %p103
      %p280 = pneg %p100
      %p281 = pneg %p124
      %p282 = pneg %p121
      %p283 = pneg %p145
      %p284 = pneg %p142
      %p285 = pneg %p166
      %p286 = pneg %p163
      %p287 = pneg %p187
      %p288 = pneg %p184
      %p289 = pneg %p213
      %p290 = pneg %p210
      %p291 = scmp.lt.s32.totalorder %s19, 3
      %s292 = scalar_select %p291, %s19, 3
      %s293 = smul.addr %s292, 21
      %s294 = smul.addr %s293, 4
      %s295 = scalar_lea.vmem %s8, %s294
      %p296 = scmp.lt.s32.totalorder %s19, 3
      %s297 = scalar_select %p296, %s19, 3
      %s298 = smul.addr %s297, 25
      %s299 = smul.addr %s298, 4
      %s300 = scalar_lea.vmem %s0, %s299
      %p301 = scmp.lt.s32.totalorder %s19, 3
      %s302 = scalar_select %p301, %s19, 3
      %s303 = smul.addr %s302, 21
      %s304 = smul.addr %s303, 4
      %s305 = scalar_lea.vmem %s8, %s304
      %v307 = vld [vmem:[%s300] sm:$0xf]
      %v308 = vld [vmem:[%s300 + $0x4] sm:$0xf]
      %v309 = vld [vmem:[%s300 + $0x8] sm:$0xf]
      %v310 = vld [vmem:[%s300 + $0xc] sm:$0xf]
      %v311 = vld [vmem:[%s300 + $0x10] sm:$0xf]
      %v312 = vld [vmem:[%s300 + $0x14] sm:$0xf]
      %v313 = vld [vmem:[%s300 + $0x18] sm:$0xf]
      %v314 = vld [vmem:[%s300 + $0x1c] sm:$0xf]
      %v315 = vld [vmem:[%s300 + $0x20] sm:$0xf]
      %v316 = vld [vmem:[%s300 + $0x24] sm:$0xf]
      %v317 = vld [vmem:[%s300 + $0x28] sm:$0xf]
      %v318 = vld [vmem:[%s300 + $0x2c] sm:$0xf]
      %v319 = vld [vmem:[%s300 + $0x30] sm:$0xf]
      %v320 = vld [vmem:[%s300 + $0x34] sm:$0xf]
      %v321 = vld [vmem:[%s300 + $0x38] sm:$0xf]
      %v322 = vld [vmem:[%s300 + $0x3c] sm:$0xf]
      %v323 = vld [vmem:[%s300 + $0x40] sm:$0xf]
      %v324 = vld [vmem:[%s300 + $0x44] sm:$0xf]
      %v325 = vld [vmem:[%s300 + $0x48] sm:$0xf]
      %v326 = vld [vmem:[%s300 + $0x4c] sm:$0xf]
      %v327 = vld [vmem:[%s300 + $0x50] sm:$0xf]
      %v328 = vld [vmem:[%s300 + $0x54] sm:$0xf]
      %v329 = vld [vmem:[%s300 + $0x58] sm:$0xf]
      %v330 = vld [vmem:[%s300 + $0x5c] sm:$0xf]
      %v331 = vld [vmem:[%s300 + $0x60] sm:$0x3]
      %v332 = vld [vmem:[%s2] sm:$0xf]
      %v333 = vld [vmem:[%s2 + $0x4] sm:$0xf]
      %v334 = vld [vmem:[%s2 + $0x8] sm:$0xf]
      %v335 = vld [vmem:[%s2 + $0xc] sm:$0xf]
      %v336 = vld [vmem:[%s2 + $0x10] sm:$0xf]
      %v337 = vld [vmem:[%s2 + $0x14] sm:$0xf]
      %v338 = vld [vmem:[%s2 + $0x18] sm:$0xf]
      %v339 = vld [vmem:[%s2 + $0x1c] sm:$0xf]
      %v340 = vld [vmem:[%s3] sm:$0x1]
      %v342 = vperm.slane %v340, 0
      %v369 = vunpack.c.l.b16 %v307
      %v370 = vunpack.c.l.b16 %v308
      %v371 = vunpack.c.l.b16 %v309
      %v372 = vunpack.c.l.b16 %v310
      %v373 = vunpack.c.l.b16 %v311
      %v374 = vunpack.c.l.b16 %v312
      %v375 = vunpack.c.l.b16 %v313
      %v376 = vunpack.c.l.b16 %v314
      %v377 = vunpack.c.l.b16 %v315
      %v378 = vunpack.c.l.b16 %v316
      %v379 = vunpack.c.l.b16 %v317
      %v380 = vunpack.c.l.b16 %v318
      %v381 = vunpack.c.l.b16 %v319
      %v382 = vunpack.c.l.b16 %v320
      %v383 = vunpack.c.l.b16 %v321
      %v384 = vunpack.c.l.b16 %v322
      %v385 = vunpack.c.l.b16 %v323
      %v386 = vunpack.c.l.b16 %v324
      %v387 = vunpack.c.l.b16 %v325
      %v388 = vunpack.c.l.b16 %v326
      %v389 = vunpack.c.l.b16 %v327
      %v390 = vunpack.c.l.b16 %v328
      %v391 = vunpack.c.l.b16 %v329
      %v392 = vunpack.c.l.b16 %v330
      %v393 = vunpack.c.l.b16 %v331
      %v394 = vpack.c.b16 %v370, %v369
      %v395 = vpack.c.b16 %v372, %v371
      %v396 = vpack.c.b16 %v374, %v373
      %v397 = vpack.c.b16 %v376, %v375
      %v398 = vpack.c.b16 %v378, %v377
      %v399 = vpack.c.b16 %v380, %v379
      %v400 = vpack.c.b16 %v382, %v381
      %v401 = vpack.c.b16 %v384, %v383
      %v402 = vpack.c.b16 %v386, %v385
      %v403 = vpack.c.b16 %v388, %v387
      %v404 = vpack.c.b16 %v390, %v389
      %v405 = vpack.c.b16 %v392, %v391
      %v406 = vpack.c.b16 %v393, %v393
      %v415 = vunpack.c.l.b16 %v332
      %v416 = vunpack.c.l.b16 %v333
      %v417 = vunpack.c.l.b16 %v334
      %v418 = vunpack.c.l.b16 %v335
      %v419 = vunpack.c.l.b16 %v336
      %v420 = vunpack.c.l.b16 %v337
      %v421 = vunpack.c.l.b16 %v338
      %v422 = vunpack.c.l.b16 %v339
      %v423 = vpack.c.b16 %v416, %v415
      %v424 = vpack.c.b16 %v418, %v417
      %v425 = vpack.c.b16 %v420, %v419
      %v426 = vpack.c.b16 %v422, %v421
      %vm431 = vcmask 523264
      %v433 = vsel %vm431, %v394, 0
      %v436 = vsel %vm431, %v395, 0
      %v439 = vsel %vm431, %v396, 0
      %v442 = vsel %vm431, %v397, 0
      %v445 = vsel %vm431, %v398, 0
      %v448 = vsel %vm431, %v399, 0
      %v451 = vsel %vm431, %v400, 0
      %v454 = vsel %vm431, %v401, 0
      %v457 = vsel %vm431, %v402, 0
      %v460 = vsel %vm431, %v403, 0
      %v463 = vsel %vm431, %v404, 0
      %v466 = vsel %vm431, %v405, 0
      %v469 = vsel %vm431, %v406, 0
      %471 = vmatpush.bf16.msra.mxu0 0
      %472 = vmatpush.bf16.msra.mxu0 0
      %473 = vmatpush.bf16.msra.mxu0 0
      %474 = vmatpush.bf16.msra.mxu0 0
      %475 = vmatpush.bf16.msra.mxu0 %v426
      %476 = vmatpush.bf16.msra.mxu0 %v425
      %477 = vmatpush.bf16.msra.mxu0 %v424
      %478 = vmatpush.bf16.msra.mxu0 %v423
      %479 = vmatmul.bf16.gmra.mxu0 %v433
      %v480 = vpop.f32.mrf.mxu0
      %v481 = vadd.f32 %v342, %v480
      %v482 = vpop.f32.mrf.mxu0
      %v483 = vadd.f32 %v342, %v482
      %484 = vmatmul.bf16.gmra.mxu0 %v436
      %v485 = vpop.f32.mrf.mxu0
      %v486 = vadd.f32 %v342, %v485
      %v487 = vpop.f32.mrf.mxu0
      %v488 = vadd.f32 %v342, %v487
      %489 = vmatmul.bf16.gmra.mxu0 %v439
      %v490 = vpop.f32.mrf.mxu0
      %v491 = vadd.f32 %v342, %v490
      %v492 = vpop.f32.mrf.mxu0
      %v493 = vadd.f32 %v342, %v492
      %494 = vmatmul.bf16.gmra.mxu0 %v442
      %v495 = vpop.f32.mrf.mxu0
      %v496 = vadd.f32 %v342, %v495
      %v497 = vpop.f32.mrf.mxu0
      %v498 = vadd.f32 %v342, %v497
      %499 = vmatmul.bf16.gmra.mxu0 %v445
      %v500 = vpop.f32.mrf.mxu0
      %v501 = vadd.f32 %v342, %v500
      %v502 = vpop.f32.mrf.mxu0
      %v503 = vadd.f32 %v342, %v502
      %504 = vmatmul.bf16.gmra.mxu0 %v448
      %v505 = vpop.f32.mrf.mxu0
      %v506 = vadd.f32 %v342, %v505
      %v507 = vpop.f32.mrf.mxu0
      %v508 = vadd.f32 %v342, %v507
      %509 = vmatmul.bf16.gmra.mxu0 %v451
      %v510 = vpop.f32.mrf.mxu0
      %v511 = vadd.f32 %v342, %v510
      %v512 = vpop.f32.mrf.mxu0
      %v513 = vadd.f32 %v342, %v512
      %514 = vmatmul.bf16.gmra.mxu0 %v454
      %v515 = vpop.f32.mrf.mxu0
      %v516 = vadd.f32 %v342, %v515
      %v517 = vpop.f32.mrf.mxu0
      %v518 = vadd.f32 %v342, %v517
      %519 = vmatmul.bf16.gmra.mxu0 %v457
      %v520 = vpop.f32.mrf.mxu0
      %v521 = vadd.f32 %v342, %v520
      %v522 = vpop.f32.mrf.mxu0
      %v523 = vadd.f32 %v342, %v522
      %524 = vmatmul.bf16.gmra.mxu0 %v460
      %v525 = vpop.f32.mrf.mxu0
      %v526 = vadd.f32 %v342, %v525
      %v527 = vpop.f32.mrf.mxu0
      %v528 = vadd.f32 %v342, %v527
      %529 = vmatmul.bf16.gmra.mxu0 %v463
      %v530 = vpop.f32.mrf.mxu0
      %v531 = vadd.f32 %v342, %v530
      %v532 = vpop.f32.mrf.mxu0
      %v533 = vadd.f32 %v342, %v532
      %534 = vmatmul.bf16.gmra.mxu0 %v466
      %v535 = vpop.f32.mrf.mxu0
      %v536 = vadd.f32 %v342, %v535
      %v537 = vpop.f32.mrf.mxu0
      %v538 = vadd.f32 %v342, %v537
      %539 = vmatmul.bf16.gmra.mxu0 %v469
      %v540 = vpop.f32.mrf.mxu0
      %v541 = vadd.f32 %v342, %v540
      %v542 = vpop.f32.mrf.mxu0
      %543 = vdwg.mxu0
      %v544 = vmax.f32 %v481, 0.0
      %v545 = vmax.f32 %v483, 0.0
      %v546 = vmax.f32 %v486, 0.0
      %v547 = vmax.f32 %v488, 0.0
      %v548 = vmax.f32 %v491, 0.0
      %v549 = vmax.f32 %v493, 0.0
      %v550 = vmax.f32 %v496, 0.0
      %v551 = vmax.f32 %v498, 0.0
      %v552 = vmax.f32 %v501, 0.0
      %v553 = vmax.f32 %v503, 0.0
      %v554 = vmax.f32 %v506, 0.0
      %v555 = vmax.f32 %v508, 0.0
      %v556 = vmax.f32 %v511, 0.0
      %v557 = vmax.f32 %v513, 0.0
      %v558 = vmax.f32 %v516, 0.0
      %v559 = vmax.f32 %v518, 0.0
      %v560 = vmax.f32 %v521, 0.0
      %v561 = vmax.f32 %v523, 0.0
      %v562 = vmax.f32 %v526, 0.0
      %v563 = vmax.f32 %v528, 0.0
      %v564 = vmax.f32 %v531, 0.0
      %v565 = vmax.f32 %v533, 0.0
      %v566 = vmax.f32 %v536, 0.0
      %v567 = vmax.f32 %v538, 0.0
      %v568 = vmax.f32 %v541, 0.0
      %v569 = vld [vmem:[%s1] sm:$0xff]
      %v570 = vld [vmem:[%s1 + $0x8] sm:$0xff]
      %v571 = vld [vmem:[%s1 + $0x10] sm:$0xff]
      %v572 = vld [vmem:[%s1 + $0x18] sm:$0xff]
      %v573 = vld [vmem:[%s1 + $0x20] sm:$0xff]
      %v574 = vld [vmem:[%s1 + $0x28] sm:$0xff]
      %v575 = vld [vmem:[%s1 + $0x30] sm:$0xff]
      %v576 = vld [vmem:[%s1 + $0x38] sm:$0xff]
      %v577 = vld [vmem:[%s1 + $0x40] sm:$0xff]
      %v578 = vld [vmem:[%s1 + $0x48] sm:$0xff]
      %v579 = vld [vmem:[%s1 + $0x50] sm:$0xff]
      %v580 = vld [vmem:[%s1 + $0x58] sm:$0xff]
      %v581 = vld [vmem:[%s1 + $0x60] sm:$0xff]
      %v582 = vld [vmem:[%s1 + $0x68] sm:$0xff]
      %v583 = vld [vmem:[%s1 + $0x70] sm:$0xff]
      %v584 = vld [vmem:[%s1 + $0x78] sm:$0xff]
      %v585 = vld [vmem:[%s1 + $0x80] sm:$0xff]
      %v586 = vld [vmem:[%s1 + $0x88] sm:$0xff]
      %v587 = vld [vmem:[%s1 + $0x90] sm:$0xff]
      %v588 = vld [vmem:[%s1 + $0x98] sm:$0xff]
      %v589 = vld [vmem:[%s1 + $0xa0] sm:$0xff]
      %v590 = vld [vmem:[%s1 + $0xa8] sm:$0xff]
      %v591 = vld [vmem:[%s1 + $0xb0] sm:$0xff]
      %v592 = vld [vmem:[%s1 + $0xb8] sm:$0xff]
      %v593 = vld [vmem:[%s1 + $0xc0] sm:$0xf]
      %595 = vset.pattern.permute.xlu0 0
      %596 = vperm.xlu0 %595, %v569
      %v597 = vpop.permute.xlu0 %596
      %600 = vset.pattern.permute.xlu0 0
      %601 = vperm.xlu0 %600, %v570
      %v602 = vpop.permute.xlu0 %601
      %605 = vset.pattern.permute.xlu0 0
      %606 = vperm.xlu0 %605, %v571
      %v607 = vpop.permute.xlu0 %606
      %610 = vset.pattern.permute.xlu0 0
      %611 = vperm.xlu0 %610, %v572
      %v612 = vpop.permute.xlu0 %611
      %615 = vset.pattern.permute.xlu0 0
      %616 = vperm.xlu0 %615, %v573
      %v617 = vpop.permute.xlu0 %616
      %620 = vset.pattern.permute.xlu0 0
      %621 = vperm.xlu0 %620, %v574
      %v622 = vpop.permute.xlu0 %621
      %625 = vset.pattern.permute.xlu0 0
      %626 = vperm.xlu0 %625, %v575
      %v627 = vpop.permute.xlu0 %626
      %630 = vset.pattern.permute.xlu0 0
      %631 = vperm.xlu0 %630, %v576
      %v632 = vpop.permute.xlu0 %631
      %635 = vset.pattern.permute.xlu0 0
      %636 = vperm.xlu0 %635, %v577
      %v637 = vpop.permute.xlu0 %636
      %640 = vset.pattern.permute.xlu0 0
      %641 = vperm.xlu0 %640, %v578
      %v642 = vpop.permute.xlu0 %641
      %645 = vset.pattern.permute.xlu0 0
      %646 = vperm.xlu0 %645, %v579
      %v647 = vpop.permute.xlu0 %646
      %650 = vset.pattern.permute.xlu0 0
      %651 = vperm.xlu0 %650, %v580
      %v652 = vpop.permute.xlu0 %651
      %655 = vset.pattern.permute.xlu0 0
      %656 = vperm.xlu0 %655, %v581
      %v657 = vpop.permute.xlu0 %656
      %660 = vset.pattern.permute.xlu0 0
      %661 = vperm.xlu0 %660, %v582
      %v662 = vpop.permute.xlu0 %661
      %665 = vset.pattern.permute.xlu0 0
      %666 = vperm.xlu0 %665, %v583
      %v667 = vpop.permute.xlu0 %666
      %670 = vset.pattern.permute.xlu0 0
      %671 = vperm.xlu0 %670, %v584
      %v672 = vpop.permute.xlu0 %671
      %675 = vset.pattern.permute.xlu0 0
      %676 = vperm.xlu0 %675, %v585
      %v677 = vpop.permute.xlu0 %676
      %680 = vset.pattern.permute.xlu0 0
      %681 = vperm.xlu0 %680, %v586
      %v682 = vpop.permute.xlu0 %681
      %685 = vset.pattern.permute.xlu0 0
      %686 = vperm.xlu0 %685, %v587
      %v687 = vpop.permute.xlu0 %686
      %690 = vset.pattern.permute.xlu0 0
      %691 = vperm.xlu0 %690, %v588
      %v692 = vpop.permute.xlu0 %691
      %695 = vset.pattern.permute.xlu0 0
      %696 = vperm.xlu0 %695, %v589
      %v697 = vpop.permute.xlu0 %696
      %700 = vset.pattern.permute.xlu0 0
      %701 = vperm.xlu0 %700, %v590
      %v702 = vpop.permute.xlu0 %701
      %705 = vset.pattern.permute.xlu0 0
      %706 = vperm.xlu0 %705, %v591
      %v707 = vpop.permute.xlu0 %706
      %710 = vset.pattern.permute.xlu0 0
      %711 = vperm.xlu0 %710, %v592
      %v712 = vpop.permute.xlu0 %711
      %715 = vset.pattern.permute.xlu0 0
      %716 = vperm.xlu0 %715, %v593
      %v717 = vpop.permute.xlu0 %716
      %v719 = vmul.f32 %v544, %v597
      %v720 = vmul.f32 %v545, %v602
      %v721 = vmul.f32 %v546, %v607
      %v722 = vmul.f32 %v547, %v612
      %v723 = vmul.f32 %v548, %v617
      %v724 = vmul.f32 %v549, %v622
      %v725 = vmul.f32 %v550, %v627
      %v726 = vmul.f32 %v551, %v632
      %v727 = vmul.f32 %v552, %v637
      %v728 = vmul.f32 %v553, %v642
      %v729 = vmul.f32 %v554, %v647
      %v730 = vmul.f32 %v555, %v652
      %v731 = vmul.f32 %v556, %v657
      %v732 = vmul.f32 %v557, %v662
      %v733 = vmul.f32 %v558, %v667
      %v734 = vmul.f32 %v559, %v672
      %v735 = vmul.f32 %v560, %v677
      %v736 = vmul.f32 %v561, %v682
      %v737 = vmul.f32 %v562, %v687
      %v738 = vmul.f32 %v563, %v692
      %v739 = vmul.f32 %v564, %v697
      %v740 = vmul.f32 %v565, %v702
      %v741 = vmul.f32 %v566, %v707
      %v742 = vmul.f32 %v567, %v712
      %v743 = vmul.f32 %v568, %v717
      %v744 = vpack.c.bf16 %v719, %v719
      %v745 = vpack.c.bf16 %v720, %v720
      %v746 = vpack.c.bf16 %v721, %v721
      %v747 = vpack.c.bf16 %v722, %v722
      %v748 = vpack.c.bf16 %v723, %v723
      %v749 = vpack.c.bf16 %v724, %v724
      %v750 = vpack.c.bf16 %v725, %v725
      %v751 = vpack.c.bf16 %v726, %v726
      %v752 = vpack.c.bf16 %v727, %v727
      %v753 = vpack.c.bf16 %v728, %v728
      %v754 = vpack.c.bf16 %v729, %v729
      %v755 = vpack.c.bf16 %v730, %v730
      %v756 = vpack.c.bf16 %v731, %v731
      %v757 = vpack.c.bf16 %v732, %v732
      %v758 = vpack.c.bf16 %v733, %v733
      %v759 = vpack.c.bf16 %v734, %v734
      %v760 = vpack.c.bf16 %v735, %v735
      %v761 = vpack.c.bf16 %v736, %v736
      %v762 = vpack.c.bf16 %v737, %v737
      %v763 = vpack.c.bf16 %v738, %v738
      %v764 = vpack.c.bf16 %v739, %v739
      %v765 = vpack.c.bf16 %v740, %v740
      %v766 = vpack.c.bf16 %v741, %v741
      %v767 = vpack.c.bf16 %v742, %v742
      %v768 = vpack.c.bf16 %v743, %v743
      %vm769 = vcmask 519168
      %770 = vst.msk [vmem:[#allocation2] sm:$0xf] %vm769, %v744
      %771 = vst.msk [vmem:[#allocation2 + $0x4] sm:$0xf] %vm769, %v745
      %772 = vst.msk [vmem:[#allocation2 + $0x8] sm:$0xf] %vm769, %v746
      %773 = vst.msk [vmem:[#allocation2 + $0xc] sm:$0xf] %vm769, %v747
      %774 = vst.msk [vmem:[#allocation2 + $0x10] sm:$0xf] %vm769, %v748
      %775 = vst.msk [vmem:[#allocation2 + $0x14] sm:$0xf] %vm769, %v749
      %776 = vst.msk [vmem:[#allocation2 + $0x18] sm:$0xf] %vm769, %v750
      %777 = vst.msk [vmem:[#allocation2 + $0x1c] sm:$0xf] %vm769, %v751
      %778 = vst.msk [vmem:[#allocation2 + $0x20] sm:$0xf] %vm769, %v752
      %779 = vst.msk [vmem:[#allocation2 + $0x24] sm:$0xf] %vm769, %v753
      %780 = vst.msk [vmem:[#allocation2 + $0x28] sm:$0xf] %vm769, %v754
      %781 = vst.msk [vmem:[#allocation2 + $0x2c] sm:$0xf] %vm769, %v755
      %782 = vst.msk [vmem:[#allocation2 + $0x30] sm:$0xf] %vm769, %v756
      %783 = vst.msk [vmem:[#allocation2 + $0x34] sm:$0xf] %vm769, %v757
      %784 = vst.msk [vmem:[#allocation2 + $0x38] sm:$0xf] %vm769, %v758
      %785 = vst.msk [vmem:[#allocation2 + $0x3c] sm:$0xf] %vm769, %v759
      %786 = vst.msk [vmem:[#allocation2 + $0x40] sm:$0xf] %vm769, %v760
      %787 = vst.msk [vmem:[#allocation2 + $0x44] sm:$0xf] %vm769, %v761
      %788 = vst.msk [vmem:[#allocation2 + $0x48] sm:$0xf] %vm769, %v762
      %789 = vst.msk [vmem:[#allocation2 + $0x4c] sm:$0xf] %vm769, %v763
      %790 = vst.msk [vmem:[#allocation2 + $0x50] sm:$0xf] %vm769, %v764
      %791 = vst.msk [vmem:[#allocation2 + $0x54] sm:$0xf] %vm769, %v765
      %792 = vst.msk [vmem:[#allocation2 + $0x58] sm:$0xf] %vm769, %v766
      %793 = vst.msk [vmem:[#allocation2 + $0x5c] sm:$0xf] %vm769, %v767
      %vm794 = vcmask 517120
      %795 = vst.msk [vmem:[#allocation2 + $0x60] sm:$0x3] %vm794, %v768
      %v796 = vld [vmem:[%s5] sm:$0x1]
      %v798 = vperm.slane %v796, 0
      %v800 = vadd.f32 %v798, 0.0
      %v801 = vld [vmem:[#allocation2] sm:$0xf]
      %v802 = vld [vmem:[#allocation2 + $0x4] sm:$0xf]
      %v803 = vld [vmem:[#allocation2 + $0x8] sm:$0xf]
      %v804 = vld [vmem:[#allocation2 + $0xc] sm:$0xf]
      %v805 = vld [vmem:[#allocation2 + $0x10] sm:$0xf]
      %v806 = vld [vmem:[#allocation2 + $0x14] sm:$0xf]
      %v807 = vld [vmem:[#allocation2 + $0x18] sm:$0xf]
      %v808 = vld [vmem:[#allocation2 + $0x1c] sm:$0xf]
      %v809 = vld [vmem:[#allocation2 + $0x20] sm:$0xf]
      %v810 = vld [vmem:[#allocation2 + $0x24] sm:$0xf]
      %v811 = vld [vmem:[#allocation2 + $0x28] sm:$0xf]
      %v812 = vld [vmem:[#allocation2 + $0x2c] sm:$0xf]
      %v813 = vld [vmem:[#allocation2 + $0x30] sm:$0xf]
      %v814 = vld [vmem:[#allocation2 + $0x34] sm:$0xf]
      %v815 = vld [vmem:[#allocation2 + $0x38] sm:$0xf]
      %v816 = vld [vmem:[#allocation2 + $0x3c] sm:$0xf]
      %v817 = vld [vmem:[#allocation2 + $0x40] sm:$0xf]
      %v818 = vld [vmem:[#allocation2 + $0x44] sm:$0xf]
      %v819 = vld [vmem:[#allocation2 + $0x48] sm:$0xf]
      %v820 = vld [vmem:[#allocation2 + $0x4c] sm:$0xf]
      %v821 = vld [vmem:[#allocation2 + $0x50] sm:$0x7]
      %v822 = vld [vmem:[%s4] sm:$0xf]
      %v823 = vld [vmem:[%s4 + $0x4] sm:$0xf]
      %v824 = vld [vmem:[%s4 + $0x8] sm:$0xf]
      %v825 = vld [vmem:[%s4 + $0xc] sm:$0xf]
      %v826 = vld [vmem:[%s4 + $0x10] sm:$0xf]
      %v827 = vld [vmem:[%s4 + $0x14] sm:$0xf]
      %v828 = vld [vmem:[%s4 + $0x18] sm:$0xf]
      %v829 = vld [vmem:[%s4 + $0x1c] sm:$0xf]
      %v851 = vunpack.c.l.b16 %v801
      %v852 = vunpack.c.l.b16 %v802
      %v853 = vunpack.c.l.b16 %v803
      %v854 = vunpack.c.l.b16 %v804
      %v855 = vunpack.c.l.b16 %v805
      %v856 = vunpack.c.l.b16 %v806
      %v857 = vunpack.c.l.b16 %v807
      %v858 = vunpack.c.l.b16 %v808
      %v859 = vunpack.c.l.b16 %v809
      %v860 = vunpack.c.l.b16 %v810
      %v861 = vunpack.c.l.b16 %v811
      %v862 = vunpack.c.l.b16 %v812
      %v863 = vunpack.c.l.b16 %v813
      %v864 = vunpack.c.l.b16 %v814
      %v865 = vunpack.c.l.b16 %v815
      %v866 = vunpack.c.l.b16 %v816
      %v867 = vunpack.c.l.b16 %v817
      %v868 = vunpack.c.l.b16 %v818
      %v869 = vunpack.c.l.b16 %v819
      %v870 = vunpack.c.l.b16 %v820
      %v871 = vunpack.c.l.b16 %v821
      %v872 = vpack.c.b16 %v852, %v851
      %v873 = vpack.c.b16 %v854, %v853
      %v874 = vpack.c.b16 %v856, %v855
      %v875 = vpack.c.b16 %v858, %v857
      %v876 = vpack.c.b16 %v860, %v859
      %v877 = vpack.c.b16 %v862, %v861
      %v878 = vpack.c.b16 %v864, %v863
      %v879 = vpack.c.b16 %v866, %v865
      %v880 = vpack.c.b16 %v868, %v867
      %v881 = vpack.c.b16 %v870, %v869
      %v882 = vpack.c.b16 %v871, %v871
      %v891 = vunpack.c.l.b16 %v822
      %v892 = vunpack.c.l.b16 %v823
      %v893 = vunpack.c.l.b16 %v824
      %v894 = vunpack.c.l.b16 %v825
      %v895 = vunpack.c.l.b16 %v826
      %v896 = vunpack.c.l.b16 %v827
      %v897 = vunpack.c.l.b16 %v828
      %v898 = vunpack.c.l.b16 %v829
      %v899 = vpack.c.b16 %v892, %v891
      %v900 = vpack.c.b16 %v894, %v893
      %v901 = vpack.c.b16 %v896, %v895
      %v902 = vpack.c.b16 %v898, %v897
      %v908 = vsel %vm431, %v872, 0
      %v911 = vsel %vm431, %v873, 0
      %v914 = vsel %vm431, %v874, 0
      %v917 = vsel %vm431, %v875, 0
      %v920 = vsel %vm431, %v876, 0
      %v923 = vsel %vm431, %v877, 0
      %v926 = vsel %vm431, %v878, 0
      %v929 = vsel %vm431, %v879, 0
      %v932 = vsel %vm431, %v880, 0
      %v935 = vsel %vm431, %v881, 0
      %v938 = vsel %vm431, %v882, 0
      %940 = vmatpush.bf16.msra.mxu0 0
      %941 = vmatpush.bf16.msra.mxu0 0
      %942 = vmatpush.bf16.msra.mxu0 0
      %943 = vmatpush.bf16.msra.mxu0 0
      %944 = vmatpush.bf16.msra.mxu0 %v902
      %945 = vmatpush.bf16.msra.mxu0 %v901
      %946 = vmatpush.bf16.msra.mxu0 %v900
      %947 = vmatpush.bf16.msra.mxu0 %v899
      %948 = vmatmul.bf16.gmra.mxu0 %v908
      %v949 = vpop.f32.mrf.mxu0
      %v950 = vadd.f32 0.0, %v949
      %v951 = vpop.f32.mrf.mxu0
      %v952 = vadd.f32 0.0, %v951
      %953 = vmatmul.bf16.gmra.mxu0 %v911
      %v954 = vpop.f32.mrf.mxu0
      %v955 = vadd.f32 0.0, %v954
      %v956 = vpop.f32.mrf.mxu0
      %v957 = vadd.f32 0.0, %v956
      %958 = vmatmul.bf16.gmra.mxu0 %v914
      %v959 = vpop.f32.mrf.mxu0
      %v960 = vadd.f32 0.0, %v959
      %v961 = vpop.f32.mrf.mxu0
      %v962 = vadd.f32 0.0, %v961
      %963 = vmatmul.bf16.gmra.mxu0 %v917
      %v964 = vpop.f32.mrf.mxu0
      %v965 = vadd.f32 0.0, %v964
      %v966 = vpop.f32.mrf.mxu0
      %v967 = vadd.f32 0.0, %v966
      %968 = vmatmul.bf16.gmra.mxu0 %v920
      %v969 = vpop.f32.mrf.mxu0
      %v970 = vadd.f32 0.0, %v969
      %v971 = vpop.f32.mrf.mxu0
      %v972 = vadd.f32 0.0, %v971
      %973 = vmatmul.bf16.gmra.mxu0 %v923
      %v974 = vpop.f32.mrf.mxu0
      %v975 = vadd.f32 0.0, %v974
      %v976 = vpop.f32.mrf.mxu0
      %v977 = vadd.f32 0.0, %v976
      %978 = vmatmul.bf16.gmra.mxu0 %v926
      %v979 = vpop.f32.mrf.mxu0
      %v980 = vadd.f32 0.0, %v979
      %v981 = vpop.f32.mrf.mxu0
      %v982 = vadd.f32 0.0, %v981
      %983 = vmatmul.bf16.gmra.mxu0 %v929
      %v984 = vpop.f32.mrf.mxu0
      %v985 = vadd.f32 0.0, %v984
      %v986 = vpop.f32.mrf.mxu0
      %v987 = vadd.f32 0.0, %v986
      %988 = vmatmul.bf16.gmra.mxu0 %v932
      %v989 = vpop.f32.mrf.mxu0
      %v990 = vadd.f32 0.0, %v989
      %v991 = vpop.f32.mrf.mxu0
      %v992 = vadd.f32 0.0, %v991
      %993 = vmatmul.bf16.gmra.mxu0 %v935
      %v994 = vpop.f32.mrf.mxu0
      %v995 = vadd.f32 0.0, %v994
      %v996 = vpop.f32.mrf.mxu0
      %v997 = vadd.f32 0.0, %v996
      %998 = vmatmul.bf16.gmra.mxu0 %v938
      %v999 = vpop.f32.mrf.mxu0
      %v1000 = vadd.f32 0.0, %v999
      %v1001 = vpop.f32.mrf.mxu0
      %1002 = vdwg.mxu0
      %v1003 = vadd.f32 %v800, %v950
      %v1004 = vadd.f32 %v800, %v952
      %v1005 = vadd.f32 %v800, %v955
      %v1006 = vadd.f32 %v800, %v957
      %v1007 = vadd.f32 %v800, %v960
      %v1008 = vadd.f32 %v800, %v962
      %v1009 = vadd.f32 %v800, %v965
      %v1010 = vadd.f32 %v800, %v967
      %v1011 = vadd.f32 %v800, %v970
      %v1012 = vadd.f32 %v800, %v972
      %v1013 = vadd.f32 %v800, %v975
      %v1014 = vadd.f32 %v800, %v977
      %v1015 = vadd.f32 %v800, %v980
      %v1016 = vadd.f32 %v800, %v982
      %v1017 = vadd.f32 %v800, %v985
      %v1018 = vadd.f32 %v800, %v987
      %v1019 = vadd.f32 %v800, %v990
      %v1020 = vadd.f32 %v800, %v992
      %v1021 = vadd.f32 %v800, %v995
      %v1022 = vadd.f32 %v800, %v997
      %v1023 = vadd.f32 %v800, %v1000
      %v1024 = vld [vmem:[#allocation2 + $0x50] sm:$0xf]
      %s1025 = scalar_lea.vmem %s4, 32
      %v1026 = vld [vmem:[%s1025] sm:$0xf]
      %v1027 = vld [vmem:[%s1025 + $0x4] sm:$0xf]
      %v1028 = vld [vmem:[%s1025 + $0x8] sm:$0xf]
      %v1029 = vld [vmem:[%s1025 + $0xc] sm:$0xf]
      %v1030 = vld [vmem:[%s1025 + $0x10] sm:$0xf]
      %v1031 = vld [vmem:[%s1025 + $0x14] sm:$0xf]
      %v1032 = vld [vmem:[%s1025 + $0x18] sm:$0xf]
      %v1033 = vld [vmem:[%s1025 + $0x1c] sm:$0xf]
      %v1035 = vunpack.c.l.b16 %v1024
      %v1036 = vpack.c.b16 %v1035, %v1035
      %vm1037 = vsmask.f32 7424
      %v1038 = vshrl.u32 %v872, 16
      %v1040 = vshll.u32 %v872, 16
      %v1042 = vrot.slane %v1040, 1
      %v1043 = vor.u32 %v1038, %v1042
      %v1044 = vshll.u32 %v873, 16
      %v1046 = vrot.slane %v1044, 1
      %v1047 = vsel %vm1037, %v1043, %v1046
      %v1048 = vshrl.u32 %v873, 16
      %v1050 = vor.u32 %v1048, %v1046
      %v1051 = vshll.u32 %v874, 16
      %v1053 = vrot.slane %v1051, 1
      %v1054 = vsel %vm1037, %v1050, %v1053
      %v1055 = vshrl.u32 %v874, 16
      %v1057 = vor.u32 %v1055, %v1053
      %v1058 = vshll.u32 %v875, 16
      %v1060 = vrot.slane %v1058, 1
      %v1061 = vsel %vm1037, %v1057, %v1060
      %v1062 = vshrl.u32 %v875, 16
      %v1064 = vor.u32 %v1062, %v1060
      %v1065 = vshll.u32 %v876, 16
      %v1067 = vrot.slane %v1065, 1
      %v1068 = vsel %vm1037, %v1064, %v1067
      %v1069 = vshrl.u32 %v876, 16
      %v1071 = vor.u32 %v1069, %v1067
      %v1072 = vshll.u32 %v877, 16
      %v1074 = vrot.slane %v1072, 1
      %v1075 = vsel %vm1037, %v1071, %v1074
      %v1076 = vshrl.u32 %v877, 16
      %v1078 = vor.u32 %v1076, %v1074
      %v1079 = vshll.u32 %v878, 16
      %v1081 = vrot.slane %v1079, 1
      %v1082 = vsel %vm1037, %v1078, %v1081
      %v1083 = vshrl.u32 %v878, 16
      %v1085 = vor.u32 %v1083, %v1081
      %v1086 = vshll.u32 %v879, 16
      %v1088 = vrot.slane %v1086, 1
      %v1089 = vsel %vm1037, %v1085, %v1088
      %v1090 = vshrl.u32 %v879, 16
      %v1092 = vor.u32 %v1090, %v1088
      %v1093 = vshll.u32 %v880, 16
      %v1095 = vrot.slane %v1093, 1
      %v1096 = vsel %vm1037, %v1092, %v1095
      %v1097 = vshrl.u32 %v880, 16
      %v1099 = vor.u32 %v1097, %v1095
      %v1100 = vshll.u32 %v881, 16
      %v1102 = vrot.slane %v1100, 1
      %v1103 = vsel %vm1037, %v1099, %v1102
      %v1104 = vshrl.u32 %v881, 16
      %v1106 = vor.u32 %v1104, %v1102
      %v1108 = vshll.u32 %v1036, 16
      %v1110 = vrot.slane %v1108, 1
      %v1111 = vsel %vm1037, %v1106, %v1110
      %v1112 = vshrl.u32 %v1036, 16
      %v1114 = vor.u32 %v1112, %v1110
      %v1123 = vunpack.c.l.b16 %v1026
      %v1124 = vunpack.c.l.b16 %v1027
      %v1125 = vunpack.c.l.b16 %v1028
      %v1126 = vunpack.c.l.b16 %v1029
      %v1127 = vunpack.c.l.b16 %v1030
      %v1128 = vunpack.c.l.b16 %v1031
      %v1129 = vunpack.c.l.b16 %v1032
      %v1130 = vunpack.c.l.b16 %v1033
      %v1131 = vpack.c.b16 %v1124, %v1123
      %v1132 = vpack.c.b16 %v1126, %v1125
      %v1133 = vpack.c.b16 %v1128, %v1127
      %v1134 = vpack.c.b16 %v1130, %v1129
      %v1140 = vsel %vm431, %v1047, 0
      %v1143 = vsel %vm431, %v1054, 0
      %v1146 = vsel %vm431, %v1061, 0
      %v1149 = vsel %vm431, %v1068, 0
      %v1152 = vsel %vm431, %v1075, 0
      %v1155 = vsel %vm431, %v1082, 0
      %v1158 = vsel %vm431, %v1089, 0
      %v1161 = vsel %vm431, %v1096, 0
      %v1164 = vsel %vm431, %v1103, 0
      %v1167 = vsel %vm431, %v1111, 0
      %v1170 = vsel %vm431, %v1114, 0
      %1172 = vmatpush.bf16.msra.mxu0 0
      %1173 = vmatpush.bf16.msra.mxu0 0
      %1174 = vmatpush.bf16.msra.mxu0 0
      %1175 = vmatpush.bf16.msra.mxu0 0
      %1176 = vmatpush.bf16.msra.mxu0 %v1134
      %1177 = vmatpush.bf16.msra.mxu0 %v1133
      %1178 = vmatpush.bf16.msra.mxu0 %v1132
      %1179 = vmatpush.bf16.msra.mxu0 %v1131
      %1180 = vmatmul.bf16.gmra.mxu0 %v1140
      %v1181 = vpop.f32.mrf.mxu0
      %v1182 = vadd.f32 0.0, %v1181
      %v1183 = vpop.f32.mrf.mxu0
      %v1184 = vadd.f32 0.0, %v1183
      %1185 = vmatmul.bf16.gmra.mxu0 %v1143
      %v1186 = vpop.f32.mrf.mxu0
      %v1187 = vadd.f32 0.0, %v1186
      %v1188 = vpop.f32.mrf.mxu0
      %v1189 = vadd.f32 0.0, %v1188
      %1190 = vmatmul.bf16.gmra.mxu0 %v1146
      %v1191 = vpop.f32.mrf.mxu0
      %v1192 = vadd.f32 0.0, %v1191
      %v1193 = vpop.f32.mrf.mxu0
      %v1194 = vadd.f32 0.0, %v1193
      %1195 = vmatmul.bf16.gmra.mxu0 %v1149
      %v1196 = vpop.f32.mrf.mxu0
      %v1197 = vadd.f32 0.0, %v1196
      %v1198 = vpop.f32.mrf.mxu0
      %v1199 = vadd.f32 0.0, %v1198
      %1200 = vmatmul.bf16.gmra.mxu0 %v1152
      %v1201 = vpop.f32.mrf.mxu0
      %v1202 = vadd.f32 0.0, %v1201
      %v1203 = vpop.f32.mrf.mxu0
      %v1204 = vadd.f32 0.0, %v1203
      %1205 = vmatmul.bf16.gmra.mxu0 %v1155
      %v1206 = vpop.f32.mrf.mxu0
      %v1207 = vadd.f32 0.0, %v1206
      %v1208 = vpop.f32.mrf.mxu0
      %v1209 = vadd.f32 0.0, %v1208
      %1210 = vmatmul.bf16.gmra.mxu0 %v1158
      %v1211 = vpop.f32.mrf.mxu0
      %v1212 = vadd.f32 0.0, %v1211
      %v1213 = vpop.f32.mrf.mxu0
      %v1214 = vadd.f32 0.0, %v1213
      %1215 = vmatmul.bf16.gmra.mxu0 %v1161
      %v1216 = vpop.f32.mrf.mxu0
      %v1217 = vadd.f32 0.0, %v1216
      %v1218 = vpop.f32.mrf.mxu0
      %v1219 = vadd.f32 0.0, %v1218
      %1220 = vmatmul.bf16.gmra.mxu0 %v1164
      %v1221 = vpop.f32.mrf.mxu0
      %v1222 = vadd.f32 0.0, %v1221
      %v1223 = vpop.f32.mrf.mxu0
      %v1224 = vadd.f32 0.0, %v1223
      %1225 = vmatmul.bf16.gmra.mxu0 %v1167
      %v1226 = vpop.f32.mrf.mxu0
      %v1227 = vadd.f32 0.0, %v1226
      %v1228 = vpop.f32.mrf.mxu0
      %v1229 = vadd.f32 0.0, %v1228
      %1230 = vmatmul.bf16.gmra.mxu0 %v1170
      %v1231 = vpop.f32.mrf.mxu0
      %v1232 = vadd.f32 0.0, %v1231
      %v1233 = vpop.f32.mrf.mxu0
      %1234 = vdwg.mxu0
      %v1235 = vadd.f32 %v1003, %v1182
      %v1236 = vadd.f32 %v1004, %v1184
      %v1237 = vadd.f32 %v1005, %v1187
      %v1238 = vadd.f32 %v1006, %v1189
      %v1239 = vadd.f32 %v1007, %v1192
      %v1240 = vadd.f32 %v1008, %v1194
      %v1241 = vadd.f32 %v1009, %v1197
      %v1242 = vadd.f32 %v1010, %v1199
      %v1243 = vadd.f32 %v1011, %v1202
      %v1244 = vadd.f32 %v1012, %v1204
      %v1245 = vadd.f32 %v1013, %v1207
      %v1246 = vadd.f32 %v1014, %v1209
      %v1247 = vadd.f32 %v1015, %v1212
      %v1248 = vadd.f32 %v1016, %v1214
      %v1249 = vadd.f32 %v1017, %v1217
      %v1250 = vadd.f32 %v1018, %v1219
      %v1251 = vadd.f32 %v1019, %v1222
      %v1252 = vadd.f32 %v1020, %v1224
      %v1253 = vadd.f32 %v1021, %v1227
      %v1254 = vadd.f32 %v1022, %v1229
      %v1255 = vadd.f32 %v1023, %v1232
      %v1256 = vld [vmem:[#allocation2] sm:$0xe]
      %s1257 = scalar_lea.vmem %s4, 64
      %v1258 = vld [vmem:[%s1257] sm:$0xf]
      %v1259 = vld [vmem:[%s1257 + $0x4] sm:$0xf]
      %v1260 = vld [vmem:[%s1257 + $0x8] sm:$0xf]
      %v1261 = vld [vmem:[%s1257 + $0xc] sm:$0xf]
      %v1262 = vld [vmem:[%s1257 + $0x10] sm:$0xf]
      %v1263 = vld [vmem:[%s1257 + $0x14] sm:$0xf]
      %v1264 = vld [vmem:[%s1257 + $0x18] sm:$0xf]
      %v1265 = vld [vmem:[%s1257 + $0x1c] sm:$0xf]
      %v1267 = vunpack.c.l.b16 %v1256
      %v1268 = vpack.c.b16 %v852, %v1267
      %vm1269 = vcmask 1046528
      %v1270 = vrot.slane %v1268, 1
      %v1271 = vrot.slane %v873, 1
      %v1272 = vsel %vm1269, %v1270, %v1271
      %v1273 = vrot.slane %v874, 1
      %v1274 = vsel %vm1269, %v1271, %v1273
      %v1275 = vrot.slane %v875, 1
      %v1276 = vsel %vm1269, %v1273, %v1275
      %v1277 = vrot.slane %v876, 1
      %v1278 = vsel %vm1269, %v1275, %v1277
      %v1279 = vrot.slane %v877, 1
      %v1280 = vsel %vm1269, %v1277, %v1279
      %v1281 = vrot.slane %v878, 1
      %v1282 = vsel %vm1269, %v1279, %v1281
      %v1283 = vrot.slane %v879, 1
      %v1284 = vsel %vm1269, %v1281, %v1283
      %v1285 = vrot.slane %v880, 1
      %v1286 = vsel %vm1269, %v1283, %v1285
      %v1287 = vrot.slane %v881, 1
      %v1288 = vsel %vm1269, %v1285, %v1287
      %v1289 = vrot.slane %v1036, 1
      %v1290 = vsel %vm1269, %v1287, %v1289
      %v1299 = vunpack.c.l.b16 %v1258
      %v1300 = vunpack.c.l.b16 %v1259
      %v1301 = vunpack.c.l.b16 %v1260
      %v1302 = vunpack.c.l.b16 %v1261
      %v1303 = vunpack.c.l.b16 %v1262
      %v1304 = vunpack.c.l.b16 %v1263
      %v1305 = vunpack.c.l.b16 %v1264
      %v1306 = vunpack.c.l.b16 %v1265
      %v1307 = vpack.c.b16 %v1300, %v1299
      %v1308 = vpack.c.b16 %v1302, %v1301
      %v1309 = vpack.c.b16 %v1304, %v1303
      %v1310 = vpack.c.b16 %v1306, %v1305
      %v1316 = vsel %vm431, %v1272, 0
      %v1319 = vsel %vm431, %v1274, 0
      %v1322 = vsel %vm431, %v1276, 0
      %v1325 = vsel %vm431, %v1278, 0
      %v1328 = vsel %vm431, %v1280, 0
      %v1331 = vsel %vm431, %v1282, 0
      %v1334 = vsel %vm431, %v1284, 0
      %v1337 = vsel %vm431, %v1286, 0
      %v1340 = vsel %vm431, %v1288, 0
      %v1343 = vsel %vm431, %v1290, 0
      %v1346 = vsel %vm431, %v1289, 0
      %1348 = vmatpush.bf16.msra.mxu0 0
      %1349 = vmatpush.bf16.msra.mxu0 0
      %1350 = vmatpush.bf16.msra.mxu0 0
      %1351 = vmatpush.bf16.msra.mxu0 0
      %1352 = vmatpush.bf16.msra.mxu0 %v1310
      %1353 = vmatpush.bf16.msra.mxu0 %v1309
      %1354 = vmatpush.bf16.msra.mxu0 %v1308
      %1355 = vmatpush.bf16.msra.mxu0 %v1307
      %1356 = vmatmul.bf16.gmra.mxu0 %v1316
      %v1357 = vpop.f32.mrf.mxu0
      %v1358 = vadd.f32 0.0, %v1357
      %v1359 = vpop.f32.mrf.mxu0
      %v1360 = vadd.f32 0.0, %v1359
      %1361 = vmatmul.bf16.gmra.mxu0 %v1319
      %v1362 = vpop.f32.mrf.mxu0
      %v1363 = vadd.f32 0.0, %v1362
      %v1364 = vpop.f32.mrf.mxu0
      %v1365 = vadd.f32 0.0, %v1364
      %1366 = vmatmul.bf16.gmra.mxu0 %v1322
      %v1367 = vpop.f32.mrf.mxu0
      %v1368 = vadd.f32 0.0, %v1367
      %v1369 = vpop.f32.mrf.mxu0
      %v1370 = vadd.f32 0.0, %v1369
      %1371 = vmatmul.bf16.gmra.mxu0 %v1325
      %v1372 = vpop.f32.mrf.mxu0
      %v1373 = vadd.f32 0.0, %v1372
      %v1374 = vpop.f32.mrf.mxu0
      %v1375 = vadd.f32 0.0, %v1374
      %1376 = vmatmul.bf16.gmra.mxu0 %v1328
      %v1377 = vpop.f32.mrf.mxu0
      %v1378 = vadd.f32 0.0, %v1377
      %v1379 = vpop.f32.mrf.mxu0
      %v1380 = vadd.f32 0.0, %v1379
      %1381 = vmatmul.bf16.gmra.mxu0 %v1331
      %v1382 = vpop.f32.mrf.mxu0
      %v1383 = vadd.f32 0.0, %v1382
      %v1384 = vpop.f32.mrf.mxu0
      %v1385 = vadd.f32 0.0, %v1384
      %1386 = vmatmul.bf16.gmra.mxu0 %v1334
      %v1387 = vpop.f32.mrf.mxu0
      %v1388 = vadd.f32 0.0, %v1387
      %v1389 = vpop.f32.mrf.mxu0
      %v1390 = vadd.f32 0.0, %v1389
      %1391 = vmatmul.bf16.gmra.mxu0 %v1337
      %v1392 = vpop.f32.mrf.mxu0
      %v1393 = vadd.f32 0.0, %v1392
      %v1394 = vpop.f32.mrf.mxu0
      %v1395 = vadd.f32 0.0, %v1394
      %1396 = vmatmul.bf16.gmra.mxu0 %v1340
      %v1397 = vpop.f32.mrf.mxu0
      %v1398 = vadd.f32 0.0, %v1397
      %v1399 = vpop.f32.mrf.mxu0
      %v1400 = vadd.f32 0.0, %v1399
      %1401 = vmatmul.bf16.gmra.mxu0 %v1343
      %v1402 = vpop.f32.mrf.mxu0
      %v1403 = vadd.f32 0.0, %v1402
      %v1404 = vpop.f32.mrf.mxu0
      %v1405 = vadd.f32 0.0, %v1404
      %1406 = vmatmul.bf16.gmra.mxu0 %v1346
      %v1407 = vpop.f32.mrf.mxu0
      %v1408 = vadd.f32 0.0, %v1407
      %v1409 = vpop.f32.mrf.mxu0
      %1410 = vdwg.mxu0
      %v1411 = vadd.f32 %v1235, %v1358
      %v1412 = vadd.f32 %v1236, %v1360
      %v1413 = vadd.f32 %v1237, %v1363
      %v1414 = vadd.f32 %v1238, %v1365
      %v1415 = vadd.f32 %v1239, %v1368
      %v1416 = vadd.f32 %v1240, %v1370
      %v1417 = vadd.f32 %v1241, %v1373
      %v1418 = vadd.f32 %v1242, %v1375
      %v1419 = vadd.f32 %v1243, %v1378
      %v1420 = vadd.f32 %v1244, %v1380
      %v1421 = vadd.f32 %v1245, %v1383
      %v1422 = vadd.f32 %v1246, %v1385
      %v1423 = vadd.f32 %v1247, %v1388
      %v1424 = vadd.f32 %v1248, %v1390
      %v1425 = vadd.f32 %v1249, %v1393
      %v1426 = vadd.f32 %v1250, %v1395
      %v1427 = vadd.f32 %v1251, %v1398
      %v1428 = vadd.f32 %v1252, %v1400
      %v1429 = vadd.f32 %v1253, %v1403
      %v1430 = vadd.f32 %v1254, %v1405
      %v1431 = vadd.f32 %v1255, %v1408
      %v1432 = vld [vmem:[#allocation2 + $0x4] sm:$0x8]
      %v1433 = vld [vmem:[#allocation2 + $0x8] sm:$0xf]
      %v1434 = vld [vmem:[#allocation2 + $0xc] sm:$0xf]
      %v1435 = vld [vmem:[#allocation2 + $0x10] sm:$0xf]
      %v1436 = vld [vmem:[#allocation2 + $0x14] sm:$0xf]
      %v1437 = vld [vmem:[#allocation2 + $0x18] sm:$0xf]
      %v1438 = vld [vmem:[#allocation2 + $0x1c] sm:$0xf]
      %v1439 = vld [vmem:[#allocation2 + $0x20] sm:$0xf]
      %v1440 = vld [vmem:[#allocation2 + $0x24] sm:$0xf]
      %v1441 = vld [vmem:[#allocation2 + $0x28] sm:$0xf]
      %v1442 = vld [vmem:[#allocation2 + $0x2c] sm:$0xf]
      %v1443 = vld [vmem:[#allocation2 + $0x30] sm:$0xf]
      %v1444 = vld [vmem:[#allocation2 + $0x34] sm:$0xf]
      %v1445 = vld [vmem:[#allocation2 + $0x38] sm:$0xf]
      %v1446 = vld [vmem:[#allocation2 + $0x3c] sm:$0xf]
      %v1447 = vld [vmem:[#allocation2 + $0x40] sm:$0xf]
      %v1448 = vld [vmem:[#allocation2 + $0x44] sm:$0xf]
      %v1449 = vld [vmem:[#allocation2 + $0x48] sm:$0xf]
      %v1450 = vld [vmem:[#allocation2 + $0x4c] sm:$0xf]
      %v1451 = vld [vmem:[#allocation2 + $0x50] sm:$0xf]
      %v1452 = vld [vmem:[#allocation2 + $0x54] sm:$0xf]
      %v1453 = vld [vmem:[#allocation2 + $0x58] sm:$0x3]
      %s1454 = scalar_lea.vmem %s4, 96
      %v1455 = vld [vmem:[%s1454] sm:$0xf]
      %v1456 = vld [vmem:[%s1454 + $0x4] sm:$0xf]
      %v1457 = vld [vmem:[%s1454 + $0x8] sm:$0xf]
      %v1458 = vld [vmem:[%s1454 + $0xc] sm:$0xf]
      %v1459 = vld [vmem:[%s1454 + $0x10] sm:$0xf]
      %v1460 = vld [vmem:[%s1454 + $0x14] sm:$0xf]
      %v1461 = vld [vmem:[%s1454 + $0x18] sm:$0xf]
      %v1462 = vld [vmem:[%s1454 + $0x1c] sm:$0xf]
      %v1485 = vunpack.c.l.b16 %v1432
      %v1486 = vunpack.c.l.b16 %v1433
      %v1487 = vunpack.c.l.b16 %v1434
      %v1488 = vunpack.c.l.b16 %v1435
      %v1489 = vunpack.c.l.b16 %v1436
      %v1490 = vunpack.c.l.b16 %v1437
      %v1491 = vunpack.c.l.b16 %v1438
      %v1492 = vunpack.c.l.b16 %v1439
      %v1493 = vunpack.c.l.b16 %v1440
      %v1494 = vunpack.c.l.b16 %v1441
      %v1495 = vunpack.c.l.b16 %v1442
      %v1496 = vunpack.c.l.b16 %v1443
      %v1497 = vunpack.c.l.b16 %v1444
      %v1498 = vunpack.c.l.b16 %v1445
      %v1499 = vunpack.c.l.b16 %v1446
      %v1500 = vunpack.c.l.b16 %v1447
      %v1501 = vunpack.c.l.b16 %v1448
      %v1502 = vunpack.c.l.b16 %v1449
      %v1503 = vunpack.c.l.b16 %v1450
      %v1504 = vunpack.c.l.b16 %v1451
      %v1505 = vunpack.c.l.b16 %v1452
      %v1506 = vunpack.c.l.b16 %v1453
      %v1507 = vpack.c.b16 %v1486, %v1485
      %v1508 = vpack.c.b16 %v1488, %v1487
      %v1509 = vpack.c.b16 %v1490, %v1489
      %v1510 = vpack.c.b16 %v1492, %v1491
      %v1511 = vpack.c.b16 %v1494, %v1493
      %v1512 = vpack.c.b16 %v1496, %v1495
      %v1513 = vpack.c.b16 %v1498, %v1497
      %v1514 = vpack.c.b16 %v1500, %v1499
      %v1515 = vpack.c.b16 %v1502, %v1501
      %v1516 = vpack.c.b16 %v1504, %v1503
      %v1517 = vpack.c.b16 %v1506, %v1505
      %vm1518 = vcmask 1044480
      %v1519 = vrot.slane %v1507, 3
      %v1520 = vrot.slane %v1508, 3
      %v1521 = vsel %vm1518, %v1519, %v1520
      %v1522 = vrot.slane %v1509, 3
      %v1523 = vsel %vm1518, %v1520, %v1522
      %v1524 = vrot.slane %v1510, 3
      %v1525 = vsel %vm1518, %v1522, %v1524
      %v1526 = vrot.slane %v1511, 3
      %v1527 = vsel %vm1518, %v1524, %v1526
      %v1528 = vrot.slane %v1512, 3
      %v1529 = vsel %vm1518, %v1526, %v1528
      %v1530 = vrot.slane %v1513, 3
      %v1531 = vsel %vm1518, %v1528, %v1530
      %v1532 = vrot.slane %v1514, 3
      %v1533 = vsel %vm1518, %v1530, %v1532
      %v1534 = vrot.slane %v1515, 3
      %v1535 = vsel %vm1518, %v1532, %v1534
      %v1536 = vrot.slane %v1516, 3
      %v1537 = vsel %vm1518, %v1534, %v1536
      %v1538 = vrot.slane %v1517, 3
      %v1539 = vsel %vm1518, %v1536, %v1538
      %v1548 = vunpack.c.l.b16 %v1455
      %v1549 = vunpack.c.l.b16 %v1456
      %v1550 = vunpack.c.l.b16 %v1457
      %v1551 = vunpack.c.l.b16 %v1458
      %v1552 = vunpack.c.l.b16 %v1459
      %v1553 = vunpack.c.l.b16 %v1460
      %v1554 = vunpack.c.l.b16 %v1461
      %v1555 = vunpack.c.l.b16 %v1462
      %v1556 = vpack.c.b16 %v1549, %v1548
      %v1557 = vpack.c.b16 %v1551, %v1550
      %v1558 = vpack.c.b16 %v1553, %v1552
      %v1559 = vpack.c.b16 %v1555, %v1554
      %v1565 = vsel %vm431, %v1521, 0
      %v1568 = vsel %vm431, %v1523, 0
      %v1571 = vsel %vm431, %v1525, 0
      %v1574 = vsel %vm431, %v1527, 0
      %v1577 = vsel %vm431, %v1529, 0
      %v1580 = vsel %vm431, %v1531, 0
      %v1583 = vsel %vm431, %v1533, 0
      %v1586 = vsel %vm431, %v1535, 0
      %v1589 = vsel %vm431, %v1537, 0
      %v1592 = vsel %vm431, %v1539, 0
      %v1595 = vsel %vm431, %v1538, 0
      %1597 = vmatpush.bf16.msra.mxu0 0
      %1598 = vmatpush.bf16.msra.mxu0 0
      %1599 = vmatpush.bf16.msra.mxu0 0
      %1600 = vmatpush.bf16.msra.mxu0 0
      %1601 = vmatpush.bf16.msra.mxu0 %v1559
      %1602 = vmatpush.bf16.msra.mxu0 %v1558
      %1603 = vmatpush.bf16.msra.mxu0 %v1557
      %1604 = vmatpush.bf16.msra.mxu0 %v1556
      %1605 = vmatmul.bf16.gmra.mxu0 %v1565
      %v1606 = vpop.f32.mrf.mxu0
      %v1607 = vadd.f32 0.0, %v1606
      %v1608 = vpop.f32.mrf.mxu0
      %v1609 = vadd.f32 0.0, %v1608
      %1610 = vmatmul.bf16.gmra.mxu0 %v1568
      %v1611 = vpop.f32.mrf.mxu0
      %v1612 = vadd.f32 0.0, %v1611
      %v1613 = vpop.f32.mrf.mxu0
      %v1614 = vadd.f32 0.0, %v1613
      %1615 = vmatmul.bf16.gmra.mxu0 %v1571
      %v1616 = vpop.f32.mrf.mxu0
      %v1617 = vadd.f32 0.0, %v1616
      %v1618 = vpop.f32.mrf.mxu0
      %v1619 = vadd.f32 0.0, %v1618
      %1620 = vmatmul.bf16.gmra.mxu0 %v1574
      %v1621 = vpop.f32.mrf.mxu0
      %v1622 = vadd.f32 0.0, %v1621
      %v1623 = vpop.f32.mrf.mxu0
      %v1624 = vadd.f32 0.0, %v1623
      %1625 = vmatmul.bf16.gmra.mxu0 %v1577
      %v1626 = vpop.f32.mrf.mxu0
      %v1627 = vadd.f32 0.0, %v1626
      %v1628 = vpop.f32.mrf.mxu0
      %v1629 = vadd.f32 0.0, %v1628
      %1630 = vmatmul.bf16.gmra.mxu0 %v1580
      %v1631 = vpop.f32.mrf.mxu0
      %v1632 = vadd.f32 0.0, %v1631
      %v1633 = vpop.f32.mrf.mxu0
      %v1634 = vadd.f32 0.0, %v1633
      %1635 = vmatmul.bf16.gmra.mxu0 %v1583
      %v1636 = vpop.f32.mrf.mxu0
      %v1637 = vadd.f32 0.0, %v1636
      %v1638 = vpop.f32.mrf.mxu0
      %v1639 = vadd.f32 0.0, %v1638
      %1640 = vmatmul.bf16.gmra.mxu0 %v1586
      %v1641 = vpop.f32.mrf.mxu0
      %v1642 = vadd.f32 0.0, %v1641
      %v1643 = vpop.f32.mrf.mxu0
      %v1644 = vadd.f32 0.0, %v1643
      %1645 = vmatmul.bf16.gmra.mxu0 %v1589
      %v1646 = vpop.f32.mrf.mxu0
      %v1647 = vadd.f32 0.0, %v1646
      %v1648 = vpop.f32.mrf.mxu0
      %v1649 = vadd.f32 0.0, %v1648
      %1650 = vmatmul.bf16.gmra.mxu0 %v1592
      %v1651 = vpop.f32.mrf.mxu0
      %v1652 = vadd.f32 0.0, %v1651
      %v1653 = vpop.f32.mrf.mxu0
      %v1654 = vadd.f32 0.0, %v1653
      %1655 = vmatmul.bf16.gmra.mxu0 %v1595
      %v1656 = vpop.f32.mrf.mxu0
      %v1657 = vadd.f32 0.0, %v1656
      %v1658 = vpop.f32.mrf.mxu0
      %1659 = vdwg.mxu0
      %v1660 = vadd.f32 %v1411, %v1607
      %v1661 = vadd.f32 %v1412, %v1609
      %v1662 = vadd.f32 %v1413, %v1612
      %v1663 = vadd.f32 %v1414, %v1614
      %v1664 = vadd.f32 %v1415, %v1617
      %v1665 = vadd.f32 %v1416, %v1619
      %v1666 = vadd.f32 %v1417, %v1622
      %v1667 = vadd.f32 %v1418, %v1624
      %v1668 = vadd.f32 %v1419, %v1627
      %v1669 = vadd.f32 %v1420, %v1629
      %v1670 = vadd.f32 %v1421, %v1632
      %v1671 = vadd.f32 %v1422, %v1634
      %v1672 = vadd.f32 %v1423, %v1637
      %v1673 = vadd.f32 %v1424, %v1639
      %v1674 = vadd.f32 %v1425, %v1642
      %v1675 = vadd.f32 %v1426, %v1644
      %v1676 = vadd.f32 %v1427, %v1647
      %v1677 = vadd.f32 %v1428, %v1649
      %v1678 = vadd.f32 %v1429, %v1652
      %v1679 = vadd.f32 %v1430, %v1654
      %v1680 = vadd.f32 %v1431, %v1657
      %v1681 = vld [vmem:[#allocation2 + $0x58] sm:$0x7]
      %s1682 = scalar_lea.vmem %s4, 128
      %v1683 = vld [vmem:[%s1682] sm:$0xf]
      %v1684 = vld [vmem:[%s1682 + $0x4] sm:$0xf]
      %v1685 = vld [vmem:[%s1682 + $0x8] sm:$0xf]
      %v1686 = vld [vmem:[%s1682 + $0xc] sm:$0xf]
      %v1687 = vld [vmem:[%s1682 + $0x10] sm:$0xf]
      %v1688 = vld [vmem:[%s1682 + $0x14] sm:$0xf]
      %v1689 = vld [vmem:[%s1682 + $0x18] sm:$0xf]
      %v1690 = vld [vmem:[%s1682 + $0x1c] sm:$0xf]
      %v1692 = vunpack.c.l.b16 %v1681
      %v1693 = vpack.c.b16 %v1692, %v1505
      %vm1694 = vsmask.f32 4352
      %v1696 = vshrl.u32 %v1507, 16
      %v1698 = vrot.slane %v1696, 3
      %v1699 = vshll.u32 %v1507, 16
      %v1701 = vrot.slane %v1699, 4
      %v1702 = vor.u32 %v1698, %v1701
      %v1704 = vshrl.u32 %v1508, 16
      %v1706 = vrot.slane %v1704, 3
      %v1707 = vshll.u32 %v1508, 16
      %v1709 = vrot.slane %v1707, 4
      %v1710 = vor.u32 %v1706, %v1709
      %v1711 = vsel %vm1694, %v1702, %v1710
      %v1713 = vshrl.u32 %v1509, 16
      %v1715 = vrot.slane %v1713, 3
      %v1716 = vshll.u32 %v1509, 16
      %v1718 = vrot.slane %v1716, 4
      %v1719 = vor.u32 %v1715, %v1718
      %v1720 = vsel %vm1694, %v1710, %v1719
      %v1722 = vshrl.u32 %v1510, 16
      %v1724 = vrot.slane %v1722, 3
      %v1725 = vshll.u32 %v1510, 16
      %v1727 = vrot.slane %v1725, 4
      %v1728 = vor.u32 %v1724, %v1727
      %v1729 = vsel %vm1694, %v1719, %v1728
      %v1731 = vshrl.u32 %v1511, 16
      %v1733 = vrot.slane %v1731, 3
      %v1734 = vshll.u32 %v1511, 16
      %v1736 = vrot.slane %v1734, 4
      %v1737 = vor.u32 %v1733, %v1736
      %v1738 = vsel %vm1694, %v1728, %v1737
      %v1740 = vshrl.u32 %v1512, 16
      %v1742 = vrot.slane %v1740, 3
      %v1743 = vshll.u32 %v1512, 16
      %v1745 = vrot.slane %v1743, 4
      %v1746 = vor.u32 %v1742, %v1745
      %v1747 = vsel %vm1694, %v1737, %v1746
      %v1749 = vshrl.u32 %v1513, 16
      %v1751 = vrot.slane %v1749, 3
      %v1752 = vshll.u32 %v1513, 16
      %v1754 = vrot.slane %v1752, 4
      %v1755 = vor.u32 %v1751, %v1754
      %v1756 = vsel %vm1694, %v1746, %v1755
      %v1758 = vshrl.u32 %v1514, 16
      %v1760 = vrot.slane %v1758, 3
      %v1761 = vshll.u32 %v1514, 16
      %v1763 = vrot.slane %v1761, 4
      %v1764 = vor.u32 %v1760, %v1763
      %v1765 = vsel %vm1694, %v1755, %v1764
      %v1767 = vshrl.u32 %v1515, 16
      %v1769 = vrot.slane %v1767, 3
      %v1770 = vshll.u32 %v1515, 16
      %v1772 = vrot.slane %v1770, 4
      %v1773 = vor.u32 %v1769, %v1772
      %v1774 = vsel %vm1694, %v1764, %v1773
      %v1776 = vshrl.u32 %v1516, 16
      %v1778 = vrot.slane %v1776, 3
      %v1779 = vshll.u32 %v1516, 16
      %v1781 = vrot.slane %v1779, 4
      %v1782 = vor.u32 %v1778, %v1781
      %v1783 = vsel %vm1694, %v1773, %v1782
      %v1785 = vshrl.u32 %v1693, 16
      %v1787 = vrot.slane %v1785, 3
      %v1788 = vshll.u32 %v1693, 16
      %v1790 = vrot.slane %v1788, 4
      %v1791 = vor.u32 %v1787, %v1790
      %v1792 = vsel %vm1694, %v1782, %v1791
      %v1801 = vunpack.c.l.b16 %v1683
      %v1802 = vunpack.c.l.b16 %v1684
      %v1803 = vunpack.c.l.b16 %v1685
      %v1804 = vunpack.c.l.b16 %v1686
      %v1805 = vunpack.c.l.b16 %v1687
      %v1806 = vunpack.c.l.b16 %v1688
      %v1807 = vunpack.c.l.b16 %v1689
      %v1808 = vunpack.c.l.b16 %v1690
      %v1809 = vpack.c.b16 %v1802, %v1801
      %v1810 = vpack.c.b16 %v1804, %v1803
      %v1811 = vpack.c.b16 %v1806, %v1805
      %v1812 = vpack.c.b16 %v1808, %v1807
      %v1818 = vsel %vm431, %v1711, 0
      %v1821 = vsel %vm431, %v1720, 0
      %v1824 = vsel %vm431, %v1729, 0
      %v1827 = vsel %vm431, %v1738, 0
      %v1830 = vsel %vm431, %v1747, 0
      %v1833 = vsel %vm431, %v1756, 0
      %v1836 = vsel %vm431, %v1765, 0
      %v1839 = vsel %vm431, %v1774, 0
      %v1842 = vsel %vm431, %v1783, 0
      %v1845 = vsel %vm431, %v1792, 0
      %v1848 = vsel %vm431, %v1791, 0
      %1850 = vmatpush.bf16.msra.mxu0 0
      %1851 = vmatpush.bf16.msra.mxu0 0
      %1852 = vmatpush.bf16.msra.mxu0 0
      %1853 = vmatpush.bf16.msra.mxu0 0
      %1854 = vmatpush.bf16.msra.mxu0 %v1812
      %1855 = vmatpush.bf16.msra.mxu0 %v1811
      %1856 = vmatpush.bf16.msra.mxu0 %v1810
      %1857 = vmatpush.bf16.msra.mxu0 %v1809
      %1858 = vmatmul.bf16.gmra.mxu0 %v1818
      %v1859 = vpop.f32.mrf.mxu0
      %v1860 = vadd.f32 0.0, %v1859
      %v1861 = vpop.f32.mrf.mxu0
      %v1862 = vadd.f32 0.0, %v1861
      %1863 = vmatmul.bf16.gmra.mxu0 %v1821
      %v1864 = vpop.f32.mrf.mxu0
      %v1865 = vadd.f32 0.0, %v1864
      %v1866 = vpop.f32.mrf.mxu0
      %v1867 = vadd.f32 0.0, %v1866
      %1868 = vmatmul.bf16.gmra.mxu0 %v1824
      %v1869 = vpop.f32.mrf.mxu0
      %v1870 = vadd.f32 0.0, %v1869
      %v1871 = vpop.f32.mrf.mxu0
      %v1872 = vadd.f32 0.0, %v1871
      %1873 = vmatmul.bf16.gmra.mxu0 %v1827
      %v1874 = vpop.f32.mrf.mxu0
      %v1875 = vadd.f32 0.0, %v1874
      %v1876 = vpop.f32.mrf.mxu0
      %v1877 = vadd.f32 0.0, %v1876
      %1878 = vmatmul.bf16.gmra.mxu0 %v1830
      %v1879 = vpop.f32.mrf.mxu0
      %v1880 = vadd.f32 0.0, %v1879
      %v1881 = vpop.f32.mrf.mxu0
      %v1882 = vadd.f32 0.0, %v1881
      %1883 = vmatmul.bf16.gmra.mxu0 %v1833
      %v1884 = vpop.f32.mrf.mxu0
      %v1885 = vadd.f32 0.0, %v1884
      %v1886 = vpop.f32.mrf.mxu0
      %v1887 = vadd.f32 0.0, %v1886
      %1888 = vmatmul.bf16.gmra.mxu0 %v1836
      %v1889 = vpop.f32.mrf.mxu0
      %v1890 = vadd.f32 0.0, %v1889
      %v1891 = vpop.f32.mrf.mxu0
      %v1892 = vadd.f32 0.0, %v1891
      %1893 = vmatmul.bf16.gmra.mxu0 %v1839
      %v1894 = vpop.f32.mrf.mxu0
      %v1895 = vadd.f32 0.0, %v1894
      %v1896 = vpop.f32.mrf.mxu0
      %v1897 = vadd.f32 0.0, %v1896
      %1898 = vmatmul.bf16.gmra.mxu0 %v1842
      %v1899 = vpop.f32.mrf.mxu0
      %v1900 = vadd.f32 0.0, %v1899
      %v1901 = vpop.f32.mrf.mxu0
      %v1902 = vadd.f32 0.0, %v1901
      %1903 = vmatmul.bf16.gmra.mxu0 %v1845
      %v1904 = vpop.f32.mrf.mxu0
      %v1905 = vadd.f32 0.0, %v1904
      %v1906 = vpop.f32.mrf.mxu0
      %v1907 = vadd.f32 0.0, %v1906
      %1908 = vmatmul.bf16.gmra.mxu0 %v1848
      %v1909 = vpop.f32.mrf.mxu0
      %v1910 = vadd.f32 0.0, %v1909
      %v1911 = vpop.f32.mrf.mxu0
      %1912 = vdwg.mxu0
      %v1913 = vadd.f32 %v1660, %v1860
      %v1914 = vadd.f32 %v1661, %v1862
      %v1915 = vadd.f32 %v1662, %v1865
      %v1916 = vadd.f32 %v1663, %v1867
      %v1917 = vadd.f32 %v1664, %v1870
      %v1918 = vadd.f32 %v1665, %v1872
      %v1919 = vadd.f32 %v1666, %v1875
      %v1920 = vadd.f32 %v1667, %v1877
      %v1921 = vadd.f32 %v1668, %v1880
      %v1922 = vadd.f32 %v1669, %v1882
      %v1923 = vadd.f32 %v1670, %v1885
      %v1924 = vadd.f32 %v1671, %v1887
      %v1925 = vadd.f32 %v1672, %v1890
      %v1926 = vadd.f32 %v1673, %v1892
      %v1927 = vadd.f32 %v1674, %v1895
      %v1928 = vadd.f32 %v1675, %v1897
      %v1929 = vadd.f32 %v1676, %v1900
      %v1930 = vadd.f32 %v1677, %v1902
      %v1931 = vadd.f32 %v1678, %v1905
      %v1932 = vadd.f32 %v1679, %v1907
      %v1933 = vadd.f32 %v1680, %v1910
      %s1934 = scalar_lea.vmem %s4, 160
      %v1935 = vld [vmem:[%s1934] sm:$0xf]
      %v1936 = vld [vmem:[%s1934 + $0x4] sm:$0xf]
      %v1937 = vld [vmem:[%s1934 + $0x8] sm:$0xf]
      %v1938 = vld [vmem:[%s1934 + $0xc] sm:$0xf]
      %v1939 = vld [vmem:[%s1934 + $0x10] sm:$0xf]
      %v1940 = vld [vmem:[%s1934 + $0x14] sm:$0xf]
      %v1941 = vld [vmem:[%s1934 + $0x18] sm:$0xf]
      %v1942 = vld [vmem:[%s1934 + $0x1c] sm:$0xf]
      %v1943 = vpack.c.b16 %v1487, %v1486
      %v1944 = vpack.c.b16 %v1489, %v1488
      %v1945 = vpack.c.b16 %v1491, %v1490
      %v1946 = vpack.c.b16 %v1493, %v1492
      %v1947 = vpack.c.b16 %v1495, %v1494
      %v1948 = vpack.c.b16 %v1497, %v1496
      %v1949 = vpack.c.b16 %v1499, %v1498
      %v1950 = vpack.c.b16 %v1501, %v1500
      %v1951 = vpack.c.b16 %v1503, %v1502
      %v1952 = vpack.c.b16 %v1505, %v1504
      %v1953 = vpack.c.b16 %v1692, %v1692
      %v1962 = vunpack.c.l.b16 %v1935
      %v1963 = vunpack.c.l.b16 %v1936
      %v1964 = vunpack.c.l.b16 %v1937
      %v1965 = vunpack.c.l.b16 %v1938
      %v1966 = vunpack.c.l.b16 %v1939
      %v1967 = vunpack.c.l.b16 %v1940
      %v1968 = vunpack.c.l.b16 %v1941
      %v1969 = vunpack.c.l.b16 %v1942
      %v1970 = vpack.c.b16 %v1963, %v1962
      %v1971 = vpack.c.b16 %v1965, %v1964
      %v1972 = vpack.c.b16 %v1967, %v1966
      %v1973 = vpack.c.b16 %v1969, %v1968
      %v1979 = vsel %vm431, %v1943, 0
      %v1982 = vsel %vm431, %v1944, 0
      %v1985 = vsel %vm431, %v1945, 0
      %v1988 = vsel %vm431, %v1946, 0
      %v1991 = vsel %vm431, %v1947, 0
      %v1994 = vsel %vm431, %v1948, 0
      %v1997 = vsel %vm431, %v1949, 0
      %v2000 = vsel %vm431, %v1950, 0
      %v2003 = vsel %vm431, %v1951, 0
      %v2006 = vsel %vm431, %v1952, 0
      %v2009 = vsel %vm431, %v1953, 0
      %2011 = vmatpush.bf16.msra.mxu0 0
      %2012 = vmatpush.bf16.msra.mxu0 0
      %2013 = vmatpush.bf16.msra.mxu0 0
      %2014 = vmatpush.bf16.msra.mxu0 0
      %2015 = vmatpush.bf16.msra.mxu0 %v1973
      %2016 = vmatpush.bf16.msra.mxu0 %v1972
      %2017 = vmatpush.bf16.msra.mxu0 %v1971
      %2018 = vmatpush.bf16.msra.mxu0 %v1970
      %2019 = vmatmul.bf16.gmra.mxu0 %v1979
      %v2020 = vpop.f32.mrf.mxu0
      %v2021 = vadd.f32 0.0, %v2020
      %v2022 = vpop.f32.mrf.mxu0
      %v2023 = vadd.f32 0.0, %v2022
      %2024 = vmatmul.bf16.gmra.mxu0 %v1982
      %v2025 = vpop.f32.mrf.mxu0
      %v2026 = vadd.f32 0.0, %v2025
      %v2027 = vpop.f32.mrf.mxu0
      %v2028 = vadd.f32 0.0, %v2027
      %2029 = vmatmul.bf16.gmra.mxu0 %v1985
      %v2030 = vpop.f32.mrf.mxu0
      %v2031 = vadd.f32 0.0, %v2030
      %v2032 = vpop.f32.mrf.mxu0
      %v2033 = vadd.f32 0.0, %v2032
      %2034 = vmatmul.bf16.gmra.mxu0 %v1988
      %v2035 = vpop.f32.mrf.mxu0
      %v2036 = vadd.f32 0.0, %v2035
      %v2037 = vpop.f32.mrf.mxu0
      %v2038 = vadd.f32 0.0, %v2037
      %2039 = vmatmul.bf16.gmra.mxu0 %v1991
      %v2040 = vpop.f32.mrf.mxu0
      %v2041 = vadd.f32 0.0, %v2040
      %v2042 = vpop.f32.mrf.mxu0
      %v2043 = vadd.f32 0.0, %v2042
      %2044 = vmatmul.bf16.gmra.mxu0 %v1994
      %v2045 = vpop.f32.mrf.mxu0
      %v2046 = vadd.f32 0.0, %v2045
      %v2047 = vpop.f32.mrf.mxu0
      %v2048 = vadd.f32 0.0, %v2047
      %2049 = vmatmul.bf16.gmra.mxu0 %v1997
      %v2050 = vpop.f32.mrf.mxu0
      %v2051 = vadd.f32 0.0, %v2050
      %v2052 = vpop.f32.mrf.mxu0
      %v2053 = vadd.f32 0.0, %v2052
      %2054 = vmatmul.bf16.gmra.mxu0 %v2000
      %v2055 = vpop.f32.mrf.mxu0
      %v2056 = vadd.f32 0.0, %v2055
      %v2057 = vpop.f32.mrf.mxu0
      %v2058 = vadd.f32 0.0, %v2057
      %2059 = vmatmul.bf16.gmra.mxu0 %v2003
      %v2060 = vpop.f32.mrf.mxu0
      %v2061 = vadd.f32 0.0, %v2060
      %v2062 = vpop.f32.mrf.mxu0
      %v2063 = vadd.f32 0.0, %v2062
      %2064 = vmatmul.bf16.gmra.mxu0 %v2006
      %v2065 = vpop.f32.mrf.mxu0
      %v2066 = vadd.f32 0.0, %v2065
      %v2067 = vpop.f32.mrf.mxu0
      %v2068 = vadd.f32 0.0, %v2067
      %2069 = vmatmul.bf16.gmra.mxu0 %v2009
      %v2070 = vpop.f32.mrf.mxu0
      %v2071 = vadd.f32 0.0, %v2070
      %v2072 = vpop.f32.mrf.mxu0
      %2073 = vdwg.mxu0
      %v2074 = vadd.f32 %v1913, %v2021
      %v2075 = vadd.f32 %v1914, %v2023
      %v2076 = vadd.f32 %v1915, %v2026
      %v2077 = vadd.f32 %v1916, %v2028
      %v2078 = vadd.f32 %v1917, %v2031
      %v2079 = vadd.f32 %v1918, %v2033
      %v2080 = vadd.f32 %v1919, %v2036
      %v2081 = vadd.f32 %v1920, %v2038
      %v2082 = vadd.f32 %v1921, %v2041
      %v2083 = vadd.f32 %v1922, %v2043
      %v2084 = vadd.f32 %v1923, %v2046
      %v2085 = vadd.f32 %v1924, %v2048
      %v2086 = vadd.f32 %v1925, %v2051
      %v2087 = vadd.f32 %v1926, %v2053
      %v2088 = vadd.f32 %v1927, %v2056
      %v2089 = vadd.f32 %v1928, %v2058
      %v2090 = vadd.f32 %v1929, %v2061
      %v2091 = vadd.f32 %v1930, %v2063
      %v2092 = vadd.f32 %v1931, %v2066
      %v2093 = vadd.f32 %v1932, %v2068
      %v2094 = vadd.f32 %v1933, %v2071
      %v2095 = vld [vmem:[#allocation2 + $0xc] sm:$0xc]
      %v2096 = vld [vmem:[#allocation2 + $0x10] sm:$0xf]
      %v2097 = vld [vmem:[#allocation2 + $0x14] sm:$0xf]
      %v2098 = vld [vmem:[#allocation2 + $0x18] sm:$0xf]
      %v2099 = vld [vmem:[#allocation2 + $0x1c] sm:$0xf]
      %v2100 = vld [vmem:[#allocation2 + $0x20] sm:$0xf]
      %v2101 = vld [vmem:[#allocation2 + $0x24] sm:$0xf]
      %v2102 = vld [vmem:[#allocation2 + $0x28] sm:$0xf]
      %v2103 = vld [vmem:[#allocation2 + $0x2c] sm:$0xf]
      %v2104 = vld [vmem:[#allocation2 + $0x30] sm:$0xf]
      %v2105 = vld [vmem:[#allocation2 + $0x34] sm:$0xf]
      %v2106 = vld [vmem:[#allocation2 + $0x38] sm:$0xf]
      %v2107 = vld [vmem:[#allocation2 + $0x3c] sm:$0xf]
      %v2108 = vld [vmem:[#allocation2 + $0x40] sm:$0xf]
      %v2109 = vld [vmem:[#allocation2 + $0x44] sm:$0xf]
      %v2110 = vld [vmem:[#allocation2 + $0x48] sm:$0xf]
      %v2111 = vld [vmem:[#allocation2 + $0x4c] sm:$0xf]
      %v2112 = vld [vmem:[#allocation2 + $0x50] sm:$0xf]
      %v2113 = vld [vmem:[#allocation2 + $0x54] sm:$0xf]
      %v2114 = vld [vmem:[#allocation2 + $0x58] sm:$0xf]
      %v2115 = vld [vmem:[#allocation2 + $0x5c] sm:$0xf]
      %v2116 = vld [vmem:[#allocation2 + $0x60] sm:$0x1]
      %s2117 = scalar_lea.vmem %s4, 192
      %v2118 = vld [vmem:[%s2117] sm:$0xf]
      %v2119 = vld [vmem:[%s2117 + $0x4] sm:$0xf]
      %v2120 = vld [vmem:[%s2117 + $0x8] sm:$0xf]
      %v2121 = vld [vmem:[%s2117 + $0xc] sm:$0xf]
      %v2122 = vld [vmem:[%s2117 + $0x10] sm:$0xf]
      %v2123 = vld [vmem:[%s2117 + $0x14] sm:$0xf]
      %v2124 = vld [vmem:[%s2117 + $0x18] sm:$0xf]
      %v2125 = vld [vmem:[%s2117 + $0x1c] sm:$0xf]
      %v2148 = vunpack.c.l.b16 %v2095
      %v2149 = vunpack.c.l.b16 %v2096
      %v2150 = vunpack.c.l.b16 %v2097
      %v2151 = vunpack.c.l.b16 %v2098
      %v2152 = vunpack.c.l.b16 %v2099
      %v2153 = vunpack.c.l.b16 %v2100
      %v2154 = vunpack.c.l.b16 %v2101
      %v2155 = vunpack.c.l.b16 %v2102
      %v2156 = vunpack.c.l.b16 %v2103
      %v2157 = vunpack.c.l.b16 %v2104
      %v2158 = vunpack.c.l.b16 %v2105
      %v2159 = vunpack.c.l.b16 %v2106
      %v2160 = vunpack.c.l.b16 %v2107
      %v2161 = vunpack.c.l.b16 %v2108
      %v2162 = vunpack.c.l.b16 %v2109
      %v2163 = vunpack.c.l.b16 %v2110
      %v2164 = vunpack.c.l.b16 %v2111
      %v2165 = vunpack.c.l.b16 %v2112
      %v2166 = vunpack.c.l.b16 %v2113
      %v2167 = vunpack.c.l.b16 %v2114
      %v2168 = vunpack.c.l.b16 %v2115
      %v2169 = vunpack.c.l.b16 %v2116
      %v2170 = vpack.c.b16 %v2149, %v2148
      %v2171 = vpack.c.b16 %v2151, %v2150
      %v2172 = vpack.c.b16 %v2153, %v2152
      %v2173 = vpack.c.b16 %v2155, %v2154
      %v2174 = vpack.c.b16 %v2157, %v2156
      %v2175 = vpack.c.b16 %v2159, %v2158
      %v2176 = vpack.c.b16 %v2161, %v2160
      %v2177 = vpack.c.b16 %v2163, %v2162
      %v2178 = vpack.c.b16 %v2165, %v2164
      %v2179 = vpack.c.b16 %v2167, %v2166
      %v2180 = vpack.c.b16 %v2169, %v2168
      %vm2181 = vcmask 1045504
      %v2182 = vrot.slane %v2170, 2
      %v2183 = vrot.slane %v2171, 2
      %v2184 = vsel %vm2181, %v2182, %v2183
      %v2185 = vrot.slane %v2172, 2
      %v2186 = vsel %vm2181, %v2183, %v2185
      %v2187 = vrot.slane %v2173, 2
      %v2188 = vsel %vm2181, %v2185, %v2187
      %v2189 = vrot.slane %v2174, 2
      %v2190 = vsel %vm2181, %v2187, %v2189
      %v2191 = vrot.slane %v2175, 2
      %v2192 = vsel %vm2181, %v2189, %v2191
      %v2193 = vrot.slane %v2176, 2
      %v2194 = vsel %vm2181, %v2191, %v2193
      %v2195 = vrot.slane %v2177, 2
      %v2196 = vsel %vm2181, %v2193, %v2195
      %v2197 = vrot.slane %v2178, 2
      %v2198 = vsel %vm2181, %v2195, %v2197
      %v2199 = vrot.slane %v2179, 2
      %v2200 = vsel %vm2181, %v2197, %v2199
      %v2201 = vrot.slane %v2180, 2
      %v2202 = vsel %vm2181, %v2199, %v2201
      %v2211 = vunpack.c.l.b16 %v2118
      %v2212 = vunpack.c.l.b16 %v2119
      %v2213 = vunpack.c.l.b16 %v2120
      %v2214 = vunpack.c.l.b16 %v2121
      %v2215 = vunpack.c.l.b16 %v2122
      %v2216 = vunpack.c.l.b16 %v2123
      %v2217 = vunpack.c.l.b16 %v2124
      %v2218 = vunpack.c.l.b16 %v2125
      %v2219 = vpack.c.b16 %v2212, %v2211
      %v2220 = vpack.c.b16 %v2214, %v2213
      %v2221 = vpack.c.b16 %v2216, %v2215
      %v2222 = vpack.c.b16 %v2218, %v2217
      %v2228 = vsel %vm431, %v2184, 0
      %v2231 = vsel %vm431, %v2186, 0
      %v2234 = vsel %vm431, %v2188, 0
      %v2237 = vsel %vm431, %v2190, 0
      %v2240 = vsel %vm431, %v2192, 0
      %v2243 = vsel %vm431, %v2194, 0
      %v2246 = vsel %vm431, %v2196, 0
      %v2249 = vsel %vm431, %v2198, 0
      %v2252 = vsel %vm431, %v2200, 0
      %v2255 = vsel %vm431, %v2202, 0
      %v2258 = vsel %vm431, %v2201, 0
      %2260 = vmatpush.bf16.msra.mxu0 0
      %2261 = vmatpush.bf16.msra.mxu0 0
      %2262 = vmatpush.bf16.msra.mxu0 0
      %2263 = vmatpush.bf16.msra.mxu0 0
      %2264 = vmatpush.bf16.msra.mxu0 %v2222
      %2265 = vmatpush.bf16.msra.mxu0 %v2221
      %2266 = vmatpush.bf16.msra.mxu0 %v2220
      %2267 = vmatpush.bf16.msra.mxu0 %v2219
      %2268 = vmatmul.bf16.gmra.mxu0 %v2228
      %v2269 = vpop.f32.mrf.mxu0
      %v2270 = vadd.f32 0.0, %v2269
      %v2271 = vpop.f32.mrf.mxu0
      %v2272 = vadd.f32 0.0, %v2271
      %2273 = vmatmul.bf16.gmra.mxu0 %v2231
      %v2274 = vpop.f32.mrf.mxu0
      %v2275 = vadd.f32 0.0, %v2274
      %v2276 = vpop.f32.mrf.mxu0
      %v2277 = vadd.f32 0.0, %v2276
      %2278 = vmatmul.bf16.gmra.mxu0 %v2234
      %v2279 = vpop.f32.mrf.mxu0
      %v2280 = vadd.f32 0.0, %v2279
      %v2281 = vpop.f32.mrf.mxu0
      %v2282 = vadd.f32 0.0, %v2281
      %2283 = vmatmul.bf16.gmra.mxu0 %v2237
      %v2284 = vpop.f32.mrf.mxu0
      %v2285 = vadd.f32 0.0, %v2284
      %v2286 = vpop.f32.mrf.mxu0
      %v2287 = vadd.f32 0.0, %v2286
      %2288 = vmatmul.bf16.gmra.mxu0 %v2240
      %v2289 = vpop.f32.mrf.mxu0
      %v2290 = vadd.f32 0.0, %v2289
      %v2291 = vpop.f32.mrf.mxu0
      %v2292 = vadd.f32 0.0, %v2291
      %2293 = vmatmul.bf16.gmra.mxu0 %v2243
      %v2294 = vpop.f32.mrf.mxu0
      %v2295 = vadd.f32 0.0, %v2294
      %v2296 = vpop.f32.mrf.mxu0
      %v2297 = vadd.f32 0.0, %v2296
      %2298 = vmatmul.bf16.gmra.mxu0 %v2246
      %v2299 = vpop.f32.mrf.mxu0
      %v2300 = vadd.f32 0.0, %v2299
      %v2301 = vpop.f32.mrf.mxu0
      %v2302 = vadd.f32 0.0, %v2301
      %2303 = vmatmul.bf16.gmra.mxu0 %v2249
      %v2304 = vpop.f32.mrf.mxu0
      %v2305 = vadd.f32 0.0, %v2304
      %v2306 = vpop.f32.mrf.mxu0
      %v2307 = vadd.f32 0.0, %v2306
      %2308 = vmatmul.bf16.gmra.mxu0 %v2252
      %v2309 = vpop.f32.mrf.mxu0
      %v2310 = vadd.f32 0.0, %v2309
      %v2311 = vpop.f32.mrf.mxu0
      %v2312 = vadd.f32 0.0, %v2311
      %2313 = vmatmul.bf16.gmra.mxu0 %v2255
      %v2314 = vpop.f32.mrf.mxu0
      %v2315 = vadd.f32 0.0, %v2314
      %v2316 = vpop.f32.mrf.mxu0
      %v2317 = vadd.f32 0.0, %v2316
      %2318 = vmatmul.bf16.gmra.mxu0 %v2258
      %v2319 = vpop.f32.mrf.mxu0
      %v2320 = vadd.f32 0.0, %v2319
      %v2321 = vpop.f32.mrf.mxu0
      %2322 = vdwg.mxu0
      %v2323 = vadd.f32 %v2074, %v2270
      %v2324 = vadd.f32 %v2075, %v2272
      %v2325 = vadd.f32 %v2076, %v2275
      %v2326 = vadd.f32 %v2077, %v2277
      %v2327 = vadd.f32 %v2078, %v2280
      %v2328 = vadd.f32 %v2079, %v2282
      %v2329 = vadd.f32 %v2080, %v2285
      %v2330 = vadd.f32 %v2081, %v2287
      %v2331 = vadd.f32 %v2082, %v2290
      %v2332 = vadd.f32 %v2083, %v2292
      %v2333 = vadd.f32 %v2084, %v2295
      %v2334 = vadd.f32 %v2085, %v2297
      %v2335 = vadd.f32 %v2086, %v2300
      %v2336 = vadd.f32 %v2087, %v2302
      %v2337 = vadd.f32 %v2088, %v2305
      %v2338 = vadd.f32 %v2089, %v2307
      %v2339 = vadd.f32 %v2090, %v2310
      %v2340 = vadd.f32 %v2091, %v2312
      %v2341 = vadd.f32 %v2092, %v2315
      %v2342 = vadd.f32 %v2093, %v2317
      %v2343 = vadd.f32 %v2094, %v2320
      %v2344 = vld [vmem:[#allocation2 + $0x60] sm:$0x3]
      %s2345 = scalar_lea.vmem %s4, 224
      %v2346 = vld [vmem:[%s2345] sm:$0xf]
      %v2347 = vld [vmem:[%s2345 + $0x4] sm:$0xf]
      %v2348 = vld [vmem:[%s2345 + $0x8] sm:$0xf]
      %v2349 = vld [vmem:[%s2345 + $0xc] sm:$0xf]
      %v2350 = vld [vmem:[%s2345 + $0x10] sm:$0xf]
      %v2351 = vld [vmem:[%s2345 + $0x14] sm:$0xf]
      %v2352 = vld [vmem:[%s2345 + $0x18] sm:$0xf]
      %v2353 = vld [vmem:[%s2345 + $0x1c] sm:$0xf]
      %v2355 = vunpack.c.l.b16 %v2344
      %v2356 = vpack.c.b16 %v2355, %v2168
      %vm2357 = vsmask.f32 5376
      %v2359 = vshrl.u32 %v2170, 16
      %v2361 = vrot.slane %v2359, 2
      %v2362 = vshll.u32 %v2170, 16
      %v2364 = vrot.slane %v2362, 3
      %v2365 = vor.u32 %v2361, %v2364
      %v2367 = vshrl.u32 %v2171, 16
      %v2369 = vrot.slane %v2367, 2
      %v2370 = vshll.u32 %v2171, 16
      %v2372 = vrot.slane %v2370, 3
      %v2373 = vor.u32 %v2369, %v2372
      %v2374 = vsel %vm2357, %v2365, %v2373
      %v2376 = vshrl.u32 %v2172, 16
      %v2378 = vrot.slane %v2376, 2
      %v2379 = vshll.u32 %v2172, 16
      %v2381 = vrot.slane %v2379, 3
      %v2382 = vor.u32 %v2378, %v2381
      %v2383 = vsel %vm2357, %v2373, %v2382
      %v2385 = vshrl.u32 %v2173, 16
      %v2387 = vrot.slane %v2385, 2
      %v2388 = vshll.u32 %v2173, 16
      %v2390 = vrot.slane %v2388, 3
      %v2391 = vor.u32 %v2387, %v2390
      %v2392 = vsel %vm2357, %v2382, %v2391
      %v2394 = vshrl.u32 %v2174, 16
      %v2396 = vrot.slane %v2394, 2
      %v2397 = vshll.u32 %v2174, 16
      %v2399 = vrot.slane %v2397, 3
      %v2400 = vor.u32 %v2396, %v2399
      %v2401 = vsel %vm2357, %v2391, %v2400
      %v2403 = vshrl.u32 %v2175, 16
      %v2405 = vrot.slane %v2403, 2
      %v2406 = vshll.u32 %v2175, 16
      %v2408 = vrot.slane %v2406, 3
      %v2409 = vor.u32 %v2405, %v2408
      %v2410 = vsel %vm2357, %v2400, %v2409
      %v2412 = vshrl.u32 %v2176, 16
      %v2414 = vrot.slane %v2412, 2
      %v2415 = vshll.u32 %v2176, 16
      %v2417 = vrot.slane %v2415, 3
      %v2418 = vor.u32 %v2414, %v2417
      %v2419 = vsel %vm2357, %v2409, %v2418
      %v2421 = vshrl.u32 %v2177, 16
      %v2423 = vrot.slane %v2421, 2
      %v2424 = vshll.u32 %v2177, 16
      %v2426 = vrot.slane %v2424, 3
      %v2427 = vor.u32 %v2423, %v2426
      %v2428 = vsel %vm2357, %v2418, %v2427
      %v2430 = vshrl.u32 %v2178, 16
      %v2432 = vrot.slane %v2430, 2
      %v2433 = vshll.u32 %v2178, 16
      %v2435 = vrot.slane %v2433, 3
      %v2436 = vor.u32 %v2432, %v2435
      %v2437 = vsel %vm2357, %v2427, %v2436
      %v2439 = vshrl.u32 %v2179, 16
      %v2441 = vrot.slane %v2439, 2
      %v2442 = vshll.u32 %v2179, 16
      %v2444 = vrot.slane %v2442, 3
      %v2445 = vor.u32 %v2441, %v2444
      %v2446 = vsel %vm2357, %v2436, %v2445
      %v2448 = vshrl.u32 %v2356, 16
      %v2450 = vrot.slane %v2448, 2
      %v2451 = vshll.u32 %v2356, 16
      %v2453 = vrot.slane %v2451, 3
      %v2454 = vor.u32 %v2450, %v2453
      %v2455 = vsel %vm2357, %v2445, %v2454
      %v2464 = vunpack.c.l.b16 %v2346
      %v2465 = vunpack.c.l.b16 %v2347
      %v2466 = vunpack.c.l.b16 %v2348
      %v2467 = vunpack.c.l.b16 %v2349
      %v2468 = vunpack.c.l.b16 %v2350
      %v2469 = vunpack.c.l.b16 %v2351
      %v2470 = vunpack.c.l.b16 %v2352
      %v2471 = vunpack.c.l.b16 %v2353
      %v2472 = vpack.c.b16 %v2465, %v2464
      %v2473 = vpack.c.b16 %v2467, %v2466
      %v2474 = vpack.c.b16 %v2469, %v2468
      %v2475 = vpack.c.b16 %v2471, %v2470
      %v2481 = vsel %vm431, %v2374, 0
      %v2484 = vsel %vm431, %v2383, 0
      %v2487 = vsel %vm431, %v2392, 0
      %v2490 = vsel %vm431, %v2401, 0
      %v2493 = vsel %vm431, %v2410, 0
      %v2496 = vsel %vm431, %v2419, 0
      %v2499 = vsel %vm431, %v2428, 0
      %v2502 = vsel %vm431, %v2437, 0
      %v2505 = vsel %vm431, %v2446, 0
      %v2508 = vsel %vm431, %v2455, 0
      %v2511 = vsel %vm431, %v2454, 0
      %2513 = vmatpush.bf16.msra.mxu0 0
      %2514 = vmatpush.bf16.msra.mxu0 0
      %2515 = vmatpush.bf16.msra.mxu0 0
      %2516 = vmatpush.bf16.msra.mxu0 0
      %2517 = vmatpush.bf16.msra.mxu0 %v2475
      %2518 = vmatpush.bf16.msra.mxu0 %v2474
      %2519 = vmatpush.bf16.msra.mxu0 %v2473
      %2520 = vmatpush.bf16.msra.mxu0 %v2472
      %2521 = vmatmul.bf16.gmra.mxu0 %v2481
      %v2522 = vpop.f32.mrf.mxu0
      %v2523 = vadd.f32 0.0, %v2522
      %v2524 = vpop.f32.mrf.mxu0
      %v2525 = vadd.f32 0.0, %v2524
      %2526 = vmatmul.bf16.gmra.mxu0 %v2484
      %v2527 = vpop.f32.mrf.mxu0
      %v2528 = vadd.f32 0.0, %v2527
      %v2529 = vpop.f32.mrf.mxu0
      %v2530 = vadd.f32 0.0, %v2529
      %2531 = vmatmul.bf16.gmra.mxu0 %v2487
      %v2532 = vpop.f32.mrf.mxu0
      %v2533 = vadd.f32 0.0, %v2532
      %v2534 = vpop.f32.mrf.mxu0
      %v2535 = vadd.f32 0.0, %v2534
      %2536 = vmatmul.bf16.gmra.mxu0 %v2490
      %v2537 = vpop.f32.mrf.mxu0
      %v2538 = vadd.f32 0.0, %v2537
      %v2539 = vpop.f32.mrf.mxu0
      %v2540 = vadd.f32 0.0, %v2539
      %2541 = vmatmul.bf16.gmra.mxu0 %v2493
      %v2542 = vpop.f32.mrf.mxu0
      %v2543 = vadd.f32 0.0, %v2542
      %v2544 = vpop.f32.mrf.mxu0
      %v2545 = vadd.f32 0.0, %v2544
      %2546 = vmatmul.bf16.gmra.mxu0 %v2496
      %v2547 = vpop.f32.mrf.mxu0
      %v2548 = vadd.f32 0.0, %v2547
      %v2549 = vpop.f32.mrf.mxu0
      %v2550 = vadd.f32 0.0, %v2549
      %2551 = vmatmul.bf16.gmra.mxu0 %v2499
      %v2552 = vpop.f32.mrf.mxu0
      %v2553 = vadd.f32 0.0, %v2552
      %v2554 = vpop.f32.mrf.mxu0
      %v2555 = vadd.f32 0.0, %v2554
      %2556 = vmatmul.bf16.gmra.mxu0 %v2502
      %v2557 = vpop.f32.mrf.mxu0
      %v2558 = vadd.f32 0.0, %v2557
      %v2559 = vpop.f32.mrf.mxu0
      %v2560 = vadd.f32 0.0, %v2559
      %2561 = vmatmul.bf16.gmra.mxu0 %v2505
      %v2562 = vpop.f32.mrf.mxu0
      %v2563 = vadd.f32 0.0, %v2562
      %v2564 = vpop.f32.mrf.mxu0
      %v2565 = vadd.f32 0.0, %v2564
      %2566 = vmatmul.bf16.gmra.mxu0 %v2508
      %v2567 = vpop.f32.mrf.mxu0
      %v2568 = vadd.f32 0.0, %v2567
      %v2569 = vpop.f32.mrf.mxu0
      %v2570 = vadd.f32 0.0, %v2569
      %2571 = vmatmul.bf16.gmra.mxu0 %v2511
      %v2572 = vpop.f32.mrf.mxu0
      %v2573 = vadd.f32 0.0, %v2572
      %v2574 = vpop.f32.mrf.mxu0
      %2575 = vdwg.mxu0
      %v2576 = vadd.f32 %v2323, %v2523
      %v2577 = vadd.f32 %v2324, %v2525
      %v2578 = vadd.f32 %v2325, %v2528
      %v2579 = vadd.f32 %v2326, %v2530
      %v2580 = vadd.f32 %v2327, %v2533
      %v2581 = vadd.f32 %v2328, %v2535
      %v2582 = vadd.f32 %v2329, %v2538
      %v2583 = vadd.f32 %v2330, %v2540
      %v2584 = vadd.f32 %v2331, %v2543
      %v2585 = vadd.f32 %v2332, %v2545
      %v2586 = vadd.f32 %v2333, %v2548
      %v2587 = vadd.f32 %v2334, %v2550
      %v2588 = vadd.f32 %v2335, %v2553
      %v2589 = vadd.f32 %v2336, %v2555
      %v2590 = vadd.f32 %v2337, %v2558
      %v2591 = vadd.f32 %v2338, %v2560
      %v2592 = vadd.f32 %v2339, %v2563
      %v2593 = vadd.f32 %v2340, %v2565
      %v2594 = vadd.f32 %v2341, %v2568
      %v2595 = vadd.f32 %v2342, %v2570
      %v2596 = vadd.f32 %v2343, %v2573
      %v2597 = vld [vmem:[#allocation2 + $0xc] sm:$0x8]
      %s2598 = scalar_lea.vmem %s4, 256
      %v2599 = vld [vmem:[%s2598] sm:$0xf]
      %v2600 = vld [vmem:[%s2598 + $0x4] sm:$0xf]
      %v2601 = vld [vmem:[%s2598 + $0x8] sm:$0xf]
      %v2602 = vld [vmem:[%s2598 + $0xc] sm:$0xf]
      %v2603 = vld [vmem:[%s2598 + $0x10] sm:$0xf]
      %v2604 = vld [vmem:[%s2598 + $0x14] sm:$0xf]
      %v2605 = vld [vmem:[%s2598 + $0x18] sm:$0xf]
      %v2606 = vld [vmem:[%s2598 + $0x1c] sm:$0xf]
      %v2608 = vunpack.c.l.b16 %v2597
      %v2609 = vpack.c.b16 %v2149, %v2608
      %v2610 = vrot.slane %v2609, 3
      %v2611 = vrot.slane %v2171, 3
      %v2612 = vsel %vm1518, %v2610, %v2611
      %v2613 = vrot.slane %v2172, 3
      %v2614 = vsel %vm1518, %v2611, %v2613
      %v2615 = vrot.slane %v2173, 3
      %v2616 = vsel %vm1518, %v2613, %v2615
      %v2617 = vrot.slane %v2174, 3
      %v2618 = vsel %vm1518, %v2615, %v2617
      %v2619 = vrot.slane %v2175, 3
      %v2620 = vsel %vm1518, %v2617, %v2619
      %v2621 = vrot.slane %v2176, 3
      %v2622 = vsel %vm1518, %v2619, %v2621
      %v2623 = vrot.slane %v2177, 3
      %v2624 = vsel %vm1518, %v2621, %v2623
      %v2625 = vrot.slane %v2178, 3
      %v2626 = vsel %vm1518, %v2623, %v2625
      %v2627 = vrot.slane %v2179, 3
      %v2628 = vsel %vm1518, %v2625, %v2627
      %v2629 = vrot.slane %v2356, 3
      %v2630 = vsel %vm1518, %v2627, %v2629
      %v2639 = vunpack.c.l.b16 %v2599
      %v2640 = vunpack.c.l.b16 %v2600
      %v2641 = vunpack.c.l.b16 %v2601
      %v2642 = vunpack.c.l.b16 %v2602
      %v2643 = vunpack.c.l.b16 %v2603
      %v2644 = vunpack.c.l.b16 %v2604
      %v2645 = vunpack.c.l.b16 %v2605
      %v2646 = vunpack.c.l.b16 %v2606
      %v2647 = vpack.c.b16 %v2640, %v2639
      %v2648 = vpack.c.b16 %v2642, %v2641
      %v2649 = vpack.c.b16 %v2644, %v2643
      %v2650 = vpack.c.b16 %v2646, %v2645
      %v2656 = vsel %vm431, %v2612, 0
      %v2659 = vsel %vm431, %v2614, 0
      %v2662 = vsel %vm431, %v2616, 0
      %v2665 = vsel %vm431, %v2618, 0
      %v2668 = vsel %vm431, %v2620, 0
      %v2671 = vsel %vm431, %v2622, 0
      %v2674 = vsel %vm431, %v2624, 0
      %v2677 = vsel %vm431, %v2626, 0
      %v2680 = vsel %vm431, %v2628, 0
      %v2683 = vsel %vm431, %v2630, 0
      %v2686 = vsel %vm431, %v2629, 0
      %2688 = vmatpush.bf16.msra.mxu0 0
      %2689 = vmatpush.bf16.msra.mxu0 0
      %2690 = vmatpush.bf16.msra.mxu0 0
      %2691 = vmatpush.bf16.msra.mxu0 0
      %2692 = vmatpush.bf16.msra.mxu0 %v2650
      %2693 = vmatpush.bf16.msra.mxu0 %v2649
      %2694 = vmatpush.bf16.msra.mxu0 %v2648
      %2695 = vmatpush.bf16.msra.mxu0 %v2647
      %2696 = vmatmul.bf16.gmra.mxu0 %v2656
      %v2697 = vpop.f32.mrf.mxu0
      %v2698 = vadd.f32 0.0, %v2697
      %v2699 = vpop.f32.mrf.mxu0
      %v2700 = vadd.f32 0.0, %v2699
      %2701 = vmatmul.bf16.gmra.mxu0 %v2659
      %v2702 = vpop.f32.mrf.mxu0
      %v2703 = vadd.f32 0.0, %v2702
      %v2704 = vpop.f32.mrf.mxu0
      %v2705 = vadd.f32 0.0, %v2704
      %2706 = vmatmul.bf16.gmra.mxu0 %v2662
      %v2707 = vpop.f32.mrf.mxu0
      %v2708 = vadd.f32 0.0, %v2707
      %v2709 = vpop.f32.mrf.mxu0
      %v2710 = vadd.f32 0.0, %v2709
      %2711 = vmatmul.bf16.gmra.mxu0 %v2665
      %v2712 = vpop.f32.mrf.mxu0
      %v2713 = vadd.f32 0.0, %v2712
      %v2714 = vpop.f32.mrf.mxu0
      %v2715 = vadd.f32 0.0, %v2714
      %2716 = vmatmul.bf16.gmra.mxu0 %v2668
      %v2717 = vpop.f32.mrf.mxu0
      %v2718 = vadd.f32 0.0, %v2717
      %v2719 = vpop.f32.mrf.mxu0
      %v2720 = vadd.f32 0.0, %v2719
      %2721 = vmatmul.bf16.gmra.mxu0 %v2671
      %v2722 = vpop.f32.mrf.mxu0
      %v2723 = vadd.f32 0.0, %v2722
      %v2724 = vpop.f32.mrf.mxu0
      %v2725 = vadd.f32 0.0, %v2724
      %2726 = vmatmul.bf16.gmra.mxu0 %v2674
      %v2727 = vpop.f32.mrf.mxu0
      %v2728 = vadd.f32 0.0, %v2727
      %v2729 = vpop.f32.mrf.mxu0
      %v2730 = vadd.f32 0.0, %v2729
      %2731 = vmatmul.bf16.gmra.mxu0 %v2677
      %v2732 = vpop.f32.mrf.mxu0
      %v2733 = vadd.f32 0.0, %v2732
      %v2734 = vpop.f32.mrf.mxu0
      %v2735 = vadd.f32 0.0, %v2734
      %2736 = vmatmul.bf16.gmra.mxu0 %v2680
      %v2737 = vpop.f32.mrf.mxu0
      %v2738 = vadd.f32 0.0, %v2737
      %v2739 = vpop.f32.mrf.mxu0
      %v2740 = vadd.f32 0.0, %v2739
      %2741 = vmatmul.bf16.gmra.mxu0 %v2683
      %v2742 = vpop.f32.mrf.mxu0
      %v2743 = vadd.f32 0.0, %v2742
      %v2744 = vpop.f32.mrf.mxu0
      %v2745 = vadd.f32 0.0, %v2744
      %2746 = vmatmul.bf16.gmra.mxu0 %v2686
      %v2747 = vpop.f32.mrf.mxu0
      %v2748 = vadd.f32 0.0, %v2747
      %v2749 = vpop.f32.mrf.mxu0
      %2750 = vdwg.mxu0
      %v2751 = vadd.f32 %v2576, %v2698
      %v2752 = vadd.f32 %v2577, %v2700
      %v2753 = vadd.f32 %v2578, %v2703
      %v2754 = vadd.f32 %v2579, %v2705
      %v2755 = vadd.f32 %v2580, %v2708
      %v2756 = vadd.f32 %v2581, %v2710
      %v2757 = vadd.f32 %v2582, %v2713
      %v2758 = vadd.f32 %v2583, %v2715
      %v2759 = vadd.f32 %v2584, %v2718
      %v2760 = vadd.f32 %v2585, %v2720
      %v2761 = vadd.f32 %v2586, %v2723
      %v2762 = vadd.f32 %v2587, %v2725
      %v2763 = vadd.f32 %v2588, %v2728
      %v2764 = vadd.f32 %v2589, %v2730
      %v2765 = vadd.f32 %v2590, %v2733
      %v2766 = vadd.f32 %v2591, %v2735
      %v2767 = vadd.f32 %v2592, %v2738
      %v2768 = vadd.f32 %v2593, %v2740
      %v2769 = vadd.f32 %v2594, %v2743
      %v2770 = vadd.f32 %v2595, %v2745
      %v2771 = vadd.f32 %v2596, %v2748
      %v2772 = vmax.f32 %v2751, 0.0
      %v2773 = vmax.f32 %v2752, 0.0
      %v2774 = vmax.f32 %v2753, 0.0
      %v2775 = vmax.f32 %v2754, 0.0
      %v2776 = vmax.f32 %v2755, 0.0
      %v2777 = vmax.f32 %v2756, 0.0
      %v2778 = vmax.f32 %v2757, 0.0
      %v2779 = vmax.f32 %v2758, 0.0
      %v2780 = vmax.f32 %v2759, 0.0
      %v2781 = vmax.f32 %v2760, 0.0
      %v2782 = vmax.f32 %v2761, 0.0
      %v2783 = vmax.f32 %v2762, 0.0
      %v2784 = vmax.f32 %v2763, 0.0
      %v2785 = vmax.f32 %v2764, 0.0
      %v2786 = vmax.f32 %v2765, 0.0
      %v2787 = vmax.f32 %v2766, 0.0
      %v2788 = vmax.f32 %v2767, 0.0
      %v2789 = vmax.f32 %v2768, 0.0
      %v2790 = vmax.f32 %v2769, 0.0
      %v2791 = vmax.f32 %v2770, 0.0
      %v2792 = vmax.f32 %v2771, 0.0
      %v2793 = vpack.c.bf16 %v2773, %v2772
      %v2794 = vpack.c.bf16 %v2775, %v2774
      %v2795 = vpack.c.bf16 %v2777, %v2776
      %v2796 = vpack.c.bf16 %v2779, %v2778
      %v2797 = vpack.c.bf16 %v2781, %v2780
      %v2798 = vpack.c.bf16 %v2783, %v2782
      %v2799 = vpack.c.bf16 %v2785, %v2784
      %v2800 = vpack.c.bf16 %v2787, %v2786
      %v2801 = vpack.c.bf16 %v2789, %v2788
      %v2802 = vpack.c.bf16 %v2791, %v2790
      %v2803 = vpack.c.bf16 %v2792, %v2792
      %v2804 = vld [vmem:[%s6] sm:$0xf]
      %v2805 = vld [vmem:[%s6 + $0x4] sm:$0xf]
      %v2806 = vld [vmem:[%s6 + $0x8] sm:$0xf]
      %v2807 = vld [vmem:[%s6 + $0xc] sm:$0xf]
      %v2808 = vld [vmem:[%s6 + $0x10] sm:$0xf]
      %v2809 = vld [vmem:[%s6 + $0x14] sm:$0xf]
      %v2810 = vld [vmem:[%s6 + $0x18] sm:$0xf]
      %v2811 = vld [vmem:[%s6 + $0x1c] sm:$0xf]
      %v2812 = vld [vmem:[%s300 + $0x4] sm:$0x8]
      %v2813 = vld [vmem:[%s300 + $0x8] sm:$0xf]
      %v2814 = vld [vmem:[%s300 + $0xc] sm:$0xf]
      %v2815 = vld [vmem:[%s300 + $0x10] sm:$0xf]
      %v2816 = vld [vmem:[%s300 + $0x14] sm:$0xf]
      %v2817 = vld [vmem:[%s300 + $0x18] sm:$0xf]
      %v2818 = vld [vmem:[%s300 + $0x1c] sm:$0xf]
      %v2819 = vld [vmem:[%s300 + $0x20] sm:$0xf]
      %v2820 = vld [vmem:[%s300 + $0x24] sm:$0xf]
      %v2821 = vld [vmem:[%s300 + $0x28] sm:$0xf]
      %v2822 = vld [vmem:[%s300 + $0x2c] sm:$0xf]
      %v2823 = vld [vmem:[%s300 + $0x30] sm:$0xf]
      %v2824 = vld [vmem:[%s300 + $0x34] sm:$0xf]
      %v2825 = vld [vmem:[%s300 + $0x38] sm:$0xf]
      %v2826 = vld [vmem:[%s300 + $0x3c] sm:$0xf]
      %v2827 = vld [vmem:[%s300 + $0x40] sm:$0xf]
      %v2828 = vld [vmem:[%s300 + $0x44] sm:$0xf]
      %v2829 = vld [vmem:[%s300 + $0x48] sm:$0xf]
      %v2830 = vld [vmem:[%s300 + $0x4c] sm:$0xf]
      %v2831 = vld [vmem:[%s300 + $0x50] sm:$0xf]
      %v2832 = vld [vmem:[%s300 + $0x54] sm:$0xf]
      %v2833 = vld [vmem:[%s300 + $0x58] sm:$0x7]
      %v2834 = vunpack.c.l.bf16 %v2812
      %v2835 = vunpack.c.l.bf16 %v2813
      %v2836 = vunpack.c.l.bf16 %v2814
      %v2837 = vunpack.c.l.bf16 %v2815
      %v2838 = vunpack.c.l.bf16 %v2816
      %v2839 = vunpack.c.l.bf16 %v2817
      %v2840 = vunpack.c.l.bf16 %v2818
      %v2841 = vunpack.c.l.bf16 %v2819
      %v2842 = vunpack.c.l.bf16 %v2820
      %v2843 = vunpack.c.l.bf16 %v2821
      %v2844 = vunpack.c.l.bf16 %v2822
      %v2845 = vunpack.c.l.bf16 %v2823
      %v2846 = vunpack.c.l.bf16 %v2824
      %v2847 = vunpack.c.l.bf16 %v2825
      %v2848 = vunpack.c.l.bf16 %v2826
      %v2849 = vunpack.c.l.bf16 %v2827
      %v2850 = vunpack.c.l.bf16 %v2828
      %v2851 = vunpack.c.l.bf16 %v2829
      %v2852 = vunpack.c.l.bf16 %v2830
      %v2853 = vunpack.c.l.bf16 %v2831
      %v2854 = vunpack.c.l.bf16 %v2832
      %v2855 = vunpack.c.l.bf16 %v2833
      %v2856 = vld [vmem:[%s7] sm:$0x1]
      %v2858 = vperm.slane %v2856, 0
      %v2868 = vunpack.c.l.b16 %v2804
      %v2869 = vunpack.c.l.b16 %v2805
      %v2870 = vunpack.c.l.b16 %v2806
      %v2871 = vunpack.c.l.b16 %v2807
      %v2872 = vunpack.c.l.b16 %v2808
      %v2873 = vunpack.c.l.b16 %v2809
      %v2874 = vunpack.c.l.b16 %v2810
      %v2875 = vunpack.c.l.b16 %v2811
      %v2876 = vpack.c.b16 %v2869, %v2868
      %v2877 = vpack.c.b16 %v2871, %v2870
      %v2878 = vpack.c.b16 %v2873, %v2872
      %v2879 = vpack.c.b16 %v2875, %v2874
      %v2885 = vsel %vm431, %v2793, 0
      %v2888 = vsel %vm431, %v2794, 0
      %v2891 = vsel %vm431, %v2795, 0
      %v2894 = vsel %vm431, %v2796, 0
      %v2897 = vsel %vm431, %v2797, 0
      %v2900 = vsel %vm431, %v2798, 0
      %v2903 = vsel %vm431, %v2799, 0
      %v2906 = vsel %vm431, %v2800, 0
      %v2909 = vsel %vm431, %v2801, 0
      %v2912 = vsel %vm431, %v2802, 0
      %v2915 = vsel %vm431, %v2803, 0
      %2917 = vmatpush.bf16.msra.mxu0 0
      %2918 = vmatpush.bf16.msra.mxu0 0
      %2919 = vmatpush.bf16.msra.mxu0 0
      %2920 = vmatpush.bf16.msra.mxu0 0
      %2921 = vmatpush.bf16.msra.mxu0 %v2879
      %2922 = vmatpush.bf16.msra.mxu0 %v2878
      %2923 = vmatpush.bf16.msra.mxu0 %v2877
      %2924 = vmatpush.bf16.msra.mxu0 %v2876
      %2925 = vmatmul.bf16.gmra.mxu0 %v2885
      %v2926 = vpop.f32.mrf.mxu0
      %v2927 = vadd.f32 %v2858, %v2926
      %v2928 = vpop.f32.mrf.mxu0
      %v2929 = vadd.f32 %v2858, %v2928
      %2930 = vmatmul.bf16.gmra.mxu0 %v2888
      %v2931 = vpop.f32.mrf.mxu0
      %v2932 = vadd.f32 %v2858, %v2931
      %v2933 = vpop.f32.mrf.mxu0
      %v2934 = vadd.f32 %v2858, %v2933
      %2935 = vmatmul.bf16.gmra.mxu0 %v2891
      %v2936 = vpop.f32.mrf.mxu0
      %v2937 = vadd.f32 %v2858, %v2936
      %v2938 = vpop.f32.mrf.mxu0
      %v2939 = vadd.f32 %v2858, %v2938
      %2940 = vmatmul.bf16.gmra.mxu0 %v2894
      %v2941 = vpop.f32.mrf.mxu0
      %v2942 = vadd.f32 %v2858, %v2941
      %v2943 = vpop.f32.mrf.mxu0
      %v2944 = vadd.f32 %v2858, %v2943
      %2945 = vmatmul.bf16.gmra.mxu0 %v2897
      %v2946 = vpop.f32.mrf.mxu0
      %v2947 = vadd.f32 %v2858, %v2946
      %v2948 = vpop.f32.mrf.mxu0
      %v2949 = vadd.f32 %v2858, %v2948
      %2950 = vmatmul.bf16.gmra.mxu0 %v2900
      %v2951 = vpop.f32.mrf.mxu0
      %v2952 = vadd.f32 %v2858, %v2951
      %v2953 = vpop.f32.mrf.mxu0
      %v2954 = vadd.f32 %v2858, %v2953
      %2955 = vmatmul.bf16.gmra.mxu0 %v2903
      %v2956 = vpop.f32.mrf.mxu0
      %v2957 = vadd.f32 %v2858, %v2956
      %v2958 = vpop.f32.mrf.mxu0
      %v2959 = vadd.f32 %v2858, %v2958
      %2960 = vmatmul.bf16.gmra.mxu0 %v2906
      %v2961 = vpop.f32.mrf.mxu0
      %v2962 = vadd.f32 %v2858, %v2961
      %v2963 = vpop.f32.mrf.mxu0
      %v2964 = vadd.f32 %v2858, %v2963
      %2965 = vmatmul.bf16.gmra.mxu0 %v2909
      %v2966 = vpop.f32.mrf.mxu0
      %v2967 = vadd.f32 %v2858, %v2966
      %v2968 = vpop.f32.mrf.mxu0
      %v2969 = vadd.f32 %v2858, %v2968
      %2970 = vmatmul.bf16.gmra.mxu0 %v2912
      %v2971 = vpop.f32.mrf.mxu0
      %v2972 = vadd.f32 %v2858, %v2971
      %v2973 = vpop.f32.mrf.mxu0
      %v2974 = vadd.f32 %v2858, %v2973
      %2975 = vmatmul.bf16.gmra.mxu0 %v2915
      %v2976 = vpop.f32.mrf.mxu0
      %v2977 = vadd.f32 %v2858, %v2976
      %v2978 = vpop.f32.mrf.mxu0
      %2979 = vdwg.mxu0
      %vm3002 = vcmask 1040384
      %v3003 = vrot.slane %v2834, 7
      %v3004 = vrot.slane %v2835, 7
      %v3005 = vsel %vm3002, %v3003, %v3004
      %v3006 = vrot.slane %v2836, 7
      %v3007 = vsel %vm3002, %v3004, %v3006
      %v3008 = vrot.slane %v2837, 7
      %v3009 = vsel %vm3002, %v3006, %v3008
      %v3010 = vrot.slane %v2838, 7
      %v3011 = vsel %vm3002, %v3008, %v3010
      %v3012 = vrot.slane %v2839, 7
      %v3013 = vsel %vm3002, %v3010, %v3012
      %v3014 = vrot.slane %v2840, 7
      %v3015 = vsel %vm3002, %v3012, %v3014
      %v3016 = vrot.slane %v2841, 7
      %v3017 = vsel %vm3002, %v3014, %v3016
      %v3018 = vrot.slane %v2842, 7
      %v3019 = vsel %vm3002, %v3016, %v3018
      %v3020 = vrot.slane %v2843, 7
      %v3021 = vsel %vm3002, %v3018, %v3020
      %v3022 = vrot.slane %v2844, 7
      %v3023 = vsel %vm3002, %v3020, %v3022
      %v3024 = vrot.slane %v2845, 7
      %v3025 = vsel %vm3002, %v3022, %v3024
      %v3026 = vrot.slane %v2846, 7
      %v3027 = vsel %vm3002, %v3024, %v3026
      %v3028 = vrot.slane %v2847, 7
      %v3029 = vsel %vm3002, %v3026, %v3028
      %v3030 = vrot.slane %v2848, 7
      %v3031 = vsel %vm3002, %v3028, %v3030
      %v3032 = vrot.slane %v2849, 7
      %v3033 = vsel %vm3002, %v3030, %v3032
      %v3034 = vrot.slane %v2850, 7
      %v3035 = vsel %vm3002, %v3032, %v3034
      %v3036 = vrot.slane %v2851, 7
      %v3037 = vsel %vm3002, %v3034, %v3036
      %v3038 = vrot.slane %v2852, 7
      %v3039 = vsel %vm3002, %v3036, %v3038
      %v3040 = vrot.slane %v2853, 7
      %v3041 = vsel %vm3002, %v3038, %v3040
      %v3042 = vrot.slane %v2854, 7
      %v3043 = vsel %vm3002, %v3040, %v3042
      %v3044 = vrot.slane %v2855, 7
      %v3045 = vsel %vm3002, %v3042, %v3044
      %v3067 = vadd.f32 %v2927, %v3005
      %v3068 = vadd.f32 %v2929, %v3007
      %v3069 = vadd.f32 %v2932, %v3009
      %v3070 = vadd.f32 %v2934, %v3011
      %v3071 = vadd.f32 %v2937, %v3013
      %v3072 = vadd.f32 %v2939, %v3015
      %v3073 = vadd.f32 %v2942, %v3017
      %v3074 = vadd.f32 %v2944, %v3019
      %v3075 = vadd.f32 %v2947, %v3021
      %v3076 = vadd.f32 %v2949, %v3023
      %v3077 = vadd.f32 %v2952, %v3025
      %v3078 = vadd.f32 %v2954, %v3027
      %v3079 = vadd.f32 %v2957, %v3029
      %v3080 = vadd.f32 %v2959, %v3031
      %v3081 = vadd.f32 %v2962, %v3033
      %v3082 = vadd.f32 %v2964, %v3035
      %v3083 = vadd.f32 %v2967, %v3037
      %v3084 = vadd.f32 %v2969, %v3039
      %v3085 = vadd.f32 %v2972, %v3041
      %v3086 = vadd.f32 %v2974, %v3043
      %v3087 = vadd.f32 %v2977, %v3045
      %v3088 = vpack.c.bf16 %v3067, %v3067
      %v3089 = vpack.c.bf16 %v3068, %v3068
      %v3090 = vpack.c.bf16 %v3069, %v3069
      %v3091 = vpack.c.bf16 %v3070, %v3070
      %v3092 = vpack.c.bf16 %v3071, %v3071
      %v3093 = vpack.c.bf16 %v3072, %v3072
      %v3094 = vpack.c.bf16 %v3073, %v3073
      %v3095 = vpack.c.bf16 %v3074, %v3074
      %v3096 = vpack.c.bf16 %v3075, %v3075
      %v3097 = vpack.c.bf16 %v3076, %v3076
      %v3098 = vpack.c.bf16 %v3077, %v3077
      %v3099 = vpack.c.bf16 %v3078, %v3078
      %v3100 = vpack.c.bf16 %v3079, %v3079
      %v3101 = vpack.c.bf16 %v3080, %v3080
      %v3102 = vpack.c.bf16 %v3081, %v3081
      %v3103 = vpack.c.bf16 %v3082, %v3082
      %v3104 = vpack.c.bf16 %v3083, %v3083
      %v3105 = vpack.c.bf16 %v3084, %v3084
      %v3106 = vpack.c.bf16 %v3085, %v3085
      %v3107 = vpack.c.bf16 %v3086, %v3086
      %v3108 = vpack.c.bf16 %v3087, %v3087
      %3109 = vst.msk [vmem:[%s305] sm:$0xf] %vm769, %v3088
      %3110 = vst.msk [vmem:[%s305 + $0x4] sm:$0xf] %vm769, %v3089
      %3111 = vst.msk [vmem:[%s305 + $0x8] sm:$0xf] %vm769, %v3090
      %3112 = vst.msk [vmem:[%s305 + $0xc] sm:$0xf] %vm769, %v3091
      %3113 = vst.msk [vmem:[%s305 + $0x10] sm:$0xf] %vm769, %v3092
      %3114 = vst.msk [vmem:[%s305 + $0x14] sm:$0xf] %vm769, %v3093
      %3115 = vst.msk [vmem:[%s305 + $0x18] sm:$0xf] %vm769, %v3094
      %3116 = vst.msk [vmem:[%s305 + $0x1c] sm:$0xf] %vm769, %v3095
      %3117 = vst.msk [vmem:[%s305 + $0x20] sm:$0xf] %vm769, %v3096
      %3118 = vst.msk [vmem:[%s305 + $0x24] sm:$0xf] %vm769, %v3097
      %3119 = vst.msk [vmem:[%s305 + $0x28] sm:$0xf] %vm769, %v3098
      %3120 = vst.msk [vmem:[%s305 + $0x2c] sm:$0xf] %vm769, %v3099
      %3121 = vst.msk [vmem:[%s305 + $0x30] sm:$0xf] %vm769, %v3100
      %3122 = vst.msk [vmem:[%s305 + $0x34] sm:$0xf] %vm769, %v3101
      %3123 = vst.msk [vmem:[%s305 + $0x38] sm:$0xf] %vm769, %v3102
      %3124 = vst.msk [vmem:[%s305 + $0x3c] sm:$0xf] %vm769, %v3103
      %3125 = vst.msk [vmem:[%s305 + $0x40] sm:$0xf] %vm769, %v3104
      %3126 = vst.msk [vmem:[%s305 + $0x44] sm:$0xf] %vm769, %v3105
      %3127 = vst.msk [vmem:[%s305 + $0x48] sm:$0xf] %vm769, %v3106
      %3128 = vst.msk [vmem:[%s305 + $0x4c] sm:$0xf] %vm769, %v3107
      %vm3129 = vcmask 518144
      %3130 = vst.msk [vmem:[%s305 + $0x50] sm:$0x7] %vm3129, %v3108
      %p3131 = scmp.lt.s32.totalorder %s19, 3
      %s3132 = scalar_select %p3131, %s19, 3
      %s3133 = smul.addr %s3132, 21
      %s3134 = smul.addr %s3133, 4
      %s3135 = scalar_lea.vmem %s8, %s3134
      // Predicated region
      $region53: #{combine_forward.5} parent=51 // pred_check
        %p3136 = pneg %p210
      $region54: #{combine_forward.5} parent=51 // pred_check_branch
        %3138 = sbr.rel (%p3136) target = $region56
      $region55: #{combine_forward.5} parent=51 // pred_region
        _
      $region56: #{combine_forward.5} parent=51 // pred_fallthru
        _
    $region52: #{combine_forward.5} parent=5 // pred_fallthru
      _
    %p3139 = scmp.le.s32.totalorder 2, %s14
    // Predicated region
    $region57: #{combine_forward.5} parent=5 // pred_check
      %p3140 = pneg %p3139
    $region58: #{combine_forward.5} parent=5 // pred_check_branch
      %3142 = sbr.rel (%p3140) target = $region60
    $region59: #{combine_forward.5} parent=5 // pred_region
      %s3143 = ssub.s32 %s14, 2
      // Predicated region
      $region61: #{combine_forward.5} parent=59 // pred_check
        %p3144 = pneg %p216
      $region62: #{combine_forward.5} parent=59 // pred_check_branch
        %3146 = sbr.rel (%p3144) target = $region64
      $region63: #{combine_forward.5} parent=59 // pred_region
        %p3147 = scmp.lt.s32.totalorder %s20, 3
        %s3148 = scalar_select %p3147, %s20, 3
        %s3149 = smul.addr %s3148, 21
        %s3150 = smul.addr %s3149, 4
        %s3151 = scalar_lea.vmem %s8, %s3150
      $region64: #{combine_forward.5} parent=59 // pred_fallthru
        _
    $region60: #{combine_forward.5} parent=5 // pred_fallthru
      _
  $region6: #{combine_forward.5} parent=0 // loop_footer
    %s18 = sadd.s32 1, %s14
  $region7: #{combine_forward.5} parent=0 // loop_footer_branch
    %13 = sbr.rel target = $region3
  $region8: #{combine_forward.5} parent=0 // loop_exit
    _

// kernel: combine_forward.6
$region0: #{combine_forward.6}
  #allocation0 [shape = 'u32[]', space=smem, size = 0x4, offset = 0x4, fixed_abs, tag = 'smem constant byte address 0x4 - core index']
  #allocation1 [shape = 'u32[72,128]{1,0:T(1,128)}', space=vmem, size = 0x9000, scoped, tag = 'internal scratch']
  #allocation2 [shape = 'bf16[64,64]{1,0:T(8,128)(2,1)}', space=vmem, size = 0x4000, scoped, tag = 'scratch operand']
  %s0 = inlined_call_operand.vmem [shape: bf16[4,64,64], index: 0, kind: input, shape index: {}]
  %s1 = inlined_call_operand.vmem [shape: f32[64,1], index: 1, kind: input, shape index: {}]
  %s2 = inlined_call_operand.vmem [shape: bf16[64,64], index: 2, kind: input, shape index: {}, may-alias: {2,6}]
  %s3 = inlined_call_operand.vmem [shape: f32[1,64], index: 3, kind: input, shape index: {}, may-alias: {3,7}]
  %s4 = inlined_call_operand.vmem [shape: bf16[9,64,64], index: 4, kind: input, shape index: {}]
  %s5 = inlined_call_operand.vmem [shape: f32[1,64], index: 5, kind: input, shape index: {}]
  %s6 = inlined_call_operand.vmem [shape: bf16[64,64], index: 6, kind: input, shape index: {}, may-alias: {2,6}]
  %s7 = inlined_call_operand.vmem [shape: f32[1,64], index: 7, kind: input, shape index: {}, may-alias: {3,7}]
  %s8 = inlined_call_operand.vmem [shape: bf16[4,46,64], index: 8, kind: output, shape index: {}]
  %s9 = sld [smem:[#allocation0]]
  $region65: #{combine_forward.6} parent=0
    _
  %s11 = ssub.s32 1, %s9
  %s12 = scalar_select 0, %s11, %s9
  loop: start=0, step=1, limit=6
  $region2: #{combine_forward.6} parent=0 // loop_pre_header
    _
  $region3: #{combine_forward.6} parent=0 // loop_header
    %s14 = sphi 0, %s18
    %p15 = scmp.ge.s32.totalorder %s14, 6
    %s24 = sphi 0, %s26
    %s27 = sphi 0, %s24
    %s28 = sphi 0, %s27
    %s44 = sphi 0, %s28
    %s48 = sphi 0, %s48
    %s50 = sphi 0, %s48
    %s51 = sphi 0, %s50
    %s65 = sphi 0, %s51
    %s69 = sphi 0, %s69
    %s71 = sphi 0, %s69
    %s72 = sphi 0, %s71
    %s86 = sphi 0, %s72
    %s90 = sphi 0, %s90
    %s92 = sphi 0, %s90
    %s93 = sphi 0, %s92
    %s107 = sphi 0, %s93
    %s111 = sphi 0, %s111
    %s113 = sphi 0, %s111
    %s114 = sphi 0, %s113
    %s128 = sphi 0, %s114
    %s132 = sphi 0, %s132
    %s134 = sphi 0, %s132
    %s135 = sphi 0, %s134
    %s149 = sphi 0, %s135
    %s153 = sphi 0, %s153
    %s155 = sphi 0, %s153
    %s156 = sphi 0, %s155
    %s170 = sphi 0, %s156
    %s174 = sphi 0, %s174
    %s176 = sphi 0, %s174
    %s177 = sphi 0, %s176
    %s191 = sphi 0, %s177
    %s197 = sphi 0, %s199
    %s200 = sphi 0, %s197
    %s201 = sphi 0, %s200
    %s217 = sphi 0, %s201
  $region4: #{combine_forward.6} parent=0 // loop_header_branch
    %17 = sbr.rel (%p15) target = $region8
  $region5: #{combine_forward.6} parent=0 // loop_body
    %s19 = ssub.s32 %s14, 1
    %s20 = ssub.s32 %s14, 2
    %s21 = sadd.s32 %s14, 1
    %s22 = ssub.s32 %s14, %s21
    %p23 = scmp.eq.s32.totalorder %s22, 0
    %s25 = sadd.s32 %s24, 1
    %s26 = scalar_select %p23, %s24, %s25
    %p29 = pneg %p23
    %p30 = scmp.eq.s32.totalorder %s14, 3
    %p31 = por %p29, %p30
    %p32 = scmp.ne.s32.totalorder %s24, %s27
    %p33 = scmp.eq.s32.totalorder %s14, 0
    %p34 = por %p32, %p33
    %p35 = scmp.ne.s32.totalorder %s24, %s27
    %p36 = scmp.eq.s32.totalorder %s19, 3
    %p37 = por %p35, %p36
    %p38 = scmp.ne.s32.totalorder %s27, %s28
    %p39 = scmp.eq.s32.totalorder %s19, 0
    %p40 = por %p38, %p39
    %p41 = scmp.ne.s32.totalorder %s27, %s28
    %p42 = scmp.eq.s32.totalorder %s20, 3
    %p43 = por %p41, %p42
    %p45 = scmp.ne.s32.totalorder %s28, %s44
    %p46 = scmp.eq.s32.totalorder %s20, 0
    %p47 = por %p45, %p46
    %s49 = sadd.s32 %s48, 1
    %p52 = scmp.eq.s32.totalorder %s14, 3
    %p53 = scmp.ne.s32.totalorder %s48, %s50
    %p54 = scmp.eq.s32.totalorder %s14, 0
    %p55 = por %p53, %p54
    %p56 = scmp.ne.s32.totalorder %s48, %s50
    %p57 = scmp.eq.s32.totalorder %s19, 3
    %p58 = por %p56, %p57
    %p59 = scmp.ne.s32.totalorder %s50, %s51
    %p60 = scmp.eq.s32.totalorder %s19, 0
    %p61 = por %p59, %p60
    %p62 = scmp.ne.s32.totalorder %s50, %s51
    %p63 = scmp.eq.s32.totalorder %s20, 3
    %p64 = por %p62, %p63
    %p66 = scmp.ne.s32.totalorder %s51, %s65
    %p67 = scmp.eq.s32.totalorder %s20, 0
    %p68 = por %p66, %p67
    %s70 = sadd.s32 %s69, 1
    %p73 = scmp.eq.s32.totalorder %s14, 3
    %p74 = scmp.ne.s32.totalorder %s69, %s71
    %p75 = scmp.eq.s32.totalorder %s14, 0
    %p76 = por %p74, %p75
    %p77 = scmp.ne.s32.totalorder %s69, %s71
    %p78 = scmp.eq.s32.totalorder %s19, 3
    %p79 = por %p77, %p78
    %p80 = scmp.ne.s32.totalorder %s71, %s72
    %p81 = scmp.eq.s32.totalorder %s19, 0
    %p82 = por %p80, %p81
    %p83 = scmp.ne.s32.totalorder %s71, %s72
    %p84 = scmp.eq.s32.totalorder %s20, 3
    %p85 = por %p83, %p84
    %p87 = scmp.ne.s32.totalorder %s72, %s86
    %p88 = scmp.eq.s32.totalorder %s20, 0
    %p89 = por %p87, %p88
    %s91 = sadd.s32 %s90, 1
    %p94 = scmp.eq.s32.totalorder %s14, 3
    %p95 = scmp.ne.s32.totalorder %s90, %s92
    %p96 = scmp.eq.s32.totalorder %s14, 0
    %p97 = por %p95, %p96
    %p98 = scmp.ne.s32.totalorder %s90, %s92
    %p99 = scmp.eq.s32.totalorder %s19, 3
    %p100 = por %p98, %p99
    %p101 = scmp.ne.s32.totalorder %s92, %s93
    %p102 = scmp.eq.s32.totalorder %s19, 0
    %p103 = por %p101, %p102
    %p104 = scmp.ne.s32.totalorder %s92, %s93
    %p105 = scmp.eq.s32.totalorder %s20, 3
    %p106 = por %p104, %p105
    %p108 = scmp.ne.s32.totalorder %s93, %s107
    %p109 = scmp.eq.s32.totalorder %s20, 0
    %p110 = por %p108, %p109
    %s112 = sadd.s32 %s111, 1
    %p115 = scmp.eq.s32.totalorder %s14, 3
    %p116 = scmp.ne.s32.totalorder %s111, %s113
    %p117 = scmp.eq.s32.totalorder %s14, 0
    %p118 = por %p116, %p117
    %p119 = scmp.ne.s32.totalorder %s111, %s113
    %p120 = scmp.eq.s32.totalorder %s19, 3
    %p121 = por %p119, %p120
    %p122 = scmp.ne.s32.totalorder %s113, %s114
    %p123 = scmp.eq.s32.totalorder %s19, 0
    %p124 = por %p122, %p123
    %p125 = scmp.ne.s32.totalorder %s113, %s114
    %p126 = scmp.eq.s32.totalorder %s20, 3
    %p127 = por %p125, %p126
    %p129 = scmp.ne.s32.totalorder %s114, %s128
    %p130 = scmp.eq.s32.totalorder %s20, 0
    %p131 = por %p129, %p130
    %s133 = sadd.s32 %s132, 1
    %p136 = scmp.eq.s32.totalorder %s14, 3
    %p137 = scmp.ne.s32.totalorder %s132, %s134
    %p138 = scmp.eq.s32.totalorder %s14, 0
    %p139 = por %p137, %p138
    %p140 = scmp.ne.s32.totalorder %s132, %s134
    %p141 = scmp.eq.s32.totalorder %s19, 3
    %p142 = por %p140, %p141
    %p143 = scmp.ne.s32.totalorder %s134, %s135
    %p144 = scmp.eq.s32.totalorder %s19, 0
    %p145 = por %p143, %p144
    %p146 = scmp.ne.s32.totalorder %s134, %s135
    %p147 = scmp.eq.s32.totalorder %s20, 3
    %p148 = por %p146, %p147
    %p150 = scmp.ne.s32.totalorder %s135, %s149
    %p151 = scmp.eq.s32.totalorder %s20, 0
    %p152 = por %p150, %p151
    %s154 = sadd.s32 %s153, 1
    %p157 = scmp.eq.s32.totalorder %s14, 3
    %p158 = scmp.ne.s32.totalorder %s153, %s155
    %p159 = scmp.eq.s32.totalorder %s14, 0
    %p160 = por %p158, %p159
    %p161 = scmp.ne.s32.totalorder %s153, %s155
    %p162 = scmp.eq.s32.totalorder %s19, 3
    %p163 = por %p161, %p162
    %p164 = scmp.ne.s32.totalorder %s155, %s156
    %p165 = scmp.eq.s32.totalorder %s19, 0
    %p166 = por %p164, %p165
    %p167 = scmp.ne.s32.totalorder %s155, %s156
    %p168 = scmp.eq.s32.totalorder %s20, 3
    %p169 = por %p167, %p168
    %p171 = scmp.ne.s32.totalorder %s156, %s170
    %p172 = scmp.eq.s32.totalorder %s20, 0
    %p173 = por %p171, %p172
    %s175 = sadd.s32 %s174, 1
    %p178 = scmp.eq.s32.totalorder %s14, 3
    %p179 = scmp.ne.s32.totalorder %s174, %s176
    %p180 = scmp.eq.s32.totalorder %s14, 0
    %p181 = por %p179, %p180
    %p182 = scmp.ne.s32.totalorder %s174, %s176
    %p183 = scmp.eq.s32.totalorder %s19, 3
    %p184 = por %p182, %p183
    %p185 = scmp.ne.s32.totalorder %s176, %s177
    %p186 = scmp.eq.s32.totalorder %s19, 0
    %p187 = por %p185, %p186
    %p188 = scmp.ne.s32.totalorder %s176, %s177
    %p189 = scmp.eq.s32.totalorder %s20, 3
    %p190 = por %p188, %p189
    %p192 = scmp.ne.s32.totalorder %s177, %s191
    %p193 = scmp.eq.s32.totalorder %s20, 0
    %p194 = por %p192, %p193
    %s195 = ssub.s32 %s14, %s21
    %p196 = scmp.eq.s32.totalorder %s195, 0
    %s198 = sadd.s32 %s197, 1
    %s199 = scalar_select %p196, %s197, %s198
    %p202 = pneg %p196
    %p203 = scmp.eq.s32.totalorder %s14, 3
    %p204 = por %p202, %p203
    %p205 = scmp.ne.s32.totalorder %s197, %s200
    %p206 = scmp.eq.s32.totalorder %s14, 0
    %p207 = por %p205, %p206
    %p208 = scmp.ne.s32.totalorder %s197, %s200
    %p209 = scmp.eq.s32.totalorder %s19, 3
    %p210 = por %p208, %p209
    %p211 = scmp.ne.s32.totalorder %s200, %s201
    %p212 = scmp.eq.s32.totalorder %s19, 0
    %p213 = por %p211, %p212
    %p214 = scmp.ne.s32.totalorder %s200, %s201
    %p215 = scmp.eq.s32.totalorder %s20, 3
    %p216 = por %p214, %p215
    %p218 = scmp.ne.s32.totalorder %s201, %s217
    %p219 = scmp.eq.s32.totalorder %s20, 0
    %p220 = por %p218, %p219
    %p221 = scmp.le.s32.totalorder 1, %s14
    %p222 = scmp.lt.s32.totalorder %s14, 5
    %p223 = pnand %p221, %p222
    %p224 = pneg %p223
    // Predicated region
    $region9: #{combine_forward.6} parent=5 // pred_check
      _
    $region10: #{combine_forward.6} parent=5 // pred_check_branch
      %226 = sbr.rel (%p223) target = $region12
    $region11: #{combine_forward.6} parent=5 // pred_region
      %s227 = ssub.s32 %s14, 1
      // Predicated region
      $region13: #{combine_forward.6} parent=11 // pred_check
        %p228 = pneg %p61
      $region14: #{combine_forward.6} parent=11 // pred_check_branch
        %230 = sbr.rel (%p228) target = $region16
      $region15: #{combine_forward.6} parent=11 // pred_region
        _
      $region16: #{combine_forward.6} parent=11 // pred_fallthru
        _
      // Predicated region
      $region17: #{combine_forward.6} parent=11 // pred_check
        %p231 = pneg %p82
      $region18: #{combine_forward.6} parent=11 // pred_check_branch
        %233 = sbr.rel (%p231) target = $region20
      $region19: #{combine_forward.6} parent=11 // pred_region
        _
      $region20: #{combine_forward.6} parent=11 // pred_fallthru
        _
      // Predicated region
      $region21: #{combine_forward.6} parent=11 // pred_check
        %p234 = pneg %p103
      $region22: #{combine_forward.6} parent=11 // pred_check_branch
        %236 = sbr.rel (%p234) target = $region24
      $region23: #{combine_forward.6} parent=11 // pred_region
        _
      $region24: #{combine_forward.6} parent=11 // pred_fallthru
        _
      // Predicated region
      $region25: #{combine_forward.6} parent=11 // pred_check
        %p237 = pneg %p124
      $region26: #{combine_forward.6} parent=11 // pred_check_branch
        %239 = sbr.rel (%p237) target = $region28
      $region27: #{combine_forward.6} parent=11 // pred_region
        _
      $region28: #{combine_forward.6} parent=11 // pred_fallthru
        _
      // Predicated region
      $region29: #{combine_forward.6} parent=11 // pred_check
        %p240 = pneg %p145
      $region30: #{combine_forward.6} parent=11 // pred_check_branch
        %242 = sbr.rel (%p240) target = $region32
      $region31: #{combine_forward.6} parent=11 // pred_region
        _
      $region32: #{combine_forward.6} parent=11 // pred_fallthru
        _
      // Predicated region
      $region33: #{combine_forward.6} parent=11 // pred_check
        %p243 = pneg %p166
      $region34: #{combine_forward.6} parent=11 // pred_check_branch
        %245 = sbr.rel (%p243) target = $region36
      $region35: #{combine_forward.6} parent=11 // pred_region
        _
      $region36: #{combine_forward.6} parent=11 // pred_fallthru
        _
      // Predicated region
      $region37: #{combine_forward.6} parent=11 // pred_check
        %p246 = pneg %p187
      $region38: #{combine_forward.6} parent=11 // pred_check_branch
        %248 = sbr.rel (%p246) target = $region40
      $region39: #{combine_forward.6} parent=11 // pred_region
        _
      $region40: #{combine_forward.6} parent=11 // pred_fallthru
        _
    $region12: #{combine_forward.6} parent=5 // pred_fallthru
      _
    %p249 = scmp.lt.s32.totalorder %s14, 4
    // Predicated region
    $region41: #{combine_forward.6} parent=5 // pred_check
      %p250 = pneg %p249
    $region42: #{combine_forward.6} parent=5 // pred_check_branch
      %252 = sbr.rel (%p250) target = $region44
    $region43: #{combine_forward.6} parent=5 // pred_region
      // Predicated region
      $region45: #{combine_forward.6} parent=43 // pred_check
        %p253 = pneg %p34
      $region46: #{combine_forward.6} parent=43 // pred_check_branch
        %255 = sbr.rel (%p253) target = $region48
      $region47: #{combine_forward.6} parent=43 // pred_region
        %p256 = scmp.lt.s32.totalorder %s14, 3
        %s257 = scalar_select %p256, %s14, 3
        %s258 = smul.addr %s257, 8
        %s259 = smul.addr %s258, 4
        %s260 = scalar_lea.vmem %s0, %s259
      $region48: #{combine_forward.6} parent=43 // pred_fallthru
        _
    $region44: #{combine_forward.6} parent=5 // pred_fallthru
      _
    %p261 = scmp.le.s32.totalorder 1, %s14
    %p262 = scmp.lt.s32.totalorder %s14, 5
    %p263 = pnand %p261, %p262
    %p264 = pneg %p263
    // Predicated region
    $region49: #{combine_forward.6} parent=5 // pred_check
      _
    $region50: #{combine_forward.6} parent=5 // pred_check_branch
      %266 = sbr.rel (%p263) target = $region52
    $region51: #{combine_forward.6} parent=5 // pred_region
      %s267 = ssub.s32 %s14, 1
      %p268 = scmp.lt.s32.totalorder %s19, 3
      %s269 = scalar_select %p268, %s19, 3
      %s270 = smul.addr %s269, 8
      %s271 = smul.addr %s270, 4
      %s272 = scalar_lea.vmem %s0, %s271
      %p273 = pneg %p40
      %p274 = pneg %p37
      %p275 = pneg %p61
      %p276 = pneg %p58
      %p277 = pneg %p82
      %p278 = pneg %p79
      %p279 = pneg %p103
      %p280 = pneg %p100
      %p281 = pneg %p124
      %p282 = pneg %p121
      %p283 = pneg %p145
      %p284 = pneg %p142
      %p285 = pneg %p166
      %p286 = pneg %p163
      %p287 = pneg %p187
      %p288 = pneg %p184
      %p289 = pneg %p213
      %p290 = pneg %p210
      %p291 = scmp.lt.s32.totalorder %s19, 3
      %s292 = scalar_select %p291, %s19, 3
      %s293 = smul.addr %s292, 6
      %s294 = smul.addr %s293, 4
      %s295 = scalar_lea.vmem %s8, %s294
      %p296 = scmp.lt.s32.totalorder %s19, 3
      %s297 = scalar_select %p296, %s19, 3
      %s298 = smul.addr %s297, 8
      %s299 = smul.addr %s298, 4
      %s300 = scalar_lea.vmem %s0, %s299
      %p301 = scmp.lt.s32.totalorder %s19, 3
      %s302 = scalar_select %p301, %s19, 3
      %s303 = smul.addr %s302, 6
      %s304 = smul.addr %s303, 4
      %s305 = scalar_lea.vmem %s8, %s304
      %v307 = vld [vmem:[%s300] sm:$0xf]
      %v308 = vld [vmem:[%s300 + $0x4] sm:$0xf]
      %v309 = vld [vmem:[%s300 + $0x8] sm:$0xf]
      %v310 = vld [vmem:[%s300 + $0xc] sm:$0xf]
      %v311 = vld [vmem:[%s300 + $0x10] sm:$0xf]
      %v312 = vld [vmem:[%s300 + $0x14] sm:$0xf]
      %v313 = vld [vmem:[%s300 + $0x18] sm:$0xf]
      %v314 = vld [vmem:[%s300 + $0x1c] sm:$0xf]
      %v315 = vld [vmem:[%s2] sm:$0xf]
      %v316 = vld [vmem:[%s2 + $0x4] sm:$0xf]
      %v317 = vld [vmem:[%s2 + $0x8] sm:$0xf]
      %v318 = vld [vmem:[%s2 + $0xc] sm:$0xf]
      %v319 = vld [vmem:[%s2 + $0x10] sm:$0xf]
      %v320 = vld [vmem:[%s2 + $0x14] sm:$0xf]
      %v321 = vld [vmem:[%s2 + $0x18] sm:$0xf]
      %v322 = vld [vmem:[%s2 + $0x1c] sm:$0xf]
      %v323 = vld [vmem:[%s3] sm:$0x1]
      %v325 = vperm.slane %v323, 0
      %v335 = vunpack.c.l.b16 %v307
      %v336 = vunpack.c.l.b16 %v308
      %v337 = vunpack.c.l.b16 %v309
      %v338 = vunpack.c.l.b16 %v310
      %v339 = vunpack.c.l.b16 %v311
      %v340 = vunpack.c.l.b16 %v312
      %v341 = vunpack.c.l.b16 %v313
      %v342 = vunpack.c.l.b16 %v314
      %v343 = vpack.c.b16 %v336, %v335
      %v344 = vpack.c.b16 %v338, %v337
      %v345 = vpack.c.b16 %v340, %v339
      %v346 = vpack.c.b16 %v342, %v341
      %v355 = vunpack.c.l.b16 %v315
      %v356 = vunpack.c.l.b16 %v316
      %v357 = vunpack.c.l.b16 %v317
      %v358 = vunpack.c.l.b16 %v318
      %v359 = vunpack.c.l.b16 %v319
      %v360 = vunpack.c.l.b16 %v320
      %v361 = vunpack.c.l.b16 %v321
      %v362 = vunpack.c.l.b16 %v322
      %v363 = vpack.c.b16 %v356, %v355
      %v364 = vpack.c.b16 %v358, %v357
      %v365 = vpack.c.b16 %v360, %v359
      %v366 = vpack.c.b16 %v362, %v361
      %vm371 = vcmask 523264
      %v373 = vsel %vm371, %v343, 0
      %v376 = vsel %vm371, %v344, 0
      %v379 = vsel %vm371, %v345, 0
      %v382 = vsel %vm371, %v346, 0
      %384 = vmatpush.bf16.msra.mxu0 0
      %385 = vmatpush.bf16.msra.mxu0 0
      %386 = vmatpush.bf16.msra.mxu0 0
      %387 = vmatpush.bf16.msra.mxu0 0
      %388 = vmatpush.bf16.msra.mxu0 %v366
      %389 = vmatpush.bf16.msra.mxu0 %v365
      %390 = vmatpush.bf16.msra.mxu0 %v364
      %391 = vmatpush.bf16.msra.mxu0 %v363
      %392 = vmatmul.bf16.gmra.mxu0 %v373
      %v393 = vpop.f32.mrf.mxu0
      %v394 = vadd.f32 %v325, %v393
      %v395 = vpop.f32.mrf.mxu0
      %v396 = vadd.f32 %v325, %v395
      %397 = vmatmul.bf16.gmra.mxu0 %v376
      %v398 = vpop.f32.mrf.mxu0
      %v399 = vadd.f32 %v325, %v398
      %v400 = vpop.f32.mrf.mxu0
      %v401 = vadd.f32 %v325, %v400
      %402 = vmatmul.bf16.gmra.mxu0 %v379
      %v403 = vpop.f32.mrf.mxu0
      %v404 = vadd.f32 %v325, %v403
      %v405 = vpop.f32.mrf.mxu0
      %v406 = vadd.f32 %v325, %v405
      %407 = vmatmul.bf16.gmra.mxu0 %v382
      %v408 = vpop.f32.mrf.mxu0
      %v409 = vadd.f32 %v325, %v408
      %v410 = vpop.f32.mrf.mxu0
      %v411 = vadd.f32 %v325, %v410
      %412 = vdwg.mxu0
      %v413 = vmax.f32 %v394, 0.0
      %v414 = vmax.f32 %v396, 0.0
      %v415 = vmax.f32 %v399, 0.0
      %v416 = vmax.f32 %v401, 0.0
      %v417 = vmax.f32 %v404, 0.0
      %v418 = vmax.f32 %v406, 0.0
      %v419 = vmax.f32 %v409, 0.0
      %v420 = vmax.f32 %v411, 0.0
      %v421 = vld [vmem:[%s1] sm:$0xff]
      %v422 = vld [vmem:[%s1 + $0x8] sm:$0xff]
      %v423 = vld [vmem:[%s1 + $0x10] sm:$0xff]
      %v424 = vld [vmem:[%s1 + $0x18] sm:$0xff]
      %v425 = vld [vmem:[%s1 + $0x20] sm:$0xff]
      %v426 = vld [vmem:[%s1 + $0x28] sm:$0xff]
      %v427 = vld [vmem:[%s1 + $0x30] sm:$0xff]
      %v428 = vld [vmem:[%s1 + $0x38] sm:$0xff]
      %430 = vset.pattern.permute.xlu0 0
      %431 = vperm.xlu0 %430, %v421
      %v432 = vpop.permute.xlu0 %431
      %435 = vset.pattern.permute.xlu0 0
      %436 = vperm.xlu0 %435, %v422
      %v437 = vpop.permute.xlu0 %436
      %440 = vset.pattern.permute.xlu0 0
      %441 = vperm.xlu0 %440, %v423
      %v442 = vpop.permute.xlu0 %441
      %445 = vset.pattern.permute.xlu0 0
      %446 = vperm.xlu0 %445, %v424
      %v447 = vpop.permute.xlu0 %446
      %450 = vset.pattern.permute.xlu0 0
      %451 = vperm.xlu0 %450, %v425
      %v452 = vpop.permute.xlu0 %451
      %455 = vset.pattern.permute.xlu0 0
      %456 = vperm.xlu0 %455, %v426
      %v457 = vpop.permute.xlu0 %456
      %460 = vset.pattern.permute.xlu0 0
      %461 = vperm.xlu0 %460, %v427
      %v462 = vpop.permute.xlu0 %461
      %465 = vset.pattern.permute.xlu0 0
      %466 = vperm.xlu0 %465, %v428
      %v467 = vpop.permute.xlu0 %466
      %v469 = vmul.f32 %v413, %v432
      %v470 = vmul.f32 %v414, %v437
      %v471 = vmul.f32 %v415, %v442
      %v472 = vmul.f32 %v416, %v447
      %v473 = vmul.f32 %v417, %v452
      %v474 = vmul.f32 %v418, %v457
      %v475 = vmul.f32 %v419, %v462
      %v476 = vmul.f32 %v420, %v467
      %v477 = vpack.c.bf16 %v469, %v469
      %v478 = vpack.c.bf16 %v470, %v470
      %v479 = vpack.c.bf16 %v471, %v471
      %v480 = vpack.c.bf16 %v472, %v472
      %v481 = vpack.c.bf16 %v473, %v473
      %v482 = vpack.c.bf16 %v474, %v474
      %v483 = vpack.c.bf16 %v475, %v475
      %v484 = vpack.c.bf16 %v476, %v476
      %vm485 = vcmask 519168
      %486 = vst.msk [vmem:[#allocation2] sm:$0xf] %vm485, %v477
      %487 = vst.msk [vmem:[#allocation2 + $0x4] sm:$0xf] %vm485, %v478
      %488 = vst.msk [vmem:[#allocation2 + $0x8] sm:$0xf] %vm485, %v479
      %489 = vst.msk [vmem:[#allocation2 + $0xc] sm:$0xf] %vm485, %v480
      %490 = vst.msk [vmem:[#allocation2 + $0x10] sm:$0xf] %vm485, %v481
      %491 = vst.msk [vmem:[#allocation2 + $0x14] sm:$0xf] %vm485, %v482
      %492 = vst.msk [vmem:[#allocation2 + $0x18] sm:$0xf] %vm485, %v483
      %493 = vst.msk [vmem:[#allocation2 + $0x1c] sm:$0xf] %vm485, %v484
      %v494 = vld [vmem:[%s5] sm:$0x1]
      %v496 = vperm.slane %v494, 0
      %v498 = vadd.f32 %v496, 0.0
      %v499 = vld [vmem:[#allocation2] sm:$0xf]
      %v500 = vld [vmem:[#allocation2 + $0x4] sm:$0xf]
      %v501 = vld [vmem:[#allocation2 + $0x8] sm:$0xf]
      %v502 = vld [vmem:[#allocation2 + $0xc] sm:$0xf]
      %v503 = vld [vmem:[#allocation2 + $0x10] sm:$0xf]
      %v504 = vld [vmem:[#allocation2 + $0x14] sm:$0x7]
      %v505 = vld [vmem:[%s4] sm:$0xf]
      %v506 = vld [vmem:[%s4 + $0x4] sm:$0xf]
      %v507 = vld [vmem:[%s4 + $0x8] sm:$0xf]
      %v508 = vld [vmem:[%s4 + $0xc] sm:$0xf]
      %v509 = vld [vmem:[%s4 + $0x10] sm:$0xf]
      %v510 = vld [vmem:[%s4 + $0x14] sm:$0xf]
      %v511 = vld [vmem:[%s4 + $0x18] sm:$0xf]
      %v512 = vld [vmem:[%s4 + $0x1c] sm:$0xf]
      %v519 = vunpack.c.l.b16 %v499
      %v520 = vunpack.c.l.b16 %v500
      %v521 = vunpack.c.l.b16 %v501
      %v522 = vunpack.c.l.b16 %v502
      %v523 = vunpack.c.l.b16 %v503
      %v524 = vunpack.c.l.b16 %v504
      %v525 = vpack.c.b16 %v520, %v519
      %v526 = vpack.c.b16 %v522, %v521
      %v527 = vpack.c.b16 %v524, %v523
      %v536 = vunpack.c.l.b16 %v505
      %v537 = vunpack.c.l.b16 %v506
      %v538 = vunpack.c.l.b16 %v507
      %v539 = vunpack.c.l.b16 %v508
      %v540 = vunpack.c.l.b16 %v509
      %v541 = vunpack.c.l.b16 %v510
      %v542 = vunpack.c.l.b16 %v511
      %v543 = vunpack.c.l.b16 %v512
      %v544 = vpack.c.b16 %v537, %v536
      %v545 = vpack.c.b16 %v539, %v538
      %v546 = vpack.c.b16 %v541, %v540
      %v547 = vpack.c.b16 %v543, %v542
      %v553 = vsel %vm371, %v525, 0
      %v556 = vsel %vm371, %v526, 0
      %v559 = vsel %vm371, %v527, 0
      %561 = vmatpush.bf16.msra.mxu0 0
      %562 = vmatpush.bf16.msra.mxu0 0
      %563 = vmatpush.bf16.msra.mxu0 0
      %564 = vmatpush.bf16.msra.mxu0 0
      %565 = vmatpush.bf16.msra.mxu0 %v547
      %566 = vmatpush.bf16.msra.mxu0 %v546
      %567 = vmatpush.bf16.msra.mxu0 %v545
      %568 = vmatpush.bf16.msra.mxu0 %v544
      %569 = vmatmul.bf16.gmra.mxu0 %v553
      %v570 = vpop.f32.mrf.mxu0
      %v571 = vadd.f32 0.0, %v570
      %v572 = vpop.f32.mrf.mxu0
      %v573 = vadd.f32 0.0, %v572
      %574 = vmatmul.bf16.gmra.mxu0 %v556
      %v575 = vpop.f32.mrf.mxu0
      %v576 = vadd.f32 0.0, %v575
      %v577 = vpop.f32.mrf.mxu0
      %v578 = vadd.f32 0.0, %v577
      %579 = vmatmul.bf16.gmra.mxu0 %v559
      %v580 = vpop.f32.mrf.mxu0
      %v581 = vadd.f32 0.0, %v580
      %v582 = vpop.f32.mrf.mxu0
      %v583 = vadd.f32 0.0, %v582
      %584 = vdwg.mxu0
      %v585 = vadd.f32 %v498, %v571
      %v586 = vadd.f32 %v498, %v573
      %v587 = vadd.f32 %v498, %v576
      %v588 = vadd.f32 %v498, %v578
      %v589 = vadd.f32 %v498, %v581
      %v590 = vadd.f32 %v498, %v583
      %v591 = vld [vmem:[#allocation2 + $0x14] sm:$0xf]
      %s592 = scalar_lea.vmem %s4, 32
      %v593 = vld [vmem:[%s592] sm:$0xf]
      %v594 = vld [vmem:[%s592 + $0x4] sm:$0xf]
      %v595 = vld [vmem:[%s592 + $0x8] sm:$0xf]
      %v596 = vld [vmem:[%s592 + $0xc] sm:$0xf]
      %v597 = vld [vmem:[%s592 + $0x10] sm:$0xf]
      %v598 = vld [vmem:[%s592 + $0x14] sm:$0xf]
      %v599 = vld [vmem:[%s592 + $0x18] sm:$0xf]
      %v600 = vld [vmem:[%s592 + $0x1c] sm:$0xf]
      %v602 = vunpack.c.l.b16 %v591
      %v603 = vpack.c.b16 %v602, %v523
      %vm604 = vsmask.f32 7424
      %v605 = vshrl.u32 %v525, 16
      %v607 = vshll.u32 %v525, 16
      %v609 = vrot.slane %v607, 1
      %v610 = vor.u32 %v605, %v609
      %v611 = vshll.u32 %v526, 16
      %v613 = vrot.slane %v611, 1
      %v614 = vsel %vm604, %v610, %v613
      %v615 = vshrl.u32 %v526, 16
      %v617 = vor.u32 %v615, %v613
      %v619 = vshll.u32 %v603, 16
      %v621 = vrot.slane %v619, 1
      %v622 = vsel %vm604, %v617, %v621
      %v623 = vshrl.u32 %v603, 16
      %v625 = vor.u32 %v623, %v621
      %v634 = vunpack.c.l.b16 %v593
      %v635 = vunpack.c.l.b16 %v594
      %v636 = vunpack.c.l.b16 %v595
      %v637 = vunpack.c.l.b16 %v596
      %v638 = vunpack.c.l.b16 %v597
      %v639 = vunpack.c.l.b16 %v598
      %v640 = vunpack.c.l.b16 %v599
      %v641 = vunpack.c.l.b16 %v600
      %v642 = vpack.c.b16 %v635, %v634
      %v643 = vpack.c.b16 %v637, %v636
      %v644 = vpack.c.b16 %v639, %v638
      %v645 = vpack.c.b16 %v641, %v640
      %v651 = vsel %vm371, %v614, 0
      %v654 = vsel %vm371, %v622, 0
      %v657 = vsel %vm371, %v625, 0
      %659 = vmatpush.bf16.msra.mxu0 0
      %660 = vmatpush.bf16.msra.mxu0 0
      %661 = vmatpush.bf16.msra.mxu0 0
      %662 = vmatpush.bf16.msra.mxu0 0
      %663 = vmatpush.bf16.msra.mxu0 %v645
      %664 = vmatpush.bf16.msra.mxu0 %v644
      %665 = vmatpush.bf16.msra.mxu0 %v643
      %666 = vmatpush.bf16.msra.mxu0 %v642
      %667 = vmatmul.bf16.gmra.mxu0 %v651
      %v668 = vpop.f32.mrf.mxu0
      %v669 = vadd.f32 0.0, %v668
      %v670 = vpop.f32.mrf.mxu0
      %v671 = vadd.f32 0.0, %v670
      %672 = vmatmul.bf16.gmra.mxu0 %v654
      %v673 = vpop.f32.mrf.mxu0
      %v674 = vadd.f32 0.0, %v673
      %v675 = vpop.f32.mrf.mxu0
      %v676 = vadd.f32 0.0, %v675
      %677 = vmatmul.bf16.gmra.mxu0 %v657
      %v678 = vpop.f32.mrf.mxu0
      %v679 = vadd.f32 0.0, %v678
      %v680 = vpop.f32.mrf.mxu0
      %v681 = vadd.f32 0.0, %v680
      %682 = vdwg.mxu0
      %v683 = vadd.f32 %v585, %v669
      %v684 = vadd.f32 %v586, %v671
      %v685 = vadd.f32 %v587, %v674
      %v686 = vadd.f32 %v588, %v676
      %v687 = vadd.f32 %v589, %v679
      %v688 = vadd.f32 %v590, %v681
      %v689 = vld [vmem:[#allocation2] sm:$0xe]
      %s690 = scalar_lea.vmem %s4, 64
      %v691 = vld [vmem:[%s690] sm:$0xf]
      %v692 = vld [vmem:[%s690 + $0x4] sm:$0xf]
      %v693 = vld [vmem:[%s690 + $0x8] sm:$0xf]
      %v694 = vld [vmem:[%s690 + $0xc] sm:$0xf]
      %v695 = vld [vmem:[%s690 + $0x10] sm:$0xf]
      %v696 = vld [vmem:[%s690 + $0x14] sm:$0xf]
      %v697 = vld [vmem:[%s690 + $0x18] sm:$0xf]
      %v698 = vld [vmem:[%s690 + $0x1c] sm:$0xf]
      %v700 = vunpack.c.l.b16 %v689
      %v701 = vpack.c.b16 %v520, %v700
      %vm702 = vcmask 1046528
      %v703 = vrot.slane %v701, 1
      %v704 = vrot.slane %v526, 1
      %v705 = vsel %vm702, %v703, %v704
      %v706 = vrot.slane %v603, 1
      %v707 = vsel %vm702, %v704, %v706
      %v716 = vunpack.c.l.b16 %v691
      %v717 = vunpack.c.l.b16 %v692
      %v718 = vunpack.c.l.b16 %v693
      %v719 = vunpack.c.l.b16 %v694
      %v720 = vunpack.c.l.b16 %v695
      %v721 = vunpack.c.l.b16 %v696
      %v722 = vunpack.c.l.b16 %v697
      %v723 = vunpack.c.l.b16 %v698
      %v724 = vpack.c.b16 %v717, %v716
      %v725 = vpack.c.b16 %v719, %v718
      %v726 = vpack.c.b16 %v721, %v720
      %v727 = vpack.c.b16 %v723, %v722
      %v733 = vsel %vm371, %v705, 0
      %v736 = vsel %vm371, %v707, 0
      %v739 = vsel %vm371, %v706, 0
      %741 = vmatpush.bf16.msra.mxu0 0
      %742 = vmatpush.bf16.msra.mxu0 0
      %743 = vmatpush.bf16.msra.mxu0 0
      %744 = vmatpush.bf16.msra.mxu0 0
      %745 = vmatpush.bf16.msra.mxu0 %v727
      %746 = vmatpush.bf16.msra.mxu0 %v726
      %747 = vmatpush.bf16.msra.mxu0 %v725
      %748 = vmatpush.bf16.msra.mxu0 %v724
      %749 = vmatmul.bf16.gmra.mxu0 %v733
      %v750 = vpop.f32.mrf.mxu0
      %v751 = vadd.f32 0.0, %v750
      %v752 = vpop.f32.mrf.mxu0
      %v753 = vadd.f32 0.0, %v752
      %754 = vmatmul.bf16.gmra.mxu0 %v736
      %v755 = vpop.f32.mrf.mxu0
      %v756 = vadd.f32 0.0, %v755
      %v757 = vpop.f32.mrf.mxu0
      %v758 = vadd.f32 0.0, %v757
      %759 = vmatmul.bf16.gmra.mxu0 %v739
      %v760 = vpop.f32.mrf.mxu0
      %v761 = vadd.f32 0.0, %v760
      %v762 = vpop.f32.mrf.mxu0
      %v763 = vadd.f32 0.0, %v762
      %764 = vdwg.mxu0
      %v765 = vadd.f32 %v683, %v751
      %v766 = vadd.f32 %v684, %v753
      %v767 = vadd.f32 %v685, %v756
      %v768 = vadd.f32 %v686, %v758
      %v769 = vadd.f32 %v687, %v761
      %v770 = vadd.f32 %v688, %v763
      %v771 = vld [vmem:[#allocation2 + $0x4] sm:$0xf]
      %v772 = vld [vmem:[#allocation2 + $0x8] sm:$0xf]
      %v773 = vld [vmem:[#allocation2 + $0xc] sm:$0xf]
      %v774 = vld [vmem:[#allocation2 + $0x10] sm:$0xf]
      %v775 = vld [vmem:[#allocation2 + $0x14] sm:$0xf]
      %v776 = vld [vmem:[#allocation2 + $0x18] sm:$0x7]
      %s777 = scalar_lea.vmem %s4, 96
      %v778 = vld [vmem:[%s777] sm:$0xf]
      %v779 = vld [vmem:[%s777 + $0x4] sm:$0xf]
      %v780 = vld [vmem:[%s777 + $0x8] sm:$0xf]
      %v781 = vld [vmem:[%s777 + $0xc] sm:$0xf]
      %v782 = vld [vmem:[%s777 + $0x10] sm:$0xf]
      %v783 = vld [vmem:[%s777 + $0x14] sm:$0xf]
      %v784 = vld [vmem:[%s777 + $0x18] sm:$0xf]
      %v785 = vld [vmem:[%s777 + $0x1c] sm:$0xf]
      %v792 = vunpack.c.l.b16 %v771
      %v793 = vunpack.c.l.b16 %v772
      %v794 = vunpack.c.l.b16 %v773
      %v795 = vunpack.c.l.b16 %v774
      %v796 = vunpack.c.l.b16 %v775
      %v797 = vunpack.c.l.b16 %v776
      %v798 = vpack.c.b16 %v793, %v792
      %v799 = vpack.c.b16 %v795, %v794
      %v800 = vpack.c.b16 %v797, %v796
      %v809 = vunpack.c.l.b16 %v778
      %v810 = vunpack.c.l.b16 %v779
      %v811 = vunpack.c.l.b16 %v780
      %v812 = vunpack.c.l.b16 %v781
      %v813 = vunpack.c.l.b16 %v782
      %v814 = vunpack.c.l.b16 %v783
      %v815 = vunpack.c.l.b16 %v784
      %v816 = vunpack.c.l.b16 %v785
      %v817 = vpack.c.b16 %v810, %v809
      %v818 = vpack.c.b16 %v812, %v811
      %v819 = vpack.c.b16 %v814, %v813
      %v820 = vpack.c.b16 %v816, %v815
      %v826 = vsel %vm371, %v798, 0
      %v829 = vsel %vm371, %v799, 0
      %v832 = vsel %vm371, %v800, 0
      %834 = vmatpush.bf16.msra.mxu0 0
      %835 = vmatpush.bf16.msra.mxu0 0
      %836 = vmatpush.bf16.msra.mxu0 0
      %837 = vmatpush.bf16.msra.mxu0 0
      %838 = vmatpush.bf16.msra.mxu0 %v820
      %839 = vmatpush.bf16.msra.mxu0 %v819
      %840 = vmatpush.bf16.msra.mxu0 %v818
      %841 = vmatpush.bf16.msra.mxu0 %v817
      %842 = vmatmul.bf16.gmra.mxu0 %v826
      %v843 = vpop.f32.mrf.mxu0
      %v844 = vadd.f32 0.0, %v843
      %v845 = vpop.f32.mrf.mxu0
      %v846 = vadd.f32 0.0, %v845
      %847 = vmatmul.bf16.gmra.mxu0 %v829
      %v848 = vpop.f32.mrf.mxu0
      %v849 = vadd.f32 0.0, %v848
      %v850 = vpop.f32.mrf.mxu0
      %v851 = vadd.f32 0.0, %v850
      %852 = vmatmul.bf16.gmra.mxu0 %v832
      %v853 = vpop.f32.mrf.mxu0
      %v854 = vadd.f32 0.0, %v853
      %v855 = vpop.f32.mrf.mxu0
      %v856 = vadd.f32 0.0, %v855
      %857 = vdwg.mxu0
      %v858 = vadd.f32 %v765, %v844
      %v859 = vadd.f32 %v766, %v846
      %v860 = vadd.f32 %v767, %v849
      %v861 = vadd.f32 %v768, %v851
      %v862 = vadd.f32 %v769, %v854
      %v863 = vadd.f32 %v770, %v856
      %v864 = vld [vmem:[#allocation2 + $0x18] sm:$0xf]
      %s865 = scalar_lea.vmem %s4, 128
      %v866 = vld [vmem:[%s865] sm:$0xf]
      %v867 = vld [vmem:[%s865 + $0x4] sm:$0xf]
      %v868 = vld [vmem:[%s865 + $0x8] sm:$0xf]
      %v869 = vld [vmem:[%s865 + $0xc] sm:$0xf]
      %v870 = vld [vmem:[%s865 + $0x10] sm:$0xf]
      %v871 = vld [vmem:[%s865 + $0x14] sm:$0xf]
      %v872 = vld [vmem:[%s865 + $0x18] sm:$0xf]
      %v873 = vld [vmem:[%s865 + $0x1c] sm:$0xf]
      %v875 = vunpack.c.l.b16 %v864
      %v876 = vpack.c.b16 %v875, %v796
      %v877 = vshrl.u32 %v798, 16
      %v879 = vshll.u32 %v798, 16
      %v881 = vrot.slane %v879, 1
      %v882 = vor.u32 %v877, %v881
      %v883 = vshll.u32 %v799, 16
      %v885 = vrot.slane %v883, 1
      %v886 = vsel %vm604, %v882, %v885
      %v887 = vshrl.u32 %v799, 16
      %v889 = vor.u32 %v887, %v885
      %v891 = vshll.u32 %v876, 16
      %v893 = vrot.slane %v891, 1
      %v894 = vsel %vm604, %v889, %v893
      %v895 = vshrl.u32 %v876, 16
      %v897 = vor.u32 %v895, %v893
      %v906 = vunpack.c.l.b16 %v866
      %v907 = vunpack.c.l.b16 %v867
      %v908 = vunpack.c.l.b16 %v868
      %v909 = vunpack.c.l.b16 %v869
      %v910 = vunpack.c.l.b16 %v870
      %v911 = vunpack.c.l.b16 %v871
      %v912 = vunpack.c.l.b16 %v872
      %v913 = vunpack.c.l.b16 %v873
      %v914 = vpack.c.b16 %v907, %v906
      %v915 = vpack.c.b16 %v909, %v908
      %v916 = vpack.c.b16 %v911, %v910
      %v917 = vpack.c.b16 %v913, %v912
      %v923 = vsel %vm371, %v886, 0
      %v926 = vsel %vm371, %v894, 0
      %v929 = vsel %vm371, %v897, 0
      %931 = vmatpush.bf16.msra.mxu0 0
      %932 = vmatpush.bf16.msra.mxu0 0
      %933 = vmatpush.bf16.msra.mxu0 0
      %934 = vmatpush.bf16.msra.mxu0 0
      %935 = vmatpush.bf16.msra.mxu0 %v917
      %936 = vmatpush.bf16.msra.mxu0 %v916
      %937 = vmatpush.bf16.msra.mxu0 %v915
      %938 = vmatpush.bf16.msra.mxu0 %v914
      %939 = vmatmul.bf16.gmra.mxu0 %v923
      %v940 = vpop.f32.mrf.mxu0
      %v941 = vadd.f32 0.0, %v940
      %v942 = vpop.f32.mrf.mxu0
      %v943 = vadd.f32 0.0, %v942
      %944 = vmatmul.bf16.gmra.mxu0 %v926
      %v945 = vpop.f32.mrf.mxu0
      %v946 = vadd.f32 0.0, %v945
      %v947 = vpop.f32.mrf.mxu0
      %v948 = vadd.f32 0.0, %v947
      %949 = vmatmul.bf16.gmra.mxu0 %v929
      %v950 = vpop.f32.mrf.mxu0
      %v951 = vadd.f32 0.0, %v950
      %v952 = vpop.f32.mrf.mxu0
      %v953 = vadd.f32 0.0, %v952
      %954 = vdwg.mxu0
      %v955 = vadd.f32 %v858, %v941
      %v956 = vadd.f32 %v859, %v943
      %v957 = vadd.f32 %v860, %v946
      %v958 = vadd.f32 %v861, %v948
      %v959 = vadd.f32 %v862, %v951
      %v960 = vadd.f32 %v863, %v953
      %v961 = vld [vmem:[#allocation2 + $0x4] sm:$0xe]
      %s962 = scalar_lea.vmem %s4, 160
      %v963 = vld [vmem:[%s962] sm:$0xf]
      %v964 = vld [vmem:[%s962 + $0x4] sm:$0xf]
      %v965 = vld [vmem:[%s962 + $0x8] sm:$0xf]
      %v966 = vld [vmem:[%s962 + $0xc] sm:$0xf]
      %v967 = vld [vmem:[%s962 + $0x10] sm:$0xf]
      %v968 = vld [vmem:[%s962 + $0x14] sm:$0xf]
      %v969 = vld [vmem:[%s962 + $0x18] sm:$0xf]
      %v970 = vld [vmem:[%s962 + $0x1c] sm:$0xf]
      %v972 = vunpack.c.l.b16 %v961
      %v973 = vpack.c.b16 %v793, %v972
      %v974 = vrot.slane %v973, 1
      %v975 = vrot.slane %v799, 1
      %v976 = vsel %vm702, %v974, %v975
      %v977 = vrot.slane %v876, 1
      %v978 = vsel %vm702, %v975, %v977
      %v987 = vunpack.c.l.b16 %v963
      %v988 = vunpack.c.l.b16 %v964
      %v989 = vunpack.c.l.b16 %v965
      %v990 = vunpack.c.l.b16 %v966
      %v991 = vunpack.c.l.b16 %v967
      %v992 = vunpack.c.l.b16 %v968
      %v993 = vunpack.c.l.b16 %v969
      %v994 = vunpack.c.l.b16 %v970
      %v995 = vpack.c.b16 %v988, %v987
      %v996 = vpack.c.b16 %v990, %v989
      %v997 = vpack.c.b16 %v992, %v991
      %v998 = vpack.c.b16 %v994, %v993
      %v1004 = vsel %vm371, %v976, 0
      %v1007 = vsel %vm371, %v978, 0
      %v1010 = vsel %vm371, %v977, 0
      %1012 = vmatpush.bf16.msra.mxu0 0
      %1013 = vmatpush.bf16.msra.mxu0 0
      %1014 = vmatpush.bf16.msra.mxu0 0
      %1015 = vmatpush.bf16.msra.mxu0 0
      %1016 = vmatpush.bf16.msra.mxu0 %v998
      %1017 = vmatpush.bf16.msra.mxu0 %v997
      %1018 = vmatpush.bf16.msra.mxu0 %v996
      %1019 = vmatpush.bf16.msra.mxu0 %v995
      %1020 = vmatmul.bf16.gmra.mxu0 %v1004
      %v1021 = vpop.f32.mrf.mxu0
      %v1022 = vadd.f32 0.0, %v1021
      %v1023 = vpop.f32.mrf.mxu0
      %v1024 = vadd.f32 0.0, %v1023
      %1025 = vmatmul.bf16.gmra.mxu0 %v1007
      %v1026 = vpop.f32.mrf.mxu0
      %v1027 = vadd.f32 0.0, %v1026
      %v1028 = vpop.f32.mrf.mxu0
      %v1029 = vadd.f32 0.0, %v1028
      %1030 = vmatmul.bf16.gmra.mxu0 %v1010
      %v1031 = vpop.f32.mrf.mxu0
      %v1032 = vadd.f32 0.0, %v1031
      %v1033 = vpop.f32.mrf.mxu0
      %v1034 = vadd.f32 0.0, %v1033
      %1035 = vdwg.mxu0
      %v1036 = vadd.f32 %v955, %v1022
      %v1037 = vadd.f32 %v956, %v1024
      %v1038 = vadd.f32 %v957, %v1027
      %v1039 = vadd.f32 %v958, %v1029
      %v1040 = vadd.f32 %v959, %v1032
      %v1041 = vadd.f32 %v960, %v1034
      %v1042 = vld [vmem:[#allocation2 + $0x8] sm:$0xf]
      %v1043 = vld [vmem:[#allocation2 + $0xc] sm:$0xf]
      %v1044 = vld [vmem:[#allocation2 + $0x10] sm:$0xf]
      %v1045 = vld [vmem:[#allocation2 + $0x14] sm:$0xf]
      %v1046 = vld [vmem:[#allocation2 + $0x18] sm:$0xf]
      %v1047 = vld [vmem:[#allocation2 + $0x1c] sm:$0x7]
      %s1048 = scalar_lea.vmem %s4, 192
      %v1049 = vld [vmem:[%s1048] sm:$0xf]
      %v1050 = vld [vmem:[%s1048 + $0x4] sm:$0xf]
      %v1051 = vld [vmem:[%s1048 + $0x8] sm:$0xf]
      %v1052 = vld [vmem:[%s1048 + $0xc] sm:$0xf]
      %v1053 = vld [vmem:[%s1048 + $0x10] sm:$0xf]
      %v1054 = vld [vmem:[%s1048 + $0x14] sm:$0xf]
      %v1055 = vld [vmem:[%s1048 + $0x18] sm:$0xf]
      %v1056 = vld [vmem:[%s1048 + $0x1c] sm:$0xf]
      %v1063 = vunpack.c.l.b16 %v1042
      %v1064 = vunpack.c.l.b16 %v1043
      %v1065 = vunpack.c.l.b16 %v1044
      %v1066 = vunpack.c.l.b16 %v1045
      %v1067 = vunpack.c.l.b16 %v1046
      %v1068 = vunpack.c.l.b16 %v1047
      %v1069 = vpack.c.b16 %v1064, %v1063
      %v1070 = vpack.c.b16 %v1066, %v1065
      %v1071 = vpack.c.b16 %v1068, %v1067
      %v1080 = vunpack.c.l.b16 %v1049
      %v1081 = vunpack.c.l.b16 %v1050
      %v1082 = vunpack.c.l.b16 %v1051
      %v1083 = vunpack.c.l.b16 %v1052
      %v1084 = vunpack.c.l.b16 %v1053
      %v1085 = vunpack.c.l.b16 %v1054
      %v1086 = vunpack.c.l.b16 %v1055
      %v1087 = vunpack.c.l.b16 %v1056
      %v1088 = vpack.c.b16 %v1081, %v1080
      %v1089 = vpack.c.b16 %v1083, %v1082
      %v1090 = vpack.c.b16 %v1085, %v1084
      %v1091 = vpack.c.b16 %v1087, %v1086
      %v1097 = vsel %vm371, %v1069, 0
      %v1100 = vsel %vm371, %v1070, 0
      %v1103 = vsel %vm371, %v1071, 0
      %1105 = vmatpush.bf16.msra.mxu0 0
      %1106 = vmatpush.bf16.msra.mxu0 0
      %1107 = vmatpush.bf16.msra.mxu0 0
      %1108 = vmatpush.bf16.msra.mxu0 0
      %1109 = vmatpush.bf16.msra.mxu0 %v1091
      %1110 = vmatpush.bf16.msra.mxu0 %v1090
      %1111 = vmatpush.bf16.msra.mxu0 %v1089
      %1112 = vmatpush.bf16.msra.mxu0 %v1088
      %1113 = vmatmul.bf16.gmra.mxu0 %v1097
      %v1114 = vpop.f32.mrf.mxu0
      %v1115 = vadd.f32 0.0, %v1114
      %v1116 = vpop.f32.mrf.mxu0
      %v1117 = vadd.f32 0.0, %v1116
      %1118 = vmatmul.bf16.gmra.mxu0 %v1100
      %v1119 = vpop.f32.mrf.mxu0
      %v1120 = vadd.f32 0.0, %v1119
      %v1121 = vpop.f32.mrf.mxu0
      %v1122 = vadd.f32 0.0, %v1121
      %1123 = vmatmul.bf16.gmra.mxu0 %v1103
      %v1124 = vpop.f32.mrf.mxu0
      %v1125 = vadd.f32 0.0, %v1124
      %v1126 = vpop.f32.mrf.mxu0
      %v1127 = vadd.f32 0.0, %v1126
      %1128 = vdwg.mxu0
      %v1129 = vadd.f32 %v1036, %v1115
      %v1130 = vadd.f32 %v1037, %v1117
      %v1131 = vadd.f32 %v1038, %v1120
      %v1132 = vadd.f32 %v1039, %v1122
      %v1133 = vadd.f32 %v1040, %v1125
      %v1134 = vadd.f32 %v1041, %v1127
      %v1135 = vld [vmem:[#allocation2 + $0x1c] sm:$0xf]
      %s1136 = scalar_lea.vmem %s4, 224
      %v1137 = vld [vmem:[%s1136] sm:$0xf]
      %v1138 = vld [vmem:[%s1136 + $0x4] sm:$0xf]
      %v1139 = vld [vmem:[%s1136 + $0x8] sm:$0xf]
      %v1140 = vld [vmem:[%s1136 + $0xc] sm:$0xf]
      %v1141 = vld [vmem:[%s1136 + $0x10] sm:$0xf]
      %v1142 = vld [vmem:[%s1136 + $0x14] sm:$0xf]
      %v1143 = vld [vmem:[%s1136 + $0x18] sm:$0xf]
      %v1144 = vld [vmem:[%s1136 + $0x1c] sm:$0xf]
      %v1146 = vunpack.c.l.b16 %v1135
      %v1147 = vpack.c.b16 %v1146, %v1067
      %v1148 = vshrl.u32 %v1069, 16
      %v1150 = vshll.u32 %v1069, 16
      %v1152 = vrot.slane %v1150, 1
      %v1153 = vor.u32 %v1148, %v1152
      %v1154 = vshll.u32 %v1070, 16
      %v1156 = vrot.slane %v1154, 1
      %v1157 = vsel %vm604, %v1153, %v1156
      %v1158 = vshrl.u32 %v1070, 16
      %v1160 = vor.u32 %v1158, %v1156
      %v1162 = vshll.u32 %v1147, 16
      %v1164 = vrot.slane %v1162, 1
      %v1165 = vsel %vm604, %v1160, %v1164
      %v1166 = vshrl.u32 %v1147, 16
      %v1168 = vor.u32 %v1166, %v1164
      %v1177 = vunpack.c.l.b16 %v1137
      %v1178 = vunpack.c.l.b16 %v1138
      %v1179 = vunpack.c.l.b16 %v1139
      %v1180 = vunpack.c.l.b16 %v1140
      %v1181 = vunpack.c.l.b16 %v1141
      %v1182 = vunpack.c.l.b16 %v1142
      %v1183 = vunpack.c.l.b16 %v1143
      %v1184 = vunpack.c.l.b16 %v1144
      %v1185 = vpack.c.b16 %v1178, %v1177
      %v1186 = vpack.c.b16 %v1180, %v1179
      %v1187 = vpack.c.b16 %v1182, %v1181
      %v1188 = vpack.c.b16 %v1184, %v1183
      %v1194 = vsel %vm371, %v1157, 0
      %v1197 = vsel %vm371, %v1165, 0
      %v1200 = vsel %vm371, %v1168, 0
      %1202 = vmatpush.bf16.msra.mxu0 0
      %1203 = vmatpush.bf16.msra.mxu0 0
      %1204 = vmatpush.bf16.msra.mxu0 0
      %1205 = vmatpush.bf16.msra.mxu0 0
      %1206 = vmatpush.bf16.msra.mxu0 %v1188
      %1207 = vmatpush.bf16.msra.mxu0 %v1187
      %1208 = vmatpush.bf16.msra.mxu0 %v1186
      %1209 = vmatpush.bf16.msra.mxu0 %v1185
      %1210 = vmatmul.bf16.gmra.mxu0 %v1194
      %v1211 = vpop.f32.mrf.mxu0
      %v1212 = vadd.f32 0.0, %v1211
      %v1213 = vpop.f32.mrf.mxu0
      %v1214 = vadd.f32 0.0, %v1213
      %1215 = vmatmul.bf16.gmra.mxu0 %v1197
      %v1216 = vpop.f32.mrf.mxu0
      %v1217 = vadd.f32 0.0, %v1216
      %v1218 = vpop.f32.mrf.mxu0
      %v1219 = vadd.f32 0.0, %v1218
      %1220 = vmatmul.bf16.gmra.mxu0 %v1200
      %v1221 = vpop.f32.mrf.mxu0
      %v1222 = vadd.f32 0.0, %v1221
      %v1223 = vpop.f32.mrf.mxu0
      %v1224 = vadd.f32 0.0, %v1223
      %1225 = vdwg.mxu0
      %v1226 = vadd.f32 %v1129, %v1212
      %v1227 = vadd.f32 %v1130, %v1214
      %v1228 = vadd.f32 %v1131, %v1217
      %v1229 = vadd.f32 %v1132, %v1219
      %v1230 = vadd.f32 %v1133, %v1222
      %v1231 = vadd.f32 %v1134, %v1224
      %v1232 = vld [vmem:[#allocation2 + $0x8] sm:$0xe]
      %s1233 = scalar_lea.vmem %s4, 256
      %v1234 = vld [vmem:[%s1233] sm:$0xf]
      %v1235 = vld [vmem:[%s1233 + $0x4] sm:$0xf]
      %v1236 = vld [vmem:[%s1233 + $0x8] sm:$0xf]
      %v1237 = vld [vmem:[%s1233 + $0xc] sm:$0xf]
      %v1238 = vld [vmem:[%s1233 + $0x10] sm:$0xf]
      %v1239 = vld [vmem:[%s1233 + $0x14] sm:$0xf]
      %v1240 = vld [vmem:[%s1233 + $0x18] sm:$0xf]
      %v1241 = vld [vmem:[%s1233 + $0x1c] sm:$0xf]
      %v1243 = vunpack.c.l.b16 %v1232
      %v1244 = vpack.c.b16 %v1064, %v1243
      %v1245 = vrot.slane %v1244, 1
      %v1246 = vrot.slane %v1070, 1
      %v1247 = vsel %vm702, %v1245, %v1246
      %v1248 = vrot.slane %v1147, 1
      %v1249 = vsel %vm702, %v1246, %v1248
      %v1258 = vunpack.c.l.b16 %v1234
      %v1259 = vunpack.c.l.b16 %v1235
      %v1260 = vunpack.c.l.b16 %v1236
      %v1261 = vunpack.c.l.b16 %v1237
      %v1262 = vunpack.c.l.b16 %v1238
      %v1263 = vunpack.c.l.b16 %v1239
      %v1264 = vunpack.c.l.b16 %v1240
      %v1265 = vunpack.c.l.b16 %v1241
      %v1266 = vpack.c.b16 %v1259, %v1258
      %v1267 = vpack.c.b16 %v1261, %v1260
      %v1268 = vpack.c.b16 %v1263, %v1262
      %v1269 = vpack.c.b16 %v1265, %v1264
      %v1275 = vsel %vm371, %v1247, 0
      %v1278 = vsel %vm371, %v1249, 0
      %v1281 = vsel %vm371, %v1248, 0
      %1283 = vmatpush.bf16.msra.mxu0 0
      %1284 = vmatpush.bf16.msra.mxu0 0
      %1285 = vmatpush.bf16.msra.mxu0 0
      %1286 = vmatpush.bf16.msra.mxu0 0
      %1287 = vmatpush.bf16.msra.mxu0 %v1269
      %1288 = vmatpush.bf16.msra.mxu0 %v1268
      %1289 = vmatpush.bf16.msra.mxu0 %v1267
      %1290 = vmatpush.bf16.msra.mxu0 %v1266
      %1291 = vmatmul.bf16.gmra.mxu0 %v1275
      %v1292 = vpop.f32.mrf.mxu0
      %v1293 = vadd.f32 0.0, %v1292
      %v1294 = vpop.f32.mrf.mxu0
      %v1295 = vadd.f32 0.0, %v1294
      %1296 = vmatmul.bf16.gmra.mxu0 %v1278
      %v1297 = vpop.f32.mrf.mxu0
      %v1298 = vadd.f32 0.0, %v1297
      %v1299 = vpop.f32.mrf.mxu0
      %v1300 = vadd.f32 0.0, %v1299
      %1301 = vmatmul.bf16.gmra.mxu0 %v1281
      %v1302 = vpop.f32.mrf.mxu0
      %v1303 = vadd.f32 0.0, %v1302
      %v1304 = vpop.f32.mrf.mxu0
      %v1305 = vadd.f32 0.0, %v1304
      %1306 = vdwg.mxu0
      %v1307 = vadd.f32 %v1226, %v1293
      %v1308 = vadd.f32 %v1227, %v1295
      %v1309 = vadd.f32 %v1228, %v1298
      %v1310 = vadd.f32 %v1229, %v1300
      %v1311 = vadd.f32 %v1230, %v1303
      %v1312 = vadd.f32 %v1231, %v1305
      %v1313 = vmax.f32 %v1307, 0.0
      %v1314 = vmax.f32 %v1308, 0.0
      %v1315 = vmax.f32 %v1309, 0.0
      %v1316 = vmax.f32 %v1310, 0.0
      %v1317 = vmax.f32 %v1311, 0.0
      %v1318 = vmax.f32 %v1312, 0.0
      %v1319 = vpack.c.bf16 %v1314, %v1313
      %v1320 = vpack.c.bf16 %v1316, %v1315
      %v1321 = vpack.c.bf16 %v1318, %v1317
      %v1322 = vld [vmem:[%s6] sm:$0xf]
      %v1323 = vld [vmem:[%s6 + $0x4] sm:$0xf]
      %v1324 = vld [vmem:[%s6 + $0x8] sm:$0xf]
      %v1325 = vld [vmem:[%s6 + $0xc] sm:$0xf]
      %v1326 = vld [vmem:[%s6 + $0x10] sm:$0xf]
      %v1327 = vld [vmem:[%s6 + $0x14] sm:$0xf]
      %v1328 = vld [vmem:[%s6 + $0x18] sm:$0xf]
      %v1329 = vld [vmem:[%s6 + $0x1c] sm:$0xf]
      %v1330 = vld [vmem:[%s300 + $0x4] sm:$0xf]
      %v1331 = vld [vmem:[%s300 + $0x8] sm:$0xf]
      %v1332 = vld [vmem:[%s300 + $0xc] sm:$0xf]
      %v1333 = vld [vmem:[%s300 + $0x10] sm:$0xf]
      %v1334 = vld [vmem:[%s300 + $0x14] sm:$0xf]
      %v1335 = vld [vmem:[%s300 + $0x18] sm:$0xf]
      %v1336 = vunpack.c.l.bf16 %v1330
      %v1337 = vunpack.c.l.bf16 %v1331
      %v1338 = vunpack.c.l.bf16 %v1332
      %v1339 = vunpack.c.l.bf16 %v1333
      %v1340 = vunpack.c.l.bf16 %v1334
      %v1341 = vunpack.c.l.bf16 %v1335
      %v1342 = vld [vmem:[%s7] sm:$0x1]
      %v1344 = vperm.slane %v1342, 0
      %v1354 = vunpack.c.l.b16 %v1322
      %v1355 = vunpack.c.l.b16 %v1323
      %v1356 = vunpack.c.l.b16 %v1324
      %v1357 = vunpack.c.l.b16 %v1325
      %v1358 = vunpack.c.l.b16 %v1326
      %v1359 = vunpack.c.l.b16 %v1327
      %v1360 = vunpack.c.l.b16 %v1328
      %v1361 = vunpack.c.l.b16 %v1329
      %v1362 = vpack.c.b16 %v1355, %v1354
      %v1363 = vpack.c.b16 %v1357, %v1356
      %v1364 = vpack.c.b16 %v1359, %v1358
      %v1365 = vpack.c.b16 %v1361, %v1360
      %v1371 = vsel %vm371, %v1319, 0
      %v1374 = vsel %vm371, %v1320, 0
      %v1377 = vsel %vm371, %v1321, 0
      %1379 = vmatpush.bf16.msra.mxu0 0
      %1380 = vmatpush.bf16.msra.mxu0 0
      %1381 = vmatpush.bf16.msra.mxu0 0
      %1382 = vmatpush.bf16.msra.mxu0 0
      %1383 = vmatpush.bf16.msra.mxu0 %v1365
      %1384 = vmatpush.bf16.msra.mxu0 %v1364
      %1385 = vmatpush.bf16.msra.mxu0 %v1363
      %1386 = vmatpush.bf16.msra.mxu0 %v1362
      %1387 = vmatmul.bf16.gmra.mxu0 %v1371
      %v1388 = vpop.f32.mrf.mxu0
      %v1389 = vadd.f32 %v1344, %v1388
      %v1390 = vpop.f32.mrf.mxu0
      %v1391 = vadd.f32 %v1344, %v1390
      %1392 = vmatmul.bf16.gmra.mxu0 %v1374
      %v1393 = vpop.f32.mrf.mxu0
      %v1394 = vadd.f32 %v1344, %v1393
      %v1395 = vpop.f32.mrf.mxu0
      %v1396 = vadd.f32 %v1344, %v1395
      %1397 = vmatmul.bf16.gmra.mxu0 %v1377
      %v1398 = vpop.f32.mrf.mxu0
      %v1399 = vadd.f32 %v1344, %v1398
      %v1400 = vpop.f32.mrf.mxu0
      %v1401 = vadd.f32 %v1344, %v1400
      %1402 = vdwg.mxu0
      %vm1409 = vcmask 1046528
      %v1410 = vrot.slane %v1336, 1
      %v1411 = vrot.slane %v1337, 1
      %v1412 = vsel %vm1409, %v1410, %v1411
      %v1413 = vrot.slane %v1338, 1
      %v1414 = vsel %vm1409, %v1411, %v1413
      %v1415 = vrot.slane %v1339, 1
      %v1416 = vsel %vm1409, %v1413, %v1415
      %v1417 = vrot.slane %v1340, 1
      %v1418 = vsel %vm1409, %v1415, %v1417
      %v1419 = vrot.slane %v1341, 1
      %v1420 = vsel %vm1409, %v1417, %v1419
      %v1427 = vadd.f32 %v1389, %v1412
      %v1428 = vadd.f32 %v1391, %v1414
      %v1429 = vadd.f32 %v1394, %v1416
      %v1430 = vadd.f32 %v1396, %v1418
      %v1431 = vadd.f32 %v1399, %v1420
      %v1432 = vadd.f32 %v1401, %v1419
      %v1433 = vpack.c.bf16 %v1427, %v1427
      %v1434 = vpack.c.bf16 %v1428, %v1428
      %v1435 = vpack.c.bf16 %v1429, %v1429
      %v1436 = vpack.c.bf16 %v1430, %v1430
      %v1437 = vpack.c.bf16 %v1431, %v1431
      %v1438 = vpack.c.bf16 %v1432, %v1432
      %1439 = vst.msk [vmem:[%s305] sm:$0xf] %vm485, %v1433
      %1440 = vst.msk [vmem:[%s305 + $0x4] sm:$0xf] %vm485, %v1434
      %1441 = vst.msk [vmem:[%s305 + $0x8] sm:$0xf] %vm485, %v1435
      %1442 = vst.msk [vmem:[%s305 + $0xc] sm:$0xf] %vm485, %v1436
      %1443 = vst.msk [vmem:[%s305 + $0x10] sm:$0xf] %vm485, %v1437
      %vm1444 = vcmask 518144
      %1445 = vst.msk [vmem:[%s305 + $0x14] sm:$0x7] %vm1444, %v1438
      %p1446 = scmp.lt.s32.totalorder %s19, 3
      %s1447 = scalar_select %p1446, %s19, 3
      %s1448 = smul.addr %s1447, 6
      %s1449 = smul.addr %s1448, 4
      %s1450 = scalar_lea.vmem %s8, %s1449
      // Predicated region
      $region53: #{combine_forward.6} parent=51 // pred_check
        %p1451 = pneg %p210
      $region54: #{combine_forward.6} parent=51 // pred_check_branch
        %1453 = sbr.rel (%p1451) target = $region56
      $region55: #{combine_forward.6} parent=51 // pred_region
        _
      $region56: #{combine_forward.6} parent=51 // pred_fallthru
        _
    $region52: #{combine_forward.6} parent=5 // pred_fallthru
      _
    %p1454 = scmp.le.s32.totalorder 2, %s14
    // Predicated region
    $region57: #{combine_forward.6} parent=5 // pred_check
      %p1455 = pneg %p1454
    $region58: #{combine_forward.6} parent=5 // pred_check_branch
      %1457 = sbr.rel (%p1455) target = $region60
    $region59: #{combine_forward.6} parent=5 // pred_region
      %s1458 = ssub.s32 %s14, 2
      // Predicated region
      $region61: #{combine_forward.6} parent=59 // pred_check
        %p1459 = pneg %p216
      $region62: #{combine_forward.6} parent=59 // pred_check_branch
        %1461 = sbr.rel (%p1459) target = $region64
      $region63: #{combine_forward.6} parent=59 // pred_region
        %p1462 = scmp.lt.s32.totalorder %s20, 3
        %s1463 = scalar_select %p1462, %s20, 3
        %s1464 = smul.addr %s1463, 6
        %s1465 = smul.addr %s1464, 4
        %s1466 = scalar_lea.vmem %s8, %s1465
      $region64: #{combine_forward.6} parent=59 // pred_fallthru
        _
    $region60: #{combine_forward.6} parent=5 // pred_fallthru
      _
  $region6: #{combine_forward.6} parent=0 // loop_footer
    %s18 = sadd.s32 1, %s14
  $region7: #{combine_forward.6} parent=0 // loop_footer_branch
    %13 = sbr.rel target = $region3
  $region8: #{combine_forward.6} parent=0 // loop_exit
    _

// kernel: combine_forward.7
$region0: #{combine_forward.7}
  #allocation0 [shape = 'u32[]', space=smem, size = 0x4, offset = 0x4, fixed_abs, tag = 'smem constant byte address 0x4 - core index']
  #allocation1 [shape = 'u32[72,128]{1,0:T(1,128)}', space=vmem, size = 0x9000, scoped, tag = 'internal scratch']
  #allocation2 [shape = 'bf16[9,64]{1,0:T(8,128)(2,1)}', space=vmem, size = 0x1000, scoped, tag = 'scratch operand']
  %s0 = inlined_call_operand.vmem [shape: bf16[4,9,64], index: 0, kind: input, shape index: {}]
  %s1 = inlined_call_operand.vmem [shape: f32[9,1], index: 1, kind: input, shape index: {}]
  %s2 = inlined_call_operand.vmem [shape: bf16[64,64], index: 2, kind: input, shape index: {}]
  %s3 = inlined_call_operand.vmem [shape: f32[1,64], index: 3, kind: input, shape index: {}]
  %s4 = inlined_call_operand.vmem [shape: bf16[9,64,64], index: 4, kind: input, shape index: {}]
  %s5 = inlined_call_operand.vmem [shape: f32[1,64], index: 5, kind: input, shape index: {}]
  %s6 = inlined_call_operand.vmem [shape: bf16[64,64], index: 6, kind: input, shape index: {}]
  %s7 = inlined_call_operand.vmem [shape: f32[1,64], index: 7, kind: input, shape index: {}]
  %s8 = inlined_call_operand.vmem [shape: bf16[4,1,64], index: 8, kind: output, shape index: {}]
  %s9 = sld [smem:[#allocation0]]
  $region65: #{combine_forward.7} parent=0
    _
  %s11 = ssub.s32 1, %s9
  %s12 = scalar_select 0, %s11, %s9
  loop: start=0, step=1, limit=6
  $region2: #{combine_forward.7} parent=0 // loop_pre_header
    _
  $region3: #{combine_forward.7} parent=0 // loop_header
    %s14 = sphi 0, %s18
    %p15 = scmp.ge.s32.totalorder %s14, 6
    %s24 = sphi 0, %s26
    %s27 = sphi 0, %s24
    %s28 = sphi 0, %s27
    %s44 = sphi 0, %s28
    %s48 = sphi 0, %s48
    %s50 = sphi 0, %s48
    %s51 = sphi 0, %s50
    %s65 = sphi 0, %s51
    %s69 = sphi 0, %s69
    %s71 = sphi 0, %s69
    %s72 = sphi 0, %s71
    %s86 = sphi 0, %s72
    %s90 = sphi 0, %s90
    %s92 = sphi 0, %s90
    %s93 = sphi 0, %s92
    %s107 = sphi 0, %s93
    %s111 = sphi 0, %s111
    %s113 = sphi 0, %s111
    %s114 = sphi 0, %s113
    %s128 = sphi 0, %s114
    %s132 = sphi 0, %s132
    %s134 = sphi 0, %s132
    %s135 = sphi 0, %s134
    %s149 = sphi 0, %s135
    %s153 = sphi 0, %s153
    %s155 = sphi 0, %s153
    %s156 = sphi 0, %s155
    %s170 = sphi 0, %s156
    %s174 = sphi 0, %s174
    %s176 = sphi 0, %s174
    %s177 = sphi 0, %s176
    %s191 = sphi 0, %s177
    %s197 = sphi 0, %s199
    %s200 = sphi 0, %s197
    %s201 = sphi 0, %s200
    %s217 = sphi 0, %s201
  $region4: #{combine_forward.7} parent=0 // loop_header_branch
    %17 = sbr.rel (%p15) target = $region8
  $region5: #{combine_forward.7} parent=0 // loop_body
    %s19 = ssub.s32 %s14, 1
    %s20 = ssub.s32 %s14, 2
    %s21 = sadd.s32 %s14, 1
    %s22 = ssub.s32 %s14, %s21
    %p23 = scmp.eq.s32.totalorder %s22, 0
    %s25 = sadd.s32 %s24, 1
    %s26 = scalar_select %p23, %s24, %s25
    %p29 = pneg %p23
    %p30 = scmp.eq.s32.totalorder %s14, 3
    %p31 = por %p29, %p30
    %p32 = scmp.ne.s32.totalorder %s24, %s27
    %p33 = scmp.eq.s32.totalorder %s14, 0
    %p34 = por %p32, %p33
    %p35 = scmp.ne.s32.totalorder %s24, %s27
    %p36 = scmp.eq.s32.totalorder %s19, 3
    %p37 = por %p35, %p36
    %p38 = scmp.ne.s32.totalorder %s27, %s28
    %p39 = scmp.eq.s32.totalorder %s19, 0
    %p40 = por %p38, %p39
    %p41 = scmp.ne.s32.totalorder %s27, %s28
    %p42 = scmp.eq.s32.totalorder %s20, 3
    %p43 = por %p41, %p42
    %p45 = scmp.ne.s32.totalorder %s28, %s44
    %p46 = scmp.eq.s32.totalorder %s20, 0
    %p47 = por %p45, %p46
    %s49 = sadd.s32 %s48, 1
    %p52 = scmp.eq.s32.totalorder %s14, 3
    %p53 = scmp.ne.s32.totalorder %s48, %s50
    %p54 = scmp.eq.s32.totalorder %s14, 0
    %p55 = por %p53, %p54
    %p56 = scmp.ne.s32.totalorder %s48, %s50
    %p57 = scmp.eq.s32.totalorder %s19, 3
    %p58 = por %p56, %p57
    %p59 = scmp.ne.s32.totalorder %s50, %s51
    %p60 = scmp.eq.s32.totalorder %s19, 0
    %p61 = por %p59, %p60
    %p62 = scmp.ne.s32.totalorder %s50, %s51
    %p63 = scmp.eq.s32.totalorder %s20, 3
    %p64 = por %p62, %p63
    %p66 = scmp.ne.s32.totalorder %s51, %s65
    %p67 = scmp.eq.s32.totalorder %s20, 0
    %p68 = por %p66, %p67
    %s70 = sadd.s32 %s69, 1
    %p73 = scmp.eq.s32.totalorder %s14, 3
    %p74 = scmp.ne.s32.totalorder %s69, %s71
    %p75 = scmp.eq.s32.totalorder %s14, 0
    %p76 = por %p74, %p75
    %p77 = scmp.ne.s32.totalorder %s69, %s71
    %p78 = scmp.eq.s32.totalorder %s19, 3
    %p79 = por %p77, %p78
    %p80 = scmp.ne.s32.totalorder %s71, %s72
    %p81 = scmp.eq.s32.totalorder %s19, 0
    %p82 = por %p80, %p81
    %p83 = scmp.ne.s32.totalorder %s71, %s72
    %p84 = scmp.eq.s32.totalorder %s20, 3
    %p85 = por %p83, %p84
    %p87 = scmp.ne.s32.totalorder %s72, %s86
    %p88 = scmp.eq.s32.totalorder %s20, 0
    %p89 = por %p87, %p88
    %s91 = sadd.s32 %s90, 1
    %p94 = scmp.eq.s32.totalorder %s14, 3
    %p95 = scmp.ne.s32.totalorder %s90, %s92
    %p96 = scmp.eq.s32.totalorder %s14, 0
    %p97 = por %p95, %p96
    %p98 = scmp.ne.s32.totalorder %s90, %s92
    %p99 = scmp.eq.s32.totalorder %s19, 3
    %p100 = por %p98, %p99
    %p101 = scmp.ne.s32.totalorder %s92, %s93
    %p102 = scmp.eq.s32.totalorder %s19, 0
    %p103 = por %p101, %p102
    %p104 = scmp.ne.s32.totalorder %s92, %s93
    %p105 = scmp.eq.s32.totalorder %s20, 3
    %p106 = por %p104, %p105
    %p108 = scmp.ne.s32.totalorder %s93, %s107
    %p109 = scmp.eq.s32.totalorder %s20, 0
    %p110 = por %p108, %p109
    %s112 = sadd.s32 %s111, 1
    %p115 = scmp.eq.s32.totalorder %s14, 3
    %p116 = scmp.ne.s32.totalorder %s111, %s113
    %p117 = scmp.eq.s32.totalorder %s14, 0
    %p118 = por %p116, %p117
    %p119 = scmp.ne.s32.totalorder %s111, %s113
    %p120 = scmp.eq.s32.totalorder %s19, 3
    %p121 = por %p119, %p120
    %p122 = scmp.ne.s32.totalorder %s113, %s114
    %p123 = scmp.eq.s32.totalorder %s19, 0
    %p124 = por %p122, %p123
    %p125 = scmp.ne.s32.totalorder %s113, %s114
    %p126 = scmp.eq.s32.totalorder %s20, 3
    %p127 = por %p125, %p126
    %p129 = scmp.ne.s32.totalorder %s114, %s128
    %p130 = scmp.eq.s32.totalorder %s20, 0
    %p131 = por %p129, %p130
    %s133 = sadd.s32 %s132, 1
    %p136 = scmp.eq.s32.totalorder %s14, 3
    %p137 = scmp.ne.s32.totalorder %s132, %s134
    %p138 = scmp.eq.s32.totalorder %s14, 0
    %p139 = por %p137, %p138
    %p140 = scmp.ne.s32.totalorder %s132, %s134
    %p141 = scmp.eq.s32.totalorder %s19, 3
    %p142 = por %p140, %p141
    %p143 = scmp.ne.s32.totalorder %s134, %s135
    %p144 = scmp.eq.s32.totalorder %s19, 0
    %p145 = por %p143, %p144
    %p146 = scmp.ne.s32.totalorder %s134, %s135
    %p147 = scmp.eq.s32.totalorder %s20, 3
    %p148 = por %p146, %p147
    %p150 = scmp.ne.s32.totalorder %s135, %s149
    %p151 = scmp.eq.s32.totalorder %s20, 0
    %p152 = por %p150, %p151
    %s154 = sadd.s32 %s153, 1
    %p157 = scmp.eq.s32.totalorder %s14, 3
    %p158 = scmp.ne.s32.totalorder %s153, %s155
    %p159 = scmp.eq.s32.totalorder %s14, 0
    %p160 = por %p158, %p159
    %p161 = scmp.ne.s32.totalorder %s153, %s155
    %p162 = scmp.eq.s32.totalorder %s19, 3
    %p163 = por %p161, %p162
    %p164 = scmp.ne.s32.totalorder %s155, %s156
    %p165 = scmp.eq.s32.totalorder %s19, 0
    %p166 = por %p164, %p165
    %p167 = scmp.ne.s32.totalorder %s155, %s156
    %p168 = scmp.eq.s32.totalorder %s20, 3
    %p169 = por %p167, %p168
    %p171 = scmp.ne.s32.totalorder %s156, %s170
    %p172 = scmp.eq.s32.totalorder %s20, 0
    %p173 = por %p171, %p172
    %s175 = sadd.s32 %s174, 1
    %p178 = scmp.eq.s32.totalorder %s14, 3
    %p179 = scmp.ne.s32.totalorder %s174, %s176
    %p180 = scmp.eq.s32.totalorder %s14, 0
    %p181 = por %p179, %p180
    %p182 = scmp.ne.s32.totalorder %s174, %s176
    %p183 = scmp.eq.s32.totalorder %s19, 3
    %p184 = por %p182, %p183
    %p185 = scmp.ne.s32.totalorder %s176, %s177
    %p186 = scmp.eq.s32.totalorder %s19, 0
    %p187 = por %p185, %p186
    %p188 = scmp.ne.s32.totalorder %s176, %s177
    %p189 = scmp.eq.s32.totalorder %s20, 3
    %p190 = por %p188, %p189
    %p192 = scmp.ne.s32.totalorder %s177, %s191
    %p193 = scmp.eq.s32.totalorder %s20, 0
    %p194 = por %p192, %p193
    %s195 = ssub.s32 %s14, %s21
    %p196 = scmp.eq.s32.totalorder %s195, 0
    %s198 = sadd.s32 %s197, 1
    %s199 = scalar_select %p196, %s197, %s198
    %p202 = pneg %p196
    %p203 = scmp.eq.s32.totalorder %s14, 3
    %p204 = por %p202, %p203
    %p205 = scmp.ne.s32.totalorder %s197, %s200
    %p206 = scmp.eq.s32.totalorder %s14, 0
    %p207 = por %p205, %p206
    %p208 = scmp.ne.s32.totalorder %s197, %s200
    %p209 = scmp.eq.s32.totalorder %s19, 3
    %p210 = por %p208, %p209
    %p211 = scmp.ne.s32.totalorder %s200, %s201
    %p212 = scmp.eq.s32.totalorder %s19, 0
    %p213 = por %p211, %p212
    %p214 = scmp.ne.s32.totalorder %s200, %s201
    %p215 = scmp.eq.s32.totalorder %s20, 3
    %p216 = por %p214, %p215
    %p218 = scmp.ne.s32.totalorder %s201, %s217
    %p219 = scmp.eq.s32.totalorder %s20, 0
    %p220 = por %p218, %p219
    %p221 = scmp.le.s32.totalorder 1, %s14
    %p222 = scmp.lt.s32.totalorder %s14, 5
    %p223 = pnand %p221, %p222
    %p224 = pneg %p223
    // Predicated region
    $region9: #{combine_forward.7} parent=5 // pred_check
      _
    $region10: #{combine_forward.7} parent=5 // pred_check_branch
      %226 = sbr.rel (%p223) target = $region12
    $region11: #{combine_forward.7} parent=5 // pred_region
      %s227 = ssub.s32 %s14, 1
      // Predicated region
      $region13: #{combine_forward.7} parent=11 // pred_check
        %p228 = pneg %p61
      $region14: #{combine_forward.7} parent=11 // pred_check_branch
        %230 = sbr.rel (%p228) target = $region16
      $region15: #{combine_forward.7} parent=11 // pred_region
        _
      $region16: #{combine_forward.7} parent=11 // pred_fallthru
        _
      // Predicated region
      $region17: #{combine_forward.7} parent=11 // pred_check
        %p231 = pneg %p82
      $region18: #{combine_forward.7} parent=11 // pred_check_branch
        %233 = sbr.rel (%p231) target = $region20
      $region19: #{combine_forward.7} parent=11 // pred_region
        _
      $region20: #{combine_forward.7} parent=11 // pred_fallthru
        _
      // Predicated region
      $region21: #{combine_forward.7} parent=11 // pred_check
        %p234 = pneg %p103
      $region22: #{combine_forward.7} parent=11 // pred_check_branch
        %236 = sbr.rel (%p234) target = $region24
      $region23: #{combine_forward.7} parent=11 // pred_region
        _
      $region24: #{combine_forward.7} parent=11 // pred_fallthru
        _
      // Predicated region
      $region25: #{combine_forward.7} parent=11 // pred_check
        %p237 = pneg %p124
      $region26: #{combine_forward.7} parent=11 // pred_check_branch
        %239 = sbr.rel (%p237) target = $region28
      $region27: #{combine_forward.7} parent=11 // pred_region
        _
      $region28: #{combine_forward.7} parent=11 // pred_fallthru
        _
      // Predicated region
      $region29: #{combine_forward.7} parent=11 // pred_check
        %p240 = pneg %p145
      $region30: #{combine_forward.7} parent=11 // pred_check_branch
        %242 = sbr.rel (%p240) target = $region32
      $region31: #{combine_forward.7} parent=11 // pred_region
        _
      $region32: #{combine_forward.7} parent=11 // pred_fallthru
        _
      // Predicated region
      $region33: #{combine_forward.7} parent=11 // pred_check
        %p243 = pneg %p166
      $region34: #{combine_forward.7} parent=11 // pred_check_branch
        %245 = sbr.rel (%p243) target = $region36
      $region35: #{combine_forward.7} parent=11 // pred_region
        _
      $region36: #{combine_forward.7} parent=11 // pred_fallthru
        _
      // Predicated region
      $region37: #{combine_forward.7} parent=11 // pred_check
        %p246 = pneg %p187
      $region38: #{combine_forward.7} parent=11 // pred_check_branch
        %248 = sbr.rel (%p246) target = $region40
      $region39: #{combine_forward.7} parent=11 // pred_region
        _
      $region40: #{combine_forward.7} parent=11 // pred_fallthru
        _
    $region12: #{combine_forward.7} parent=5 // pred_fallthru
      _
    %p249 = scmp.lt.s32.totalorder %s14, 4
    // Predicated region
    $region41: #{combine_forward.7} parent=5 // pred_check
      %p250 = pneg %p249
    $region42: #{combine_forward.7} parent=5 // pred_check_branch
      %252 = sbr.rel (%p250) target = $region44
    $region43: #{combine_forward.7} parent=5 // pred_region
      // Predicated region
      $region45: #{combine_forward.7} parent=43 // pred_check
        %p253 = pneg %p34
      $region46: #{combine_forward.7} parent=43 // pred_check_branch
        %255 = sbr.rel (%p253) target = $region48
      $region47: #{combine_forward.7} parent=43 // pred_region
        %p256 = scmp.lt.s32.totalorder %s14, 3
        %s257 = scalar_select %p256, %s14, 3
        %s258 = smul.addr %s257, 2
        %s259 = smul.addr %s258, 4
        %s260 = scalar_lea.vmem %s0, %s259
      $region48: #{combine_forward.7} parent=43 // pred_fallthru
        _
    $region44: #{combine_forward.7} parent=5 // pred_fallthru
      _
    %p261 = scmp.le.s32.totalorder 1, %s14
    %p262 = scmp.lt.s32.totalorder %s14, 5
    %p263 = pnand %p261, %p262
    %p264 = pneg %p263
    // Predicated region
    $region49: #{combine_forward.7} parent=5 // pred_check
      _
    $region50: #{combine_forward.7} parent=5 // pred_check_branch
      %266 = sbr.rel (%p263) target = $region52
    $region51: #{combine_forward.7} parent=5 // pred_region
      %s267 = ssub.s32 %s14, 1
      %p268 = scmp.lt.s32.totalorder %s19, 3
      %s269 = scalar_select %p268, %s19, 3
      %s270 = smul.addr %s269, 2
      %s271 = smul.addr %s270, 4
      %s272 = scalar_lea.vmem %s0, %s271
      %p273 = pneg %p40
      %p274 = pneg %p37
      %p275 = pneg %p61
      %p276 = pneg %p58
      %p277 = pneg %p82
      %p278 = pneg %p79
      %p279 = pneg %p103
      %p280 = pneg %p100
      %p281 = pneg %p124
      %p282 = pneg %p121
      %p283 = pneg %p145
      %p284 = pneg %p142
      %p285 = pneg %p166
      %p286 = pneg %p163
      %p287 = pneg %p187
      %p288 = pneg %p184
      %p289 = pneg %p213
      %p290 = pneg %p210
      %p291 = scmp.lt.s32.totalorder %s19, 3
      %s292 = scalar_select %p291, %s19, 3
      %s293 = scalar_lea.vmem %s8, %s292
      %p294 = scmp.lt.s32.totalorder %s19, 3
      %s295 = scalar_select %p294, %s19, 3
      %s296 = smul.addr %s295, 2
      %s297 = smul.addr %s296, 4
      %s298 = scalar_lea.vmem %s0, %s297
      %p299 = scmp.lt.s32.totalorder %s19, 3
      %s300 = scalar_select %p299, %s19, 3
      %s301 = scalar_lea.vmem %s8, %s300
      %v303 = vld [vmem:[%s298] sm:$0xf]
      %v304 = vld [vmem:[%s298 + $0x4] sm:$0x1]
      %v305 = vld [vmem:[%s2] sm:$0xf]
      %v306 = vld [vmem:[%s2 + $0x4] sm:$0xf]
      %v307 = vld [vmem:[%s2 + $0x8] sm:$0xf]
      %v308 = vld [vmem:[%s2 + $0xc] sm:$0xf]
      %v309 = vld [vmem:[%s2 + $0x10] sm:$0xf]
      %v310 = vld [vmem:[%s2 + $0x14] sm:$0xf]
      %v311 = vld [vmem:[%s2 + $0x18] sm:$0xf]
      %v312 = vld [vmem:[%s2 + $0x1c] sm:$0xf]
      %v313 = vld [vmem:[%s3] sm:$0x1]
      %v315 = vperm.slane %v313, 0
      %v319 = vunpack.c.l.b16 %v303
      %v320 = vunpack.c.l.b16 %v304
      %v321 = vpack.c.b16 %v320, %v319
      %v330 = vunpack.c.l.b16 %v305
      %v331 = vunpack.c.l.b16 %v306
      %v332 = vunpack.c.l.b16 %v307
      %v333 = vunpack.c.l.b16 %v308
      %v334 = vunpack.c.l.b16 %v309
      %v335 = vunpack.c.l.b16 %v310
      %v336 = vunpack.c.l.b16 %v311
      %v337 = vunpack.c.l.b16 %v312
      %v338 = vpack.c.b16 %v331, %v330
      %v339 = vpack.c.b16 %v333, %v332
      %v340 = vpack.c.b16 %v335, %v334
      %v341 = vpack.c.b16 %v337, %v336
      %vm346 = vcmask 523264
      %v348 = vsel %vm346, %v321, 0
      %350 = vmatpush.bf16.msra.mxu0 0
      %351 = vmatpush.bf16.msra.mxu0 0
      %352 = vmatpush.bf16.msra.mxu0 0
      %353 = vmatpush.bf16.msra.mxu0 0
      %354 = vmatpush.bf16.msra.mxu0 %v341
      %355 = vmatpush.bf16.msra.mxu0 %v340
      %356 = vmatpush.bf16.msra.mxu0 %v339
      %357 = vmatpush.bf16.msra.mxu0 %v338
      %358 = vmatmul.bf16.gmra.mxu0 %v348
      %v359 = vpop.f32.mrf.mxu0
      %v360 = vadd.f32 %v315, %v359
      %v361 = vpop.f32.mrf.mxu0
      %v362 = vadd.f32 %v315, %v361
      %363 = vdwg.mxu0
      %v364 = vmax.f32 %v360, 0.0
      %v365 = vmax.f32 %v362, 0.0
      %v366 = vpack.c.bf16 %v364, %v364
      %v367 = vpack.c.bf16 %v365, %v365
      %vm368 = vcmask 519168
      %369 = vst.msk [vmem:[#allocation2] sm:$0xf] %vm368, %v366
      %vm370 = vcmask 516096
      %vm371 = vsmask.f32 256
      %vm372 = vmand %vm370, %vm371
      %v373 = vld [vmem:[#allocation2 + $0x4] sm:$0x1]
      %v374 = vsel %vm372, %v367, %v373
      %375 = vst [vmem:[#allocation2 + $0x4] sm:$0x1] %v374
      %v376 = vld [vmem:[%s5] sm:$0x1]
      %v377 = vadd.f32 %v376, 0.0
      %v378 = vld [vmem:[#allocation2] sm:$0x1]
      %v379 = vld [vmem:[%s4] sm:$0xf]
      %v380 = vld [vmem:[%s4 + $0x4] sm:$0xf]
      %v381 = vld [vmem:[%s4 + $0x8] sm:$0xf]
      %v382 = vld [vmem:[%s4 + $0xc] sm:$0xf]
      %v383 = vld [vmem:[%s4 + $0x10] sm:$0xf]
      %v384 = vld [vmem:[%s4 + $0x14] sm:$0xf]
      %v385 = vld [vmem:[%s4 + $0x18] sm:$0xf]
      %v386 = vld [vmem:[%s4 + $0x1c] sm:$0xf]
      %v395 = vunpack.c.l.b16 %v379
      %v396 = vunpack.c.l.b16 %v380
      %v397 = vunpack.c.l.b16 %v381
      %v398 = vunpack.c.l.b16 %v382
      %v399 = vunpack.c.l.b16 %v383
      %v400 = vunpack.c.l.b16 %v384
      %v401 = vunpack.c.l.b16 %v385
      %v402 = vunpack.c.l.b16 %v386
      %v403 = vpack.c.b16 %v396, %v395
      %v404 = vpack.c.b16 %v398, %v397
      %v405 = vpack.c.b16 %v400, %v399
      %v406 = vpack.c.b16 %v402, %v401
      %v412 = vsel %vm346, %v378, 0
      %414 = vmatpush.bf16.msra.mxu0 0
      %415 = vmatpush.bf16.msra.mxu0 0
      %416 = vmatpush.bf16.msra.mxu0 0
      %417 = vmatpush.bf16.msra.mxu0 0
      %418 = vmatpush.bf16.msra.mxu0 %v406
      %419 = vmatpush.bf16.msra.mxu0 %v405
      %420 = vmatpush.bf16.msra.mxu0 %v404
      %421 = vmatpush.bf16.msra.mxu0 %v403
      %422 = vmatmul.bf16.gmra.mxu0 %v412
      %v423 = vpop.f32.mrf.mxu0
      %v424 = vadd.f32 0.0, %v423
      %v425 = vpop.f32.mrf.mxu0
      %426 = vdwg.mxu0
      %v427 = vadd.f32 %v377, %v424
      %s428 = scalar_lea.vmem %s4, 32
      %v429 = vld [vmem:[%s428] sm:$0xf]
      %v430 = vld [vmem:[%s428 + $0x4] sm:$0xf]
      %v431 = vld [vmem:[%s428 + $0x8] sm:$0xf]
      %v432 = vld [vmem:[%s428 + $0xc] sm:$0xf]
      %v433 = vld [vmem:[%s428 + $0x10] sm:$0xf]
      %v434 = vld [vmem:[%s428 + $0x14] sm:$0xf]
      %v435 = vld [vmem:[%s428 + $0x18] sm:$0xf]
      %v436 = vld [vmem:[%s428 + $0x1c] sm:$0xf]
      %v438 = vunpack.c.l.b16 %v378
      %v439 = vpack.c.b16 %v438, %v438
      %v441 = vshrl.u32 %v439, 16
      %v451 = vunpack.c.l.b16 %v429
      %v452 = vunpack.c.l.b16 %v430
      %v453 = vunpack.c.l.b16 %v431
      %v454 = vunpack.c.l.b16 %v432
      %v455 = vunpack.c.l.b16 %v433
      %v456 = vunpack.c.l.b16 %v434
      %v457 = vunpack.c.l.b16 %v435
      %v458 = vunpack.c.l.b16 %v436
      %v459 = vpack.c.b16 %v452, %v451
      %v460 = vpack.c.b16 %v454, %v453
      %v461 = vpack.c.b16 %v456, %v455
      %v462 = vpack.c.b16 %v458, %v457
      %v468 = vsel %vm346, %v441, 0
      %470 = vmatpush.bf16.msra.mxu0 0
      %471 = vmatpush.bf16.msra.mxu0 0
      %472 = vmatpush.bf16.msra.mxu0 0
      %473 = vmatpush.bf16.msra.mxu0 0
      %474 = vmatpush.bf16.msra.mxu0 %v462
      %475 = vmatpush.bf16.msra.mxu0 %v461
      %476 = vmatpush.bf16.msra.mxu0 %v460
      %477 = vmatpush.bf16.msra.mxu0 %v459
      %478 = vmatmul.bf16.gmra.mxu0 %v468
      %v479 = vpop.f32.mrf.mxu0
      %v480 = vadd.f32 0.0, %v479
      %v481 = vpop.f32.mrf.mxu0
      %482 = vdwg.mxu0
      %v483 = vadd.f32 %v427, %v480
      %v484 = vld [vmem:[#allocation2] sm:$0x2]
      %s485 = scalar_lea.vmem %s4, 64
      %v486 = vld [vmem:[%s485] sm:$0xf]
      %v487 = vld [vmem:[%s485 + $0x4] sm:$0xf]
      %v488 = vld [vmem:[%s485 + $0x8] sm:$0xf]
      %v489 = vld [vmem:[%s485 + $0xc] sm:$0xf]
      %v490 = vld [vmem:[%s485 + $0x10] sm:$0xf]
      %v491 = vld [vmem:[%s485 + $0x14] sm:$0xf]
      %v492 = vld [vmem:[%s485 + $0x18] sm:$0xf]
      %v493 = vld [vmem:[%s485 + $0x1c] sm:$0xf]
      %v495 = vunpack.c.l.b16 %v484
      %v496 = vpack.c.b16 %v495, %v495
      %v497 = vrot.slane %v496, 1
      %v506 = vunpack.c.l.b16 %v486
      %v507 = vunpack.c.l.b16 %v487
      %v508 = vunpack.c.l.b16 %v488
      %v509 = vunpack.c.l.b16 %v489
      %v510 = vunpack.c.l.b16 %v490
      %v511 = vunpack.c.l.b16 %v491
      %v512 = vunpack.c.l.b16 %v492
      %v513 = vunpack.c.l.b16 %v493
      %v514 = vpack.c.b16 %v507, %v506
      %v515 = vpack.c.b16 %v509, %v508
      %v516 = vpack.c.b16 %v511, %v510
      %v517 = vpack.c.b16 %v513, %v512
      %v523 = vsel %vm346, %v497, 0
      %525 = vmatpush.bf16.msra.mxu0 0
      %526 = vmatpush.bf16.msra.mxu0 0
      %527 = vmatpush.bf16.msra.mxu0 0
      %528 = vmatpush.bf16.msra.mxu0 0
      %529 = vmatpush.bf16.msra.mxu0 %v517
      %530 = vmatpush.bf16.msra.mxu0 %v516
      %531 = vmatpush.bf16.msra.mxu0 %v515
      %532 = vmatpush.bf16.msra.mxu0 %v514
      %533 = vmatmul.bf16.gmra.mxu0 %v523
      %v534 = vpop.f32.mrf.mxu0
      %v535 = vadd.f32 0.0, %v534
      %v536 = vpop.f32.mrf.mxu0
      %537 = vdwg.mxu0
      %v538 = vadd.f32 %v483, %v535
      %s539 = scalar_lea.vmem %s4, 96
      %v540 = vld [vmem:[%s539] sm:$0xf]
      %v541 = vld [vmem:[%s539 + $0x4] sm:$0xf]
      %v542 = vld [vmem:[%s539 + $0x8] sm:$0xf]
      %v543 = vld [vmem:[%s539 + $0xc] sm:$0xf]
      %v544 = vld [vmem:[%s539 + $0x10] sm:$0xf]
      %v545 = vld [vmem:[%s539 + $0x14] sm:$0xf]
      %v546 = vld [vmem:[%s539 + $0x18] sm:$0xf]
      %v547 = vld [vmem:[%s539 + $0x1c] sm:$0xf]
      %v549 = vshrl.u32 %v496, 16
      %v551 = vrot.slane %v549, 1
      %v560 = vunpack.c.l.b16 %v540
      %v561 = vunpack.c.l.b16 %v541
      %v562 = vunpack.c.l.b16 %v542
      %v563 = vunpack.c.l.b16 %v543
      %v564 = vunpack.c.l.b16 %v544
      %v565 = vunpack.c.l.b16 %v545
      %v566 = vunpack.c.l.b16 %v546
      %v567 = vunpack.c.l.b16 %v547
      %v568 = vpack.c.b16 %v561, %v560
      %v569 = vpack.c.b16 %v563, %v562
      %v570 = vpack.c.b16 %v565, %v564
      %v571 = vpack.c.b16 %v567, %v566
      %v577 = vsel %vm346, %v551, 0
      %579 = vmatpush.bf16.msra.mxu0 0
      %580 = vmatpush.bf16.msra.mxu0 0
      %581 = vmatpush.bf16.msra.mxu0 0
      %582 = vmatpush.bf16.msra.mxu0 0
      %583 = vmatpush.bf16.msra.mxu0 %v571
      %584 = vmatpush.bf16.msra.mxu0 %v570
      %585 = vmatpush.bf16.msra.mxu0 %v569
      %586 = vmatpush.bf16.msra.mxu0 %v568
      %587 = vmatmul.bf16.gmra.mxu0 %v577
      %v588 = vpop.f32.mrf.mxu0
      %v589 = vadd.f32 0.0, %v588
      %v590 = vpop.f32.mrf.mxu0
      %591 = vdwg.mxu0
      %v592 = vadd.f32 %v538, %v589
      %v593 = vld [vmem:[#allocation2] sm:$0x4]
      %s594 = scalar_lea.vmem %s4, 128
      %v595 = vld [vmem:[%s594] sm:$0xf]
      %v596 = vld [vmem:[%s594 + $0x4] sm:$0xf]
      %v597 = vld [vmem:[%s594 + $0x8] sm:$0xf]
      %v598 = vld [vmem:[%s594 + $0xc] sm:$0xf]
      %v599 = vld [vmem:[%s594 + $0x10] sm:$0xf]
      %v600 = vld [vmem:[%s594 + $0x14] sm:$0xf]
      %v601 = vld [vmem:[%s594 + $0x18] sm:$0xf]
      %v602 = vld [vmem:[%s594 + $0x1c] sm:$0xf]
      %v604 = vunpack.c.l.b16 %v593
      %v605 = vpack.c.b16 %v604, %v604
      %v606 = vrot.slane %v605, 2
      %v615 = vunpack.c.l.b16 %v595
      %v616 = vunpack.c.l.b16 %v596
      %v617 = vunpack.c.l.b16 %v597
      %v618 = vunpack.c.l.b16 %v598
      %v619 = vunpack.c.l.b16 %v599
      %v620 = vunpack.c.l.b16 %v600
      %v621 = vunpack.c.l.b16 %v601
      %v622 = vunpack.c.l.b16 %v602
      %v623 = vpack.c.b16 %v616, %v615
      %v624 = vpack.c.b16 %v618, %v617
      %v625 = vpack.c.b16 %v620, %v619
      %v626 = vpack.c.b16 %v622, %v621
      %v632 = vsel %vm346, %v606, 0
      %634 = vmatpush.bf16.msra.mxu0 0
      %635 = vmatpush.bf16.msra.mxu0 0
      %636 = vmatpush.bf16.msra.mxu0 0
      %637 = vmatpush.bf16.msra.mxu0 0
      %638 = vmatpush.bf16.msra.mxu0 %v626
      %639 = vmatpush.bf16.msra.mxu0 %v625
      %640 = vmatpush.bf16.msra.mxu0 %v624
      %641 = vmatpush.bf16.msra.mxu0 %v623
      %642 = vmatmul.bf16.gmra.mxu0 %v632
      %v643 = vpop.f32.mrf.mxu0
      %v644 = vadd.f32 0.0, %v643
      %v645 = vpop.f32.mrf.mxu0
      %646 = vdwg.mxu0
      %v647 = vadd.f32 %v592, %v644
      %s648 = scalar_lea.vmem %s4, 160
      %v649 = vld [vmem:[%s648] sm:$0xf]
      %v650 = vld [vmem:[%s648 + $0x4] sm:$0xf]
      %v651 = vld [vmem:[%s648 + $0x8] sm:$0xf]
      %v652 = vld [vmem:[%s648 + $0xc] sm:$0xf]
      %v653 = vld [vmem:[%s648 + $0x10] sm:$0xf]
      %v654 = vld [vmem:[%s648 + $0x14] sm:$0xf]
      %v655 = vld [vmem:[%s648 + $0x18] sm:$0xf]
      %v656 = vld [vmem:[%s648 + $0x1c] sm:$0xf]
      %v658 = vshrl.u32 %v605, 16
      %v660 = vrot.slane %v658, 2
      %v669 = vunpack.c.l.b16 %v649
      %v670 = vunpack.c.l.b16 %v650
      %v671 = vunpack.c.l.b16 %v651
      %v672 = vunpack.c.l.b16 %v652
      %v673 = vunpack.c.l.b16 %v653
      %v674 = vunpack.c.l.b16 %v654
      %v675 = vunpack.c.l.b16 %v655
      %v676 = vunpack.c.l.b16 %v656
      %v677 = vpack.c.b16 %v670, %v669
      %v678 = vpack.c.b16 %v672, %v671
      %v679 = vpack.c.b16 %v674, %v673
      %v680 = vpack.c.b16 %v676, %v675
      %v686 = vsel %vm346, %v660, 0
      %688 = vmatpush.bf16.msra.mxu0 0
      %689 = vmatpush.bf16.msra.mxu0 0
      %690 = vmatpush.bf16.msra.mxu0 0
      %691 = vmatpush.bf16.msra.mxu0 0
      %692 = vmatpush.bf16.msra.mxu0 %v680
      %693 = vmatpush.bf16.msra.mxu0 %v679
      %694 = vmatpush.bf16.msra.mxu0 %v678
      %695 = vmatpush.bf16.msra.mxu0 %v677
      %696 = vmatmul.bf16.gmra.mxu0 %v686
      %v697 = vpop.f32.mrf.mxu0
      %v698 = vadd.f32 0.0, %v697
      %v699 = vpop.f32.mrf.mxu0
      %700 = vdwg.mxu0
      %v701 = vadd.f32 %v647, %v698
      %v702 = vld [vmem:[#allocation2] sm:$0x8]
      %s703 = scalar_lea.vmem %s4, 192
      %v704 = vld [vmem:[%s703] sm:$0xf]
      %v705 = vld [vmem:[%s703 + $0x4] sm:$0xf]
      %v706 = vld [vmem:[%s703 + $0x8] sm:$0xf]
      %v707 = vld [vmem:[%s703 + $0xc] sm:$0xf]
      %v708 = vld [vmem:[%s703 + $0x10] sm:$0xf]
      %v709 = vld [vmem:[%s703 + $0x14] sm:$0xf]
      %v710 = vld [vmem:[%s703 + $0x18] sm:$0xf]
      %v711 = vld [vmem:[%s703 + $0x1c] sm:$0xf]
      %v713 = vunpack.c.l.b16 %v702
      %v714 = vpack.c.b16 %v713, %v713
      %v715 = vrot.slane %v714, 3
      %v724 = vunpack.c.l.b16 %v704
      %v725 = vunpack.c.l.b16 %v705
      %v726 = vunpack.c.l.b16 %v706
      %v727 = vunpack.c.l.b16 %v707
      %v728 = vunpack.c.l.b16 %v708
      %v729 = vunpack.c.l.b16 %v709
      %v730 = vunpack.c.l.b16 %v710
      %v731 = vunpack.c.l.b16 %v711
      %v732 = vpack.c.b16 %v725, %v724
      %v733 = vpack.c.b16 %v727, %v726
      %v734 = vpack.c.b16 %v729, %v728
      %v735 = vpack.c.b16 %v731, %v730
      %v741 = vsel %vm346, %v715, 0
      %743 = vmatpush.bf16.msra.mxu0 0
      %744 = vmatpush.bf16.msra.mxu0 0
      %745 = vmatpush.bf16.msra.mxu0 0
      %746 = vmatpush.bf16.msra.mxu0 0
      %747 = vmatpush.bf16.msra.mxu0 %v735
      %748 = vmatpush.bf16.msra.mxu0 %v734
      %749 = vmatpush.bf16.msra.mxu0 %v733
      %750 = vmatpush.bf16.msra.mxu0 %v732
      %751 = vmatmul.bf16.gmra.mxu0 %v741
      %v752 = vpop.f32.mrf.mxu0
      %v753 = vadd.f32 0.0, %v752
      %v754 = vpop.f32.mrf.mxu0
      %755 = vdwg.mxu0
      %v756 = vadd.f32 %v701, %v753
      %s757 = scalar_lea.vmem %s4, 224
      %v758 = vld [vmem:[%s757] sm:$0xf]
      %v759 = vld [vmem:[%s757 + $0x4] sm:$0xf]
      %v760 = vld [vmem:[%s757 + $0x8] sm:$0xf]
      %v761 = vld [vmem:[%s757 + $0xc] sm:$0xf]
      %v762 = vld [vmem:[%s757 + $0x10] sm:$0xf]
      %v763 = vld [vmem:[%s757 + $0x14] sm:$0xf]
      %v764 = vld [vmem:[%s757 + $0x18] sm:$0xf]
      %v765 = vld [vmem:[%s757 + $0x1c] sm:$0xf]
      %v767 = vshrl.u32 %v714, 16
      %v769 = vrot.slane %v767, 3
      %v778 = vunpack.c.l.b16 %v758
      %v779 = vunpack.c.l.b16 %v759
      %v780 = vunpack.c.l.b16 %v760
      %v781 = vunpack.c.l.b16 %v761
      %v782 = vunpack.c.l.b16 %v762
      %v783 = vunpack.c.l.b16 %v763
      %v784 = vunpack.c.l.b16 %v764
      %v785 = vunpack.c.l.b16 %v765
      %v786 = vpack.c.b16 %v779, %v778
      %v787 = vpack.c.b16 %v781, %v780
      %v788 = vpack.c.b16 %v783, %v782
      %v789 = vpack.c.b16 %v785, %v784
      %v795 = vsel %vm346, %v769, 0
      %797 = vmatpush.bf16.msra.mxu0 0
      %798 = vmatpush.bf16.msra.mxu0 0
      %799 = vmatpush.bf16.msra.mxu0 0
      %800 = vmatpush.bf16.msra.mxu0 0
      %801 = vmatpush.bf16.msra.mxu0 %v789
      %802 = vmatpush.bf16.msra.mxu0 %v788
      %803 = vmatpush.bf16.msra.mxu0 %v787
      %804 = vmatpush.bf16.msra.mxu0 %v786
      %805 = vmatmul.bf16.gmra.mxu0 %v795
      %v806 = vpop.f32.mrf.mxu0
      %v807 = vadd.f32 0.0, %v806
      %v808 = vpop.f32.mrf.mxu0
      %809 = vdwg.mxu0
      %v810 = vadd.f32 %v756, %v807
      %v811 = vld [vmem:[#allocation2 + $0x4] sm:$0x1]
      %s812 = scalar_lea.vmem %s4, 256
      %v813 = vld [vmem:[%s812] sm:$0xf]
      %v814 = vld [vmem:[%s812 + $0x4] sm:$0xf]
      %v815 = vld [vmem:[%s812 + $0x8] sm:$0xf]
      %v816 = vld [vmem:[%s812 + $0xc] sm:$0xf]
      %v817 = vld [vmem:[%s812 + $0x10] sm:$0xf]
      %v818 = vld [vmem:[%s812 + $0x14] sm:$0xf]
      %v819 = vld [vmem:[%s812 + $0x18] sm:$0xf]
      %v820 = vld [vmem:[%s812 + $0x1c] sm:$0xf]
      %v829 = vunpack.c.l.b16 %v813
      %v830 = vunpack.c.l.b16 %v814
      %v831 = vunpack.c.l.b16 %v815
      %v832 = vunpack.c.l.b16 %v816
      %v833 = vunpack.c.l.b16 %v817
      %v834 = vunpack.c.l.b16 %v818
      %v835 = vunpack.c.l.b16 %v819
      %v836 = vunpack.c.l.b16 %v820
      %v837 = vpack.c.b16 %v830, %v829
      %v838 = vpack.c.b16 %v832, %v831
      %v839 = vpack.c.b16 %v834, %v833
      %v840 = vpack.c.b16 %v836, %v835
      %v846 = vsel %vm346, %v811, 0
      %848 = vmatpush.bf16.msra.mxu0 0
      %849 = vmatpush.bf16.msra.mxu0 0
      %850 = vmatpush.bf16.msra.mxu0 0
      %851 = vmatpush.bf16.msra.mxu0 0
      %852 = vmatpush.bf16.msra.mxu0 %v840
      %853 = vmatpush.bf16.msra.mxu0 %v839
      %854 = vmatpush.bf16.msra.mxu0 %v838
      %855 = vmatpush.bf16.msra.mxu0 %v837
      %856 = vmatmul.bf16.gmra.mxu0 %v846
      %v857 = vpop.f32.mrf.mxu0
      %v858 = vadd.f32 0.0, %v857
      %v859 = vpop.f32.mrf.mxu0
      %860 = vdwg.mxu0
      %v861 = vadd.f32 %v810, %v858
      %v862 = vpack.c.bf16 %v861, %v861
      %v863 = vld [vmem:[%s301] sm:$0x1]
      %v864 = vsel %vm372, %v862, %v863
      %865 = vst [vmem:[%s301] sm:$0x1] %v864
      %p866 = scmp.lt.s32.totalorder %s19, 3
      %s867 = scalar_select %p866, %s19, 3
      %s868 = scalar_lea.vmem %s8, %s867
      // Predicated region
      $region53: #{combine_forward.7} parent=51 // pred_check
        %p869 = pneg %p210
      $region54: #{combine_forward.7} parent=51 // pred_check_branch
        %871 = sbr.rel (%p869) target = $region56
      $region55: #{combine_forward.7} parent=51 // pred_region
        _
      $region56: #{combine_forward.7} parent=51 // pred_fallthru
        _
    $region52: #{combine_forward.7} parent=5 // pred_fallthru
      _
    %p872 = scmp.le.s32.totalorder 2, %s14
    // Predicated region
    $region57: #{combine_forward.7} parent=5 // pred_check
      %p873 = pneg %p872
    $region58: #{combine_forward.7} parent=5 // pred_check_branch
      %875 = sbr.rel (%p873) target = $region60
    $region59: #{combine_forward.7} parent=5 // pred_region
      %s876 = ssub.s32 %s14, 2
      // Predicated region
      $region61: #{combine_forward.7} parent=59 // pred_check
        %p877 = pneg %p216
      $region62: #{combine_forward.7} parent=59 // pred_check_branch
        %879 = sbr.rel (%p877) target = $region64
      $region63: #{combine_forward.7} parent=59 // pred_region
        %p880 = scmp.lt.s32.totalorder %s20, 3
        %s881 = scalar_select %p880, %s20, 3
        %s882 = scalar_lea.vmem %s8, %s881
      $region64: #{combine_forward.7} parent=59 // pred_fallthru
        _
    $region60: #{combine_forward.7} parent=5 // pred_fallthru
      _
  $region6: #{combine_forward.7} parent=0 // loop_footer
    %s18 = sadd.s32 1, %s14
  $region7: #{combine_forward.7} parent=0 // loop_footer_branch
    %13 = sbr.rel target = $region3
  $region8: #{combine_forward.7} parent=0 // loop_exit
    _

</llo_original>
